<compile_context>
chip_gen: v7x
topology: tpu7x:2x2x1
jax: 0.10.0
libtpu: 0.0.40
codegen_flags: <defaults>
</compile_context>

<pallas_src>
import functools

import numpy as np
import jax
import jax.numpy as jnp
from jax.experimental import pallas as pl
from jax.experimental.pallas import tpu as pltpu


# ----------------------------------------------------------------------------
# Helpers
# ----------------------------------------------------------------------------
MAX_TM = 1024
_PAD_MODES = {"zero": "constant", "reflect": "reflect", "replicate": "edge"}


def _round_up(x, m):
    return ((x + m - 1) // m) * m


def _m_tiles(M):
    """Choose (TM, Mp, nblocks) for the M (rows) grid axis."""
    nb = max(1, -(-M // MAX_TM))
    if M >= 256:              # keep >=2 parallel blocks so both v7x TCs get work
        nb = max(nb, 2)
    tm = _round_up(-(-M // nb), 16)   # sublane/bf16-pack friendly
    return tm, tm * nb, nb


# ----------------------------------------------------------------------------
# Pallas kernels: (patches @ W) * scale + shift, activation, optional skip add
# ----------------------------------------------------------------------------
def _conv_mm_kernel(p_ref, w_ref, sc_ref, sh_ref, o_ref, *, act):
    y = jnp.dot(p_ref[...], w_ref[...], preferred_element_type=jnp.float32)
    y = y * sc_ref[...] + sh_ref[...]
    if act == "relu":
        y = jnp.maximum(y, 0.0)
    elif act == "lrelu":
        y = jnp.where(y > 0.0, y, 0.2 * y)
    elif act == "tanh":
        y = jnp.tanh(y)
    o_ref[...] = y


def _conv_mm_skip_kernel(p_ref, w_ref, sc_ref, sh_ref, skip_ref, o_ref, *, act):
    y = jnp.dot(p_ref[...], w_ref[...], preferred_element_type=jnp.float32)
    y = y * sc_ref[...] + sh_ref[...]
    if act == "relu":
        y = jnp.maximum(y, 0.0)
    elif act == "lrelu":
        y = jnp.where(y > 0.0, y, 0.2 * y)
    elif act == "tanh":
        y = jnp.tanh(y)
    o_ref[...] = y + skip_ref[...]


def matmul_affine_act(patches, w, sc, sh, act, skip2d=None):
    """patches: (M, K) f32; w: (Kp, Np) bf16 prepared; sc/sh: (1, Np) f32.

    Returns the padded (Mp, Np) f32 result; caller slices [:M, :cout]."""
    M, K = patches.shape
    Kp, Np = w.shape
    TM, Mp, nb = _m_tiles(M)

    # Single fused pad+cast of patches (no 128-multiple K pad; bf16 halves bytes).
    p = jnp.pad(patches.astype(jnp.bfloat16), ((0, Mp - M), (0, Kp - K)))

    args = [p, w, sc, sh]
    in_specs = [
        pl.BlockSpec((TM, Kp), lambda i: (i, 0)),
        pl.BlockSpec((Kp, Np), lambda i: (0, 0)),
        pl.BlockSpec((1, Np), lambda i: (0, 0)),
        pl.BlockSpec((1, Np), lambda i: (0, 0)),
    ]
    if skip2d is not None:
        sM, sC = skip2d.shape
        skip_p = jnp.pad(skip2d.astype(jnp.float32), ((0, Mp - sM), (0, Np - sC)))
        args.append(skip_p)
        in_specs.append(pl.BlockSpec((TM, Np), lambda i: (i, 0)))
        kern = functools.partial(_conv_mm_skip_kernel, act=act)
    else:
        kern = functools.partial(_conv_mm_kernel, act=act)

    bytes_acc = (Mp * Kp * 2 + Kp * Np * 2 + 2 * Np * 4 + Mp * Np * 4
                 + (Mp * Np * 4 if skip2d is not None else 0))
    cost = pl.CostEstimate(
        flops=2 * Mp * Kp * Np,
        transcendentals=Mp * Np if act == "tanh" else 0,
        bytes_accessed=bytes_acc,
    )

    out = pl.pallas_call(
        kern,
        out_shape=jax.ShapeDtypeStruct((Mp, Np), jnp.float32),
        grid=(nb,),
        in_specs=in_specs,
        out_specs=pl.BlockSpec((TM, Np), lambda i: (i, 0)),
        compiler_params=pltpu.CompilerParams(dimension_semantics=("parallel",)),
        cost_estimate=cost,
    )(*args)
    return out


# ----------------------------------------------------------------------------
# Conv / ConvTranspose built on the Pallas matmul kernel
# ----------------------------------------------------------------------------
def _im2col(x, kh, kw, stride):
    """x: (N, H, W, C) already padded. Returns (N*Ho*Wo, kh*kw*C), (N, Ho, Wo)."""
    N, H, W, C = x.shape
    Ho = (H - kh) // stride + 1
    Wo = (W - kw) // stride + 1
    cols = []
    for i in range(kh):
        for j in range(kw):
            cols.append(
                x[:, i:i + stride * (Ho - 1) + 1:stride,
                     j:j + stride * (Wo - 1) + 1:stride, :]
            )
    patches = jnp.stack(cols, axis=3)          # (N, Ho, Wo, kh*kw, C)
    return patches.reshape(N * Ho * Wo, kh * kw * C), (N, Ho, Wo)


def conv2d_p(x, layer, *, kh, kw, cout, stride=1, pad=0, pad_mode="zero",
             act="none", skip=None):
    """x: NHWC; layer: prepared {w (Kp,Np) bf16, sc, sh (1,Np) f32}."""
    if pad > 0:
        x = jnp.pad(x, ((0, 0), (pad, pad), (pad, pad), (0, 0)),
                    mode=_PAD_MODES[pad_mode])
    patches, (N, Ho, Wo) = _im2col(x, kh, kw, stride)
    skip2d = skip.reshape(N * Ho * Wo, skip.shape[-1]) if skip is not None else None
    out = matmul_affine_act(patches, layer["w"], layer["sc"], layer["sh"], act, skip2d)
    M = N * Ho * Wo
    return out[:M, :cout].reshape(N, Ho, Wo, cout)


def conv_transpose2d_p(x, layer, *, cout, act):
    """ConvTranspose2d(k=3, s=2, p=1, output_padding=1) via sub-pixel decomposition:
    one 2x2 valid conv (combined weight, 4*cout output channels) on the undilated
    input padded by 1 on bottom/right, then interleave the 2x2 sub-pixel outputs."""
    N, H, W, C = x.shape
    xe = jnp.pad(x, ((0, 0), (0, 1), (0, 1), (0, 0)))
    patches, _ = _im2col(xe, 2, 2, 1)                    # (N*H*W, 4*C)
    out = matmul_affine_act(patches, layer["w"], layer["sc"], layer["sh"], act)
    M = N * H * W
    y = out[:M, :4 * cout].reshape(N, H, W, 2, 2, cout)   # (.., ry, rx, co)
    y = jnp.transpose(y, (0, 1, 3, 2, 4, 5)).reshape(N, 2 * H, 2 * W, cout)
    return y


# ----------------------------------------------------------------------------
# Raw parameter construction (deterministic, synthetic) + eval-mode BN fold
# ----------------------------------------------------------------------------
def _conv_p(key, c_out, c_in, kh, kw):
    k1, k2 = jax.random.split(key)
    fan_in = c_in * kh * kw
    return {
        "w": jax.random.normal(k1, (c_out, c_in, kh, kw), jnp.float32) / np.sqrt(fan_in),
        "b": 0.01 * jax.random.normal(k2, (c_out,), jnp.float32),
    }


def _tconv_p(key, c_in, c_out, kh, kw):
    k1, k2 = jax.random.split(key)
    fan_in = c_in * kh * kw
    return {
        "w": jax.random.normal(k1, (c_in, c_out, kh, kw), jnp.float32) / np.sqrt(fan_in),
        "b": 0.01 * jax.random.normal(k2, (c_out,), jnp.float32),
    }


def _bn_p(key, c):
    k1, k2 = jax.random.split(key)
    return {
        "gamma": 1.0 + 0.1 * jax.random.normal(k1, (c,), jnp.float32),
        "beta": 0.1 * jax.random.normal(k2, (c,), jnp.float32),
        "mean": jnp.zeros((c,), jnp.float32),
        "var": jnp.ones((c,), jnp.float32),
        "eps": 1e-5,
    }


def _fold(conv, bn=None):
    """Fold conv bias + eval-mode BN into per-channel (scale, shift)."""
    b = conv["b"]
    if bn is None:
        return jnp.ones_like(b), b
    scale = bn["gamma"] / jnp.sqrt(bn["var"] + bn["eps"])
    shift = bn["beta"] + (b - bn["mean"]) * scale
    return scale, shift


# ----------------------------------------------------------------------------
# One-time weight preprocessing (transpose / combine / pad / cast to bf16)
# ----------------------------------------------------------------------------
def _prep_conv(conv, bn=None):
    w = conv["w"]                                   # (cout, cin, kh, kw)
    cout, cin, kh, kw = w.shape
    K = kh * kw * cin
    Kp = _round_up(K, 16)
    Np = _round_up(cout, 128)
    w_mat = jnp.transpose(w, (2, 3, 1, 0)).reshape(K, cout)
    w_mat = jnp.pad(w_mat, ((0, Kp - K), (0, Np - cout))).astype(jnp.bfloat16)
    scale, shift = _fold(conv, bn)
    sc = jnp.pad(scale.reshape(1, cout), ((0, 0), (0, Np - cout))).astype(jnp.float32)
    sh = jnp.pad(shift.reshape(1, cout), ((0, 0), (0, Np - cout))).astype(jnp.float32)
    return {"w": w_mat, "sc": sc, "sh": sh}


def _prep_tconv(tconv, bn=None):
    """Build the combined 2x2 sub-pixel weight for ConvTranspose2d(3, s2, p1, op1).

    out[2y+ry, 2x+rx, co] = sum_{a,b in {0,1}} xe[y+a, x+b, :] @ W[a,b,:,ry,rx,co]
    with xe = x zero-padded by 1 on bottom/right."""
    w = tconv["w"]                                  # (cin, cout, 3, 3)
    cin, cout, kh, kw = w.shape
    assert kh == 3 and kw == 3
    wt = jnp.transpose(w, (2, 3, 0, 1))             # (ki, kj, cin, cout)
    comb = jnp.zeros((2, 2, cin, 2, 2, cout), jnp.float32)
    comb = comb.at[0, 0, :, 0, 0, :].set(wt[1, 1])
    comb = comb.at[0, 0, :, 0, 1, :].set(wt[1, 2])
    comb = comb.at[0, 1, :, 0, 1, :].set(wt[1, 0])
    comb = comb.at[0, 0, :, 1, 0, :].set(wt[2, 1])
    comb = comb.at[1, 0, :, 1, 0, :].set(wt[0, 1])
    comb = comb.at[0, 0, :, 1, 1, :].set(wt[2, 2])
    comb = comb.at[0, 1, :, 1, 1, :].set(wt[2, 0])
    comb = comb.at[1, 0, :, 1, 1, :].set(wt[0, 2])
    comb = comb.at[1, 1, :, 1, 1, :].set(wt[0, 0])
    K, N4 = 4 * cin, 4 * cout
    Kp = _round_up(K, 16)
    Np = _round_up(N4, 128)
    w_mat = comb.reshape(K, N4)
    w_mat = jnp.pad(w_mat, ((0, Kp - K), (0, Np - N4))).astype(jnp.bfloat16)
    scale, shift = _fold(tconv, bn)
    sc = jnp.pad(jnp.tile(scale.reshape(1, cout), (1, 4)),
                 ((0, 0), (0, Np - N4))).astype(jnp.float32)
    sh = jnp.pad(jnp.tile(shift.reshape(1, cout), (1, 4)),
                 ((0, 0), (0, Np - N4))).astype(jnp.float32)
    return {"w": w_mat, "sc": sc, "sh": sh}


def init_generator(key, input_ch):
    ks = jax.random.split(key, 32)
    p = {
        "init_conv": _conv_p(ks[0], 16, input_ch, 7, 7), "init_bn": _bn_p(ks[1], 16),
        "down1_conv": _conv_p(ks[2], 32, 16, 3, 3), "down1_bn": _bn_p(ks[3], 32),
        "down2_conv": _conv_p(ks[4], 64, 32, 3, 3), "down2_bn": _bn_p(ks[5], 64),
        "res": [],
        "up1_conv": _tconv_p(ks[6], 64, 32, 3, 3), "up1_bn": _bn_p(ks[7], 32),
        "up2_conv": _tconv_p(ks[8], 32, 16, 3, 3), "up2_bn": _bn_p(ks[9], 16),
        "out_conv": _conv_p(ks[10], input_ch, 16, 7, 7),
    }
    for r in range(3):
        base = 12 + 4 * r
        p["res"].append({
            "conv1": _conv_p(ks[base + 0], 64, 64, 3, 3), "bn1": _bn_p(ks[base + 1], 64),
            "conv2": _conv_p(ks[base + 2], 64, 64, 3, 3), "bn2": _bn_p(ks[base + 3], 64),
        })
    return p


def init_discriminator(key, input_ch):
    ks = jax.random.split(key, 16)
    return {
        "c1": _conv_p(ks[0], 16, input_ch, 7, 7),
        "c2": _conv_p(ks[1], 16, 16, 4, 4),
        "c3": _conv_p(ks[2], 32, 16, 4, 4), "bn3": _bn_p(ks[3], 32),
        "c4": _conv_p(ks[4], 64, 32, 4, 4), "bn4": _bn_p(ks[5], 64),
        "c5": _conv_p(ks[6], 128, 64, 4, 4), "bn5": _bn_p(ks[7], 128),
        "c6": _conv_p(ks[8], 1, 128, 4, 4),
    }


def prepare_generator(raw):
    return {
        "init": _prep_conv(raw["init_conv"], raw["init_bn"]),
        "down1": _prep_conv(raw["down1_conv"], raw["down1_bn"]),
        "down2": _prep_conv(raw["down2_conv"], raw["down2_bn"]),
        "res": [{"c1": _prep_conv(rb["conv1"], rb["bn1"]),
                 "c2": _prep_conv(rb["conv2"], rb["bn2"])} for rb in raw["res"]],
        "up1": _prep_tconv(raw["up1_conv"], raw["up1_bn"]),
        "up2": _prep_tconv(raw["up2_conv"], raw["up2_bn"]),
        "out": _prep_conv(raw["out_conv"], None),
    }


def prepare_discriminator(raw):
    return {
        "c1": _prep_conv(raw["c1"], None),
        "c2": _prep_conv(raw["c2"], None),
        "c3": _prep_conv(raw["c3"], raw["bn3"]),
        "c4": _prep_conv(raw["c4"], raw["bn4"]),
        "c5": _prep_conv(raw["c5"], raw["bn5"]),
        "c6": _prep_conv(raw["c6"], None),
    }


# ----------------------------------------------------------------------------
# Network forward passes (jitted once; all conv compute runs in the Pallas kernel)
# ----------------------------------------------------------------------------
@functools.partial(jax.jit, static_argnames=("input_ch",))
def generator_apply(x_nchw, p, *, input_ch):
    x = jnp.transpose(x_nchw, (0, 2, 3, 1))                      # NCHW -> NHWC
    h = conv2d_p(x, p["init"], kh=7, kw=7, cout=16, stride=1, pad=3,
                 pad_mode="reflect", act="relu")
    h = conv2d_p(h, p["down1"], kh=3, kw=3, cout=32, stride=2, pad=1, act="relu")
    h = conv2d_p(h, p["down2"], kh=3, kw=3, cout=64, stride=2, pad=1, act="relu")
    for rb in p["res"]:
        r = conv2d_p(h, rb["c1"], kh=3, kw=3, cout=64, stride=1, pad=1,
                     pad_mode="reflect", act="relu")
        # Dropout(0.5) is identity at inference; residual add fused in the kernel.
        h = conv2d_p(r, rb["c2"], kh=3, kw=3, cout=64, stride=1, pad=1,
                     pad_mode="reflect", act="none", skip=h)
    h = conv_transpose2d_p(h, p["up1"], cout=32, act="relu")
    h = conv_transpose2d_p(h, p["up2"], cout=16, act="relu")
    h = conv2d_p(h, p["out"], kh=7, kw=7, cout=input_ch, stride=1, pad=3,
                 pad_mode="reflect", act="tanh")
    return jnp.transpose(h, (0, 3, 1, 2))                        # NHWC -> NCHW


@jax.jit
def discriminator_apply(x_nchw, p):
    x = jnp.transpose(x_nchw, (0, 2, 3, 1))
    h = conv2d_p(x, p["c1"], kh=7, kw=7, cout=16, stride=1, pad=1,
                 pad_mode="replicate", act="lrelu")
    # Dropout(0.2) layers are identity at inference.
    h = conv2d_p(h, p["c2"], kh=4, kw=4, cout=16, stride=2, pad=1, act="lrelu")
    h = conv2d_p(h, p["c3"], kh=4, kw=4, cout=32, stride=2, pad=1, act="lrelu")
    h = conv2d_p(h, p["c4"], kh=4, kw=4, cout=64, stride=2, pad=1, act="lrelu")
    h = conv2d_p(h, p["c5"], kh=4, kw=4, cout=128, stride=1, pad=1, act="lrelu")
    h = conv2d_p(h, p["c6"], kh=4, kw=4, cout=1, stride=1, pad=1, act="none")
    return jnp.transpose(h, (0, 3, 1, 2))


class CycleGANPallas:
    """Pallas/JAX port of cycleGAN_model.forward(data_A, data_B, mode)."""

    def __init__(self, input_ch=3, seed=0):
        self.input_ch = input_ch
        kga, kgb, kda, kdb = jax.random.split(jax.random.PRNGKey(seed + 1), 4)
        # One-time weight preprocessing (transpose/pad/bf16) done here, not per call.
        self.gen = {"A": prepare_generator(init_generator(kga, input_ch)),
                    "B": prepare_generator(init_generator(kgb, input_ch))}
        self.dis = {"A": prepare_discriminator(init_discriminator(kda, input_ch)),
                    "B": prepare_discriminator(init_discriminator(kdb, input_ch))}
        # TODO(synk): optimizers / schedulers / loss terms (GANLoss, gradient
        # penalty, L1/MSE criteria) are training-time machinery, not part of
        # forward(); they are intentionally not ported.

    def forward(self, data_A, data_B, mode):
        if mode == "gen":
            A_out = generator_apply(data_A, self.gen["A"], input_ch=self.input_ch)
            B_out = generator_apply(data_B, self.gen["B"], input_ch=self.input_ch)
        elif mode == "dis":
            A_out = discriminator_apply(data_A, self.dis["A"])
            B_out = discriminator_apply(data_B, self.dis["B"])
        else:
            raise ValueError(mode)
        return A_out, B_out


if __name__ == "__main__":
    key = jax.random.PRNGKey(0)
    kA, kB = jax.random.split(key)
    # small shapes consistent with the module: NCHW, input_ch=3, 32x32 spatial
    data_A = jax.random.uniform(kA, (2, 3, 32, 32), jnp.float32)
    data_B = jax.random.uniform(kB, (2, 3, 32, 32), jnp.float32)

    model = CycleGANPallas(input_ch=3, seed=0)

    gen_A, gen_B = model.forward(data_A, data_B, "gen")
    dis_A, dis_B = model.forward(data_A, data_B, "dis")
    jax.block_until_ready((gen_A, gen_B, dis_A, dis_B))

    assert gen_A.shape == (2, 3, 32, 32) and gen_B.shape == (2, 3, 32, 32)
    assert dis_A.shape == (2, 1, 1, 1) and dis_B.shape == (2, 1, 1, 1)
    assert bool(jnp.all(jnp.isfinite(gen_A))) and bool(jnp.all(jnp.isfinite(dis_A)))
    print("KERNEL_OK")
</pallas_src>

<mosaic_0001>
module attributes {stable_mosaic.version = 11 : i64} {
  func.func @_conv_mm_kernel(%arg0: i32, %arg1: memref<1024x160xbf16, #tpu.memory_space<vmem>>, %arg2: memref<160x128xbf16, #tpu.memory_space<vmem>>, %arg3: memref<1x128xf32, #tpu.memory_space<vmem>>, %arg4: memref<1x128xf32, #tpu.memory_space<vmem>>, %arg5: memref<1024x128xf32, #tpu.memory_space<vmem>>) attributes {dimension_semantics = [#tpu.dimension_semantics<parallel>], iteration_bounds = array<i64: 2>, scalar_prefetch = 0 : i64, scratch_operands = 0 : i64, tpu.core_type = #tpu.core_type<tc>, window_params = [{transform_indices = @transform_0, window_bounds = array<i64: 1024, 160>}, {pipeline_mode = #tpu.pipeline_mode<synchronous>, transform_indices = @transform_1, window_bounds = array<i64: 160, 128>}, {pipeline_mode = #tpu.pipeline_mode<synchronous>, transform_indices = @transform_2, window_bounds = array<i64: 1, 128>}, {pipeline_mode = #tpu.pipeline_mode<synchronous>, transform_indices = @transform_3, window_bounds = array<i64: 1, 128>}, {transform_indices = @transform_4, window_bounds = array<i64: 1024, 128>}]} {
    %c0 = arith.constant 0 : index
    %c0_0 = arith.constant 0 : index
    %0 = vector.load %arg1[%c0, %c0_0] : memref<1024x160xbf16, #tpu.memory_space<vmem>>, vector<1024x160xbf16>
    %c0_1 = arith.constant 0 : index
    %c0_2 = arith.constant 0 : index
    %1 = vector.load %arg2[%c0_1, %c0_2] : memref<160x128xbf16, #tpu.memory_space<vmem>>, vector<160x128xbf16>
    %cst = arith.constant dense<0.000000e+00> : vector<1024x128xf32>
    %2 = tpu.matmul %0, %1, %cst {dimension_numbers = #tpu.dot_dimension_numbers<[1], [0], [0], [1], [0, 0, 1, 1], [], []>} : vector<1024x160xbf16>, vector<160x128xbf16>, vector<1024x128xf32> -> vector<1024x128xf32>
    %c0_3 = arith.constant 0 : index
    %c0_4 = arith.constant 0 : index
    %3 = vector.load %arg3[%c0_3, %c0_4] : memref<1x128xf32, #tpu.memory_space<vmem>>, vector<1x128xf32>
    %4 = vector.broadcast %3 : vector<1x128xf32> to vector<1024x128xf32>
    %5 = arith.mulf %2, %4 : vector<1024x128xf32>
    %c0_5 = arith.constant 0 : index
    %c0_6 = arith.constant 0 : index
    %6 = vector.load %arg4[%c0_5, %c0_6] : memref<1x128xf32, #tpu.memory_space<vmem>>, vector<1x128xf32>
    %7 = vector.broadcast %6 : vector<1x128xf32> to vector<1024x128xf32>
    %8 = arith.addf %5, %7 : vector<1024x128xf32>
    %cst_7 = arith.constant 0.000000e+00 : f32
    %9 = vector.broadcast %cst_7 : f32 to vector<1024x128xf32>
    %10 = arith.maximumf %8, %9 : vector<1024x128xf32>
    %c0_8 = arith.constant 0 : index
    %c0_9 = arith.constant 0 : index
    %11 = vector.load %arg5[%c0_8, %c0_9] : memref<1024x128xf32, #tpu.memory_space<vmem>>, vector<1024x128xf32>
    tpu.vector_store %arg5[%c0_8, %c0_9], %10 {strides = array<i32>} : memref<1024x128xf32, #tpu.memory_space<vmem>>, vector<1024x128xf32>,
    return
  }
  func.func @transform_0(%arg0: i32) -> (i32, i32) {
    %c0_i32 = arith.constant 0 : i32
    %c0_i32_0 = arith.constant 0 : i32
    return %arg0, %c0_i32 : i32, i32
  }
  func.func @transform_1(%arg0: i32) -> (i32, i32) {
    %c0_i32 = arith.constant 0 : i32
    %c0_i32_0 = arith.constant 0 : i32
    %c0_i32_1 = arith.constant 0 : i32
    return %c0_i32, %c0_i32_0 : i32, i32
  }
  func.func @transform_2(%arg0: i32) -> (i32, i32) {
    %c0_i32 = arith.constant 0 : i32
    %c0_i32_0 = arith.constant 0 : i32
    %c0_i32_1 = arith.constant 0 : i32
    return %c0_i32, %c0_i32_0 : i32, i32
  }
  func.func @transform_3(%arg0: i32) -> (i32, i32) {
    %c0_i32 = arith.constant 0 : i32
    %c0_i32_0 = arith.constant 0 : i32
    %c0_i32_1 = arith.constant 0 : i32
    return %c0_i32, %c0_i32_0 : i32, i32
  }
  func.func @transform_4(%arg0: i32) -> (i32, i32) {
    %c0_i32 = arith.constant 0 : i32
    %c0_i32_0 = arith.constant 0 : i32
    return %arg0, %c0_i32 : i32, i32
  }
}

module attributes {stable_mosaic.version = 11 : i64} {
  func.func @_conv_mm_kernel(%arg0: i32, %arg1: memref<256x144xbf16, #tpu.memory_space<vmem>>, %arg2: memref<144x128xbf16, #tpu.memory_space<vmem>>, %arg3: memref<1x128xf32, #tpu.memory_space<vmem>>, %arg4: memref<1x128xf32, #tpu.memory_space<vmem>>, %arg5: memref<256x128xf32, #tpu.memory_space<vmem>>) attributes {dimension_semantics = [#tpu.dimension_semantics<parallel>], iteration_bounds = array<i64: 2>, scalar_prefetch = 0 : i64, scratch_operands = 0 : i64, tpu.core_type = #tpu.core_type<tc>, window_params = [{transform_indices = @transform_0, window_bounds = array<i64: 256, 144>}, {pipeline_mode = #tpu.pipeline_mode<synchronous>, transform_indices = @transform_1, window_bounds = array<i64: 144, 128>}, {pipeline_mode = #tpu.pipeline_mode<synchronous>, transform_indices = @transform_2, window_bounds = array<i64: 1, 128>}, {pipeline_mode = #tpu.pipeline_mode<synchronous>, transform_indices = @transform_3, window_bounds = array<i64: 1, 128>}, {transform_indices = @transform_4, window_bounds = array<i64: 256, 128>}]} {
    %c0 = arith.constant 0 : index
    %c0_0 = arith.constant 0 : index
    %0 = vector.load %arg1[%c0, %c0_0] : memref<256x144xbf16, #tpu.memory_space<vmem>>, vector<256x144xbf16>
    %c0_1 = arith.constant 0 : index
    %c0_2 = arith.constant 0 : index
    %1 = vector.load %arg2[%c0_1, %c0_2] : memref<144x128xbf16, #tpu.memory_space<vmem>>, vector<144x128xbf16>
    %cst = arith.constant dense<0.000000e+00> : vector<256x128xf32>
    %2 = tpu.matmul %0, %1, %cst {dimension_numbers = #tpu.dot_dimension_numbers<[1], [0], [0], [1], [0, 0, 1, 1], [], []>} : vector<256x144xbf16>, vector<144x128xbf16>, vector<256x128xf32> -> vector<256x128xf32>
    %c0_3 = arith.constant 0 : index
    %c0_4 = arith.constant 0 : index
    %3 = vector.load %arg3[%c0_3, %c0_4] : memref<1x128xf32, #tpu.memory_space<vmem>>, vector<1x128xf32>
    %4 = vector.broadcast %3 : vector<1x128xf32> to vector<256x128xf32>
    %5 = arith.mulf %2, %4 : vector<256x128xf32>
    %c0_5 = arith.constant 0 : index
    %c0_6 = arith.constant 0 : index
    %6 = vector.load %arg4[%c0_5, %c0_6] : memref<1x128xf32, #tpu.memory_space<vmem>>, vector<1x128xf32>
    %7 = vector.broadcast %6 : vector<1x128xf32> to vector<256x128xf32>
    %8 = arith.addf %5, %7 : vector<256x128xf32>
    %cst_7 = arith.constant 0.000000e+00 : f32
    %9 = vector.broadcast %cst_7 : f32 to vector<256x128xf32>
    %10 = arith.maximumf %8, %9 : vector<256x128xf32>
    %c0_8 = arith.constant 0 : index
    %c0_9 = arith.constant 0 : index
    %11 = vector.load %arg5[%c0_8, %c0_9] : memref<256x128xf32, #tpu.memory_space<vmem>>, vector<256x128xf32>
    tpu.vector_store %arg5[%c0_8, %c0_9], %10 {strides = array<i32>} : memref<256x128xf32, #tpu.memory_space<vmem>>, vector<256x128xf32>,
    return
  }
  func.func @transform_0(%arg0: i32) -> (i32, i32) {
    %c0_i32 = arith.constant 0 : i32
    %c0_i32_0 = arith.constant 0 : i32
    return %arg0, %c0_i32 : i32, i32
  }
  func.func @transform_1(%arg0: i32) -> (i32, i32) {
    %c0_i32 = arith.constant 0 : i32
    %c0_i32_0 = arith.constant 0 : i32
    %c0_i32_1 = arith.constant 0 : i32
    return %c0_i32, %c0_i32_0 : i32, i32
  }
  func.func @transform_2(%arg0: i32) -> (i32, i32) {
    %c0_i32 = arith.constant 0 : i32
    %c0_i32_0 = arith.constant 0 : i32
    %c0_i32_1 = arith.constant 0 : i32
    return %c0_i32, %c0_i32_0 : i32, i32
  }
  func.func @transform_3(%arg0: i32) -> (i32, i32) {
    %c0_i32 = arith.constant 0 : i32
    %c0_i32_0 = arith.constant 0 : i32
    %c0_i32_1 = arith.constant 0 : i32
    return %c0_i32, %c0_i32_0 : i32, i32
  }
  func.func @transform_4(%arg0: i32) -> (i32, i32) {
    %c0_i32 = arith.constant 0 : i32
    %c0_i32_0 = arith.constant 0 : i32
    return %arg0, %c0_i32 : i32, i32
  }
}

module attributes {stable_mosaic.version = 11 : i64} {
  func.func @_conv_mm_kernel(%arg0: i32, %arg1: memref<128x288xbf16, #tpu.memory_space<vmem>>, %arg2: memref<288x128xbf16, #tpu.memory_space<vmem>>, %arg3: memref<1x128xf32, #tpu.memory_space<vmem>>, %arg4: memref<1x128xf32, #tpu.memory_space<vmem>>, %arg5: memref<128x128xf32, #tpu.memory_space<vmem>>) attributes {dimension_semantics = [#tpu.dimension_semantics<parallel>], iteration_bounds = array<i64: 1>, scalar_prefetch = 0 : i64, scratch_operands = 0 : i64, tpu.core_type = #tpu.core_type<tc>, window_params = [{transform_indices = @transform_0, window_bounds = array<i64: 128, 288>}, {pipeline_mode = #tpu.pipeline_mode<synchronous>, transform_indices = @transform_1, window_bounds = array<i64: 288, 128>}, {pipeline_mode = #tpu.pipeline_mode<synchronous>, transform_indices = @transform_2, window_bounds = array<i64: 1, 128>}, {pipeline_mode = #tpu.pipeline_mode<synchronous>, transform_indices = @transform_3, window_bounds = array<i64: 1, 128>}, {transform_indices = @transform_4, window_bounds = array<i64: 128, 128>}]} {
    %c0 = arith.constant 0 : index
    %c0_0 = arith.constant 0 : index
    %0 = vector.load %arg1[%c0, %c0_0] : memref<128x288xbf16, #tpu.memory_space<vmem>>, vector<128x288xbf16>
    %c0_1 = arith.constant 0 : index
    %c0_2 = arith.constant 0 : index
    %1 = vector.load %arg2[%c0_1, %c0_2] : memref<288x128xbf16, #tpu.memory_space<vmem>>, vector<288x128xbf16>
    %cst = arith.constant dense<0.000000e+00> : vector<128x128xf32>
    %2 = tpu.matmul %0, %1, %cst {dimension_numbers = #tpu.dot_dimension_numbers<[1], [0], [0], [1], [0, 0, 1, 1], [], []>} : vector<128x288xbf16>, vector<288x128xbf16>, vector<128x128xf32> -> vector<128x128xf32>
    %c0_3 = arith.constant 0 : index
    %c0_4 = arith.constant 0 : index
    %3 = vector.load %arg3[%c0_3, %c0_4] : memref<1x128xf32, #tpu.memory_space<vmem>>, vector<1x128xf32>
    %4 = vector.broadcast %3 : vector<1x128xf32> to vector<128x128xf32>
    %5 = arith.mulf %2, %4 : vector<128x128xf32>
    %c0_5 = arith.constant 0 : index
    %c0_6 = arith.constant 0 : index
    %6 = vector.load %arg4[%c0_5, %c0_6] : memref<1x128xf32, #tpu.memory_space<vmem>>, vector<1x128xf32>
    %7 = vector.broadcast %6 : vector<1x128xf32> to vector<128x128xf32>
    %8 = arith.addf %5, %7 : vector<128x128xf32>
    %cst_7 = arith.constant 0.000000e+00 : f32
    %9 = vector.broadcast %cst_7 : f32 to vector<128x128xf32>
    %10 = arith.maximumf %8, %9 : vector<128x128xf32>
    %c0_8 = arith.constant 0 : index
    %c0_9 = arith.constant 0 : index
    %11 = vector.load %arg5[%c0_8, %c0_9] : memref<128x128xf32, #tpu.memory_space<vmem>>, vector<128x128xf32>
    tpu.vector_store %arg5[%c0_8, %c0_9], %10 {strides = array<i32>} : memref<128x128xf32, #tpu.memory_space<vmem>>, vector<128x128xf32>,
    return
  }
  func.func @transform_0(%arg0: i32) -> (i32, i32) {
    %c0_i32 = arith.constant 0 : i32
    %c0_i32_0 = arith.constant 0 : i32
    return %arg0, %c0_i32 : i32, i32
  }
  func.func @transform_1(%arg0: i32) -> (i32, i32) {
    %c0_i32 = arith.constant 0 : i32
    %c0_i32_0 = arith.constant 0 : i32
    %c0_i32_1 = arith.constant 0 : i32
    return %c0_i32, %c0_i32_0 : i32, i32
  }
  func.func @transform_2(%arg0: i32) -> (i32, i32) {
    %c0_i32 = arith.constant 0 : i32
    %c0_i32_0 = arith.constant 0 : i32
    %c0_i32_1 = arith.constant 0 : i32
    return %c0_i32, %c0_i32_0 : i32, i32
  }
  func.func @transform_3(%arg0: i32) -> (i32, i32) {
    %c0_i32 = arith.constant 0 : i32
    %c0_i32_0 = arith.constant 0 : i32
    %c0_i32_1 = arith.constant 0 : i32
    return %c0_i32, %c0_i32_0 : i32, i32
  }
  func.func @transform_4(%arg0: i32) -> (i32, i32) {
    %c0_i32 = arith.constant 0 : i32
    %c0_i32_0 = arith.constant 0 : i32
    return %arg0, %c0_i32 : i32, i32
  }
}

module attributes {stable_mosaic.version = 11 : i64} {
  func.func @_conv_mm_kernel(%arg0: i32, %arg1: memref<128x576xbf16, #tpu.memory_space<vmem>>, %arg2: memref<576x128xbf16, #tpu.memory_space<vmem>>, %arg3: memref<1x128xf32, #tpu.memory_space<vmem>>, %arg4: memref<1x128xf32, #tpu.memory_space<vmem>>, %arg5: memref<128x128xf32, #tpu.memory_space<vmem>>) attributes {dimension_semantics = [#tpu.dimension_semantics<parallel>], iteration_bounds = array<i64: 1>, scalar_prefetch = 0 : i64, scratch_operands = 0 : i64, tpu.core_type = #tpu.core_type<tc>, window_params = [{transform_indices = @transform_0, window_bounds = array<i64: 128, 576>}, {pipeline_mode = #tpu.pipeline_mode<synchronous>, transform_indices = @transform_1, window_bounds = array<i64: 576, 128>}, {pipeline_mode = #tpu.pipeline_mode<synchronous>, transform_indices = @transform_2, window_bounds = array<i64: 1, 128>}, {pipeline_mode = #tpu.pipeline_mode<synchronous>, transform_indices = @transform_3, window_bounds = array<i64: 1, 128>}, {transform_indices = @transform_4, window_bounds = array<i64: 128, 128>}]} {
    %c0 = arith.constant 0 : index
    %c0_0 = arith.constant 0 : index
    %0 = vector.load %arg1[%c0, %c0_0] : memref<128x576xbf16, #tpu.memory_space<vmem>>, vector<128x576xbf16>
    %c0_1 = arith.constant 0 : index
    %c0_2 = arith.constant 0 : index
    %1 = vector.load %arg2[%c0_1, %c0_2] : memref<576x128xbf16, #tpu.memory_space<vmem>>, vector<576x128xbf16>
    %cst = arith.constant dense<0.000000e+00> : vector<128x128xf32>
    %2 = tpu.matmul %0, %1, %cst {dimension_numbers = #tpu.dot_dimension_numbers<[1], [0], [0], [1], [0, 0, 1, 1], [], []>} : vector<128x576xbf16>, vector<576x128xbf16>, vector<128x128xf32> -> vector<128x128xf32>
    %c0_3 = arith.constant 0 : index
    %c0_4 = arith.constant 0 : index
    %3 = vector.load %arg3[%c0_3, %c0_4] : memref<1x128xf32, #tpu.memory_space<vmem>>, vector<1x128xf32>
    %4 = vector.broadcast %3 : vector<1x128xf32> to vector<128x128xf32>
    %5 = arith.mulf %2, %4 : vector<128x128xf32>
    %c0_5 = arith.constant 0 : index
    %c0_6 = arith.constant 0 : index
    %6 = vector.load %arg4[%c0_5, %c0_6] : memref<1x128xf32, #tpu.memory_space<vmem>>, vector<1x128xf32>
    %7 = vector.broadcast %6 : vector<1x128xf32> to vector<128x128xf32>
    %8 = arith.addf %5, %7 : vector<128x128xf32>
    %cst_7 = arith.constant 0.000000e+00 : f32
    %9 = vector.broadcast %cst_7 : f32 to vector<128x128xf32>
    %10 = arith.maximumf %8, %9 : vector<128x128xf32>
    %c0_8 = arith.constant 0 : index
    %c0_9 = arith.constant 0 : index
    %11 = vector.load %arg5[%c0_8, %c0_9] : memref<128x128xf32, #tpu.memory_space<vmem>>, vector<128x128xf32>
    tpu.vector_store %arg5[%c0_8, %c0_9], %10 {strides = array<i32>} : memref<128x128xf32, #tpu.memory_space<vmem>>, vector<128x128xf32>,
    return
  }
  func.func @transform_0(%arg0: i32) -> (i32, i32) {
    %c0_i32 = arith.constant 0 : i32
    %c0_i32_0 = arith.constant 0 : i32
    return %arg0, %c0_i32 : i32, i32
  }
  func.func @transform_1(%arg0: i32) -> (i32, i32) {
    %c0_i32 = arith.constant 0 : i32
    %c0_i32_0 = arith.constant 0 : i32
    %c0_i32_1 = arith.constant 0 : i32
    return %c0_i32, %c0_i32_0 : i32, i32
  }
  func.func @transform_2(%arg0: i32) -> (i32, i32) {
    %c0_i32 = arith.constant 0 : i32
    %c0_i32_0 = arith.constant 0 : i32
    %c0_i32_1 = arith.constant 0 : i32
    return %c0_i32, %c0_i32_0 : i32, i32
  }
  func.func @transform_3(%arg0: i32) -> (i32, i32) {
    %c0_i32 = arith.constant 0 : i32
    %c0_i32_0 = arith.constant 0 : i32
    %c0_i32_1 = arith.constant 0 : i32
    return %c0_i32, %c0_i32_0 : i32, i32
  }
  func.func @transform_4(%arg0: i32) -> (i32, i32) {
    %c0_i32 = arith.constant 0 : i32
    %c0_i32_0 = arith.constant 0 : i32
    return %arg0, %c0_i32 : i32, i32
  }
}

module attributes {stable_mosaic.version = 11 : i64} {
  func.func @_conv_mm_skip_kernel(%arg0: i32, %arg1: memref<128x576xbf16, #tpu.memory_space<vmem>>, %arg2: memref<576x128xbf16, #tpu.memory_space<vmem>>, %arg3: memref<1x128xf32, #tpu.memory_space<vmem>>, %arg4: memref<1x128xf32, #tpu.memory_space<vmem>>, %arg5: memref<128x128xf32, #tpu.memory_space<vmem>>, %arg6: memref<128x128xf32, #tpu.memory_space<vmem>>) attributes {dimension_semantics = [#tpu.dimension_semantics<parallel>], iteration_bounds = array<i64: 1>, scalar_prefetch = 0 : i64, scratch_operands = 0 : i64, tpu.core_type = #tpu.core_type<tc>, window_params = [{transform_indices = @transform_0, window_bounds = array<i64: 128, 576>}, {pipeline_mode = #tpu.pipeline_mode<synchronous>, transform_indices = @transform_1, window_bounds = array<i64: 576, 128>}, {pipeline_mode = #tpu.pipeline_mode<synchronous>, transform_indices = @transform_2, window_bounds = array<i64: 1, 128>}, {pipeline_mode = #tpu.pipeline_mode<synchronous>, transform_indices = @transform_3, window_bounds = array<i64: 1, 128>}, {transform_indices = @transform_4, window_bounds = array<i64: 128, 128>}, {transform_indices = @transform_5, window_bounds = array<i64: 128, 128>}]} {
    %c0 = arith.constant 0 : index
    %c0_0 = arith.constant 0 : index
    %0 = vector.load %arg1[%c0, %c0_0] : memref<128x576xbf16, #tpu.memory_space<vmem>>, vector<128x576xbf16>
    %c0_1 = arith.constant 0 : index
    %c0_2 = arith.constant 0 : index
    %1 = vector.load %arg2[%c0_1, %c0_2] : memref<576x128xbf16, #tpu.memory_space<vmem>>, vector<576x128xbf16>
    %cst = arith.constant dense<0.000000e+00> : vector<128x128xf32>
    %2 = tpu.matmul %0, %1, %cst {dimension_numbers = #tpu.dot_dimension_numbers<[1], [0], [0], [1], [0, 0, 1, 1], [], []>} : vector<128x576xbf16>, vector<576x128xbf16>, vector<128x128xf32> -> vector<128x128xf32>
    %c0_3 = arith.constant 0 : index
    %c0_4 = arith.constant 0 : index
    %3 = vector.load %arg3[%c0_3, %c0_4] : memref<1x128xf32, #tpu.memory_space<vmem>>, vector<1x128xf32>
    %4 = vector.broadcast %3 : vector<1x128xf32> to vector<128x128xf32>
    %5 = arith.mulf %2, %4 : vector<128x128xf32>
    %c0_5 = arith.constant 0 : index
    %c0_6 = arith.constant 0 : index
    %6 = vector.load %arg4[%c0_5, %c0_6] : memref<1x128xf32, #tpu.memory_space<vmem>>, vector<1x128xf32>
    %7 = vector.broadcast %6 : vector<1x128xf32> to vector<128x128xf32>
    %8 = arith.addf %5, %7 : vector<128x128xf32>
    %c0_7 = arith.constant 0 : index
    %c0_8 = arith.constant 0 : index
    %9 = vector.load %arg5[%c0_7, %c0_8] : memref<128x128xf32, #tpu.memory_space<vmem>>, vector<128x128xf32>
    %10 = arith.addf %8, %9 : vector<128x128xf32>
    %c0_9 = arith.constant 0 : index
    %c0_10 = arith.constant 0 : index
    %11 = vector.load %arg6[%c0_9, %c0_10] : memref<128x128xf32, #tpu.memory_space<vmem>>, vector<128x128xf32>
    tpu.vector_store %arg6[%c0_9, %c0_10], %10 {strides = array<i32>} : memref<128x128xf32, #tpu.memory_space<vmem>>, vector<128x128xf32>,
    return
  }
  func.func @transform_0(%arg0: i32) -> (i32, i32) {
    %c0_i32 = arith.constant 0 : i32
    %c0_i32_0 = arith.constant 0 : i32
    return %arg0, %c0_i32 : i32, i32
  }
  func.func @transform_1(%arg0: i32) -> (i32, i32) {
    %c0_i32 = arith.constant 0 : i32
    %c0_i32_0 = arith.constant 0 : i32
    %c0_i32_1 = arith.constant 0 : i32
    return %c0_i32, %c0_i32_0 : i32, i32
  }
  func.func @transform_2(%arg0: i32) -> (i32, i32) {
    %c0_i32 = arith.constant 0 : i32
    %c0_i32_0 = arith.constant 0 : i32
    %c0_i32_1 = arith.constant 0 : i32
    return %c0_i32, %c0_i32_0 : i32, i32
  }
  func.func @transform_3(%arg0: i32) -> (i32, i32) {
    %c0_i32 = arith.constant 0 : i32
    %c0_i32_0 = arith.constant 0 : i32
    %c0_i32_1 = arith.constant 0 : i32
    return %c0_i32, %c0_i32_0 : i32, i32
  }
  func.func @transform_4(%arg0: i32) -> (i32, i32) {
    %c0_i32 = arith.constant 0 : i32
    %c0_i32_0 = arith.constant 0 : i32
    return %arg0, %c0_i32 : i32, i32
  }
  func.func @transform_5(%arg0: i32) -> (i32, i32) {
    %c0_i32 = arith.constant 0 : i32
    %c0_i32_0 = arith.constant 0 : i32
    return %arg0, %c0_i32 : i32, i32
  }
}

module attributes {stable_mosaic.version = 11 : i64} {
  func.func @_conv_mm_kernel(%arg0: i32, %arg1: memref<128x256xbf16, #tpu.memory_space<vmem>>, %arg2: memref<256x128xbf16, #tpu.memory_space<vmem>>, %arg3: memref<1x128xf32, #tpu.memory_space<vmem>>, %arg4: memref<1x128xf32, #tpu.memory_space<vmem>>, %arg5: memref<128x128xf32, #tpu.memory_space<vmem>>) attributes {dimension_semantics = [#tpu.dimension_semantics<parallel>], iteration_bounds = array<i64: 1>, scalar_prefetch = 0 : i64, scratch_operands = 0 : i64, tpu.core_type = #tpu.core_type<tc>, window_params = [{transform_indices = @transform_0, window_bounds = array<i64: 128, 256>}, {pipeline_mode = #tpu.pipeline_mode<synchronous>, transform_indices = @transform_1, window_bounds = array<i64: 256, 128>}, {pipeline_mode = #tpu.pipeline_mode<synchronous>, transform_indices = @transform_2, window_bounds = array<i64: 1, 128>}, {pipeline_mode = #tpu.pipeline_mode<synchronous>, transform_indices = @transform_3, window_bounds = array<i64: 1, 128>}, {transform_indices = @transform_4, window_bounds = array<i64: 128, 128>}]} {
    %c0 = arith.constant 0 : index
    %c0_0 = arith.constant 0 : index
    %0 = vector.load %arg1[%c0, %c0_0] : memref<128x256xbf16, #tpu.memory_space<vmem>>, vector<128x256xbf16>
    %c0_1 = arith.constant 0 : index
    %c0_2 = arith.constant 0 : index
    %1 = vector.load %arg2[%c0_1, %c0_2] : memref<256x128xbf16, #tpu.memory_space<vmem>>, vector<256x128xbf16>
    %cst = arith.constant dense<0.000000e+00> : vector<128x128xf32>
    %2 = tpu.matmul %0, %1, %cst {dimension_numbers = #tpu.dot_dimension_numbers<[1], [0], [0], [1], [0, 0, 1, 1], [], []>} : vector<128x256xbf16>, vector<256x128xbf16>, vector<128x128xf32> -> vector<128x128xf32>
    %c0_3 = arith.constant 0 : index
    %c0_4 = arith.constant 0 : index
    %3 = vector.load %arg3[%c0_3, %c0_4] : memref<1x128xf32, #tpu.memory_space<vmem>>, vector<1x128xf32>
    %4 = vector.broadcast %3 : vector<1x128xf32> to vector<128x128xf32>
    %5 = arith.mulf %2, %4 : vector<128x128xf32>
    %c0_5 = arith.constant 0 : index
    %c0_6 = arith.constant 0 : index
    %6 = vector.load %arg4[%c0_5, %c0_6] : memref<1x128xf32, #tpu.memory_space<vmem>>, vector<1x128xf32>
    %7 = vector.broadcast %6 : vector<1x128xf32> to vector<128x128xf32>
    %8 = arith.addf %5, %7 : vector<128x128xf32>
    %cst_7 = arith.constant 0.000000e+00 : f32
    %9 = vector.broadcast %cst_7 : f32 to vector<128x128xf32>
    %10 = arith.maximumf %8, %9 : vector<128x128xf32>
    %c0_8 = arith.constant 0 : index
    %c0_9 = arith.constant 0 : index
    %11 = vector.load %arg5[%c0_8, %c0_9] : memref<128x128xf32, #tpu.memory_space<vmem>>, vector<128x128xf32>
    tpu.vector_store %arg5[%c0_8, %c0_9], %10 {strides = array<i32>} : memref<128x128xf32, #tpu.memory_space<vmem>>, vector<128x128xf32>,
    return
  }
  func.func @transform_0(%arg0: i32) -> (i32, i32) {
    %c0_i32 = arith.constant 0 : i32
    %c0_i32_0 = arith.constant 0 : i32
    return %arg0, %c0_i32 : i32, i32
  }
  func.func @transform_1(%arg0: i32) -> (i32, i32) {
    %c0_i32 = arith.constant 0 : i32
    %c0_i32_0 = arith.constant 0 : i32
    %c0_i32_1 = arith.constant 0 : i32
    return %c0_i32, %c0_i32_0 : i32, i32
  }
  func.func @transform_2(%arg0: i32) -> (i32, i32) {
    %c0_i32 = arith.constant 0 : i32
    %c0_i32_0 = arith.constant 0 : i32
    %c0_i32_1 = arith.constant 0 : i32
    return %c0_i32, %c0_i32_0 : i32, i32
  }
  func.func @transform_3(%arg0: i32) -> (i32, i32) {
    %c0_i32 = arith.constant 0 : i32
    %c0_i32_0 = arith.constant 0 : i32
    %c0_i32_1 = arith.constant 0 : i32
    return %c0_i32, %c0_i32_0 : i32, i32
  }
  func.func @transform_4(%arg0: i32) -> (i32, i32) {
    %c0_i32 = arith.constant 0 : i32
    %c0_i32_0 = arith.constant 0 : i32
    return %arg0, %c0_i32 : i32, i32
  }
}

module attributes {stable_mosaic.version = 11 : i64} {
  func.func @_conv_mm_kernel(%arg0: i32, %arg1: memref<256x128xbf16, #tpu.memory_space<vmem>>, %arg2: memref<128x128xbf16, #tpu.memory_space<vmem>>, %arg3: memref<1x128xf32, #tpu.memory_space<vmem>>, %arg4: memref<1x128xf32, #tpu.memory_space<vmem>>, %arg5: memref<256x128xf32, #tpu.memory_space<vmem>>) attributes {dimension_semantics = [#tpu.dimension_semantics<parallel>], iteration_bounds = array<i64: 2>, scalar_prefetch = 0 : i64, scratch_operands = 0 : i64, tpu.core_type = #tpu.core_type<tc>, window_params = [{transform_indices = @transform_0, window_bounds = array<i64: 256, 128>}, {pipeline_mode = #tpu.pipeline_mode<synchronous>, transform_indices = @transform_1, window_bounds = array<i64: 128, 128>}, {pipeline_mode = #tpu.pipeline_mode<synchronous>, transform_indices = @transform_2, window_bounds = array<i64: 1, 128>}, {pipeline_mode = #tpu.pipeline_mode<synchronous>, transform_indices = @transform_3, window_bounds = array<i64: 1, 128>}, {transform_indices = @transform_4, window_bounds = array<i64: 256, 128>}]} {
    %c0 = arith.constant 0 : index
    %c0_0 = arith.constant 0 : index
    %0 = vector.load %arg1[%c0, %c0_0] : memref<256x128xbf16, #tpu.memory_space<vmem>>, vector<256x128xbf16>
    %c0_1 = arith.constant 0 : index
    %c0_2 = arith.constant 0 : index
    %1 = vector.load %arg2[%c0_1, %c0_2] : memref<128x128xbf16, #tpu.memory_space<vmem>>, vector<128x128xbf16>
    %cst = arith.constant dense<0.000000e+00> : vector<256x128xf32>
    %2 = tpu.matmul %0, %1, %cst {dimension_numbers = #tpu.dot_dimension_numbers<[1], [0], [0], [1], [0, 0, 1, 1], [], []>} : vector<256x128xbf16>, vector<128x128xbf16>, vector<256x128xf32> -> vector<256x128xf32>
    %c0_3 = arith.constant 0 : index
    %c0_4 = arith.constant 0 : index
    %3 = vector.load %arg3[%c0_3, %c0_4] : memref<1x128xf32, #tpu.memory_space<vmem>>, vector<1x128xf32>
    %4 = vector.broadcast %3 : vector<1x128xf32> to vector<256x128xf32>
    %5 = arith.mulf %2, %4 : vector<256x128xf32>
    %c0_5 = arith.constant 0 : index
    %c0_6 = arith.constant 0 : index
    %6 = vector.load %arg4[%c0_5, %c0_6] : memref<1x128xf32, #tpu.memory_space<vmem>>, vector<1x128xf32>
    %7 = vector.broadcast %6 : vector<1x128xf32> to vector<256x128xf32>
    %8 = arith.addf %5, %7 : vector<256x128xf32>
    %cst_7 = arith.constant 0.000000e+00 : f32
    %9 = vector.broadcast %cst_7 : f32 to vector<256x128xf32>
    %10 = arith.maximumf %8, %9 : vector<256x128xf32>
    %c0_8 = arith.constant 0 : index
    %c0_9 = arith.constant 0 : index
    %11 = vector.load %arg5[%c0_8, %c0_9] : memref<256x128xf32, #tpu.memory_space<vmem>>, vector<256x128xf32>
    tpu.vector_store %arg5[%c0_8, %c0_9], %10 {strides = array<i32>} : memref<256x128xf32, #tpu.memory_space<vmem>>, vector<256x128xf32>,
    return
  }
  func.func @transform_0(%arg0: i32) -> (i32, i32) {
    %c0_i32 = arith.constant 0 : i32
    %c0_i32_0 = arith.constant 0 : i32
    return %arg0, %c0_i32 : i32, i32
  }
  func.func @transform_1(%arg0: i32) -> (i32, i32) {
    %c0_i32 = arith.constant 0 : i32
    %c0_i32_0 = arith.constant 0 : i32
    %c0_i32_1 = arith.constant 0 : i32
    return %c0_i32, %c0_i32_0 : i32, i32
  }
  func.func @transform_2(%arg0: i32) -> (i32, i32) {
    %c0_i32 = arith.constant 0 : i32
    %c0_i32_0 = arith.constant 0 : i32
    %c0_i32_1 = arith.constant 0 : i32
    return %c0_i32, %c0_i32_0 : i32, i32
  }
  func.func @transform_3(%arg0: i32) -> (i32, i32) {
    %c0_i32 = arith.constant 0 : i32
    %c0_i32_0 = arith.constant 0 : i32
    %c0_i32_1 = arith.constant 0 : i32
    return %c0_i32, %c0_i32_0 : i32, i32
  }
  func.func @transform_4(%arg0: i32) -> (i32, i32) {
    %c0_i32 = arith.constant 0 : i32
    %c0_i32_0 = arith.constant 0 : i32
    return %arg0, %c0_i32 : i32, i32
  }
}

module attributes {stable_mosaic.version = 11 : i64} {
  func.func @_conv_mm_kernel(%arg0: i32, %arg1: memref<1024x784xbf16, #tpu.memory_space<vmem>>, %arg2: memref<784x128xbf16, #tpu.memory_space<vmem>>, %arg3: memref<1x128xf32, #tpu.memory_space<vmem>>, %arg4: memref<1x128xf32, #tpu.memory_space<vmem>>, %arg5: memref<1024x128xf32, #tpu.memory_space<vmem>>) attributes {dimension_semantics = [#tpu.dimension_semantics<parallel>], iteration_bounds = array<i64: 2>, scalar_prefetch = 0 : i64, scratch_operands = 0 : i64, tpu.core_type = #tpu.core_type<tc>, window_params = [{transform_indices = @transform_0, window_bounds = array<i64: 1024, 784>}, {pipeline_mode = #tpu.pipeline_mode<synchronous>, transform_indices = @transform_1, window_bounds = array<i64: 784, 128>}, {pipeline_mode = #tpu.pipeline_mode<synchronous>, transform_indices = @transform_2, window_bounds = array<i64: 1, 128>}, {pipeline_mode = #tpu.pipeline_mode<synchronous>, transform_indices = @transform_3, window_bounds = array<i64: 1, 128>}, {transform_indices = @transform_4, window_bounds = array<i64: 1024, 128>}]} {
    %c0 = arith.constant 0 : index
    %c0_0 = arith.constant 0 : index
    %0 = vector.load %arg1[%c0, %c0_0] : memref<1024x784xbf16, #tpu.memory_space<vmem>>, vector<1024x784xbf16>
    %c0_1 = arith.constant 0 : index
    %c0_2 = arith.constant 0 : index
    %1 = vector.load %arg2[%c0_1, %c0_2] : memref<784x128xbf16, #tpu.memory_space<vmem>>, vector<784x128xbf16>
    %cst = arith.constant dense<0.000000e+00> : vector<1024x128xf32>
    %2 = tpu.matmul %0, %1, %cst {dimension_numbers = #tpu.dot_dimension_numbers<[1], [0], [0], [1], [0, 0, 1, 1], [], []>} : vector<1024x784xbf16>, vector<784x128xbf16>, vector<1024x128xf32> -> vector<1024x128xf32>
    %c0_3 = arith.constant 0 : index
    %c0_4 = arith.constant 0 : index
    %3 = vector.load %arg3[%c0_3, %c0_4] : memref<1x128xf32, #tpu.memory_space<vmem>>, vector<1x128xf32>
    %4 = vector.broadcast %3 : vector<1x128xf32> to vector<1024x128xf32>
    %5 = arith.mulf %2, %4 : vector<1024x128xf32>
    %c0_5 = arith.constant 0 : index
    %c0_6 = arith.constant 0 : index
    %6 = vector.load %arg4[%c0_5, %c0_6] : memref<1x128xf32, #tpu.memory_space<vmem>>, vector<1x128xf32>
    %7 = vector.broadcast %6 : vector<1x128xf32> to vector<1024x128xf32>
    %8 = arith.addf %5, %7 : vector<1024x128xf32>
    %9 = math.tanh %8 : vector<1024x128xf32>
    %c0_7 = arith.constant 0 : index
    %c0_8 = arith.constant 0 : index
    %10 = vector.load %arg5[%c0_7, %c0_8] : memref<1024x128xf32, #tpu.memory_space<vmem>>, vector<1024x128xf32>
    tpu.vector_store %arg5[%c0_7, %c0_8], %9 {strides = array<i32>} : memref<1024x128xf32, #tpu.memory_space<vmem>>, vector<1024x128xf32>,
    return
  }
  func.func @transform_0(%arg0: i32) -> (i32, i32) {
    %c0_i32 = arith.constant 0 : i32
    %c0_i32_0 = arith.constant 0 : i32
    return %arg0, %c0_i32 : i32, i32
  }
  func.func @transform_1(%arg0: i32) -> (i32, i32) {
    %c0_i32 = arith.constant 0 : i32
    %c0_i32_0 = arith.constant 0 : i32
    %c0_i32_1 = arith.constant 0 : i32
    return %c0_i32, %c0_i32_0 : i32, i32
  }
  func.func @transform_2(%arg0: i32) -> (i32, i32) {
    %c0_i32 = arith.constant 0 : i32
    %c0_i32_0 = arith.constant 0 : i32
    %c0_i32_1 = arith.constant 0 : i32
    return %c0_i32, %c0_i32_0 : i32, i32
  }
  func.func @transform_3(%arg0: i32) -> (i32, i32) {
    %c0_i32 = arith.constant 0 : i32
    %c0_i32_0 = arith.constant 0 : i32
    %c0_i32_1 = arith.constant 0 : i32
    return %c0_i32, %c0_i32_0 : i32, i32
  }
  func.func @transform_4(%arg0: i32) -> (i32, i32) {
    %c0_i32 = arith.constant 0 : i32
    %c0_i32_0 = arith.constant 0 : i32
    return %arg0, %c0_i32 : i32, i32
  }
}

</mosaic_0001>

<llo_original>
// kernel: generator_apply.12
$region0: #{generator_apply.12}
  #allocation0 [shape = 'u32[]', space=smem, size = 0x4, offset = 0x4, fixed_abs, tag = 'smem constant byte address 0x4 - core index']
  #allocation1 [shape = 'u32[144,128]{1,0:T(1,128)}', space=vmem, size = 0x12000, scoped, tag = 'internal scratch']
  %s0 = inlined_call_operand.vmem [shape: bf16[2048,160], index: 0, kind: input, shape index: {}]
  %s1 = inlined_call_operand.vmem [shape: bf16[160,128], index: 1, kind: input, shape index: {}]
  %s2 = inlined_call_operand.vmem [shape: f32[1,128], index: 2, kind: input, shape index: {}]
  %s3 = inlined_call_operand.vmem [shape: f32[1,128], index: 3, kind: input, shape index: {}]
  %s4 = inlined_call_operand.vmem [shape: f32[2048,128], index: 4, kind: output, shape index: {}]
  %s5 = sld [smem:[#allocation0]]
  $region49: #{generator_apply.12} parent=0
    _
  %s7 = ssub.s32 1, %s5
  %s8 = scalar_select 0, %s7, %s5
  loop: start=0, step=1, limit=4
  $region2: #{generator_apply.12} parent=0 // loop_pre_header
    _
  $region3: #{generator_apply.12} parent=0 // loop_header
    %s10 = sphi 0, %s14
    %p11 = scmp.ge.s32.totalorder %s10, 4
    %s20 = sphi 0, %s22
    %s23 = sphi 0, %s20
    %s24 = sphi 0, %s23
    %s40 = sphi 0, %s24
    %s44 = sphi 0, %s44
    %s46 = sphi 0, %s44
    %s47 = sphi 0, %s46
    %s61 = sphi 0, %s47
    %s65 = sphi 0, %s65
    %s67 = sphi 0, %s65
    %s68 = sphi 0, %s67
    %s82 = sphi 0, %s68
    %s86 = sphi 0, %s86
    %s88 = sphi 0, %s86
    %s89 = sphi 0, %s88
    %s103 = sphi 0, %s89
    %s109 = sphi 0, %s111
    %s112 = sphi 0, %s109
    %s113 = sphi 0, %s112
    %s129 = sphi 0, %s113
  $region4: #{generator_apply.12} parent=0 // loop_header_branch
    %13 = sbr.rel (%p11) target = $region8
  $region5: #{generator_apply.12} parent=0 // loop_body
    %s15 = ssub.s32 %s10, 1
    %s16 = ssub.s32 %s10, 2
    %s17 = sadd.s32 %s10, 1
    %s18 = ssub.s32 %s10, %s17
    %p19 = scmp.eq.s32.totalorder %s18, 0
    %s21 = sadd.s32 %s20, 1
    %s22 = scalar_select %p19, %s20, %s21
    %p25 = pneg %p19
    %p26 = scmp.eq.s32.totalorder %s10, 1
    %p27 = por %p25, %p26
    %p28 = scmp.ne.s32.totalorder %s20, %s23
    %p29 = scmp.eq.s32.totalorder %s10, 0
    %p30 = por %p28, %p29
    %p31 = scmp.ne.s32.totalorder %s20, %s23
    %p32 = scmp.eq.s32.totalorder %s15, 1
    %p33 = por %p31, %p32
    %p34 = scmp.ne.s32.totalorder %s23, %s24
    %p35 = scmp.eq.s32.totalorder %s15, 0
    %p36 = por %p34, %p35
    %p37 = scmp.ne.s32.totalorder %s23, %s24
    %p38 = scmp.eq.s32.totalorder %s16, 1
    %p39 = por %p37, %p38
    %p41 = scmp.ne.s32.totalorder %s24, %s40
    %p42 = scmp.eq.s32.totalorder %s16, 0
    %p43 = por %p41, %p42
    %s45 = sadd.s32 %s44, 1
    %p48 = scmp.eq.s32.totalorder %s10, 1
    %p49 = scmp.ne.s32.totalorder %s44, %s46
    %p50 = scmp.eq.s32.totalorder %s10, 0
    %p51 = por %p49, %p50
    %p52 = scmp.ne.s32.totalorder %s44, %s46
    %p53 = scmp.eq.s32.totalorder %s15, 1
    %p54 = por %p52, %p53
    %p55 = scmp.ne.s32.totalorder %s46, %s47
    %p56 = scmp.eq.s32.totalorder %s15, 0
    %p57 = por %p55, %p56
    %p58 = scmp.ne.s32.totalorder %s46, %s47
    %p59 = scmp.eq.s32.totalorder %s16, 1
    %p60 = por %p58, %p59
    %p62 = scmp.ne.s32.totalorder %s47, %s61
    %p63 = scmp.eq.s32.totalorder %s16, 0
    %p64 = por %p62, %p63
    %s66 = sadd.s32 %s65, 1
    %p69 = scmp.eq.s32.totalorder %s10, 1
    %p70 = scmp.ne.s32.totalorder %s65, %s67
    %p71 = scmp.eq.s32.totalorder %s10, 0
    %p72 = por %p70, %p71
    %p73 = scmp.ne.s32.totalorder %s65, %s67
    %p74 = scmp.eq.s32.totalorder %s15, 1
    %p75 = por %p73, %p74
    %p76 = scmp.ne.s32.totalorder %s67, %s68
    %p77 = scmp.eq.s32.totalorder %s15, 0
    %p78 = por %p76, %p77
    %p79 = scmp.ne.s32.totalorder %s67, %s68
    %p80 = scmp.eq.s32.totalorder %s16, 1
    %p81 = por %p79, %p80
    %p83 = scmp.ne.s32.totalorder %s68, %s82
    %p84 = scmp.eq.s32.totalorder %s16, 0
    %p85 = por %p83, %p84
    %s87 = sadd.s32 %s86, 1
    %p90 = scmp.eq.s32.totalorder %s10, 1
    %p91 = scmp.ne.s32.totalorder %s86, %s88
    %p92 = scmp.eq.s32.totalorder %s10, 0
    %p93 = por %p91, %p92
    %p94 = scmp.ne.s32.totalorder %s86, %s88
    %p95 = scmp.eq.s32.totalorder %s15, 1
    %p96 = por %p94, %p95
    %p97 = scmp.ne.s32.totalorder %s88, %s89
    %p98 = scmp.eq.s32.totalorder %s15, 0
    %p99 = por %p97, %p98
    %p100 = scmp.ne.s32.totalorder %s88, %s89
    %p101 = scmp.eq.s32.totalorder %s16, 1
    %p102 = por %p100, %p101
    %p104 = scmp.ne.s32.totalorder %s89, %s103
    %p105 = scmp.eq.s32.totalorder %s16, 0
    %p106 = por %p104, %p105
    %s107 = ssub.s32 %s10, %s17
    %p108 = scmp.eq.s32.totalorder %s107, 0
    %s110 = sadd.s32 %s109, 1
    %s111 = scalar_select %p108, %s109, %s110
    %p114 = pneg %p108
    %p115 = scmp.eq.s32.totalorder %s10, 1
    %p116 = por %p114, %p115
    %p117 = scmp.ne.s32.totalorder %s109, %s112
    %p118 = scmp.eq.s32.totalorder %s10, 0
    %p119 = por %p117, %p118
    %p120 = scmp.ne.s32.totalorder %s109, %s112
    %p121 = scmp.eq.s32.totalorder %s15, 1
    %p122 = por %p120, %p121
    %p123 = scmp.ne.s32.totalorder %s112, %s113
    %p124 = scmp.eq.s32.totalorder %s15, 0
    %p125 = por %p123, %p124
    %p126 = scmp.ne.s32.totalorder %s112, %s113
    %p127 = scmp.eq.s32.totalorder %s16, 1
    %p128 = por %p126, %p127
    %p130 = scmp.ne.s32.totalorder %s113, %s129
    %p131 = scmp.eq.s32.totalorder %s16, 0
    %p132 = por %p130, %p131
    %p133 = scmp.le.s32.totalorder 1, %s10
    %p134 = scmp.lt.s32.totalorder %s10, 3
    %p135 = pnand %p133, %p134
    %p136 = pneg %p135
    // Predicated region
    $region9: #{generator_apply.12} parent=5 // pred_check
      _
    $region10: #{generator_apply.12} parent=5 // pred_check_branch
      %138 = sbr.rel (%p135) target = $region12
    $region11: #{generator_apply.12} parent=5 // pred_region
      %s139 = ssub.s32 %s10, 1
      // Predicated region
      $region13: #{generator_apply.12} parent=11 // pred_check
        %p140 = pneg %p57
      $region14: #{generator_apply.12} parent=11 // pred_check_branch
        %142 = sbr.rel (%p140) target = $region16
      $region15: #{generator_apply.12} parent=11 // pred_region
        _
      $region16: #{generator_apply.12} parent=11 // pred_fallthru
        _
      // Predicated region
      $region17: #{generator_apply.12} parent=11 // pred_check
        %p143 = pneg %p78
      $region18: #{generator_apply.12} parent=11 // pred_check_branch
        %145 = sbr.rel (%p143) target = $region20
      $region19: #{generator_apply.12} parent=11 // pred_region
        _
      $region20: #{generator_apply.12} parent=11 // pred_fallthru
        _
      // Predicated region
      $region21: #{generator_apply.12} parent=11 // pred_check
        %p146 = pneg %p99
      $region22: #{generator_apply.12} parent=11 // pred_check_branch
        %148 = sbr.rel (%p146) target = $region24
      $region23: #{generator_apply.12} parent=11 // pred_region
        _
      $region24: #{generator_apply.12} parent=11 // pred_fallthru
        _
    $region12: #{generator_apply.12} parent=5 // pred_fallthru
      _
    %p149 = scmp.lt.s32.totalorder %s10, 2
    // Predicated region
    $region25: #{generator_apply.12} parent=5 // pred_check
      %p150 = pneg %p149
    $region26: #{generator_apply.12} parent=5 // pred_check_branch
      %152 = sbr.rel (%p150) target = $region28
    $region27: #{generator_apply.12} parent=5 // pred_region
      // Predicated region
      $region29: #{generator_apply.12} parent=27 // pred_check
        %p153 = pneg %p30
      $region30: #{generator_apply.12} parent=27 // pred_check_branch
        %155 = sbr.rel (%p153) target = $region32
      $region31: #{generator_apply.12} parent=27 // pred_region
        %s156 = smul.u32 128, %s10
        %p157 = scmp.lt.s32.totalorder %s156, 255
        %s158 = scalar_select %p157, %s156, 255
        %s159 = smul.addr %s158, 2
        %s160 = smul.addr %s159, 4
        %s161 = scalar_lea.vmem %s0, %s160
        %s162 = smul.u32 128, %s10
      $region32: #{generator_apply.12} parent=27 // pred_fallthru
        _
    $region28: #{generator_apply.12} parent=5 // pred_fallthru
      _
    %p163 = scmp.le.s32.totalorder 1, %s10
    %p164 = scmp.lt.s32.totalorder %s10, 3
    %p165 = pnand %p163, %p164
    %p166 = pneg %p165
    // Predicated region
    $region33: #{generator_apply.12} parent=5 // pred_check
      _
    $region34: #{generator_apply.12} parent=5 // pred_check_branch
      %168 = sbr.rel (%p165) target = $region36
    $region35: #{generator_apply.12} parent=5 // pred_region
      %s169 = ssub.s32 %s10, 1
      %s170 = smul.u32 128, %s15
      %p171 = scmp.lt.s32.totalorder %s170, 255
      %s172 = scalar_select %p171, %s170, 255
      %s173 = smul.addr %s172, 2
      %s174 = smul.addr %s173, 4
      %s175 = scalar_lea.vmem %s0, %s174
      %p176 = pneg %p36
      %p177 = pneg %p33
      %p178 = pneg %p57
      %p179 = pneg %p54
      %p180 = pneg %p78
      %p181 = pneg %p75
      %p182 = pneg %p99
      %p183 = pneg %p96
      %p184 = pneg %p125
      %p185 = pneg %p122
      %s186 = smul.u32 128, %s15
      %p187 = scmp.lt.s32.totalorder %s186, 255
      %s188 = scalar_select %p187, %s186, 255
      %s189 = smul.addr %s188, 8
      %s190 = scalar_lea.vmem %s4, %s189
      %s191 = smul.u32 128, %s15
      %p192 = scmp.lt.s32.totalorder %s191, 255
      %s193 = scalar_select %p192, %s191, 255
      %s194 = smul.addr %s193, 2
      %s195 = smul.addr %s194, 4
      %s196 = scalar_lea.vmem %s0, %s195
      %s197 = smul.u32 128, %s15
      %s198 = smul.u32 128, %s15
      %p199 = scmp.lt.s32.totalorder %s198, 255
      %s200 = scalar_select %p199, %s198, 255
      %s201 = smul.addr %s200, 8
      %s202 = scalar_lea.vmem %s4, %s201
      %s203 = smul.u32 128, %s15
      %v205 = vld [vmem:[%s196] sm:$0xff]
      %v206 = vld [vmem:[%s196 + $0x8] sm:$0xff]
      %v207 = vld [vmem:[%s196 + $0x10] sm:$0xff]
      %v208 = vld [vmem:[%s196 + $0x18] sm:$0xff]
      %v209 = vld [vmem:[%s196 + $0x20] sm:$0xff]
      %v210 = vld [vmem:[%s196 + $0x28] sm:$0xff]
      %v211 = vld [vmem:[%s196 + $0x30] sm:$0xff]
      %v212 = vld [vmem:[%s196 + $0x38] sm:$0xff]
      %v213 = vld [vmem:[%s196 + $0x40] sm:$0xff]
      %v214 = vld [vmem:[%s196 + $0x48] sm:$0xff]
      %v215 = vld [vmem:[%s196 + $0x50] sm:$0xff]
      %v216 = vld [vmem:[%s196 + $0x58] sm:$0xff]
      %v217 = vld [vmem:[%s196 + $0x60] sm:$0xff]
      %v218 = vld [vmem:[%s196 + $0x68] sm:$0xff]
      %v219 = vld [vmem:[%s196 + $0x70] sm:$0xff]
      %v220 = vld [vmem:[%s196 + $0x78] sm:$0xff]
      %v221 = vld [vmem:[%s196 + $0x80] sm:$0xff]
      %v222 = vld [vmem:[%s196 + $0x88] sm:$0xff]
      %v223 = vld [vmem:[%s196 + $0x90] sm:$0xff]
      %v224 = vld [vmem:[%s196 + $0x98] sm:$0xff]
      %v225 = vld [vmem:[%s196 + $0xa0] sm:$0xff]
      %v226 = vld [vmem:[%s196 + $0xa8] sm:$0xff]
      %v227 = vld [vmem:[%s196 + $0xb0] sm:$0xff]
      %v228 = vld [vmem:[%s196 + $0xb8] sm:$0xff]
      %v229 = vld [vmem:[%s196 + $0xc0] sm:$0xff]
      %v230 = vld [vmem:[%s196 + $0xc8] sm:$0xff]
      %v231 = vld [vmem:[%s196 + $0xd0] sm:$0xff]
      %v232 = vld [vmem:[%s196 + $0xd8] sm:$0xff]
      %v233 = vld [vmem:[%s196 + $0xe0] sm:$0xff]
      %v234 = vld [vmem:[%s196 + $0xe8] sm:$0xff]
      %v235 = vld [vmem:[%s196 + $0xf0] sm:$0xff]
      %v236 = vld [vmem:[%s196 + $0xf8] sm:$0xff]
      %v237 = vld [vmem:[%s196 + $0x100] sm:$0xff]
      %v238 = vld [vmem:[%s196 + $0x108] sm:$0xff]
      %v239 = vld [vmem:[%s196 + $0x110] sm:$0xff]
      %v240 = vld [vmem:[%s196 + $0x118] sm:$0xff]
      %v241 = vld [vmem:[%s196 + $0x120] sm:$0xff]
      %v242 = vld [vmem:[%s196 + $0x128] sm:$0xff]
      %v243 = vld [vmem:[%s196 + $0x130] sm:$0xff]
      %v244 = vld [vmem:[%s196 + $0x138] sm:$0xff]
      %v245 = vld [vmem:[%s196 + $0x140] sm:$0xff]
      %v246 = vld [vmem:[%s196 + $0x148] sm:$0xff]
      %v247 = vld [vmem:[%s196 + $0x150] sm:$0xff]
      %v248 = vld [vmem:[%s196 + $0x158] sm:$0xff]
      %v249 = vld [vmem:[%s196 + $0x160] sm:$0xff]
      %v250 = vld [vmem:[%s196 + $0x168] sm:$0xff]
      %v251 = vld [vmem:[%s196 + $0x170] sm:$0xff]
      %v252 = vld [vmem:[%s196 + $0x178] sm:$0xff]
      %v253 = vld [vmem:[%s196 + $0x180] sm:$0xff]
      %v254 = vld [vmem:[%s196 + $0x188] sm:$0xff]
      %v255 = vld [vmem:[%s196 + $0x190] sm:$0xff]
      %v256 = vld [vmem:[%s196 + $0x198] sm:$0xff]
      %v257 = vld [vmem:[%s196 + $0x1a0] sm:$0xff]
      %v258 = vld [vmem:[%s196 + $0x1a8] sm:$0xff]
      %v259 = vld [vmem:[%s196 + $0x1b0] sm:$0xff]
      %v260 = vld [vmem:[%s196 + $0x1b8] sm:$0xff]
      %v261 = vld [vmem:[%s196 + $0x1c0] sm:$0xff]
      %v262 = vld [vmem:[%s196 + $0x1c8] sm:$0xff]
      %v263 = vld [vmem:[%s196 + $0x1d0] sm:$0xff]
      %v264 = vld [vmem:[%s196 + $0x1d8] sm:$0xff]
      %v265 = vld [vmem:[%s196 + $0x1e0] sm:$0xff]
      %v266 = vld [vmem:[%s196 + $0x1e8] sm:$0xff]
      %v267 = vld [vmem:[%s196 + $0x1f0] sm:$0xff]
      %v268 = vld [vmem:[%s196 + $0x1f8] sm:$0xff]
      %v269 = vld [vmem:[%s196 + $0x200] sm:$0xff]
      %v270 = vld [vmem:[%s196 + $0x208] sm:$0xff]
      %v271 = vld [vmem:[%s196 + $0x210] sm:$0xff]
      %v272 = vld [vmem:[%s196 + $0x218] sm:$0xff]
      %v273 = vld [vmem:[%s196 + $0x220] sm:$0xff]
      %v274 = vld [vmem:[%s196 + $0x228] sm:$0xff]
      %v275 = vld [vmem:[%s196 + $0x230] sm:$0xff]
      %v276 = vld [vmem:[%s196 + $0x238] sm:$0xff]
      %v277 = vld [vmem:[%s196 + $0x240] sm:$0xff]
      %v278 = vld [vmem:[%s196 + $0x248] sm:$0xff]
      %v279 = vld [vmem:[%s196 + $0x250] sm:$0xff]
      %v280 = vld [vmem:[%s196 + $0x258] sm:$0xff]
      %v281 = vld [vmem:[%s196 + $0x260] sm:$0xff]
      %v282 = vld [vmem:[%s196 + $0x268] sm:$0xff]
      %v283 = vld [vmem:[%s196 + $0x270] sm:$0xff]
      %v284 = vld [vmem:[%s196 + $0x278] sm:$0xff]
      %v285 = vld [vmem:[%s196 + $0x280] sm:$0xff]
      %v286 = vld [vmem:[%s196 + $0x288] sm:$0xff]
      %v287 = vld [vmem:[%s196 + $0x290] sm:$0xff]
      %v288 = vld [vmem:[%s196 + $0x298] sm:$0xff]
      %v289 = vld [vmem:[%s196 + $0x2a0] sm:$0xff]
      %v290 = vld [vmem:[%s196 + $0x2a8] sm:$0xff]
      %v291 = vld [vmem:[%s196 + $0x2b0] sm:$0xff]
      %v292 = vld [vmem:[%s196 + $0x2b8] sm:$0xff]
      %v293 = vld [vmem:[%s196 + $0x2c0] sm:$0xff]
      %v294 = vld [vmem:[%s196 + $0x2c8] sm:$0xff]
      %v295 = vld [vmem:[%s196 + $0x2d0] sm:$0xff]
      %v296 = vld [vmem:[%s196 + $0x2d8] sm:$0xff]
      %v297 = vld [vmem:[%s196 + $0x2e0] sm:$0xff]
      %v298 = vld [vmem:[%s196 + $0x2e8] sm:$0xff]
      %v299 = vld [vmem:[%s196 + $0x2f0] sm:$0xff]
      %v300 = vld [vmem:[%s196 + $0x2f8] sm:$0xff]
      %v301 = vld [vmem:[%s196 + $0x300] sm:$0xff]
      %v302 = vld [vmem:[%s196 + $0x308] sm:$0xff]
      %v303 = vld [vmem:[%s196 + $0x310] sm:$0xff]
      %v304 = vld [vmem:[%s196 + $0x318] sm:$0xff]
      %v305 = vld [vmem:[%s196 + $0x320] sm:$0xff]
      %v306 = vld [vmem:[%s196 + $0x328] sm:$0xff]
      %v307 = vld [vmem:[%s196 + $0x330] sm:$0xff]
      %v308 = vld [vmem:[%s196 + $0x338] sm:$0xff]
      %v309 = vld [vmem:[%s196 + $0x340] sm:$0xff]
      %v310 = vld [vmem:[%s196 + $0x348] sm:$0xff]
      %v311 = vld [vmem:[%s196 + $0x350] sm:$0xff]
      %v312 = vld [vmem:[%s196 + $0x358] sm:$0xff]
      %v313 = vld [vmem:[%s196 + $0x360] sm:$0xff]
      %v314 = vld [vmem:[%s196 + $0x368] sm:$0xff]
      %v315 = vld [vmem:[%s196 + $0x370] sm:$0xff]
      %v316 = vld [vmem:[%s196 + $0x378] sm:$0xff]
      %v317 = vld [vmem:[%s196 + $0x380] sm:$0xff]
      %v318 = vld [vmem:[%s196 + $0x388] sm:$0xff]
      %v319 = vld [vmem:[%s196 + $0x390] sm:$0xff]
      %v320 = vld [vmem:[%s196 + $0x398] sm:$0xff]
      %v321 = vld [vmem:[%s196 + $0x3a0] sm:$0xff]
      %v322 = vld [vmem:[%s196 + $0x3a8] sm:$0xff]
      %v323 = vld [vmem:[%s196 + $0x3b0] sm:$0xff]
      %v324 = vld [vmem:[%s196 + $0x3b8] sm:$0xff]
      %v325 = vld [vmem:[%s196 + $0x3c0] sm:$0xff]
      %v326 = vld [vmem:[%s196 + $0x3c8] sm:$0xff]
      %v327 = vld [vmem:[%s196 + $0x3d0] sm:$0xff]
      %v328 = vld [vmem:[%s196 + $0x3d8] sm:$0xff]
      %v329 = vld [vmem:[%s196 + $0x3e0] sm:$0xff]
      %v330 = vld [vmem:[%s196 + $0x3e8] sm:$0xff]
      %v331 = vld [vmem:[%s196 + $0x3f0] sm:$0xff]
      %v332 = vld [vmem:[%s196 + $0x3f8] sm:$0xff]
      %v333 = vld [vmem:[%s1] sm:$0xf]
      %v334 = vld [vmem:[%s1 + $0x4] sm:$0xf]
      %v335 = vld [vmem:[%s1 + $0x8] sm:$0xf]
      %v336 = vld [vmem:[%s1 + $0xc] sm:$0xf]
      %v337 = vld [vmem:[%s1 + $0x10] sm:$0xf]
      %v338 = vld [vmem:[%s1 + $0x14] sm:$0xf]
      %v339 = vld [vmem:[%s1 + $0x18] sm:$0xf]
      %v340 = vld [vmem:[%s1 + $0x1c] sm:$0xf]
      %v341 = vld [vmem:[%s1 + $0x20] sm:$0xf]
      %v342 = vld [vmem:[%s1 + $0x24] sm:$0xf]
      %v343 = vld [vmem:[%s1 + $0x28] sm:$0xf]
      %v344 = vld [vmem:[%s1 + $0x2c] sm:$0xf]
      %v345 = vld [vmem:[%s1 + $0x30] sm:$0xf]
      %v346 = vld [vmem:[%s1 + $0x34] sm:$0xf]
      %v347 = vld [vmem:[%s1 + $0x38] sm:$0xf]
      %v348 = vld [vmem:[%s1 + $0x3c] sm:$0xf]
      %v349 = vld [vmem:[%s1 + $0x40] sm:$0xf]
      %v350 = vld [vmem:[%s1 + $0x44] sm:$0xf]
      %v351 = vld [vmem:[%s1 + $0x48] sm:$0xf]
      %v352 = vld [vmem:[%s1 + $0x4c] sm:$0xf]
      %v481 = vunpack.c.l.b16 %v205
      %v482 = vunpack.c.h.b16 %v205
      %v483 = vunpack.c.l.b16 %v206
      %v484 = vunpack.c.h.b16 %v206
      %v485 = vunpack.c.l.b16 %v207
      %v486 = vunpack.c.h.b16 %v207
      %v487 = vunpack.c.l.b16 %v208
      %v488 = vunpack.c.h.b16 %v208
      %v489 = vunpack.c.l.b16 %v209
      %v490 = vunpack.c.h.b16 %v209
      %v491 = vunpack.c.l.b16 %v210
      %v492 = vunpack.c.h.b16 %v210
      %v493 = vunpack.c.l.b16 %v211
      %v494 = vunpack.c.h.b16 %v211
      %v495 = vunpack.c.l.b16 %v212
      %v496 = vunpack.c.h.b16 %v212
      %v497 = vunpack.c.l.b16 %v213
      %v498 = vunpack.c.h.b16 %v213
      %v499 = vunpack.c.l.b16 %v214
      %v500 = vunpack.c.h.b16 %v214
      %v501 = vunpack.c.l.b16 %v215
      %v502 = vunpack.c.h.b16 %v215
      %v503 = vunpack.c.l.b16 %v216
      %v504 = vunpack.c.h.b16 %v216
      %v505 = vunpack.c.l.b16 %v217
      %v506 = vunpack.c.h.b16 %v217
      %v507 = vunpack.c.l.b16 %v218
      %v508 = vunpack.c.h.b16 %v218
      %v509 = vunpack.c.l.b16 %v219
      %v510 = vunpack.c.h.b16 %v219
      %v511 = vunpack.c.l.b16 %v220
      %v512 = vunpack.c.h.b16 %v220
      %v513 = vunpack.c.l.b16 %v221
      %v514 = vunpack.c.h.b16 %v221
      %v515 = vunpack.c.l.b16 %v222
      %v516 = vunpack.c.h.b16 %v222
      %v517 = vunpack.c.l.b16 %v223
      %v518 = vunpack.c.h.b16 %v223
      %v519 = vunpack.c.l.b16 %v224
      %v520 = vunpack.c.h.b16 %v224
      %v521 = vunpack.c.l.b16 %v225
      %v522 = vunpack.c.h.b16 %v225
      %v523 = vunpack.c.l.b16 %v226
      %v524 = vunpack.c.h.b16 %v226
      %v525 = vunpack.c.l.b16 %v227
      %v526 = vunpack.c.h.b16 %v227
      %v527 = vunpack.c.l.b16 %v228
      %v528 = vunpack.c.h.b16 %v228
      %v529 = vunpack.c.l.b16 %v229
      %v530 = vunpack.c.h.b16 %v229
      %v531 = vunpack.c.l.b16 %v230
      %v532 = vunpack.c.h.b16 %v230
      %v533 = vunpack.c.l.b16 %v231
      %v534 = vunpack.c.h.b16 %v231
      %v535 = vunpack.c.l.b16 %v232
      %v536 = vunpack.c.h.b16 %v232
      %v537 = vunpack.c.l.b16 %v233
      %v538 = vunpack.c.h.b16 %v233
      %v539 = vunpack.c.l.b16 %v234
      %v540 = vunpack.c.h.b16 %v234
      %v541 = vunpack.c.l.b16 %v235
      %v542 = vunpack.c.h.b16 %v235
      %v543 = vunpack.c.l.b16 %v236
      %v544 = vunpack.c.h.b16 %v236
      %v545 = vunpack.c.l.b16 %v237
      %v546 = vunpack.c.h.b16 %v237
      %v547 = vunpack.c.l.b16 %v238
      %v548 = vunpack.c.h.b16 %v238
      %v549 = vunpack.c.l.b16 %v239
      %v550 = vunpack.c.h.b16 %v239
      %v551 = vunpack.c.l.b16 %v240
      %v552 = vunpack.c.h.b16 %v240
      %v553 = vunpack.c.l.b16 %v241
      %v554 = vunpack.c.h.b16 %v241
      %v555 = vunpack.c.l.b16 %v242
      %v556 = vunpack.c.h.b16 %v242
      %v557 = vunpack.c.l.b16 %v243
      %v558 = vunpack.c.h.b16 %v243
      %v559 = vunpack.c.l.b16 %v244
      %v560 = vunpack.c.h.b16 %v244
      %v561 = vunpack.c.l.b16 %v245
      %v562 = vunpack.c.h.b16 %v245
      %v563 = vunpack.c.l.b16 %v246
      %v564 = vunpack.c.h.b16 %v246
      %v565 = vunpack.c.l.b16 %v247
      %v566 = vunpack.c.h.b16 %v247
      %v567 = vunpack.c.l.b16 %v248
      %v568 = vunpack.c.h.b16 %v248
      %v569 = vunpack.c.l.b16 %v249
      %v570 = vunpack.c.h.b16 %v249
      %v571 = vunpack.c.l.b16 %v250
      %v572 = vunpack.c.h.b16 %v250
      %v573 = vunpack.c.l.b16 %v251
      %v574 = vunpack.c.h.b16 %v251
      %v575 = vunpack.c.l.b16 %v252
      %v576 = vunpack.c.h.b16 %v252
      %v577 = vunpack.c.l.b16 %v253
      %v578 = vunpack.c.h.b16 %v253
      %v579 = vunpack.c.l.b16 %v254
      %v580 = vunpack.c.h.b16 %v254
      %v581 = vunpack.c.l.b16 %v255
      %v582 = vunpack.c.h.b16 %v255
      %v583 = vunpack.c.l.b16 %v256
      %v584 = vunpack.c.h.b16 %v256
      %v585 = vunpack.c.l.b16 %v257
      %v586 = vunpack.c.h.b16 %v257
      %v587 = vunpack.c.l.b16 %v258
      %v588 = vunpack.c.h.b16 %v258
      %v589 = vunpack.c.l.b16 %v259
      %v590 = vunpack.c.h.b16 %v259
      %v591 = vunpack.c.l.b16 %v260
      %v592 = vunpack.c.h.b16 %v260
      %v593 = vunpack.c.l.b16 %v261
      %v594 = vunpack.c.h.b16 %v261
      %v595 = vunpack.c.l.b16 %v262
      %v596 = vunpack.c.h.b16 %v262
      %v597 = vunpack.c.l.b16 %v263
      %v598 = vunpack.c.h.b16 %v263
      %v599 = vunpack.c.l.b16 %v264
      %v600 = vunpack.c.h.b16 %v264
      %v601 = vunpack.c.l.b16 %v265
      %v602 = vunpack.c.h.b16 %v265
      %v603 = vunpack.c.l.b16 %v266
      %v604 = vunpack.c.h.b16 %v266
      %v605 = vunpack.c.l.b16 %v267
      %v606 = vunpack.c.h.b16 %v267
      %v607 = vunpack.c.l.b16 %v268
      %v608 = vunpack.c.h.b16 %v268
      %v609 = vunpack.c.l.b16 %v269
      %v610 = vunpack.c.h.b16 %v269
      %v611 = vunpack.c.l.b16 %v270
      %v612 = vunpack.c.h.b16 %v270
      %v613 = vunpack.c.l.b16 %v271
      %v614 = vunpack.c.h.b16 %v271
      %v615 = vunpack.c.l.b16 %v272
      %v616 = vunpack.c.h.b16 %v272
      %v617 = vunpack.c.l.b16 %v273
      %v618 = vunpack.c.h.b16 %v273
      %v619 = vunpack.c.l.b16 %v274
      %v620 = vunpack.c.h.b16 %v274
      %v621 = vunpack.c.l.b16 %v275
      %v622 = vunpack.c.h.b16 %v275
      %v623 = vunpack.c.l.b16 %v276
      %v624 = vunpack.c.h.b16 %v276
      %v625 = vunpack.c.l.b16 %v277
      %v626 = vunpack.c.h.b16 %v277
      %v627 = vunpack.c.l.b16 %v278
      %v628 = vunpack.c.h.b16 %v278
      %v629 = vunpack.c.l.b16 %v279
      %v630 = vunpack.c.h.b16 %v279
      %v631 = vunpack.c.l.b16 %v280
      %v632 = vunpack.c.h.b16 %v280
      %v633 = vunpack.c.l.b16 %v281
      %v634 = vunpack.c.h.b16 %v281
      %v635 = vunpack.c.l.b16 %v282
      %v636 = vunpack.c.h.b16 %v282
      %v637 = vunpack.c.l.b16 %v283
      %v638 = vunpack.c.h.b16 %v283
      %v639 = vunpack.c.l.b16 %v284
      %v640 = vunpack.c.h.b16 %v284
      %v641 = vunpack.c.l.b16 %v285
      %v642 = vunpack.c.h.b16 %v285
      %v643 = vunpack.c.l.b16 %v286
      %v644 = vunpack.c.h.b16 %v286
      %v645 = vunpack.c.l.b16 %v287
      %v646 = vunpack.c.h.b16 %v287
      %v647 = vunpack.c.l.b16 %v288
      %v648 = vunpack.c.h.b16 %v288
      %v649 = vunpack.c.l.b16 %v289
      %v650 = vunpack.c.h.b16 %v289
      %v651 = vunpack.c.l.b16 %v290
      %v652 = vunpack.c.h.b16 %v290
      %v653 = vunpack.c.l.b16 %v291
      %v654 = vunpack.c.h.b16 %v291
      %v655 = vunpack.c.l.b16 %v292
      %v656 = vunpack.c.h.b16 %v292
      %v657 = vunpack.c.l.b16 %v293
      %v658 = vunpack.c.h.b16 %v293
      %v659 = vunpack.c.l.b16 %v294
      %v660 = vunpack.c.h.b16 %v294
      %v661 = vunpack.c.l.b16 %v295
      %v662 = vunpack.c.h.b16 %v295
      %v663 = vunpack.c.l.b16 %v296
      %v664 = vunpack.c.h.b16 %v296
      %v665 = vunpack.c.l.b16 %v297
      %v666 = vunpack.c.h.b16 %v297
      %v667 = vunpack.c.l.b16 %v298
      %v668 = vunpack.c.h.b16 %v298
      %v669 = vunpack.c.l.b16 %v299
      %v670 = vunpack.c.h.b16 %v299
      %v671 = vunpack.c.l.b16 %v300
      %v672 = vunpack.c.h.b16 %v300
      %v673 = vunpack.c.l.b16 %v301
      %v674 = vunpack.c.h.b16 %v301
      %v675 = vunpack.c.l.b16 %v302
      %v676 = vunpack.c.h.b16 %v302
      %v677 = vunpack.c.l.b16 %v303
      %v678 = vunpack.c.h.b16 %v303
      %v679 = vunpack.c.l.b16 %v304
      %v680 = vunpack.c.h.b16 %v304
      %v681 = vunpack.c.l.b16 %v305
      %v682 = vunpack.c.h.b16 %v305
      %v683 = vunpack.c.l.b16 %v306
      %v684 = vunpack.c.h.b16 %v306
      %v685 = vunpack.c.l.b16 %v307
      %v686 = vunpack.c.h.b16 %v307
      %v687 = vunpack.c.l.b16 %v308
      %v688 = vunpack.c.h.b16 %v308
      %v689 = vunpack.c.l.b16 %v309
      %v690 = vunpack.c.h.b16 %v309
      %v691 = vunpack.c.l.b16 %v310
      %v692 = vunpack.c.h.b16 %v310
      %v693 = vunpack.c.l.b16 %v311
      %v694 = vunpack.c.h.b16 %v311
      %v695 = vunpack.c.l.b16 %v312
      %v696 = vunpack.c.h.b16 %v312
      %v697 = vunpack.c.l.b16 %v313
      %v698 = vunpack.c.h.b16 %v313
      %v699 = vunpack.c.l.b16 %v314
      %v700 = vunpack.c.h.b16 %v314
      %v701 = vunpack.c.l.b16 %v315
      %v702 = vunpack.c.h.b16 %v315
      %v703 = vunpack.c.l.b16 %v316
      %v704 = vunpack.c.h.b16 %v316
      %v705 = vunpack.c.l.b16 %v317
      %v706 = vunpack.c.h.b16 %v317
      %v707 = vunpack.c.l.b16 %v318
      %v708 = vunpack.c.h.b16 %v318
      %v709 = vunpack.c.l.b16 %v319
      %v710 = vunpack.c.h.b16 %v319
      %v711 = vunpack.c.l.b16 %v320
      %v712 = vunpack.c.h.b16 %v320
      %v713 = vunpack.c.l.b16 %v321
      %v714 = vunpack.c.h.b16 %v321
      %v715 = vunpack.c.l.b16 %v322
      %v716 = vunpack.c.h.b16 %v322
      %v717 = vunpack.c.l.b16 %v323
      %v718 = vunpack.c.h.b16 %v323
      %v719 = vunpack.c.l.b16 %v324
      %v720 = vunpack.c.h.b16 %v324
      %v721 = vunpack.c.l.b16 %v325
      %v722 = vunpack.c.h.b16 %v325
      %v723 = vunpack.c.l.b16 %v326
      %v724 = vunpack.c.h.b16 %v326
      %v725 = vunpack.c.l.b16 %v327
      %v726 = vunpack.c.h.b16 %v327
      %v727 = vunpack.c.l.b16 %v328
      %v728 = vunpack.c.h.b16 %v328
      %v729 = vunpack.c.l.b16 %v329
      %v730 = vunpack.c.h.b16 %v329
      %v731 = vunpack.c.l.b16 %v330
      %v732 = vunpack.c.h.b16 %v330
      %v733 = vunpack.c.l.b16 %v331
      %v734 = vunpack.c.h.b16 %v331
      %v735 = vunpack.c.l.b16 %v332
      %v736 = vunpack.c.h.b16 %v332
      %v737 = vpack.c.b16 %v483, %v481
      %v738 = vpack.c.b16 %v484, %v482
      %v739 = vpack.c.b16 %v487, %v485
      %v740 = vpack.c.b16 %v488, %v486
      %v741 = vpack.c.b16 %v491, %v489
      %v742 = vpack.c.b16 %v492, %v490
      %v743 = vpack.c.b16 %v495, %v493
      %v744 = vpack.c.b16 %v496, %v494
      %v745 = vpack.c.b16 %v499, %v497
      %v746 = vpack.c.b16 %v500, %v498
      %v747 = vpack.c.b16 %v503, %v501
      %v748 = vpack.c.b16 %v504, %v502
      %v749 = vpack.c.b16 %v507, %v505
      %v750 = vpack.c.b16 %v508, %v506
      %v751 = vpack.c.b16 %v511, %v509
      %v752 = vpack.c.b16 %v512, %v510
      %v753 = vpack.c.b16 %v515, %v513
      %v754 = vpack.c.b16 %v516, %v514
      %v755 = vpack.c.b16 %v519, %v517
      %v756 = vpack.c.b16 %v520, %v518
      %v757 = vpack.c.b16 %v523, %v521
      %v758 = vpack.c.b16 %v524, %v522
      %v759 = vpack.c.b16 %v527, %v525
      %v760 = vpack.c.b16 %v528, %v526
      %v761 = vpack.c.b16 %v531, %v529
      %v762 = vpack.c.b16 %v532, %v530
      %v763 = vpack.c.b16 %v535, %v533
      %v764 = vpack.c.b16 %v536, %v534
      %v765 = vpack.c.b16 %v539, %v537
      %v766 = vpack.c.b16 %v540, %v538
      %v767 = vpack.c.b16 %v543, %v541
      %v768 = vpack.c.b16 %v544, %v542
      %v769 = vpack.c.b16 %v547, %v545
      %v770 = vpack.c.b16 %v548, %v546
      %v771 = vpack.c.b16 %v551, %v549
      %v772 = vpack.c.b16 %v552, %v550
      %v773 = vpack.c.b16 %v555, %v553
      %v774 = vpack.c.b16 %v556, %v554
      %v775 = vpack.c.b16 %v559, %v557
      %v776 = vpack.c.b16 %v560, %v558
      %v777 = vpack.c.b16 %v563, %v561
      %v778 = vpack.c.b16 %v564, %v562
      %v779 = vpack.c.b16 %v567, %v565
      %v780 = vpack.c.b16 %v568, %v566
      %v781 = vpack.c.b16 %v571, %v569
      %v782 = vpack.c.b16 %v572, %v570
      %v783 = vpack.c.b16 %v575, %v573
      %v784 = vpack.c.b16 %v576, %v574
      %v785 = vpack.c.b16 %v579, %v577
      %v786 = vpack.c.b16 %v580, %v578
      %v787 = vpack.c.b16 %v583, %v581
      %v788 = vpack.c.b16 %v584, %v582
      %v789 = vpack.c.b16 %v587, %v585
      %v790 = vpack.c.b16 %v588, %v586
      %v791 = vpack.c.b16 %v591, %v589
      %v792 = vpack.c.b16 %v592, %v590
      %v793 = vpack.c.b16 %v595, %v593
      %v794 = vpack.c.b16 %v596, %v594
      %v795 = vpack.c.b16 %v599, %v597
      %v796 = vpack.c.b16 %v600, %v598
      %v797 = vpack.c.b16 %v603, %v601
      %v798 = vpack.c.b16 %v604, %v602
      %v799 = vpack.c.b16 %v607, %v605
      %v800 = vpack.c.b16 %v608, %v606
      %v801 = vpack.c.b16 %v611, %v609
      %v802 = vpack.c.b16 %v612, %v610
      %v803 = vpack.c.b16 %v615, %v613
      %v804 = vpack.c.b16 %v616, %v614
      %v805 = vpack.c.b16 %v619, %v617
      %v806 = vpack.c.b16 %v620, %v618
      %v807 = vpack.c.b16 %v623, %v621
      %v808 = vpack.c.b16 %v624, %v622
      %v809 = vpack.c.b16 %v627, %v625
      %v810 = vpack.c.b16 %v628, %v626
      %v811 = vpack.c.b16 %v631, %v629
      %v812 = vpack.c.b16 %v632, %v630
      %v813 = vpack.c.b16 %v635, %v633
      %v814 = vpack.c.b16 %v636, %v634
      %v815 = vpack.c.b16 %v639, %v637
      %v816 = vpack.c.b16 %v640, %v638
      %v817 = vpack.c.b16 %v643, %v641
      %v818 = vpack.c.b16 %v644, %v642
      %v819 = vpack.c.b16 %v647, %v645
      %v820 = vpack.c.b16 %v648, %v646
      %v821 = vpack.c.b16 %v651, %v649
      %v822 = vpack.c.b16 %v652, %v650
      %v823 = vpack.c.b16 %v655, %v653
      %v824 = vpack.c.b16 %v656, %v654
      %v825 = vpack.c.b16 %v659, %v657
      %v826 = vpack.c.b16 %v660, %v658
      %v827 = vpack.c.b16 %v663, %v661
      %v828 = vpack.c.b16 %v664, %v662
      %v829 = vpack.c.b16 %v667, %v665
      %v830 = vpack.c.b16 %v668, %v666
      %v831 = vpack.c.b16 %v671, %v669
      %v832 = vpack.c.b16 %v672, %v670
      %v833 = vpack.c.b16 %v675, %v673
      %v834 = vpack.c.b16 %v676, %v674
      %v835 = vpack.c.b16 %v679, %v677
      %v836 = vpack.c.b16 %v680, %v678
      %v837 = vpack.c.b16 %v683, %v681
      %v838 = vpack.c.b16 %v684, %v682
      %v839 = vpack.c.b16 %v687, %v685
      %v840 = vpack.c.b16 %v688, %v686
      %v841 = vpack.c.b16 %v691, %v689
      %v842 = vpack.c.b16 %v692, %v690
      %v843 = vpack.c.b16 %v695, %v693
      %v844 = vpack.c.b16 %v696, %v694
      %v845 = vpack.c.b16 %v699, %v697
      %v846 = vpack.c.b16 %v700, %v698
      %v847 = vpack.c.b16 %v703, %v701
      %v848 = vpack.c.b16 %v704, %v702
      %v849 = vpack.c.b16 %v707, %v705
      %v850 = vpack.c.b16 %v708, %v706
      %v851 = vpack.c.b16 %v711, %v709
      %v852 = vpack.c.b16 %v712, %v710
      %v853 = vpack.c.b16 %v715, %v713
      %v854 = vpack.c.b16 %v716, %v714
      %v855 = vpack.c.b16 %v719, %v717
      %v856 = vpack.c.b16 %v720, %v718
      %v857 = vpack.c.b16 %v723, %v721
      %v858 = vpack.c.b16 %v724, %v722
      %v859 = vpack.c.b16 %v727, %v725
      %v860 = vpack.c.b16 %v728, %v726
      %v861 = vpack.c.b16 %v731, %v729
      %v862 = vpack.c.b16 %v732, %v730
      %v863 = vpack.c.b16 %v735, %v733
      %v864 = vpack.c.b16 %v736, %v734
      %v949 = vunpack.c.l.b16 %v333
      %v950 = vunpack.c.l.b16 %v334
      %v951 = vunpack.c.l.b16 %v335
      %v952 = vunpack.c.l.b16 %v336
      %v953 = vunpack.c.l.b16 %v337
      %v954 = vunpack.c.l.b16 %v338
      %v955 = vunpack.c.l.b16 %v339
      %v956 = vunpack.c.l.b16 %v340
      %v957 = vunpack.c.l.b16 %v341
      %v958 = vunpack.c.l.b16 %v342
      %v959 = vunpack.c.l.b16 %v343
      %v960 = vunpack.c.l.b16 %v344
      %v961 = vunpack.c.l.b16 %v345
      %v962 = vunpack.c.l.b16 %v346
      %v963 = vunpack.c.l.b16 %v347
      %v964 = vunpack.c.l.b16 %v348
      %v965 = vunpack.c.l.b16 %v349
      %v966 = vunpack.c.l.b16 %v350
      %v967 = vunpack.c.l.b16 %v351
      %v968 = vunpack.c.l.b16 %v352
      %v969 = vpack.c.b16 %v950, %v949
      %v970 = vpack.c.b16 %v952, %v951
      %v971 = vpack.c.b16 %v954, %v953
      %v972 = vpack.c.b16 %v956, %v955
      %v973 = vpack.c.b16 %v958, %v957
      %v974 = vpack.c.b16 %v960, %v959
      %v975 = vpack.c.b16 %v962, %v961
      %v976 = vpack.c.b16 %v964, %v963
      %v977 = vpack.c.b16 %v966, %v965
      %v978 = vpack.c.b16 %v968, %v967
      %vm989 = vcmask 261120
      %v991 = vsel %vm989, %v738, 0
      %v994 = vsel %vm989, %v740, 0
      %v997 = vsel %vm989, %v742, 0
      %v1000 = vsel %vm989, %v744, 0
      %v1003 = vsel %vm989, %v746, 0
      %v1006 = vsel %vm989, %v748, 0
      %v1009 = vsel %vm989, %v750, 0
      %v1012 = vsel %vm989, %v752, 0
      %v1015 = vsel %vm989, %v754, 0
      %v1018 = vsel %vm989, %v756, 0
      %v1021 = vsel %vm989, %v758, 0
      %v1024 = vsel %vm989, %v760, 0
      %v1027 = vsel %vm989, %v762, 0
      %v1030 = vsel %vm989, %v764, 0
      %v1033 = vsel %vm989, %v766, 0
      %v1036 = vsel %vm989, %v768, 0
      %v1039 = vsel %vm989, %v770, 0
      %v1042 = vsel %vm989, %v772, 0
      %v1045 = vsel %vm989, %v774, 0
      %v1048 = vsel %vm989, %v776, 0
      %v1051 = vsel %vm989, %v778, 0
      %v1054 = vsel %vm989, %v780, 0
      %v1057 = vsel %vm989, %v782, 0
      %v1060 = vsel %vm989, %v784, 0
      %v1063 = vsel %vm989, %v786, 0
      %v1066 = vsel %vm989, %v788, 0
      %v1069 = vsel %vm989, %v790, 0
      %v1072 = vsel %vm989, %v792, 0
      %v1075 = vsel %vm989, %v794, 0
      %v1078 = vsel %vm989, %v796, 0
      %v1081 = vsel %vm989, %v798, 0
      %v1084 = vsel %vm989, %v800, 0
      %v1087 = vsel %vm989, %v802, 0
      %v1090 = vsel %vm989, %v804, 0
      %v1093 = vsel %vm989, %v806, 0
      %v1096 = vsel %vm989, %v808, 0
      %v1099 = vsel %vm989, %v810, 0
      %v1102 = vsel %vm989, %v812, 0
      %v1105 = vsel %vm989, %v814, 0
      %v1108 = vsel %vm989, %v816, 0
      %v1111 = vsel %vm989, %v818, 0
      %v1114 = vsel %vm989, %v820, 0
      %v1117 = vsel %vm989, %v822, 0
      %v1120 = vsel %vm989, %v824, 0
      %v1123 = vsel %vm989, %v826, 0
      %v1126 = vsel %vm989, %v828, 0
      %v1129 = vsel %vm989, %v830, 0
      %v1132 = vsel %vm989, %v832, 0
      %v1135 = vsel %vm989, %v834, 0
      %v1138 = vsel %vm989, %v836, 0
      %v1141 = vsel %vm989, %v838, 0
      %v1144 = vsel %vm989, %v840, 0
      %v1147 = vsel %vm989, %v842, 0
      %v1150 = vsel %vm989, %v844, 0
      %v1153 = vsel %vm989, %v846, 0
      %v1156 = vsel %vm989, %v848, 0
      %v1159 = vsel %vm989, %v850, 0
      %v1162 = vsel %vm989, %v852, 0
      %v1165 = vsel %vm989, %v854, 0
      %v1168 = vsel %vm989, %v856, 0
      %v1171 = vsel %vm989, %v858, 0
      %v1174 = vsel %vm989, %v860, 0
      %v1177 = vsel %vm989, %v862, 0
      %v1180 = vsel %vm989, %v864, 0
      %1182 = vmatprep.subr.bf16.mxu0 0
      %1183 = vmatpush1.bf16.msra.mxu0 %v969
      %1184 = vmatprep.subr.bf16.mxu0 0
      %1185 = vmatpush1.bf16.msra.mxu0 %v970
      %1186 = vmatprep.subr.bf16.mxu0 0
      %1187 = vmatpush1.bf16.msra.mxu0 %v971
      %1188 = vmatprep.subr.bf16.mxu0 0
      %1189 = vmatpush1.bf16.msra.mxu0 %v972
      %1190 = vmatprep.subr.bf16.mxu0 0
      %1191 = vmatpush1.bf16.msra.mxu0 %v973
      %1192 = vmatprep.subr.bf16.mxu0 0
      %1193 = vmatpush1.bf16.msra.mxu0 %v974
      %1194 = vmatprep.subr.bf16.mxu0 0
      %1195 = vmatpush1.bf16.msra.mxu0 %v975
      %1196 = vmatprep.subr.bf16.mxu0 0
      %1197 = vmatpush1.bf16.msra.mxu0 %v976
      %1198 = vmatprep.subr.bf16.mxu0 0
      %1199 = vmatpush1.bf16.msra.mxu0 %v977
      %1200 = vmatprep.subr.bf16.mxu0 0
      %1201 = vmatpush1.bf16.msra.mxu0 %v978
      %1202 = vmatprep.subr.bf16.mxu0 0
      %1203 = vmatpush1.bf16.msra.mxu0 0
      %1204 = vmatprep.subr.bf16.mxu0 0
      %1205 = vmatpush1.bf16.msra.mxu0 0
      %1206 = vmatprep.subr.bf16.mxu0 0
      %1207 = vmatpush1.bf16.msra.mxu0 0
      %1208 = vmatprep.subr.bf16.mxu0 0
      %1209 = vmatpush1.bf16.msra.mxu0 0
      %1210 = vmatprep.subr.bf16.mxu0 0
      %1211 = vmatpush1.bf16.msra.mxu0 0
      %1212 = vmatprep.subr.bf16.mxu0 0
      %1213 = vmatpush1.bf16.msra.mxu0 0
      %1214 = vmatprep.mubr.bf16.mxu0 %v991
      %1215 = vmatmul.mubr.bf16.gmra.mrb[0].mxu0 %v737
      %v1216 = vpop.f32.mrb[0].mxu0
      %v1217 = vadd.f32 0.0, %v1216
      %v1218 = vpop.f32.mrb[0].mxu0
      %v1219 = vpop.f32.mrb[0].mxu0
      %v1220 = vadd.f32 0.0, %v1219
      %v1221 = vpop.f32.mrb[0].mxu0
      %1222 = vmatprep.mubr.bf16.mxu0 %v994
      %1223 = vmatmul.mubr.bf16.gmra.mrb[0].mxu0 %v739
      %v1224 = vpop.f32.mrb[0].mxu0
      %v1225 = vadd.f32 0.0, %v1224
      %v1226 = vpop.f32.mrb[0].mxu0
      %v1227 = vpop.f32.mrb[0].mxu0
      %v1228 = vadd.f32 0.0, %v1227
      %v1229 = vpop.f32.mrb[0].mxu0
      %1230 = vmatprep.mubr.bf16.mxu0 %v997
      %1231 = vmatmul.mubr.bf16.gmra.mrb[0].mxu0 %v741
      %v1232 = vpop.f32.mrb[0].mxu0
      %v1233 = vadd.f32 0.0, %v1232
      %v1234 = vpop.f32.mrb[0].mxu0
      %v1235 = vpop.f32.mrb[0].mxu0
      %v1236 = vadd.f32 0.0, %v1235
      %v1237 = vpop.f32.mrb[0].mxu0
      %1238 = vmatprep.mubr.bf16.mxu0 %v1000
      %1239 = vmatmul.mubr.bf16.gmra.mrb[0].mxu0 %v743
      %v1240 = vpop.f32.mrb[0].mxu0
      %v1241 = vadd.f32 0.0, %v1240
      %v1242 = vpop.f32.mrb[0].mxu0
      %v1243 = vpop.f32.mrb[0].mxu0
      %v1244 = vadd.f32 0.0, %v1243
      %v1245 = vpop.f32.mrb[0].mxu0
      %1246 = vmatprep.mubr.bf16.mxu0 %v1003
      %1247 = vmatmul.mubr.bf16.gmra.mrb[0].mxu0 %v745
      %v1248 = vpop.f32.mrb[0].mxu0
      %v1249 = vadd.f32 0.0, %v1248
      %v1250 = vpop.f32.mrb[0].mxu0
      %v1251 = vpop.f32.mrb[0].mxu0
      %v1252 = vadd.f32 0.0, %v1251
      %v1253 = vpop.f32.mrb[0].mxu0
      %1254 = vmatprep.mubr.bf16.mxu0 %v1006
      %1255 = vmatmul.mubr.bf16.gmra.mrb[0].mxu0 %v747
      %v1256 = vpop.f32.mrb[0].mxu0
      %v1257 = vadd.f32 0.0, %v1256
      %v1258 = vpop.f32.mrb[0].mxu0
      %v1259 = vpop.f32.mrb[0].mxu0
      %v1260 = vadd.f32 0.0, %v1259
      %v1261 = vpop.f32.mrb[0].mxu0
      %1262 = vmatprep.mubr.bf16.mxu0 %v1009
      %1263 = vmatmul.mubr.bf16.gmra.mrb[0].mxu0 %v749
      %v1264 = vpop.f32.mrb[0].mxu0
      %v1265 = vadd.f32 0.0, %v1264
      %v1266 = vpop.f32.mrb[0].mxu0
      %v1267 = vpop.f32.mrb[0].mxu0
      %v1268 = vadd.f32 0.0, %v1267
      %v1269 = vpop.f32.mrb[0].mxu0
      %1270 = vmatprep.mubr.bf16.mxu0 %v1012
      %1271 = vmatmul.mubr.bf16.gmra.mrb[0].mxu0 %v751
      %v1272 = vpop.f32.mrb[0].mxu0
      %v1273 = vadd.f32 0.0, %v1272
      %v1274 = vpop.f32.mrb[0].mxu0
      %v1275 = vpop.f32.mrb[0].mxu0
      %v1276 = vadd.f32 0.0, %v1275
      %v1277 = vpop.f32.mrb[0].mxu0
      %1278 = vmatprep.mubr.bf16.mxu0 %v1015
      %1279 = vmatmul.mubr.bf16.gmra.mrb[0].mxu0 %v753
      %v1280 = vpop.f32.mrb[0].mxu0
      %v1281 = vadd.f32 0.0, %v1280
      %v1282 = vpop.f32.mrb[0].mxu0
      %v1283 = vpop.f32.mrb[0].mxu0
      %v1284 = vadd.f32 0.0, %v1283
      %v1285 = vpop.f32.mrb[0].mxu0
      %1286 = vmatprep.mubr.bf16.mxu0 %v1018
      %1287 = vmatmul.mubr.bf16.gmra.mrb[0].mxu0 %v755
      %v1288 = vpop.f32.mrb[0].mxu0
      %v1289 = vadd.f32 0.0, %v1288
      %v1290 = vpop.f32.mrb[0].mxu0
      %v1291 = vpop.f32.mrb[0].mxu0
      %v1292 = vadd.f32 0.0, %v1291
      %v1293 = vpop.f32.mrb[0].mxu0
      %1294 = vmatprep.mubr.bf16.mxu0 %v1021
      %1295 = vmatmul.mubr.bf16.gmra.mrb[0].mxu0 %v757
      %v1296 = vpop.f32.mrb[0].mxu0
      %v1297 = vadd.f32 0.0, %v1296
      %v1298 = vpop.f32.mrb[0].mxu0
      %v1299 = vpop.f32.mrb[0].mxu0
      %v1300 = vadd.f32 0.0, %v1299
      %v1301 = vpop.f32.mrb[0].mxu0
      %1302 = vmatprep.mubr.bf16.mxu0 %v1024
      %1303 = vmatmul.mubr.bf16.gmra.mrb[0].mxu0 %v759
      %v1304 = vpop.f32.mrb[0].mxu0
      %v1305 = vadd.f32 0.0, %v1304
      %v1306 = vpop.f32.mrb[0].mxu0
      %v1307 = vpop.f32.mrb[0].mxu0
      %v1308 = vadd.f32 0.0, %v1307
      %v1309 = vpop.f32.mrb[0].mxu0
      %1310 = vmatprep.mubr.bf16.mxu0 %v1027
      %1311 = vmatmul.mubr.bf16.gmra.mrb[0].mxu0 %v761
      %v1312 = vpop.f32.mrb[0].mxu0
      %v1313 = vadd.f32 0.0, %v1312
      %v1314 = vpop.f32.mrb[0].mxu0
      %v1315 = vpop.f32.mrb[0].mxu0
      %v1316 = vadd.f32 0.0, %v1315
      %v1317 = vpop.f32.mrb[0].mxu0
      %1318 = vmatprep.mubr.bf16.mxu0 %v1030
      %1319 = vmatmul.mubr.bf16.gmra.mrb[0].mxu0 %v763
      %v1320 = vpop.f32.mrb[0].mxu0
      %v1321 = vadd.f32 0.0, %v1320
      %v1322 = vpop.f32.mrb[0].mxu0
      %v1323 = vpop.f32.mrb[0].mxu0
      %v1324 = vadd.f32 0.0, %v1323
      %v1325 = vpop.f32.mrb[0].mxu0
      %1326 = vmatprep.mubr.bf16.mxu0 %v1033
      %1327 = vmatmul.mubr.bf16.gmra.mrb[0].mxu0 %v765
      %v1328 = vpop.f32.mrb[0].mxu0
      %v1329 = vadd.f32 0.0, %v1328
      %v1330 = vpop.f32.mrb[0].mxu0
      %v1331 = vpop.f32.mrb[0].mxu0
      %v1332 = vadd.f32 0.0, %v1331
      %v1333 = vpop.f32.mrb[0].mxu0
      %1334 = vmatprep.mubr.bf16.mxu0 %v1036
      %1335 = vmatmul.mubr.bf16.gmra.mrb[0].mxu0 %v767
      %v1336 = vpop.f32.mrb[0].mxu0
      %v1337 = vadd.f32 0.0, %v1336
      %v1338 = vpop.f32.mrb[0].mxu0
      %v1339 = vpop.f32.mrb[0].mxu0
      %v1340 = vadd.f32 0.0, %v1339
      %v1341 = vpop.f32.mrb[0].mxu0
      %1342 = vmatprep.mubr.bf16.mxu0 %v1039
      %1343 = vmatmul.mubr.bf16.gmra.mrb[0].mxu0 %v769
      %v1344 = vpop.f32.mrb[0].mxu0
      %v1345 = vadd.f32 0.0, %v1344
      %v1346 = vpop.f32.mrb[0].mxu0
      %v1347 = vpop.f32.mrb[0].mxu0
      %v1348 = vadd.f32 0.0, %v1347
      %v1349 = vpop.f32.mrb[0].mxu0
      %1350 = vmatprep.mubr.bf16.mxu0 %v1042
      %1351 = vmatmul.mubr.bf16.gmra.mrb[0].mxu0 %v771
      %v1352 = vpop.f32.mrb[0].mxu0
      %v1353 = vadd.f32 0.0, %v1352
      %v1354 = vpop.f32.mrb[0].mxu0
      %v1355 = vpop.f32.mrb[0].mxu0
      %v1356 = vadd.f32 0.0, %v1355
      %v1357 = vpop.f32.mrb[0].mxu0
      %1358 = vmatprep.mubr.bf16.mxu0 %v1045
      %1359 = vmatmul.mubr.bf16.gmra.mrb[0].mxu0 %v773
      %v1360 = vpop.f32.mrb[0].mxu0
      %v1361 = vadd.f32 0.0, %v1360
      %v1362 = vpop.f32.mrb[0].mxu0
      %v1363 = vpop.f32.mrb[0].mxu0
      %v1364 = vadd.f32 0.0, %v1363
      %v1365 = vpop.f32.mrb[0].mxu0
      %1366 = vmatprep.mubr.bf16.mxu0 %v1048
      %1367 = vmatmul.mubr.bf16.gmra.mrb[0].mxu0 %v775
      %v1368 = vpop.f32.mrb[0].mxu0
      %v1369 = vadd.f32 0.0, %v1368
      %v1370 = vpop.f32.mrb[0].mxu0
      %v1371 = vpop.f32.mrb[0].mxu0
      %v1372 = vadd.f32 0.0, %v1371
      %v1373 = vpop.f32.mrb[0].mxu0
      %1374 = vmatprep.mubr.bf16.mxu0 %v1051
      %1375 = vmatmul.mubr.bf16.gmra.mrb[0].mxu0 %v777
      %v1376 = vpop.f32.mrb[0].mxu0
      %v1377 = vadd.f32 0.0, %v1376
      %v1378 = vpop.f32.mrb[0].mxu0
      %v1379 = vpop.f32.mrb[0].mxu0
      %v1380 = vadd.f32 0.0, %v1379
      %v1381 = vpop.f32.mrb[0].mxu0
      %1382 = vmatprep.mubr.bf16.mxu0 %v1054
      %1383 = vmatmul.mubr.bf16.gmra.mrb[0].mxu0 %v779
      %v1384 = vpop.f32.mrb[0].mxu0
      %v1385 = vadd.f32 0.0, %v1384
      %v1386 = vpop.f32.mrb[0].mxu0
      %v1387 = vpop.f32.mrb[0].mxu0
      %v1388 = vadd.f32 0.0, %v1387
      %v1389 = vpop.f32.mrb[0].mxu0
      %1390 = vmatprep.mubr.bf16.mxu0 %v1057
      %1391 = vmatmul.mubr.bf16.gmra.mrb[0].mxu0 %v781
      %v1392 = vpop.f32.mrb[0].mxu0
      %v1393 = vadd.f32 0.0, %v1392
      %v1394 = vpop.f32.mrb[0].mxu0
      %v1395 = vpop.f32.mrb[0].mxu0
      %v1396 = vadd.f32 0.0, %v1395
      %v1397 = vpop.f32.mrb[0].mxu0
      %1398 = vmatprep.mubr.bf16.mxu0 %v1060
      %1399 = vmatmul.mubr.bf16.gmra.mrb[0].mxu0 %v783
      %v1400 = vpop.f32.mrb[0].mxu0
      %v1401 = vadd.f32 0.0, %v1400
      %v1402 = vpop.f32.mrb[0].mxu0
      %v1403 = vpop.f32.mrb[0].mxu0
      %v1404 = vadd.f32 0.0, %v1403
      %v1405 = vpop.f32.mrb[0].mxu0
      %1406 = vmatprep.mubr.bf16.mxu0 %v1063
      %1407 = vmatmul.mubr.bf16.gmra.mrb[0].mxu0 %v785
      %v1408 = vpop.f32.mrb[0].mxu0
      %v1409 = vadd.f32 0.0, %v1408
      %v1410 = vpop.f32.mrb[0].mxu0
      %v1411 = vpop.f32.mrb[0].mxu0
      %v1412 = vadd.f32 0.0, %v1411
      %v1413 = vpop.f32.mrb[0].mxu0
      %1414 = vmatprep.mubr.bf16.mxu0 %v1066
      %1415 = vmatmul.mubr.bf16.gmra.mrb[0].mxu0 %v787
      %v1416 = vpop.f32.mrb[0].mxu0
      %v1417 = vadd.f32 0.0, %v1416
      %v1418 = vpop.f32.mrb[0].mxu0
      %v1419 = vpop.f32.mrb[0].mxu0
      %v1420 = vadd.f32 0.0, %v1419
      %v1421 = vpop.f32.mrb[0].mxu0
      %1422 = vmatprep.mubr.bf16.mxu0 %v1069
      %1423 = vmatmul.mubr.bf16.gmra.mrb[0].mxu0 %v789
      %v1424 = vpop.f32.mrb[0].mxu0
      %v1425 = vadd.f32 0.0, %v1424
      %v1426 = vpop.f32.mrb[0].mxu0
      %v1427 = vpop.f32.mrb[0].mxu0
      %v1428 = vadd.f32 0.0, %v1427
      %v1429 = vpop.f32.mrb[0].mxu0
      %1430 = vmatprep.mubr.bf16.mxu0 %v1072
      %1431 = vmatmul.mubr.bf16.gmra.mrb[0].mxu0 %v791
      %v1432 = vpop.f32.mrb[0].mxu0
      %v1433 = vadd.f32 0.0, %v1432
      %v1434 = vpop.f32.mrb[0].mxu0
      %v1435 = vpop.f32.mrb[0].mxu0
      %v1436 = vadd.f32 0.0, %v1435
      %v1437 = vpop.f32.mrb[0].mxu0
      %1438 = vmatprep.mubr.bf16.mxu0 %v1075
      %1439 = vmatmul.mubr.bf16.gmra.mrb[0].mxu0 %v793
      %v1440 = vpop.f32.mrb[0].mxu0
      %v1441 = vadd.f32 0.0, %v1440
      %v1442 = vpop.f32.mrb[0].mxu0
      %v1443 = vpop.f32.mrb[0].mxu0
      %v1444 = vadd.f32 0.0, %v1443
      %v1445 = vpop.f32.mrb[0].mxu0
      %1446 = vmatprep.mubr.bf16.mxu0 %v1078
      %1447 = vmatmul.mubr.bf16.gmra.mrb[0].mxu0 %v795
      %v1448 = vpop.f32.mrb[0].mxu0
      %v1449 = vadd.f32 0.0, %v1448
      %v1450 = vpop.f32.mrb[0].mxu0
      %v1451 = vpop.f32.mrb[0].mxu0
      %v1452 = vadd.f32 0.0, %v1451
      %v1453 = vpop.f32.mrb[0].mxu0
      %1454 = vmatprep.mubr.bf16.mxu0 %v1081
      %1455 = vmatmul.mubr.bf16.gmra.mrb[0].mxu0 %v797
      %v1456 = vpop.f32.mrb[0].mxu0
      %v1457 = vadd.f32 0.0, %v1456
      %v1458 = vpop.f32.mrb[0].mxu0
      %v1459 = vpop.f32.mrb[0].mxu0
      %v1460 = vadd.f32 0.0, %v1459
      %v1461 = vpop.f32.mrb[0].mxu0
      %1462 = vmatprep.mubr.bf16.mxu0 %v1084
      %1463 = vmatmul.mubr.bf16.gmra.mrb[0].mxu0 %v799
      %v1464 = vpop.f32.mrb[0].mxu0
      %v1465 = vadd.f32 0.0, %v1464
      %v1466 = vpop.f32.mrb[0].mxu0
      %v1467 = vpop.f32.mrb[0].mxu0
      %v1468 = vadd.f32 0.0, %v1467
      %v1469 = vpop.f32.mrb[0].mxu0
      %1470 = vmatprep.mubr.bf16.mxu0 %v1087
      %1471 = vmatmul.mubr.bf16.gmra.mrb[0].mxu0 %v801
      %v1472 = vpop.f32.mrb[0].mxu0
      %v1473 = vadd.f32 0.0, %v1472
      %v1474 = vpop.f32.mrb[0].mxu0
      %v1475 = vpop.f32.mrb[0].mxu0
      %v1476 = vadd.f32 0.0, %v1475
      %v1477 = vpop.f32.mrb[0].mxu0
      %1478 = vmatprep.mubr.bf16.mxu0 %v1090
      %1479 = vmatmul.mubr.bf16.gmra.mrb[0].mxu0 %v803
      %v1480 = vpop.f32.mrb[0].mxu0
      %v1481 = vadd.f32 0.0, %v1480
      %v1482 = vpop.f32.mrb[0].mxu0
      %v1483 = vpop.f32.mrb[0].mxu0
      %v1484 = vadd.f32 0.0, %v1483
      %v1485 = vpop.f32.mrb[0].mxu0
      %1486 = vmatprep.mubr.bf16.mxu0 %v1093
      %1487 = vmatmul.mubr.bf16.gmra.mrb[0].mxu0 %v805
      %v1488 = vpop.f32.mrb[0].mxu0
      %v1489 = vadd.f32 0.0, %v1488
      %v1490 = vpop.f32.mrb[0].mxu0
      %v1491 = vpop.f32.mrb[0].mxu0
      %v1492 = vadd.f32 0.0, %v1491
      %v1493 = vpop.f32.mrb[0].mxu0
      %1494 = vmatprep.mubr.bf16.mxu0 %v1096
      %1495 = vmatmul.mubr.bf16.gmra.mrb[0].mxu0 %v807
      %v1496 = vpop.f32.mrb[0].mxu0
      %v1497 = vadd.f32 0.0, %v1496
      %v1498 = vpop.f32.mrb[0].mxu0
      %v1499 = vpop.f32.mrb[0].mxu0
      %v1500 = vadd.f32 0.0, %v1499
      %v1501 = vpop.f32.mrb[0].mxu0
      %1502 = vmatprep.mubr.bf16.mxu0 %v1099
      %1503 = vmatmul.mubr.bf16.gmra.mrb[0].mxu0 %v809
      %v1504 = vpop.f32.mrb[0].mxu0
      %v1505 = vadd.f32 0.0, %v1504
      %v1506 = vpop.f32.mrb[0].mxu0
      %v1507 = vpop.f32.mrb[0].mxu0
      %v1508 = vadd.f32 0.0, %v1507
      %v1509 = vpop.f32.mrb[0].mxu0
      %1510 = vmatprep.mubr.bf16.mxu0 %v1102
      %1511 = vmatmul.mubr.bf16.gmra.mrb[0].mxu0 %v811
      %v1512 = vpop.f32.mrb[0].mxu0
      %v1513 = vadd.f32 0.0, %v1512
      %v1514 = vpop.f32.mrb[0].mxu0
      %v1515 = vpop.f32.mrb[0].mxu0
      %v1516 = vadd.f32 0.0, %v1515
      %v1517 = vpop.f32.mrb[0].mxu0
      %1518 = vmatprep.mubr.bf16.mxu0 %v1105
      %1519 = vmatmul.mubr.bf16.gmra.mrb[0].mxu0 %v813
      %v1520 = vpop.f32.mrb[0].mxu0
      %v1521 = vadd.f32 0.0, %v1520
      %v1522 = vpop.f32.mrb[0].mxu0
      %v1523 = vpop.f32.mrb[0].mxu0
      %v1524 = vadd.f32 0.0, %v1523
      %v1525 = vpop.f32.mrb[0].mxu0
      %1526 = vmatprep.mubr.bf16.mxu0 %v1108
      %1527 = vmatmul.mubr.bf16.gmra.mrb[0].mxu0 %v815
      %v1528 = vpop.f32.mrb[0].mxu0
      %v1529 = vadd.f32 0.0, %v1528
      %v1530 = vpop.f32.mrb[0].mxu0
      %v1531 = vpop.f32.mrb[0].mxu0
      %v1532 = vadd.f32 0.0, %v1531
      %v1533 = vpop.f32.mrb[0].mxu0
      %1534 = vmatprep.mubr.bf16.mxu0 %v1111
      %1535 = vmatmul.mubr.bf16.gmra.mrb[0].mxu0 %v817
      %v1536 = vpop.f32.mrb[0].mxu0
      %v1537 = vadd.f32 0.0, %v1536
      %v1538 = vpop.f32.mrb[0].mxu0
      %v1539 = vpop.f32.mrb[0].mxu0
      %v1540 = vadd.f32 0.0, %v1539
      %v1541 = vpop.f32.mrb[0].mxu0
      %1542 = vmatprep.mubr.bf16.mxu0 %v1114
      %1543 = vmatmul.mubr.bf16.gmra.mrb[0].mxu0 %v819
      %v1544 = vpop.f32.mrb[0].mxu0
      %v1545 = vadd.f32 0.0, %v1544
      %v1546 = vpop.f32.mrb[0].mxu0
      %v1547 = vpop.f32.mrb[0].mxu0
      %v1548 = vadd.f32 0.0, %v1547
      %v1549 = vpop.f32.mrb[0].mxu0
      %1550 = vmatprep.mubr.bf16.mxu0 %v1117
      %1551 = vmatmul.mubr.bf16.gmra.mrb[0].mxu0 %v821
      %v1552 = vpop.f32.mrb[0].mxu0
      %v1553 = vadd.f32 0.0, %v1552
      %v1554 = vpop.f32.mrb[0].mxu0
      %v1555 = vpop.f32.mrb[0].mxu0
      %v1556 = vadd.f32 0.0, %v1555
      %v1557 = vpop.f32.mrb[0].mxu0
      %1558 = vmatprep.mubr.bf16.mxu0 %v1120
      %1559 = vmatmul.mubr.bf16.gmra.mrb[0].mxu0 %v823
      %v1560 = vpop.f32.mrb[0].mxu0
      %v1561 = vadd.f32 0.0, %v1560
      %v1562 = vpop.f32.mrb[0].mxu0
      %v1563 = vpop.f32.mrb[0].mxu0
      %v1564 = vadd.f32 0.0, %v1563
      %v1565 = vpop.f32.mrb[0].mxu0
      %1566 = vmatprep.mubr.bf16.mxu0 %v1123
      %1567 = vmatmul.mubr.bf16.gmra.mrb[0].mxu0 %v825
      %v1568 = vpop.f32.mrb[0].mxu0
      %v1569 = vadd.f32 0.0, %v1568
      %v1570 = vpop.f32.mrb[0].mxu0
      %v1571 = vpop.f32.mrb[0].mxu0
      %v1572 = vadd.f32 0.0, %v1571
      %v1573 = vpop.f32.mrb[0].mxu0
      %1574 = vmatprep.mubr.bf16.mxu0 %v1126
      %1575 = vmatmul.mubr.bf16.gmra.mrb[0].mxu0 %v827
      %v1576 = vpop.f32.mrb[0].mxu0
      %v1577 = vadd.f32 0.0, %v1576
      %v1578 = vpop.f32.mrb[0].mxu0
      %v1579 = vpop.f32.mrb[0].mxu0
      %v1580 = vadd.f32 0.0, %v1579
      %v1581 = vpop.f32.mrb[0].mxu0
      %1582 = vmatprep.mubr.bf16.mxu0 %v1129
      %1583 = vmatmul.mubr.bf16.gmra.mrb[0].mxu0 %v829
      %v1584 = vpop.f32.mrb[0].mxu0
      %v1585 = vadd.f32 0.0, %v1584
      %v1586 = vpop.f32.mrb[0].mxu0
      %v1587 = vpop.f32.mrb[0].mxu0
      %v1588 = vadd.f32 0.0, %v1587
      %v1589 = vpop.f32.mrb[0].mxu0
      %1590 = vmatprep.mubr.bf16.mxu0 %v1132
      %1591 = vmatmul.mubr.bf16.gmra.mrb[0].mxu0 %v831
      %v1592 = vpop.f32.mrb[0].mxu0
      %v1593 = vadd.f32 0.0, %v1592
      %v1594 = vpop.f32.mrb[0].mxu0
      %v1595 = vpop.f32.mrb[0].mxu0
      %v1596 = vadd.f32 0.0, %v1595
      %v1597 = vpop.f32.mrb[0].mxu0
      %1598 = vmatprep.mubr.bf16.mxu0 %v1135
      %1599 = vmatmul.mubr.bf16.gmra.mrb[0].mxu0 %v833
      %v1600 = vpop.f32.mrb[0].mxu0
      %v1601 = vadd.f32 0.0, %v1600
      %v1602 = vpop.f32.mrb[0].mxu0
      %v1603 = vpop.f32.mrb[0].mxu0
      %v1604 = vadd.f32 0.0, %v1603
      %v1605 = vpop.f32.mrb[0].mxu0
      %1606 = vmatprep.mubr.bf16.mxu0 %v1138
      %1607 = vmatmul.mubr.bf16.gmra.mrb[0].mxu0 %v835
      %v1608 = vpop.f32.mrb[0].mxu0
      %v1609 = vadd.f32 0.0, %v1608
      %v1610 = vpop.f32.mrb[0].mxu0
      %v1611 = vpop.f32.mrb[0].mxu0
      %v1612 = vadd.f32 0.0, %v1611
      %v1613 = vpop.f32.mrb[0].mxu0
      %1614 = vmatprep.mubr.bf16.mxu0 %v1141
      %1615 = vmatmul.mubr.bf16.gmra.mrb[0].mxu0 %v837
      %v1616 = vpop.f32.mrb[0].mxu0
      %v1617 = vadd.f32 0.0, %v1616
      %v1618 = vpop.f32.mrb[0].mxu0
      %v1619 = vpop.f32.mrb[0].mxu0
      %v1620 = vadd.f32 0.0, %v1619
      %v1621 = vpop.f32.mrb[0].mxu0
      %1622 = vmatprep.mubr.bf16.mxu0 %v1144
      %1623 = vmatmul.mubr.bf16.gmra.mrb[0].mxu0 %v839
      %v1624 = vpop.f32.mrb[0].mxu0
      %v1625 = vadd.f32 0.0, %v1624
      %v1626 = vpop.f32.mrb[0].mxu0
      %v1627 = vpop.f32.mrb[0].mxu0
      %v1628 = vadd.f32 0.0, %v1627
      %v1629 = vpop.f32.mrb[0].mxu0
      %1630 = vmatprep.mubr.bf16.mxu0 %v1147
      %1631 = vmatmul.mubr.bf16.gmra.mrb[0].mxu0 %v841
      %v1632 = vpop.f32.mrb[0].mxu0
      %v1633 = vadd.f32 0.0, %v1632
      %v1634 = vpop.f32.mrb[0].mxu0
      %v1635 = vpop.f32.mrb[0].mxu0
      %v1636 = vadd.f32 0.0, %v1635
      %v1637 = vpop.f32.mrb[0].mxu0
      %1638 = vmatprep.mubr.bf16.mxu0 %v1150
      %1639 = vmatmul.mubr.bf16.gmra.mrb[0].mxu0 %v843
      %v1640 = vpop.f32.mrb[0].mxu0
      %v1641 = vadd.f32 0.0, %v1640
      %v1642 = vpop.f32.mrb[0].mxu0
      %v1643 = vpop.f32.mrb[0].mxu0
      %v1644 = vadd.f32 0.0, %v1643
      %v1645 = vpop.f32.mrb[0].mxu0
      %1646 = vmatprep.mubr.bf16.mxu0 %v1153
      %1647 = vmatmul.mubr.bf16.gmra.mrb[0].mxu0 %v845
      %v1648 = vpop.f32.mrb[0].mxu0
      %v1649 = vadd.f32 0.0, %v1648
      %v1650 = vpop.f32.mrb[0].mxu0
      %v1651 = vpop.f32.mrb[0].mxu0
      %v1652 = vadd.f32 0.0, %v1651
      %v1653 = vpop.f32.mrb[0].mxu0
      %1654 = vmatprep.mubr.bf16.mxu0 %v1156
      %1655 = vmatmul.mubr.bf16.gmra.mrb[0].mxu0 %v847
      %v1656 = vpop.f32.mrb[0].mxu0
      %v1657 = vadd.f32 0.0, %v1656
      %v1658 = vpop.f32.mrb[0].mxu0
      %v1659 = vpop.f32.mrb[0].mxu0
      %v1660 = vadd.f32 0.0, %v1659
      %v1661 = vpop.f32.mrb[0].mxu0
      %1662 = vmatprep.mubr.bf16.mxu0 %v1159
      %1663 = vmatmul.mubr.bf16.gmra.mrb[0].mxu0 %v849
      %v1664 = vpop.f32.mrb[0].mxu0
      %v1665 = vadd.f32 0.0, %v1664
      %v1666 = vpop.f32.mrb[0].mxu0
      %v1667 = vpop.f32.mrb[0].mxu0
      %v1668 = vadd.f32 0.0, %v1667
      %v1669 = vpop.f32.mrb[0].mxu0
      %1670 = vmatprep.mubr.bf16.mxu0 %v1162
      %1671 = vmatmul.mubr.bf16.gmra.mrb[0].mxu0 %v851
      %v1672 = vpop.f32.mrb[0].mxu0
      %v1673 = vadd.f32 0.0, %v1672
      %v1674 = vpop.f32.mrb[0].mxu0
      %v1675 = vpop.f32.mrb[0].mxu0
      %v1676 = vadd.f32 0.0, %v1675
      %v1677 = vpop.f32.mrb[0].mxu0
      %1678 = vmatprep.mubr.bf16.mxu0 %v1165
      %1679 = vmatmul.mubr.bf16.gmra.mrb[0].mxu0 %v853
      %v1680 = vpop.f32.mrb[0].mxu0
      %v1681 = vadd.f32 0.0, %v1680
      %v1682 = vpop.f32.mrb[0].mxu0
      %v1683 = vpop.f32.mrb[0].mxu0
      %v1684 = vadd.f32 0.0, %v1683
      %v1685 = vpop.f32.mrb[0].mxu0
      %1686 = vmatprep.mubr.bf16.mxu0 %v1168
      %1687 = vmatmul.mubr.bf16.gmra.mrb[0].mxu0 %v855
      %v1688 = vpop.f32.mrb[0].mxu0
      %v1689 = vadd.f32 0.0, %v1688
      %v1690 = vpop.f32.mrb[0].mxu0
      %v1691 = vpop.f32.mrb[0].mxu0
      %v1692 = vadd.f32 0.0, %v1691
      %v1693 = vpop.f32.mrb[0].mxu0
      %1694 = vmatprep.mubr.bf16.mxu0 %v1171
      %1695 = vmatmul.mubr.bf16.gmra.mrb[0].mxu0 %v857
      %v1696 = vpop.f32.mrb[0].mxu0
      %v1697 = vadd.f32 0.0, %v1696
      %v1698 = vpop.f32.mrb[0].mxu0
      %v1699 = vpop.f32.mrb[0].mxu0
      %v1700 = vadd.f32 0.0, %v1699
      %v1701 = vpop.f32.mrb[0].mxu0
      %1702 = vmatprep.mubr.bf16.mxu0 %v1174
      %1703 = vmatmul.mubr.bf16.gmra.mrb[0].mxu0 %v859
      %v1704 = vpop.f32.mrb[0].mxu0
      %v1705 = vadd.f32 0.0, %v1704
      %v1706 = vpop.f32.mrb[0].mxu0
      %v1707 = vpop.f32.mrb[0].mxu0
      %v1708 = vadd.f32 0.0, %v1707
      %v1709 = vpop.f32.mrb[0].mxu0
      %1710 = vmatprep.mubr.bf16.mxu0 %v1177
      %1711 = vmatmul.mubr.bf16.gmra.mrb[0].mxu0 %v861
      %v1712 = vpop.f32.mrb[0].mxu0
      %v1713 = vadd.f32 0.0, %v1712
      %v1714 = vpop.f32.mrb[0].mxu0
      %v1715 = vpop.f32.mrb[0].mxu0
      %v1716 = vadd.f32 0.0, %v1715
      %v1717 = vpop.f32.mrb[0].mxu0
      %1718 = vmatprep.mubr.bf16.mxu0 %v1180
      %1719 = vmatmul.mubr.bf16.gmra.mrb[0].mxu0 %v863
      %v1720 = vpop.f32.mrb[0].mxu0
      %v1721 = vadd.f32 0.0, %v1720
      %v1722 = vpop.f32.mrb[0].mxu0
      %v1723 = vpop.f32.mrb[0].mxu0
      %v1724 = vadd.f32 0.0, %v1723
      %v1725 = vpop.f32.mrb[0].mxu0
      %1726 = vdwg.mxu0
      %v1727 = vld [vmem:[%s2] sm:$0x1]
      %v1729 = vlaneseq
      %v1730 = vshrl.u32 %v1729, 7
      %v1731 = vsub.s32 0, %v1730
      %v1732 = vrot.slane %v1727, %v1731
      %v1734 = vmul.f32 %v1217, %v1732
      %v1735 = vmul.f32 %v1220, %v1732
      %v1736 = vmul.f32 %v1225, %v1732
      %v1737 = vmul.f32 %v1228, %v1732
      %v1738 = vmul.f32 %v1233, %v1732
      %v1739 = vmul.f32 %v1236, %v1732
      %v1740 = vmul.f32 %v1241, %v1732
      %v1741 = vmul.f32 %v1244, %v1732
      %v1742 = vmul.f32 %v1249, %v1732
      %v1743 = vmul.f32 %v1252, %v1732
      %v1744 = vmul.f32 %v1257, %v1732
      %v1745 = vmul.f32 %v1260, %v1732
      %v1746 = vmul.f32 %v1265, %v1732
      %v1747 = vmul.f32 %v1268, %v1732
      %v1748 = vmul.f32 %v1273, %v1732
      %v1749 = vmul.f32 %v1276, %v1732
      %v1750 = vmul.f32 %v1281, %v1732
      %v1751 = vmul.f32 %v1284, %v1732
      %v1752 = vmul.f32 %v1289, %v1732
      %v1753 = vmul.f32 %v1292, %v1732
      %v1754 = vmul.f32 %v1297, %v1732
      %v1755 = vmul.f32 %v1300, %v1732
      %v1756 = vmul.f32 %v1305, %v1732
      %v1757 = vmul.f32 %v1308, %v1732
      %v1758 = vmul.f32 %v1313, %v1732
      %v1759 = vmul.f32 %v1316, %v1732
      %v1760 = vmul.f32 %v1321, %v1732
      %v1761 = vmul.f32 %v1324, %v1732
      %v1762 = vmul.f32 %v1329, %v1732
      %v1763 = vmul.f32 %v1332, %v1732
      %v1764 = vmul.f32 %v1337, %v1732
      %v1765 = vmul.f32 %v1340, %v1732
      %v1766 = vmul.f32 %v1345, %v1732
      %v1767 = vmul.f32 %v1348, %v1732
      %v1768 = vmul.f32 %v1353, %v1732
      %v1769 = vmul.f32 %v1356, %v1732
      %v1770 = vmul.f32 %v1361, %v1732
      %v1771 = vmul.f32 %v1364, %v1732
      %v1772 = vmul.f32 %v1369, %v1732
      %v1773 = vmul.f32 %v1372, %v1732
      %v1774 = vmul.f32 %v1377, %v1732
      %v1775 = vmul.f32 %v1380, %v1732
      %v1776 = vmul.f32 %v1385, %v1732
      %v1777 = vmul.f32 %v1388, %v1732
      %v1778 = vmul.f32 %v1393, %v1732
      %v1779 = vmul.f32 %v1396, %v1732
      %v1780 = vmul.f32 %v1401, %v1732
      %v1781 = vmul.f32 %v1404, %v1732
      %v1782 = vmul.f32 %v1409, %v1732
      %v1783 = vmul.f32 %v1412, %v1732
      %v1784 = vmul.f32 %v1417, %v1732
      %v1785 = vmul.f32 %v1420, %v1732
      %v1786 = vmul.f32 %v1425, %v1732
      %v1787 = vmul.f32 %v1428, %v1732
      %v1788 = vmul.f32 %v1433, %v1732
      %v1789 = vmul.f32 %v1436, %v1732
      %v1790 = vmul.f32 %v1441, %v1732
      %v1791 = vmul.f32 %v1444, %v1732
      %v1792 = vmul.f32 %v1449, %v1732
      %v1793 = vmul.f32 %v1452, %v1732
      %v1794 = vmul.f32 %v1457, %v1732
      %v1795 = vmul.f32 %v1460, %v1732
      %v1796 = vmul.f32 %v1465, %v1732
      %v1797 = vmul.f32 %v1468, %v1732
      %v1798 = vmul.f32 %v1473, %v1732
      %v1799 = vmul.f32 %v1476, %v1732
      %v1800 = vmul.f32 %v1481, %v1732
      %v1801 = vmul.f32 %v1484, %v1732
      %v1802 = vmul.f32 %v1489, %v1732
      %v1803 = vmul.f32 %v1492, %v1732
      %v1804 = vmul.f32 %v1497, %v1732
      %v1805 = vmul.f32 %v1500, %v1732
      %v1806 = vmul.f32 %v1505, %v1732
      %v1807 = vmul.f32 %v1508, %v1732
      %v1808 = vmul.f32 %v1513, %v1732
      %v1809 = vmul.f32 %v1516, %v1732
      %v1810 = vmul.f32 %v1521, %v1732
      %v1811 = vmul.f32 %v1524, %v1732
      %v1812 = vmul.f32 %v1529, %v1732
      %v1813 = vmul.f32 %v1532, %v1732
      %v1814 = vmul.f32 %v1537, %v1732
      %v1815 = vmul.f32 %v1540, %v1732
      %v1816 = vmul.f32 %v1545, %v1732
      %v1817 = vmul.f32 %v1548, %v1732
      %v1818 = vmul.f32 %v1553, %v1732
      %v1819 = vmul.f32 %v1556, %v1732
      %v1820 = vmul.f32 %v1561, %v1732
      %v1821 = vmul.f32 %v1564, %v1732
      %v1822 = vmul.f32 %v1569, %v1732
      %v1823 = vmul.f32 %v1572, %v1732
      %v1824 = vmul.f32 %v1577, %v1732
      %v1825 = vmul.f32 %v1580, %v1732
      %v1826 = vmul.f32 %v1585, %v1732
      %v1827 = vmul.f32 %v1588, %v1732
      %v1828 = vmul.f32 %v1593, %v1732
      %v1829 = vmul.f32 %v1596, %v1732
      %v1830 = vmul.f32 %v1601, %v1732
      %v1831 = vmul.f32 %v1604, %v1732
      %v1832 = vmul.f32 %v1609, %v1732
      %v1833 = vmul.f32 %v1612, %v1732
      %v1834 = vmul.f32 %v1617, %v1732
      %v1835 = vmul.f32 %v1620, %v1732
      %v1836 = vmul.f32 %v1625, %v1732
      %v1837 = vmul.f32 %v1628, %v1732
      %v1838 = vmul.f32 %v1633, %v1732
      %v1839 = vmul.f32 %v1636, %v1732
      %v1840 = vmul.f32 %v1641, %v1732
      %v1841 = vmul.f32 %v1644, %v1732
      %v1842 = vmul.f32 %v1649, %v1732
      %v1843 = vmul.f32 %v1652, %v1732
      %v1844 = vmul.f32 %v1657, %v1732
      %v1845 = vmul.f32 %v1660, %v1732
      %v1846 = vmul.f32 %v1665, %v1732
      %v1847 = vmul.f32 %v1668, %v1732
      %v1848 = vmul.f32 %v1673, %v1732
      %v1849 = vmul.f32 %v1676, %v1732
      %v1850 = vmul.f32 %v1681, %v1732
      %v1851 = vmul.f32 %v1684, %v1732
      %v1852 = vmul.f32 %v1689, %v1732
      %v1853 = vmul.f32 %v1692, %v1732
      %v1854 = vmul.f32 %v1697, %v1732
      %v1855 = vmul.f32 %v1700, %v1732
      %v1856 = vmul.f32 %v1705, %v1732
      %v1857 = vmul.f32 %v1708, %v1732
      %v1858 = vmul.f32 %v1713, %v1732
      %v1859 = vmul.f32 %v1716, %v1732
      %v1860 = vmul.f32 %v1721, %v1732
      %v1861 = vmul.f32 %v1724, %v1732
      %v1862 = vld [vmem:[%s3] sm:$0x1]
      %v1864 = vlaneseq
      %v1865 = vshrl.u32 %v1864, 7
      %v1866 = vsub.s32 0, %v1865
      %v1867 = vrot.slane %v1862, %v1866
      %v1869 = vadd.f32 %v1734, %v1867
      %v1870 = vadd.f32 %v1735, %v1867
      %v1871 = vadd.f32 %v1736, %v1867
      %v1872 = vadd.f32 %v1737, %v1867
      %v1873 = vadd.f32 %v1738, %v1867
      %v1874 = vadd.f32 %v1739, %v1867
      %v1875 = vadd.f32 %v1740, %v1867
      %v1876 = vadd.f32 %v1741, %v1867
      %v1877 = vadd.f32 %v1742, %v1867
      %v1878 = vadd.f32 %v1743, %v1867
      %v1879 = vadd.f32 %v1744, %v1867
      %v1880 = vadd.f32 %v1745, %v1867
      %v1881 = vadd.f32 %v1746, %v1867
      %v1882 = vadd.f32 %v1747, %v1867
      %v1883 = vadd.f32 %v1748, %v1867
      %v1884 = vadd.f32 %v1749, %v1867
      %v1885 = vadd.f32 %v1750, %v1867
      %v1886 = vadd.f32 %v1751, %v1867
      %v1887 = vadd.f32 %v1752, %v1867
      %v1888 = vadd.f32 %v1753, %v1867
      %v1889 = vadd.f32 %v1754, %v1867
      %v1890 = vadd.f32 %v1755, %v1867
      %v1891 = vadd.f32 %v1756, %v1867
      %v1892 = vadd.f32 %v1757, %v1867
      %v1893 = vadd.f32 %v1758, %v1867
      %v1894 = vadd.f32 %v1759, %v1867
      %v1895 = vadd.f32 %v1760, %v1867
      %v1896 = vadd.f32 %v1761, %v1867
      %v1897 = vadd.f32 %v1762, %v1867
      %v1898 = vadd.f32 %v1763, %v1867
      %v1899 = vadd.f32 %v1764, %v1867
      %v1900 = vadd.f32 %v1765, %v1867
      %v1901 = vadd.f32 %v1766, %v1867
      %v1902 = vadd.f32 %v1767, %v1867
      %v1903 = vadd.f32 %v1768, %v1867
      %v1904 = vadd.f32 %v1769, %v1867
      %v1905 = vadd.f32 %v1770, %v1867
      %v1906 = vadd.f32 %v1771, %v1867
      %v1907 = vadd.f32 %v1772, %v1867
      %v1908 = vadd.f32 %v1773, %v1867
      %v1909 = vadd.f32 %v1774, %v1867
      %v1910 = vadd.f32 %v1775, %v1867
      %v1911 = vadd.f32 %v1776, %v1867
      %v1912 = vadd.f32 %v1777, %v1867
      %v1913 = vadd.f32 %v1778, %v1867
      %v1914 = vadd.f32 %v1779, %v1867
      %v1915 = vadd.f32 %v1780, %v1867
      %v1916 = vadd.f32 %v1781, %v1867
      %v1917 = vadd.f32 %v1782, %v1867
      %v1918 = vadd.f32 %v1783, %v1867
      %v1919 = vadd.f32 %v1784, %v1867
      %v1920 = vadd.f32 %v1785, %v1867
      %v1921 = vadd.f32 %v1786, %v1867
      %v1922 = vadd.f32 %v1787, %v1867
      %v1923 = vadd.f32 %v1788, %v1867
      %v1924 = vadd.f32 %v1789, %v1867
      %v1925 = vadd.f32 %v1790, %v1867
      %v1926 = vadd.f32 %v1791, %v1867
      %v1927 = vadd.f32 %v1792, %v1867
      %v1928 = vadd.f32 %v1793, %v1867
      %v1929 = vadd.f32 %v1794, %v1867
      %v1930 = vadd.f32 %v1795, %v1867
      %v1931 = vadd.f32 %v1796, %v1867
      %v1932 = vadd.f32 %v1797, %v1867
      %v1933 = vadd.f32 %v1798, %v1867
      %v1934 = vadd.f32 %v1799, %v1867
      %v1935 = vadd.f32 %v1800, %v1867
      %v1936 = vadd.f32 %v1801, %v1867
      %v1937 = vadd.f32 %v1802, %v1867
      %v1938 = vadd.f32 %v1803, %v1867
      %v1939 = vadd.f32 %v1804, %v1867
      %v1940 = vadd.f32 %v1805, %v1867
      %v1941 = vadd.f32 %v1806, %v1867
      %v1942 = vadd.f32 %v1807, %v1867
      %v1943 = vadd.f32 %v1808, %v1867
      %v1944 = vadd.f32 %v1809, %v1867
      %v1945 = vadd.f32 %v1810, %v1867
      %v1946 = vadd.f32 %v1811, %v1867
      %v1947 = vadd.f32 %v1812, %v1867
      %v1948 = vadd.f32 %v1813, %v1867
      %v1949 = vadd.f32 %v1814, %v1867
      %v1950 = vadd.f32 %v1815, %v1867
      %v1951 = vadd.f32 %v1816, %v1867
      %v1952 = vadd.f32 %v1817, %v1867
      %v1953 = vadd.f32 %v1818, %v1867
      %v1954 = vadd.f32 %v1819, %v1867
      %v1955 = vadd.f32 %v1820, %v1867
      %v1956 = vadd.f32 %v1821, %v1867
      %v1957 = vadd.f32 %v1822, %v1867
      %v1958 = vadd.f32 %v1823, %v1867
      %v1959 = vadd.f32 %v1824, %v1867
      %v1960 = vadd.f32 %v1825, %v1867
      %v1961 = vadd.f32 %v1826, %v1867
      %v1962 = vadd.f32 %v1827, %v1867
      %v1963 = vadd.f32 %v1828, %v1867
      %v1964 = vadd.f32 %v1829, %v1867
      %v1965 = vadd.f32 %v1830, %v1867
      %v1966 = vadd.f32 %v1831, %v1867
      %v1967 = vadd.f32 %v1832, %v1867
      %v1968 = vadd.f32 %v1833, %v1867
      %v1969 = vadd.f32 %v1834, %v1867
      %v1970 = vadd.f32 %v1835, %v1867
      %v1971 = vadd.f32 %v1836, %v1867
      %v1972 = vadd.f32 %v1837, %v1867
      %v1973 = vadd.f32 %v1838, %v1867
      %v1974 = vadd.f32 %v1839, %v1867
      %v1975 = vadd.f32 %v1840, %v1867
      %v1976 = vadd.f32 %v1841, %v1867
      %v1977 = vadd.f32 %v1842, %v1867
      %v1978 = vadd.f32 %v1843, %v1867
      %v1979 = vadd.f32 %v1844, %v1867
      %v1980 = vadd.f32 %v1845, %v1867
      %v1981 = vadd.f32 %v1846, %v1867
      %v1982 = vadd.f32 %v1847, %v1867
      %v1983 = vadd.f32 %v1848, %v1867
      %v1984 = vadd.f32 %v1849, %v1867
      %v1985 = vadd.f32 %v1850, %v1867
      %v1986 = vadd.f32 %v1851, %v1867
      %v1987 = vadd.f32 %v1852, %v1867
      %v1988 = vadd.f32 %v1853, %v1867
      %v1989 = vadd.f32 %v1854, %v1867
      %v1990 = vadd.f32 %v1855, %v1867
      %v1991 = vadd.f32 %v1856, %v1867
      %v1992 = vadd.f32 %v1857, %v1867
      %v1993 = vadd.f32 %v1858, %v1867
      %v1994 = vadd.f32 %v1859, %v1867
      %v1995 = vadd.f32 %v1860, %v1867
      %v1996 = vadd.f32 %v1861, %v1867
      %v1997 = vmax.f32 %v1869, 0.0
      %v1998 = vmax.f32 %v1870, 0.0
      %v1999 = vmax.f32 %v1871, 0.0
      %v2000 = vmax.f32 %v1872, 0.0
      %v2001 = vmax.f32 %v1873, 0.0
      %v2002 = vmax.f32 %v1874, 0.0
      %v2003 = vmax.f32 %v1875, 0.0
      %v2004 = vmax.f32 %v1876, 0.0
      %v2005 = vmax.f32 %v1877, 0.0
      %v2006 = vmax.f32 %v1878, 0.0
      %v2007 = vmax.f32 %v1879, 0.0
      %v2008 = vmax.f32 %v1880, 0.0
      %v2009 = vmax.f32 %v1881, 0.0
      %v2010 = vmax.f32 %v1882, 0.0
      %v2011 = vmax.f32 %v1883, 0.0
      %v2012 = vmax.f32 %v1884, 0.0
      %v2013 = vmax.f32 %v1885, 0.0
      %v2014 = vmax.f32 %v1886, 0.0
      %v2015 = vmax.f32 %v1887, 0.0
      %v2016 = vmax.f32 %v1888, 0.0
      %v2017 = vmax.f32 %v1889, 0.0
      %v2018 = vmax.f32 %v1890, 0.0
      %v2019 = vmax.f32 %v1891, 0.0
      %v2020 = vmax.f32 %v1892, 0.0
      %v2021 = vmax.f32 %v1893, 0.0
      %v2022 = vmax.f32 %v1894, 0.0
      %v2023 = vmax.f32 %v1895, 0.0
      %v2024 = vmax.f32 %v1896, 0.0
      %v2025 = vmax.f32 %v1897, 0.0
      %v2026 = vmax.f32 %v1898, 0.0
      %v2027 = vmax.f32 %v1899, 0.0
      %v2028 = vmax.f32 %v1900, 0.0
      %v2029 = vmax.f32 %v1901, 0.0
      %v2030 = vmax.f32 %v1902, 0.0
      %v2031 = vmax.f32 %v1903, 0.0
      %v2032 = vmax.f32 %v1904, 0.0
      %v2033 = vmax.f32 %v1905, 0.0
      %v2034 = vmax.f32 %v1906, 0.0
      %v2035 = vmax.f32 %v1907, 0.0
      %v2036 = vmax.f32 %v1908, 0.0
      %v2037 = vmax.f32 %v1909, 0.0
      %v2038 = vmax.f32 %v1910, 0.0
      %v2039 = vmax.f32 %v1911, 0.0
      %v2040 = vmax.f32 %v1912, 0.0
      %v2041 = vmax.f32 %v1913, 0.0
      %v2042 = vmax.f32 %v1914, 0.0
      %v2043 = vmax.f32 %v1915, 0.0
      %v2044 = vmax.f32 %v1916, 0.0
      %v2045 = vmax.f32 %v1917, 0.0
      %v2046 = vmax.f32 %v1918, 0.0
      %v2047 = vmax.f32 %v1919, 0.0
      %v2048 = vmax.f32 %v1920, 0.0
      %v2049 = vmax.f32 %v1921, 0.0
      %v2050 = vmax.f32 %v1922, 0.0
      %v2051 = vmax.f32 %v1923, 0.0
      %v2052 = vmax.f32 %v1924, 0.0
      %v2053 = vmax.f32 %v1925, 0.0
      %v2054 = vmax.f32 %v1926, 0.0
      %v2055 = vmax.f32 %v1927, 0.0
      %v2056 = vmax.f32 %v1928, 0.0
      %v2057 = vmax.f32 %v1929, 0.0
      %v2058 = vmax.f32 %v1930, 0.0
      %v2059 = vmax.f32 %v1931, 0.0
      %v2060 = vmax.f32 %v1932, 0.0
      %v2061 = vmax.f32 %v1933, 0.0
      %v2062 = vmax.f32 %v1934, 0.0
      %v2063 = vmax.f32 %v1935, 0.0
      %v2064 = vmax.f32 %v1936, 0.0
      %v2065 = vmax.f32 %v1937, 0.0
      %v2066 = vmax.f32 %v1938, 0.0
      %v2067 = vmax.f32 %v1939, 0.0
      %v2068 = vmax.f32 %v1940, 0.0
      %v2069 = vmax.f32 %v1941, 0.0
      %v2070 = vmax.f32 %v1942, 0.0
      %v2071 = vmax.f32 %v1943, 0.0
      %v2072 = vmax.f32 %v1944, 0.0
      %v2073 = vmax.f32 %v1945, 0.0
      %v2074 = vmax.f32 %v1946, 0.0
      %v2075 = vmax.f32 %v1947, 0.0
      %v2076 = vmax.f32 %v1948, 0.0
      %v2077 = vmax.f32 %v1949, 0.0
      %v2078 = vmax.f32 %v1950, 0.0
      %v2079 = vmax.f32 %v1951, 0.0
      %v2080 = vmax.f32 %v1952, 0.0
      %v2081 = vmax.f32 %v1953, 0.0
      %v2082 = vmax.f32 %v1954, 0.0
      %v2083 = vmax.f32 %v1955, 0.0
      %v2084 = vmax.f32 %v1956, 0.0
      %v2085 = vmax.f32 %v1957, 0.0
      %v2086 = vmax.f32 %v1958, 0.0
      %v2087 = vmax.f32 %v1959, 0.0
      %v2088 = vmax.f32 %v1960, 0.0
      %v2089 = vmax.f32 %v1961, 0.0
      %v2090 = vmax.f32 %v1962, 0.0
      %v2091 = vmax.f32 %v1963, 0.0
      %v2092 = vmax.f32 %v1964, 0.0
      %v2093 = vmax.f32 %v1965, 0.0
      %v2094 = vmax.f32 %v1966, 0.0
      %v2095 = vmax.f32 %v1967, 0.0
      %v2096 = vmax.f32 %v1968, 0.0
      %v2097 = vmax.f32 %v1969, 0.0
      %v2098 = vmax.f32 %v1970, 0.0
      %v2099 = vmax.f32 %v1971, 0.0
      %v2100 = vmax.f32 %v1972, 0.0
      %v2101 = vmax.f32 %v1973, 0.0
      %v2102 = vmax.f32 %v1974, 0.0
      %v2103 = vmax.f32 %v1975, 0.0
      %v2104 = vmax.f32 %v1976, 0.0
      %v2105 = vmax.f32 %v1977, 0.0
      %v2106 = vmax.f32 %v1978, 0.0
      %v2107 = vmax.f32 %v1979, 0.0
      %v2108 = vmax.f32 %v1980, 0.0
      %v2109 = vmax.f32 %v1981, 0.0
      %v2110 = vmax.f32 %v1982, 0.0
      %v2111 = vmax.f32 %v1983, 0.0
      %v2112 = vmax.f32 %v1984, 0.0
      %v2113 = vmax.f32 %v1985, 0.0
      %v2114 = vmax.f32 %v1986, 0.0
      %v2115 = vmax.f32 %v1987, 0.0
      %v2116 = vmax.f32 %v1988, 0.0
      %v2117 = vmax.f32 %v1989, 0.0
      %v2118 = vmax.f32 %v1990, 0.0
      %v2119 = vmax.f32 %v1991, 0.0
      %v2120 = vmax.f32 %v1992, 0.0
      %v2121 = vmax.f32 %v1993, 0.0
      %v2122 = vmax.f32 %v1994, 0.0
      %v2123 = vmax.f32 %v1995, 0.0
      %v2124 = vmax.f32 %v1996, 0.0
      %2125 = vst [vmem:[%s202] sm:$0xff] %v1997
      %2126 = vst [vmem:[%s202 + $0x8] sm:$0xff] %v1998
      %2127 = vst [vmem:[%s202 + $0x10] sm:$0xff] %v1999
      %2128 = vst [vmem:[%s202 + $0x18] sm:$0xff] %v2000
      %2129 = vst [vmem:[%s202 + $0x20] sm:$0xff] %v2001
      %2130 = vst [vmem:[%s202 + $0x28] sm:$0xff] %v2002
      %2131 = vst [vmem:[%s202 + $0x30] sm:$0xff] %v2003
      %2132 = vst [vmem:[%s202 + $0x38] sm:$0xff] %v2004
      %2133 = vst [vmem:[%s202 + $0x40] sm:$0xff] %v2005
      %2134 = vst [vmem:[%s202 + $0x48] sm:$0xff] %v2006
      %2135 = vst [vmem:[%s202 + $0x50] sm:$0xff] %v2007
      %2136 = vst [vmem:[%s202 + $0x58] sm:$0xff] %v2008
      %2137 = vst [vmem:[%s202 + $0x60] sm:$0xff] %v2009
      %2138 = vst [vmem:[%s202 + $0x68] sm:$0xff] %v2010
      %2139 = vst [vmem:[%s202 + $0x70] sm:$0xff] %v2011
      %2140 = vst [vmem:[%s202 + $0x78] sm:$0xff] %v2012
      %2141 = vst [vmem:[%s202 + $0x80] sm:$0xff] %v2013
      %2142 = vst [vmem:[%s202 + $0x88] sm:$0xff] %v2014
      %2143 = vst [vmem:[%s202 + $0x90] sm:$0xff] %v2015
      %2144 = vst [vmem:[%s202 + $0x98] sm:$0xff] %v2016
      %2145 = vst [vmem:[%s202 + $0xa0] sm:$0xff] %v2017
      %2146 = vst [vmem:[%s202 + $0xa8] sm:$0xff] %v2018
      %2147 = vst [vmem:[%s202 + $0xb0] sm:$0xff] %v2019
      %2148 = vst [vmem:[%s202 + $0xb8] sm:$0xff] %v2020
      %2149 = vst [vmem:[%s202 + $0xc0] sm:$0xff] %v2021
      %2150 = vst [vmem:[%s202 + $0xc8] sm:$0xff] %v2022
      %2151 = vst [vmem:[%s202 + $0xd0] sm:$0xff] %v2023
      %2152 = vst [vmem:[%s202 + $0xd8] sm:$0xff] %v2024
      %2153 = vst [vmem:[%s202 + $0xe0] sm:$0xff] %v2025
      %2154 = vst [vmem:[%s202 + $0xe8] sm:$0xff] %v2026
      %2155 = vst [vmem:[%s202 + $0xf0] sm:$0xff] %v2027
      %2156 = vst [vmem:[%s202 + $0xf8] sm:$0xff] %v2028
      %2157 = vst [vmem:[%s202 + $0x100] sm:$0xff] %v2029
      %2158 = vst [vmem:[%s202 + $0x108] sm:$0xff] %v2030
      %2159 = vst [vmem:[%s202 + $0x110] sm:$0xff] %v2031
      %2160 = vst [vmem:[%s202 + $0x118] sm:$0xff] %v2032
      %2161 = vst [vmem:[%s202 + $0x120] sm:$0xff] %v2033
      %2162 = vst [vmem:[%s202 + $0x128] sm:$0xff] %v2034
      %2163 = vst [vmem:[%s202 + $0x130] sm:$0xff] %v2035
      %2164 = vst [vmem:[%s202 + $0x138] sm:$0xff] %v2036
      %2165 = vst [vmem:[%s202 + $0x140] sm:$0xff] %v2037
      %2166 = vst [vmem:[%s202 + $0x148] sm:$0xff] %v2038
      %2167 = vst [vmem:[%s202 + $0x150] sm:$0xff] %v2039
      %2168 = vst [vmem:[%s202 + $0x158] sm:$0xff] %v2040
      %2169 = vst [vmem:[%s202 + $0x160] sm:$0xff] %v2041
      %2170 = vst [vmem:[%s202 + $0x168] sm:$0xff] %v2042
      %2171 = vst [vmem:[%s202 + $0x170] sm:$0xff] %v2043
      %2172 = vst [vmem:[%s202 + $0x178] sm:$0xff] %v2044
      %2173 = vst [vmem:[%s202 + $0x180] sm:$0xff] %v2045
      %2174 = vst [vmem:[%s202 + $0x188] sm:$0xff] %v2046
      %2175 = vst [vmem:[%s202 + $0x190] sm:$0xff] %v2047
      %2176 = vst [vmem:[%s202 + $0x198] sm:$0xff] %v2048
      %2177 = vst [vmem:[%s202 + $0x1a0] sm:$0xff] %v2049
      %2178 = vst [vmem:[%s202 + $0x1a8] sm:$0xff] %v2050
      %2179 = vst [vmem:[%s202 + $0x1b0] sm:$0xff] %v2051
      %2180 = vst [vmem:[%s202 + $0x1b8] sm:$0xff] %v2052
      %2181 = vst [vmem:[%s202 + $0x1c0] sm:$0xff] %v2053
      %2182 = vst [vmem:[%s202 + $0x1c8] sm:$0xff] %v2054
      %2183 = vst [vmem:[%s202 + $0x1d0] sm:$0xff] %v2055
      %2184 = vst [vmem:[%s202 + $0x1d8] sm:$0xff] %v2056
      %2185 = vst [vmem:[%s202 + $0x1e0] sm:$0xff] %v2057
      %2186 = vst [vmem:[%s202 + $0x1e8] sm:$0xff] %v2058
      %2187 = vst [vmem:[%s202 + $0x1f0] sm:$0xff] %v2059
      %2188 = vst [vmem:[%s202 + $0x1f8] sm:$0xff] %v2060
      %2189 = vst [vmem:[%s202 + $0x200] sm:$0xff] %v2061
      %2190 = vst [vmem:[%s202 + $0x208] sm:$0xff] %v2062
      %2191 = vst [vmem:[%s202 + $0x210] sm:$0xff] %v2063
      %2192 = vst [vmem:[%s202 + $0x218] sm:$0xff] %v2064
      %2193 = vst [vmem:[%s202 + $0x220] sm:$0xff] %v2065
      %2194 = vst [vmem:[%s202 + $0x228] sm:$0xff] %v2066
      %2195 = vst [vmem:[%s202 + $0x230] sm:$0xff] %v2067
      %2196 = vst [vmem:[%s202 + $0x238] sm:$0xff] %v2068
      %2197 = vst [vmem:[%s202 + $0x240] sm:$0xff] %v2069
      %2198 = vst [vmem:[%s202 + $0x248] sm:$0xff] %v2070
      %2199 = vst [vmem:[%s202 + $0x250] sm:$0xff] %v2071
      %2200 = vst [vmem:[%s202 + $0x258] sm:$0xff] %v2072
      %2201 = vst [vmem:[%s202 + $0x260] sm:$0xff] %v2073
      %2202 = vst [vmem:[%s202 + $0x268] sm:$0xff] %v2074
      %2203 = vst [vmem:[%s202 + $0x270] sm:$0xff] %v2075
      %2204 = vst [vmem:[%s202 + $0x278] sm:$0xff] %v2076
      %2205 = vst [vmem:[%s202 + $0x280] sm:$0xff] %v2077
      %2206 = vst [vmem:[%s202 + $0x288] sm:$0xff] %v2078
      %2207 = vst [vmem:[%s202 + $0x290] sm:$0xff] %v2079
      %2208 = vst [vmem:[%s202 + $0x298] sm:$0xff] %v2080
      %2209 = vst [vmem:[%s202 + $0x2a0] sm:$0xff] %v2081
      %2210 = vst [vmem:[%s202 + $0x2a8] sm:$0xff] %v2082
      %2211 = vst [vmem:[%s202 + $0x2b0] sm:$0xff] %v2083
      %2212 = vst [vmem:[%s202 + $0x2b8] sm:$0xff] %v2084
      %2213 = vst [vmem:[%s202 + $0x2c0] sm:$0xff] %v2085
      %2214 = vst [vmem:[%s202 + $0x2c8] sm:$0xff] %v2086
      %2215 = vst [vmem:[%s202 + $0x2d0] sm:$0xff] %v2087
      %2216 = vst [vmem:[%s202 + $0x2d8] sm:$0xff] %v2088
      %2217 = vst [vmem:[%s202 + $0x2e0] sm:$0xff] %v2089
      %2218 = vst [vmem:[%s202 + $0x2e8] sm:$0xff] %v2090
      %2219 = vst [vmem:[%s202 + $0x2f0] sm:$0xff] %v2091
      %2220 = vst [vmem:[%s202 + $0x2f8] sm:$0xff] %v2092
      %2221 = vst [vmem:[%s202 + $0x300] sm:$0xff] %v2093
      %2222 = vst [vmem:[%s202 + $0x308] sm:$0xff] %v2094
      %2223 = vst [vmem:[%s202 + $0x310] sm:$0xff] %v2095
      %2224 = vst [vmem:[%s202 + $0x318] sm:$0xff] %v2096
      %2225 = vst [vmem:[%s202 + $0x320] sm:$0xff] %v2097
      %2226 = vst [vmem:[%s202 + $0x328] sm:$0xff] %v2098
      %2227 = vst [vmem:[%s202 + $0x330] sm:$0xff] %v2099
      %2228 = vst [vmem:[%s202 + $0x338] sm:$0xff] %v2100
      %2229 = vst [vmem:[%s202 + $0x340] sm:$0xff] %v2101
      %2230 = vst [vmem:[%s202 + $0x348] sm:$0xff] %v2102
      %2231 = vst [vmem:[%s202 + $0x350] sm:$0xff] %v2103
      %2232 = vst [vmem:[%s202 + $0x358] sm:$0xff] %v2104
      %2233 = vst [vmem:[%s202 + $0x360] sm:$0xff] %v2105
      %2234 = vst [vmem:[%s202 + $0x368] sm:$0xff] %v2106
      %2235 = vst [vmem:[%s202 + $0x370] sm:$0xff] %v2107
      %2236 = vst [vmem:[%s202 + $0x378] sm:$0xff] %v2108
      %2237 = vst [vmem:[%s202 + $0x380] sm:$0xff] %v2109
      %2238 = vst [vmem:[%s202 + $0x388] sm:$0xff] %v2110
      %2239 = vst [vmem:[%s202 + $0x390] sm:$0xff] %v2111
      %2240 = vst [vmem:[%s202 + $0x398] sm:$0xff] %v2112
      %2241 = vst [vmem:[%s202 + $0x3a0] sm:$0xff] %v2113
      %2242 = vst [vmem:[%s202 + $0x3a8] sm:$0xff] %v2114
      %2243 = vst [vmem:[%s202 + $0x3b0] sm:$0xff] %v2115
      %2244 = vst [vmem:[%s202 + $0x3b8] sm:$0xff] %v2116
      %2245 = vst [vmem:[%s202 + $0x3c0] sm:$0xff] %v2117
      %2246 = vst [vmem:[%s202 + $0x3c8] sm:$0xff] %v2118
      %2247 = vst [vmem:[%s202 + $0x3d0] sm:$0xff] %v2119
      %2248 = vst [vmem:[%s202 + $0x3d8] sm:$0xff] %v2120
      %2249 = vst [vmem:[%s202 + $0x3e0] sm:$0xff] %v2121
      %2250 = vst [vmem:[%s202 + $0x3e8] sm:$0xff] %v2122
      %2251 = vst [vmem:[%s202 + $0x3f0] sm:$0xff] %v2123
      %2252 = vst [vmem:[%s202 + $0x3f8] sm:$0xff] %v2124
      %s2253 = smul.u32 128, %s15
      %p2254 = scmp.lt.s32.totalorder %s2253, 255
      %s2255 = scalar_select %p2254, %s2253, 255
      %s2256 = smul.addr %s2255, 8
      %s2257 = scalar_lea.vmem %s4, %s2256
      // Predicated region
      $region37: #{generator_apply.12} parent=35 // pred_check
        %p2258 = pneg %p122
      $region38: #{generator_apply.12} parent=35 // pred_check_branch
        %2260 = sbr.rel (%p2258) target = $region40
      $region39: #{generator_apply.12} parent=35 // pred_region
        %s2261 = smul.u32 128, %s15
      $region40: #{generator_apply.12} parent=35 // pred_fallthru
        _
    $region36: #{generator_apply.12} parent=5 // pred_fallthru
      _
    %p2262 = scmp.le.s32.totalorder 2, %s10
    // Predicated region
    $region41: #{generator_apply.12} parent=5 // pred_check
      %p2263 = pneg %p2262
    $region42: #{generator_apply.12} parent=5 // pred_check_branch
      %2265 = sbr.rel (%p2263) target = $region44
    $region43: #{generator_apply.12} parent=5 // pred_region
      %s2266 = ssub.s32 %s10, 2
      // Predicated region
      $region45: #{generator_apply.12} parent=43 // pred_check
        %p2267 = pneg %p128
      $region46: #{generator_apply.12} parent=43 // pred_check_branch
        %2269 = sbr.rel (%p2267) target = $region48
      $region47: #{generator_apply.12} parent=43 // pred_region
        %s2270 = smul.u32 128, %s16
        %p2271 = scmp.lt.s32.totalorder %s2270, 255
        %s2272 = scalar_select %p2271, %s2270, 255
        %s2273 = smul.addr %s2272, 8
        %s2274 = scalar_lea.vmem %s4, %s2273
      $region48: #{generator_apply.12} parent=43 // pred_fallthru
        _
    $region44: #{generator_apply.12} parent=5 // pred_fallthru
      _
  $region6: #{generator_apply.12} parent=0 // loop_footer
    %s14 = sadd.s32 1, %s10
  $region7: #{generator_apply.12} parent=0 // loop_footer_branch
    %9 = sbr.rel target = $region3
  $region8: #{generator_apply.12} parent=0 // loop_exit
    _

// kernel: generator_apply.13
$region0: #{generator_apply.13}
  #allocation0 [shape = 'u32[]', space=smem, size = 0x4, offset = 0x4, fixed_abs, tag = 'smem constant byte address 0x4 - core index']
  #allocation1 [shape = 'u32[144,128]{1,0:T(1,128)}', space=vmem, size = 0x12000, scoped, tag = 'internal scratch']
  %s0 = inlined_call_operand.vmem [shape: bf16[512,144], index: 0, kind: input, shape index: {}]
  %s1 = inlined_call_operand.vmem [shape: bf16[144,128], index: 1, kind: input, shape index: {}]
  %s2 = inlined_call_operand.vmem [shape: f32[1,128], index: 2, kind: input, shape index: {}]
  %s3 = inlined_call_operand.vmem [shape: f32[1,128], index: 3, kind: input, shape index: {}]
  %s4 = inlined_call_operand.vmem [shape: f32[512,128], index: 4, kind: output, shape index: {}]
  %s5 = sld [smem:[#allocation0]]
  $region49: #{generator_apply.13} parent=0
    _
  %s7 = ssub.s32 1, %s5
  %s8 = scalar_select 0, %s7, %s5
  loop: start=0, step=1, limit=4
  $region2: #{generator_apply.13} parent=0 // loop_pre_header
    _
  $region3: #{generator_apply.13} parent=0 // loop_header
    %s10 = sphi 0, %s14
    %p11 = scmp.ge.s32.totalorder %s10, 4
    %s20 = sphi 0, %s22
    %s23 = sphi 0, %s20
    %s24 = sphi 0, %s23
    %s40 = sphi 0, %s24
    %s44 = sphi 0, %s44
    %s46 = sphi 0, %s44
    %s47 = sphi 0, %s46
    %s61 = sphi 0, %s47
    %s65 = sphi 0, %s65
    %s67 = sphi 0, %s65
    %s68 = sphi 0, %s67
    %s82 = sphi 0, %s68
    %s86 = sphi 0, %s86
    %s88 = sphi 0, %s86
    %s89 = sphi 0, %s88
    %s103 = sphi 0, %s89
    %s109 = sphi 0, %s111
    %s112 = sphi 0, %s109
    %s113 = sphi 0, %s112
    %s129 = sphi 0, %s113
  $region4: #{generator_apply.13} parent=0 // loop_header_branch
    %13 = sbr.rel (%p11) target = $region8
  $region5: #{generator_apply.13} parent=0 // loop_body
    %s15 = ssub.s32 %s10, 1
    %s16 = ssub.s32 %s10, 2
    %s17 = sadd.s32 %s10, 1
    %s18 = ssub.s32 %s10, %s17
    %p19 = scmp.eq.s32.totalorder %s18, 0
    %s21 = sadd.s32 %s20, 1
    %s22 = scalar_select %p19, %s20, %s21
    %p25 = pneg %p19
    %p26 = scmp.eq.s32.totalorder %s10, 1
    %p27 = por %p25, %p26
    %p28 = scmp.ne.s32.totalorder %s20, %s23
    %p29 = scmp.eq.s32.totalorder %s10, 0
    %p30 = por %p28, %p29
    %p31 = scmp.ne.s32.totalorder %s20, %s23
    %p32 = scmp.eq.s32.totalorder %s15, 1
    %p33 = por %p31, %p32
    %p34 = scmp.ne.s32.totalorder %s23, %s24
    %p35 = scmp.eq.s32.totalorder %s15, 0
    %p36 = por %p34, %p35
    %p37 = scmp.ne.s32.totalorder %s23, %s24
    %p38 = scmp.eq.s32.totalorder %s16, 1
    %p39 = por %p37, %p38
    %p41 = scmp.ne.s32.totalorder %s24, %s40
    %p42 = scmp.eq.s32.totalorder %s16, 0
    %p43 = por %p41, %p42
    %s45 = sadd.s32 %s44, 1
    %p48 = scmp.eq.s32.totalorder %s10, 1
    %p49 = scmp.ne.s32.totalorder %s44, %s46
    %p50 = scmp.eq.s32.totalorder %s10, 0
    %p51 = por %p49, %p50
    %p52 = scmp.ne.s32.totalorder %s44, %s46
    %p53 = scmp.eq.s32.totalorder %s15, 1
    %p54 = por %p52, %p53
    %p55 = scmp.ne.s32.totalorder %s46, %s47
    %p56 = scmp.eq.s32.totalorder %s15, 0
    %p57 = por %p55, %p56
    %p58 = scmp.ne.s32.totalorder %s46, %s47
    %p59 = scmp.eq.s32.totalorder %s16, 1
    %p60 = por %p58, %p59
    %p62 = scmp.ne.s32.totalorder %s47, %s61
    %p63 = scmp.eq.s32.totalorder %s16, 0
    %p64 = por %p62, %p63
    %s66 = sadd.s32 %s65, 1
    %p69 = scmp.eq.s32.totalorder %s10, 1
    %p70 = scmp.ne.s32.totalorder %s65, %s67
    %p71 = scmp.eq.s32.totalorder %s10, 0
    %p72 = por %p70, %p71
    %p73 = scmp.ne.s32.totalorder %s65, %s67
    %p74 = scmp.eq.s32.totalorder %s15, 1
    %p75 = por %p73, %p74
    %p76 = scmp.ne.s32.totalorder %s67, %s68
    %p77 = scmp.eq.s32.totalorder %s15, 0
    %p78 = por %p76, %p77
    %p79 = scmp.ne.s32.totalorder %s67, %s68
    %p80 = scmp.eq.s32.totalorder %s16, 1
    %p81 = por %p79, %p80
    %p83 = scmp.ne.s32.totalorder %s68, %s82
    %p84 = scmp.eq.s32.totalorder %s16, 0
    %p85 = por %p83, %p84
    %s87 = sadd.s32 %s86, 1
    %p90 = scmp.eq.s32.totalorder %s10, 1
    %p91 = scmp.ne.s32.totalorder %s86, %s88
    %p92 = scmp.eq.s32.totalorder %s10, 0
    %p93 = por %p91, %p92
    %p94 = scmp.ne.s32.totalorder %s86, %s88
    %p95 = scmp.eq.s32.totalorder %s15, 1
    %p96 = por %p94, %p95
    %p97 = scmp.ne.s32.totalorder %s88, %s89
    %p98 = scmp.eq.s32.totalorder %s15, 0
    %p99 = por %p97, %p98
    %p100 = scmp.ne.s32.totalorder %s88, %s89
    %p101 = scmp.eq.s32.totalorder %s16, 1
    %p102 = por %p100, %p101
    %p104 = scmp.ne.s32.totalorder %s89, %s103
    %p105 = scmp.eq.s32.totalorder %s16, 0
    %p106 = por %p104, %p105
    %s107 = ssub.s32 %s10, %s17
    %p108 = scmp.eq.s32.totalorder %s107, 0
    %s110 = sadd.s32 %s109, 1
    %s111 = scalar_select %p108, %s109, %s110
    %p114 = pneg %p108
    %p115 = scmp.eq.s32.totalorder %s10, 1
    %p116 = por %p114, %p115
    %p117 = scmp.ne.s32.totalorder %s109, %s112
    %p118 = scmp.eq.s32.totalorder %s10, 0
    %p119 = por %p117, %p118
    %p120 = scmp.ne.s32.totalorder %s109, %s112
    %p121 = scmp.eq.s32.totalorder %s15, 1
    %p122 = por %p120, %p121
    %p123 = scmp.ne.s32.totalorder %s112, %s113
    %p124 = scmp.eq.s32.totalorder %s15, 0
    %p125 = por %p123, %p124
    %p126 = scmp.ne.s32.totalorder %s112, %s113
    %p127 = scmp.eq.s32.totalorder %s16, 1
    %p128 = por %p126, %p127
    %p130 = scmp.ne.s32.totalorder %s113, %s129
    %p131 = scmp.eq.s32.totalorder %s16, 0
    %p132 = por %p130, %p131
    %p133 = scmp.le.s32.totalorder 1, %s10
    %p134 = scmp.lt.s32.totalorder %s10, 3
    %p135 = pnand %p133, %p134
    %p136 = pneg %p135
    // Predicated region
    $region9: #{generator_apply.13} parent=5 // pred_check
      _
    $region10: #{generator_apply.13} parent=5 // pred_check_branch
      %138 = sbr.rel (%p135) target = $region12
    $region11: #{generator_apply.13} parent=5 // pred_region
      %s139 = ssub.s32 %s10, 1
      // Predicated region
      $region13: #{generator_apply.13} parent=11 // pred_check
        %p140 = pneg %p57
      $region14: #{generator_apply.13} parent=11 // pred_check_branch
        %142 = sbr.rel (%p140) target = $region16
      $region15: #{generator_apply.13} parent=11 // pred_region
        _
      $region16: #{generator_apply.13} parent=11 // pred_fallthru
        _
      // Predicated region
      $region17: #{generator_apply.13} parent=11 // pred_check
        %p143 = pneg %p78
      $region18: #{generator_apply.13} parent=11 // pred_check_branch
        %145 = sbr.rel (%p143) target = $region20
      $region19: #{generator_apply.13} parent=11 // pred_region
        _
      $region20: #{generator_apply.13} parent=11 // pred_fallthru
        _
      // Predicated region
      $region21: #{generator_apply.13} parent=11 // pred_check
        %p146 = pneg %p99
      $region22: #{generator_apply.13} parent=11 // pred_check_branch
        %148 = sbr.rel (%p146) target = $region24
      $region23: #{generator_apply.13} parent=11 // pred_region
        _
      $region24: #{generator_apply.13} parent=11 // pred_fallthru
        _
    $region12: #{generator_apply.13} parent=5 // pred_fallthru
      _
    %p149 = scmp.lt.s32.totalorder %s10, 2
    // Predicated region
    $region25: #{generator_apply.13} parent=5 // pred_check
      %p150 = pneg %p149
    $region26: #{generator_apply.13} parent=5 // pred_check_branch
      %152 = sbr.rel (%p150) target = $region28
    $region27: #{generator_apply.13} parent=5 // pred_region
      // Predicated region
      $region29: #{generator_apply.13} parent=27 // pred_check
        %p153 = pneg %p30
      $region30: #{generator_apply.13} parent=27 // pred_check_branch
        %155 = sbr.rel (%p153) target = $region32
      $region31: #{generator_apply.13} parent=27 // pred_region
        %s156 = smul.u32 32, %s10
        %p157 = scmp.lt.s32.totalorder %s156, 63
        %s158 = scalar_select %p157, %s156, 63
        %s159 = smul.addr %s158, 2
        %s160 = smul.addr %s159, 4
        %s161 = scalar_lea.vmem %s0, %s160
        %s162 = smul.u32 32, %s10
      $region32: #{generator_apply.13} parent=27 // pred_fallthru
        _
    $region28: #{generator_apply.13} parent=5 // pred_fallthru
      _
    %p163 = scmp.le.s32.totalorder 1, %s10
    %p164 = scmp.lt.s32.totalorder %s10, 3
    %p165 = pnand %p163, %p164
    %p166 = pneg %p165
    // Predicated region
    $region33: #{generator_apply.13} parent=5 // pred_check
      _
    $region34: #{generator_apply.13} parent=5 // pred_check_branch
      %168 = sbr.rel (%p165) target = $region36
    $region35: #{generator_apply.13} parent=5 // pred_region
      %s169 = ssub.s32 %s10, 1
      %s170 = smul.u32 32, %s15
      %p171 = scmp.lt.s32.totalorder %s170, 63
      %s172 = scalar_select %p171, %s170, 63
      %s173 = smul.addr %s172, 2
      %s174 = smul.addr %s173, 4
      %s175 = scalar_lea.vmem %s0, %s174
      %p176 = pneg %p36
      %p177 = pneg %p33
      %p178 = pneg %p57
      %p179 = pneg %p54
      %p180 = pneg %p78
      %p181 = pneg %p75
      %p182 = pneg %p99
      %p183 = pneg %p96
      %p184 = pneg %p125
      %p185 = pneg %p122
      %s186 = smul.u32 32, %s15
      %p187 = scmp.lt.s32.totalorder %s186, 63
      %s188 = scalar_select %p187, %s186, 63
      %s189 = smul.addr %s188, 8
      %s190 = scalar_lea.vmem %s4, %s189
      %s191 = smul.u32 32, %s15
      %p192 = scmp.lt.s32.totalorder %s191, 63
      %s193 = scalar_select %p192, %s191, 63
      %s194 = smul.addr %s193, 2
      %s195 = smul.addr %s194, 4
      %s196 = scalar_lea.vmem %s0, %s195
      %s197 = smul.u32 32, %s15
      %s198 = smul.u32 32, %s15
      %p199 = scmp.lt.s32.totalorder %s198, 63
      %s200 = scalar_select %p199, %s198, 63
      %s201 = smul.addr %s200, 8
      %s202 = scalar_lea.vmem %s4, %s201
      %s203 = smul.u32 32, %s15
      %v205 = vld [vmem:[%s196] sm:$0xff]
      %v206 = vld [vmem:[%s196 + $0x8] sm:$0xff]
      %v207 = vld [vmem:[%s196 + $0x10] sm:$0xff]
      %v208 = vld [vmem:[%s196 + $0x18] sm:$0xff]
      %v209 = vld [vmem:[%s196 + $0x20] sm:$0xff]
      %v210 = vld [vmem:[%s196 + $0x28] sm:$0xff]
      %v211 = vld [vmem:[%s196 + $0x30] sm:$0xff]
      %v212 = vld [vmem:[%s196 + $0x38] sm:$0xff]
      %v213 = vld [vmem:[%s196 + $0x40] sm:$0xff]
      %v214 = vld [vmem:[%s196 + $0x48] sm:$0xff]
      %v215 = vld [vmem:[%s196 + $0x50] sm:$0xff]
      %v216 = vld [vmem:[%s196 + $0x58] sm:$0xff]
      %v217 = vld [vmem:[%s196 + $0x60] sm:$0xff]
      %v218 = vld [vmem:[%s196 + $0x68] sm:$0xff]
      %v219 = vld [vmem:[%s196 + $0x70] sm:$0xff]
      %v220 = vld [vmem:[%s196 + $0x78] sm:$0xff]
      %v221 = vld [vmem:[%s196 + $0x80] sm:$0xff]
      %v222 = vld [vmem:[%s196 + $0x88] sm:$0xff]
      %v223 = vld [vmem:[%s196 + $0x90] sm:$0xff]
      %v224 = vld [vmem:[%s196 + $0x98] sm:$0xff]
      %v225 = vld [vmem:[%s196 + $0xa0] sm:$0xff]
      %v226 = vld [vmem:[%s196 + $0xa8] sm:$0xff]
      %v227 = vld [vmem:[%s196 + $0xb0] sm:$0xff]
      %v228 = vld [vmem:[%s196 + $0xb8] sm:$0xff]
      %v229 = vld [vmem:[%s196 + $0xc0] sm:$0xff]
      %v230 = vld [vmem:[%s196 + $0xc8] sm:$0xff]
      %v231 = vld [vmem:[%s196 + $0xd0] sm:$0xff]
      %v232 = vld [vmem:[%s196 + $0xd8] sm:$0xff]
      %v233 = vld [vmem:[%s196 + $0xe0] sm:$0xff]
      %v234 = vld [vmem:[%s196 + $0xe8] sm:$0xff]
      %v235 = vld [vmem:[%s196 + $0xf0] sm:$0xff]
      %v236 = vld [vmem:[%s196 + $0xf8] sm:$0xff]
      %v237 = vld [vmem:[%s1] sm:$0xf]
      %v238 = vld [vmem:[%s1 + $0x4] sm:$0xf]
      %v239 = vld [vmem:[%s1 + $0x8] sm:$0xf]
      %v240 = vld [vmem:[%s1 + $0xc] sm:$0xf]
      %v241 = vld [vmem:[%s1 + $0x10] sm:$0xf]
      %v242 = vld [vmem:[%s1 + $0x14] sm:$0xf]
      %v243 = vld [vmem:[%s1 + $0x18] sm:$0xf]
      %v244 = vld [vmem:[%s1 + $0x1c] sm:$0xf]
      %v245 = vld [vmem:[%s1 + $0x20] sm:$0xf]
      %v246 = vld [vmem:[%s1 + $0x24] sm:$0xf]
      %v247 = vld [vmem:[%s1 + $0x28] sm:$0xf]
      %v248 = vld [vmem:[%s1 + $0x2c] sm:$0xf]
      %v249 = vld [vmem:[%s1 + $0x30] sm:$0xf]
      %v250 = vld [vmem:[%s1 + $0x34] sm:$0xf]
      %v251 = vld [vmem:[%s1 + $0x38] sm:$0xf]
      %v252 = vld [vmem:[%s1 + $0x3c] sm:$0xf]
      %v253 = vld [vmem:[%s1 + $0x40] sm:$0xf]
      %v254 = vld [vmem:[%s1 + $0x44] sm:$0xf]
      %v287 = vunpack.c.l.b16 %v205
      %v288 = vunpack.c.h.b16 %v205
      %v289 = vunpack.c.l.b16 %v206
      %v290 = vunpack.c.h.b16 %v206
      %v291 = vunpack.c.l.b16 %v207
      %v292 = vunpack.c.h.b16 %v207
      %v293 = vunpack.c.l.b16 %v208
      %v294 = vunpack.c.h.b16 %v208
      %v295 = vunpack.c.l.b16 %v209
      %v296 = vunpack.c.h.b16 %v209
      %v297 = vunpack.c.l.b16 %v210
      %v298 = vunpack.c.h.b16 %v210
      %v299 = vunpack.c.l.b16 %v211
      %v300 = vunpack.c.h.b16 %v211
      %v301 = vunpack.c.l.b16 %v212
      %v302 = vunpack.c.h.b16 %v212
      %v303 = vunpack.c.l.b16 %v213
      %v304 = vunpack.c.h.b16 %v213
      %v305 = vunpack.c.l.b16 %v214
      %v306 = vunpack.c.h.b16 %v214
      %v307 = vunpack.c.l.b16 %v215
      %v308 = vunpack.c.h.b16 %v215
      %v309 = vunpack.c.l.b16 %v216
      %v310 = vunpack.c.h.b16 %v216
      %v311 = vunpack.c.l.b16 %v217
      %v312 = vunpack.c.h.b16 %v217
      %v313 = vunpack.c.l.b16 %v218
      %v314 = vunpack.c.h.b16 %v218
      %v315 = vunpack.c.l.b16 %v219
      %v316 = vunpack.c.h.b16 %v219
      %v317 = vunpack.c.l.b16 %v220
      %v318 = vunpack.c.h.b16 %v220
      %v319 = vunpack.c.l.b16 %v221
      %v320 = vunpack.c.h.b16 %v221
      %v321 = vunpack.c.l.b16 %v222
      %v322 = vunpack.c.h.b16 %v222
      %v323 = vunpack.c.l.b16 %v223
      %v324 = vunpack.c.h.b16 %v223
      %v325 = vunpack.c.l.b16 %v224
      %v326 = vunpack.c.h.b16 %v224
      %v327 = vunpack.c.l.b16 %v225
      %v328 = vunpack.c.h.b16 %v225
      %v329 = vunpack.c.l.b16 %v226
      %v330 = vunpack.c.h.b16 %v226
      %v331 = vunpack.c.l.b16 %v227
      %v332 = vunpack.c.h.b16 %v227
      %v333 = vunpack.c.l.b16 %v228
      %v334 = vunpack.c.h.b16 %v228
      %v335 = vunpack.c.l.b16 %v229
      %v336 = vunpack.c.h.b16 %v229
      %v337 = vunpack.c.l.b16 %v230
      %v338 = vunpack.c.h.b16 %v230
      %v339 = vunpack.c.l.b16 %v231
      %v340 = vunpack.c.h.b16 %v231
      %v341 = vunpack.c.l.b16 %v232
      %v342 = vunpack.c.h.b16 %v232
      %v343 = vunpack.c.l.b16 %v233
      %v344 = vunpack.c.h.b16 %v233
      %v345 = vunpack.c.l.b16 %v234
      %v346 = vunpack.c.h.b16 %v234
      %v347 = vunpack.c.l.b16 %v235
      %v348 = vunpack.c.h.b16 %v235
      %v349 = vunpack.c.l.b16 %v236
      %v350 = vunpack.c.h.b16 %v236
      %v351 = vpack.c.b16 %v289, %v287
      %v352 = vpack.c.b16 %v290, %v288
      %v353 = vpack.c.b16 %v293, %v291
      %v354 = vpack.c.b16 %v294, %v292
      %v355 = vpack.c.b16 %v297, %v295
      %v356 = vpack.c.b16 %v298, %v296
      %v357 = vpack.c.b16 %v301, %v299
      %v358 = vpack.c.b16 %v302, %v300
      %v359 = vpack.c.b16 %v305, %v303
      %v360 = vpack.c.b16 %v306, %v304
      %v361 = vpack.c.b16 %v309, %v307
      %v362 = vpack.c.b16 %v310, %v308
      %v363 = vpack.c.b16 %v313, %v311
      %v364 = vpack.c.b16 %v314, %v312
      %v365 = vpack.c.b16 %v317, %v315
      %v366 = vpack.c.b16 %v318, %v316
      %v367 = vpack.c.b16 %v321, %v319
      %v368 = vpack.c.b16 %v322, %v320
      %v369 = vpack.c.b16 %v325, %v323
      %v370 = vpack.c.b16 %v326, %v324
      %v371 = vpack.c.b16 %v329, %v327
      %v372 = vpack.c.b16 %v330, %v328
      %v373 = vpack.c.b16 %v333, %v331
      %v374 = vpack.c.b16 %v334, %v332
      %v375 = vpack.c.b16 %v337, %v335
      %v376 = vpack.c.b16 %v338, %v336
      %v377 = vpack.c.b16 %v341, %v339
      %v378 = vpack.c.b16 %v342, %v340
      %v379 = vpack.c.b16 %v345, %v343
      %v380 = vpack.c.b16 %v346, %v344
      %v381 = vpack.c.b16 %v349, %v347
      %v382 = vpack.c.b16 %v350, %v348
      %v417 = vunpack.c.l.b16 %v237
      %v418 = vunpack.c.l.b16 %v238
      %v419 = vunpack.c.l.b16 %v239
      %v420 = vunpack.c.l.b16 %v240
      %v421 = vunpack.c.l.b16 %v241
      %v422 = vunpack.c.l.b16 %v242
      %v423 = vunpack.c.l.b16 %v243
      %v424 = vunpack.c.l.b16 %v244
      %v425 = vunpack.c.l.b16 %v245
      %v426 = vunpack.c.l.b16 %v246
      %v427 = vunpack.c.l.b16 %v247
      %v428 = vunpack.c.l.b16 %v248
      %v429 = vunpack.c.l.b16 %v249
      %v430 = vunpack.c.l.b16 %v250
      %v431 = vunpack.c.l.b16 %v251
      %v432 = vunpack.c.l.b16 %v252
      %v433 = vunpack.c.l.b16 %v253
      %v434 = vunpack.c.l.b16 %v254
      %v435 = vpack.c.b16 %v418, %v417
      %v436 = vpack.c.b16 %v420, %v419
      %v437 = vpack.c.b16 %v422, %v421
      %v438 = vpack.c.b16 %v424, %v423
      %v439 = vpack.c.b16 %v426, %v425
      %v440 = vpack.c.b16 %v428, %v427
      %v441 = vpack.c.b16 %v430, %v429
      %v442 = vpack.c.b16 %v432, %v431
      %v443 = vpack.c.b16 %v434, %v433
      %vm453 = vcmask 130048
      %v455 = vsel %vm453, %v352, 0
      %v458 = vsel %vm453, %v354, 0
      %v461 = vsel %vm453, %v356, 0
      %v464 = vsel %vm453, %v358, 0
      %v467 = vsel %vm453, %v360, 0
      %v470 = vsel %vm453, %v362, 0
      %v473 = vsel %vm453, %v364, 0
      %v476 = vsel %vm453, %v366, 0
      %v479 = vsel %vm453, %v368, 0
      %v482 = vsel %vm453, %v370, 0
      %v485 = vsel %vm453, %v372, 0
      %v488 = vsel %vm453, %v374, 0
      %v491 = vsel %vm453, %v376, 0
      %v494 = vsel %vm453, %v378, 0
      %v497 = vsel %vm453, %v380, 0
      %v500 = vsel %vm453, %v382, 0
      %502 = vmatprep.subr.bf16.mxu0 0
      %503 = vmatpush1.bf16.msra.mxu0 %v435
      %504 = vmatprep.subr.bf16.mxu0 0
      %505 = vmatpush1.bf16.msra.mxu0 %v436
      %506 = vmatprep.subr.bf16.mxu0 0
      %507 = vmatpush1.bf16.msra.mxu0 %v437
      %508 = vmatprep.subr.bf16.mxu0 0
      %509 = vmatpush1.bf16.msra.mxu0 %v438
      %510 = vmatprep.subr.bf16.mxu0 0
      %511 = vmatpush1.bf16.msra.mxu0 %v439
      %512 = vmatprep.subr.bf16.mxu0 0
      %513 = vmatpush1.bf16.msra.mxu0 %v440
      %514 = vmatprep.subr.bf16.mxu0 0
      %515 = vmatpush1.bf16.msra.mxu0 %v441
      %516 = vmatprep.subr.bf16.mxu0 0
      %517 = vmatpush1.bf16.msra.mxu0 %v442
      %518 = vmatprep.subr.bf16.mxu0 0
      %519 = vmatpush1.bf16.msra.mxu0 %v443
      %520 = vmatprep.subr.bf16.mxu0 0
      %521 = vmatpush1.bf16.msra.mxu0 0
      %522 = vmatprep.subr.bf16.mxu0 0
      %523 = vmatpush1.bf16.msra.mxu0 0
      %524 = vmatprep.subr.bf16.mxu0 0
      %525 = vmatpush1.bf16.msra.mxu0 0
      %526 = vmatprep.subr.bf16.mxu0 0
      %527 = vmatpush1.bf16.msra.mxu0 0
      %528 = vmatprep.subr.bf16.mxu0 0
      %529 = vmatpush1.bf16.msra.mxu0 0
      %530 = vmatprep.subr.bf16.mxu0 0
      %531 = vmatpush1.bf16.msra.mxu0 0
      %532 = vmatprep.subr.bf16.mxu0 0
      %533 = vmatpush1.bf16.msra.mxu0 0
      %534 = vmatprep.mubr.bf16.mxu0 %v455
      %535 = vmatmul.mubr.bf16.gmra.mrb[0].mxu0 %v351
      %v536 = vpop.f32.mrb[0].mxu0
      %v537 = vadd.f32 0.0, %v536
      %v538 = vpop.f32.mrb[0].mxu0
      %v539 = vpop.f32.mrb[0].mxu0
      %v540 = vadd.f32 0.0, %v539
      %v541 = vpop.f32.mrb[0].mxu0
      %542 = vmatprep.mubr.bf16.mxu0 %v458
      %543 = vmatmul.mubr.bf16.gmra.mrb[0].mxu0 %v353
      %v544 = vpop.f32.mrb[0].mxu0
      %v545 = vadd.f32 0.0, %v544
      %v546 = vpop.f32.mrb[0].mxu0
      %v547 = vpop.f32.mrb[0].mxu0
      %v548 = vadd.f32 0.0, %v547
      %v549 = vpop.f32.mrb[0].mxu0
      %550 = vmatprep.mubr.bf16.mxu0 %v461
      %551 = vmatmul.mubr.bf16.gmra.mrb[0].mxu0 %v355
      %v552 = vpop.f32.mrb[0].mxu0
      %v553 = vadd.f32 0.0, %v552
      %v554 = vpop.f32.mrb[0].mxu0
      %v555 = vpop.f32.mrb[0].mxu0
      %v556 = vadd.f32 0.0, %v555
      %v557 = vpop.f32.mrb[0].mxu0
      %558 = vmatprep.mubr.bf16.mxu0 %v464
      %559 = vmatmul.mubr.bf16.gmra.mrb[0].mxu0 %v357
      %v560 = vpop.f32.mrb[0].mxu0
      %v561 = vadd.f32 0.0, %v560
      %v562 = vpop.f32.mrb[0].mxu0
      %v563 = vpop.f32.mrb[0].mxu0
      %v564 = vadd.f32 0.0, %v563
      %v565 = vpop.f32.mrb[0].mxu0
      %566 = vmatprep.mubr.bf16.mxu0 %v467
      %567 = vmatmul.mubr.bf16.gmra.mrb[0].mxu0 %v359
      %v568 = vpop.f32.mrb[0].mxu0
      %v569 = vadd.f32 0.0, %v568
      %v570 = vpop.f32.mrb[0].mxu0
      %v571 = vpop.f32.mrb[0].mxu0
      %v572 = vadd.f32 0.0, %v571
      %v573 = vpop.f32.mrb[0].mxu0
      %574 = vmatprep.mubr.bf16.mxu0 %v470
      %575 = vmatmul.mubr.bf16.gmra.mrb[0].mxu0 %v361
      %v576 = vpop.f32.mrb[0].mxu0
      %v577 = vadd.f32 0.0, %v576
      %v578 = vpop.f32.mrb[0].mxu0
      %v579 = vpop.f32.mrb[0].mxu0
      %v580 = vadd.f32 0.0, %v579
      %v581 = vpop.f32.mrb[0].mxu0
      %582 = vmatprep.mubr.bf16.mxu0 %v473
      %583 = vmatmul.mubr.bf16.gmra.mrb[0].mxu0 %v363
      %v584 = vpop.f32.mrb[0].mxu0
      %v585 = vadd.f32 0.0, %v584
      %v586 = vpop.f32.mrb[0].mxu0
      %v587 = vpop.f32.mrb[0].mxu0
      %v588 = vadd.f32 0.0, %v587
      %v589 = vpop.f32.mrb[0].mxu0
      %590 = vmatprep.mubr.bf16.mxu0 %v476
      %591 = vmatmul.mubr.bf16.gmra.mrb[0].mxu0 %v365
      %v592 = vpop.f32.mrb[0].mxu0
      %v593 = vadd.f32 0.0, %v592
      %v594 = vpop.f32.mrb[0].mxu0
      %v595 = vpop.f32.mrb[0].mxu0
      %v596 = vadd.f32 0.0, %v595
      %v597 = vpop.f32.mrb[0].mxu0
      %598 = vmatprep.mubr.bf16.mxu0 %v479
      %599 = vmatmul.mubr.bf16.gmra.mrb[0].mxu0 %v367
      %v600 = vpop.f32.mrb[0].mxu0
      %v601 = vadd.f32 0.0, %v600
      %v602 = vpop.f32.mrb[0].mxu0
      %v603 = vpop.f32.mrb[0].mxu0
      %v604 = vadd.f32 0.0, %v603
      %v605 = vpop.f32.mrb[0].mxu0
      %606 = vmatprep.mubr.bf16.mxu0 %v482
      %607 = vmatmul.mubr.bf16.gmra.mrb[0].mxu0 %v369
      %v608 = vpop.f32.mrb[0].mxu0
      %v609 = vadd.f32 0.0, %v608
      %v610 = vpop.f32.mrb[0].mxu0
      %v611 = vpop.f32.mrb[0].mxu0
      %v612 = vadd.f32 0.0, %v611
      %v613 = vpop.f32.mrb[0].mxu0
      %614 = vmatprep.mubr.bf16.mxu0 %v485
      %615 = vmatmul.mubr.bf16.gmra.mrb[0].mxu0 %v371
      %v616 = vpop.f32.mrb[0].mxu0
      %v617 = vadd.f32 0.0, %v616
      %v618 = vpop.f32.mrb[0].mxu0
      %v619 = vpop.f32.mrb[0].mxu0
      %v620 = vadd.f32 0.0, %v619
      %v621 = vpop.f32.mrb[0].mxu0
      %622 = vmatprep.mubr.bf16.mxu0 %v488
      %623 = vmatmul.mubr.bf16.gmra.mrb[0].mxu0 %v373
      %v624 = vpop.f32.mrb[0].mxu0
      %v625 = vadd.f32 0.0, %v624
      %v626 = vpop.f32.mrb[0].mxu0
      %v627 = vpop.f32.mrb[0].mxu0
      %v628 = vadd.f32 0.0, %v627
      %v629 = vpop.f32.mrb[0].mxu0
      %630 = vmatprep.mubr.bf16.mxu0 %v491
      %631 = vmatmul.mubr.bf16.gmra.mrb[0].mxu0 %v375
      %v632 = vpop.f32.mrb[0].mxu0
      %v633 = vadd.f32 0.0, %v632
      %v634 = vpop.f32.mrb[0].mxu0
      %v635 = vpop.f32.mrb[0].mxu0
      %v636 = vadd.f32 0.0, %v635
      %v637 = vpop.f32.mrb[0].mxu0
      %638 = vmatprep.mubr.bf16.mxu0 %v494
      %639 = vmatmul.mubr.bf16.gmra.mrb[0].mxu0 %v377
      %v640 = vpop.f32.mrb[0].mxu0
      %v641 = vadd.f32 0.0, %v640
      %v642 = vpop.f32.mrb[0].mxu0
      %v643 = vpop.f32.mrb[0].mxu0
      %v644 = vadd.f32 0.0, %v643
      %v645 = vpop.f32.mrb[0].mxu0
      %646 = vmatprep.mubr.bf16.mxu0 %v497
      %647 = vmatmul.mubr.bf16.gmra.mrb[0].mxu0 %v379
      %v648 = vpop.f32.mrb[0].mxu0
      %v649 = vadd.f32 0.0, %v648
      %v650 = vpop.f32.mrb[0].mxu0
      %v651 = vpop.f32.mrb[0].mxu0
      %v652 = vadd.f32 0.0, %v651
      %v653 = vpop.f32.mrb[0].mxu0
      %654 = vmatprep.mubr.bf16.mxu0 %v500
      %655 = vmatmul.mubr.bf16.gmra.mrb[0].mxu0 %v381
      %v656 = vpop.f32.mrb[0].mxu0
      %v657 = vadd.f32 0.0, %v656
      %v658 = vpop.f32.mrb[0].mxu0
      %v659 = vpop.f32.mrb[0].mxu0
      %v660 = vadd.f32 0.0, %v659
      %v661 = vpop.f32.mrb[0].mxu0
      %662 = vdwg.mxu0
      %v663 = vld [vmem:[%s2] sm:$0x1]
      %v665 = vlaneseq
      %v666 = vshrl.u32 %v665, 7
      %v667 = vsub.s32 0, %v666
      %v668 = vrot.slane %v663, %v667
      %v670 = vmul.f32 %v537, %v668
      %v671 = vmul.f32 %v540, %v668
      %v672 = vmul.f32 %v545, %v668
      %v673 = vmul.f32 %v548, %v668
      %v674 = vmul.f32 %v553, %v668
      %v675 = vmul.f32 %v556, %v668
      %v676 = vmul.f32 %v561, %v668
      %v677 = vmul.f32 %v564, %v668
      %v678 = vmul.f32 %v569, %v668
      %v679 = vmul.f32 %v572, %v668
      %v680 = vmul.f32 %v577, %v668
      %v681 = vmul.f32 %v580, %v668
      %v682 = vmul.f32 %v585, %v668
      %v683 = vmul.f32 %v588, %v668
      %v684 = vmul.f32 %v593, %v668
      %v685 = vmul.f32 %v596, %v668
      %v686 = vmul.f32 %v601, %v668
      %v687 = vmul.f32 %v604, %v668
      %v688 = vmul.f32 %v609, %v668
      %v689 = vmul.f32 %v612, %v668
      %v690 = vmul.f32 %v617, %v668
      %v691 = vmul.f32 %v620, %v668
      %v692 = vmul.f32 %v625, %v668
      %v693 = vmul.f32 %v628, %v668
      %v694 = vmul.f32 %v633, %v668
      %v695 = vmul.f32 %v636, %v668
      %v696 = vmul.f32 %v641, %v668
      %v697 = vmul.f32 %v644, %v668
      %v698 = vmul.f32 %v649, %v668
      %v699 = vmul.f32 %v652, %v668
      %v700 = vmul.f32 %v657, %v668
      %v701 = vmul.f32 %v660, %v668
      %v702 = vld [vmem:[%s3] sm:$0x1]
      %v704 = vlaneseq
      %v705 = vshrl.u32 %v704, 7
      %v706 = vsub.s32 0, %v705
      %v707 = vrot.slane %v702, %v706
      %v709 = vadd.f32 %v670, %v707
      %v710 = vadd.f32 %v671, %v707
      %v711 = vadd.f32 %v672, %v707
      %v712 = vadd.f32 %v673, %v707
      %v713 = vadd.f32 %v674, %v707
      %v714 = vadd.f32 %v675, %v707
      %v715 = vadd.f32 %v676, %v707
      %v716 = vadd.f32 %v677, %v707
      %v717 = vadd.f32 %v678, %v707
      %v718 = vadd.f32 %v679, %v707
      %v719 = vadd.f32 %v680, %v707
      %v720 = vadd.f32 %v681, %v707
      %v721 = vadd.f32 %v682, %v707
      %v722 = vadd.f32 %v683, %v707
      %v723 = vadd.f32 %v684, %v707
      %v724 = vadd.f32 %v685, %v707
      %v725 = vadd.f32 %v686, %v707
      %v726 = vadd.f32 %v687, %v707
      %v727 = vadd.f32 %v688, %v707
      %v728 = vadd.f32 %v689, %v707
      %v729 = vadd.f32 %v690, %v707
      %v730 = vadd.f32 %v691, %v707
      %v731 = vadd.f32 %v692, %v707
      %v732 = vadd.f32 %v693, %v707
      %v733 = vadd.f32 %v694, %v707
      %v734 = vadd.f32 %v695, %v707
      %v735 = vadd.f32 %v696, %v707
      %v736 = vadd.f32 %v697, %v707
      %v737 = vadd.f32 %v698, %v707
      %v738 = vadd.f32 %v699, %v707
      %v739 = vadd.f32 %v700, %v707
      %v740 = vadd.f32 %v701, %v707
      %v741 = vmax.f32 %v709, 0.0
      %v742 = vmax.f32 %v710, 0.0
      %v743 = vmax.f32 %v711, 0.0
      %v744 = vmax.f32 %v712, 0.0
      %v745 = vmax.f32 %v713, 0.0
      %v746 = vmax.f32 %v714, 0.0
      %v747 = vmax.f32 %v715, 0.0
      %v748 = vmax.f32 %v716, 0.0
      %v749 = vmax.f32 %v717, 0.0
      %v750 = vmax.f32 %v718, 0.0
      %v751 = vmax.f32 %v719, 0.0
      %v752 = vmax.f32 %v720, 0.0
      %v753 = vmax.f32 %v721, 0.0
      %v754 = vmax.f32 %v722, 0.0
      %v755 = vmax.f32 %v723, 0.0
      %v756 = vmax.f32 %v724, 0.0
      %v757 = vmax.f32 %v725, 0.0
      %v758 = vmax.f32 %v726, 0.0
      %v759 = vmax.f32 %v727, 0.0
      %v760 = vmax.f32 %v728, 0.0
      %v761 = vmax.f32 %v729, 0.0
      %v762 = vmax.f32 %v730, 0.0
      %v763 = vmax.f32 %v731, 0.0
      %v764 = vmax.f32 %v732, 0.0
      %v765 = vmax.f32 %v733, 0.0
      %v766 = vmax.f32 %v734, 0.0
      %v767 = vmax.f32 %v735, 0.0
      %v768 = vmax.f32 %v736, 0.0
      %v769 = vmax.f32 %v737, 0.0
      %v770 = vmax.f32 %v738, 0.0
      %v771 = vmax.f32 %v739, 0.0
      %v772 = vmax.f32 %v740, 0.0
      %773 = vst [vmem:[%s202] sm:$0xff] %v741
      %774 = vst [vmem:[%s202 + $0x8] sm:$0xff] %v742
      %775 = vst [vmem:[%s202 + $0x10] sm:$0xff] %v743
      %776 = vst [vmem:[%s202 + $0x18] sm:$0xff] %v744
      %777 = vst [vmem:[%s202 + $0x20] sm:$0xff] %v745
      %778 = vst [vmem:[%s202 + $0x28] sm:$0xff] %v746
      %779 = vst [vmem:[%s202 + $0x30] sm:$0xff] %v747
      %780 = vst [vmem:[%s202 + $0x38] sm:$0xff] %v748
      %781 = vst [vmem:[%s202 + $0x40] sm:$0xff] %v749
      %782 = vst [vmem:[%s202 + $0x48] sm:$0xff] %v750
      %783 = vst [vmem:[%s202 + $0x50] sm:$0xff] %v751
      %784 = vst [vmem:[%s202 + $0x58] sm:$0xff] %v752
      %785 = vst [vmem:[%s202 + $0x60] sm:$0xff] %v753
      %786 = vst [vmem:[%s202 + $0x68] sm:$0xff] %v754
      %787 = vst [vmem:[%s202 + $0x70] sm:$0xff] %v755
      %788 = vst [vmem:[%s202 + $0x78] sm:$0xff] %v756
      %789 = vst [vmem:[%s202 + $0x80] sm:$0xff] %v757
      %790 = vst [vmem:[%s202 + $0x88] sm:$0xff] %v758
      %791 = vst [vmem:[%s202 + $0x90] sm:$0xff] %v759
      %792 = vst [vmem:[%s202 + $0x98] sm:$0xff] %v760
      %793 = vst [vmem:[%s202 + $0xa0] sm:$0xff] %v761
      %794 = vst [vmem:[%s202 + $0xa8] sm:$0xff] %v762
      %795 = vst [vmem:[%s202 + $0xb0] sm:$0xff] %v763
      %796 = vst [vmem:[%s202 + $0xb8] sm:$0xff] %v764
      %797 = vst [vmem:[%s202 + $0xc0] sm:$0xff] %v765
      %798 = vst [vmem:[%s202 + $0xc8] sm:$0xff] %v766
      %799 = vst [vmem:[%s202 + $0xd0] sm:$0xff] %v767
      %800 = vst [vmem:[%s202 + $0xd8] sm:$0xff] %v768
      %801 = vst [vmem:[%s202 + $0xe0] sm:$0xff] %v769
      %802 = vst [vmem:[%s202 + $0xe8] sm:$0xff] %v770
      %803 = vst [vmem:[%s202 + $0xf0] sm:$0xff] %v771
      %804 = vst [vmem:[%s202 + $0xf8] sm:$0xff] %v772
      %s805 = smul.u32 32, %s15
      %p806 = scmp.lt.s32.totalorder %s805, 63
      %s807 = scalar_select %p806, %s805, 63
      %s808 = smul.addr %s807, 8
      %s809 = scalar_lea.vmem %s4, %s808
      // Predicated region
      $region37: #{generator_apply.13} parent=35 // pred_check
        %p810 = pneg %p122
      $region38: #{generator_apply.13} parent=35 // pred_check_branch
        %812 = sbr.rel (%p810) target = $region40
      $region39: #{generator_apply.13} parent=35 // pred_region
        %s813 = smul.u32 32, %s15
      $region40: #{generator_apply.13} parent=35 // pred_fallthru
        _
    $region36: #{generator_apply.13} parent=5 // pred_fallthru
      _
    %p814 = scmp.le.s32.totalorder 2, %s10
    // Predicated region
    $region41: #{generator_apply.13} parent=5 // pred_check
      %p815 = pneg %p814
    $region42: #{generator_apply.13} parent=5 // pred_check_branch
      %817 = sbr.rel (%p815) target = $region44
    $region43: #{generator_apply.13} parent=5 // pred_region
      %s818 = ssub.s32 %s10, 2
      // Predicated region
      $region45: #{generator_apply.13} parent=43 // pred_check
        %p819 = pneg %p128
      $region46: #{generator_apply.13} parent=43 // pred_check_branch
        %821 = sbr.rel (%p819) target = $region48
      $region47: #{generator_apply.13} parent=43 // pred_region
        %s822 = smul.u32 32, %s16
        %p823 = scmp.lt.s32.totalorder %s822, 63
        %s824 = scalar_select %p823, %s822, 63
        %s825 = smul.addr %s824, 8
        %s826 = scalar_lea.vmem %s4, %s825
      $region48: #{generator_apply.13} parent=43 // pred_fallthru
        _
    $region44: #{generator_apply.13} parent=5 // pred_fallthru
      _
  $region6: #{generator_apply.13} parent=0 // loop_footer
    %s14 = sadd.s32 1, %s10
  $region7: #{generator_apply.13} parent=0 // loop_footer_branch
    %9 = sbr.rel target = $region3
  $region8: #{generator_apply.13} parent=0 // loop_exit
    _

// kernel: generator_apply.14
$region0: #{generator_apply.14}
  #allocation0 [shape = 'u32[]', space=smem, size = 0x4, offset = 0x4, fixed_abs, tag = 'smem constant byte address 0x4 - core index']
  #allocation1 [shape = 'u32[144,128]{1,0:T(1,128)}', space=vmem, size = 0x12000, scoped, tag = 'internal scratch']
  %s0 = inlined_call_operand.vmem [shape: bf16[128,288], index: 0, kind: input, shape index: {}]
  %s1 = inlined_call_operand.vmem [shape: bf16[288,128], index: 1, kind: input, shape index: {}]
  %s2 = inlined_call_operand.vmem [shape: f32[1,128], index: 2, kind: input, shape index: {}]
  %s3 = inlined_call_operand.vmem [shape: f32[1,128], index: 3, kind: input, shape index: {}]
  %s4 = inlined_call_operand.vmem [shape: f32[128,128], index: 4, kind: output, shape index: {}]
  %s5 = sld [smem:[#allocation0]]
  $region26: #{generator_apply.14} parent=0
    _
  %s7 = ssub.s32 1, %s5
  %s8 = scalar_select 0, %s7, %s5
  // Predicated region
  $region2: #{generator_apply.14} parent=0 // pred_check
    _
  $region3: #{generator_apply.14} parent=0 // pred_check_branch
    %10 = sbr.rel (0) target = $region5
  $region4: #{generator_apply.14} parent=0 // pred_region
    _
  $region5: #{generator_apply.14} parent=0 // pred_fallthru
    _
  // Predicated region
  $region6: #{generator_apply.14} parent=0 // pred_check
    _
  $region7: #{generator_apply.14} parent=0 // pred_check_branch
    %12 = sbr.rel (0) target = $region9
  $region8: #{generator_apply.14} parent=0 // pred_region
    _
  $region9: #{generator_apply.14} parent=0 // pred_fallthru
    _
  // Predicated region
  $region10: #{generator_apply.14} parent=0 // pred_check
    _
  $region11: #{generator_apply.14} parent=0 // pred_check_branch
    %14 = sbr.rel (0) target = $region13
  $region12: #{generator_apply.14} parent=0 // pred_region
    _
  $region13: #{generator_apply.14} parent=0 // pred_fallthru
    _
  // Predicated region
  $region14: #{generator_apply.14} parent=0 // pred_check
    _
  $region15: #{generator_apply.14} parent=0 // pred_check_branch
    %16 = sbr.rel (0) target = $region17
  $region16: #{generator_apply.14} parent=0 // pred_region
    _
  $region17: #{generator_apply.14} parent=0 // pred_fallthru
    _
  %v18 = vld [vmem:[%s0] sm:$0xff]
  %v19 = vld [vmem:[%s0 + $0x8] sm:$0xf]
  %v20 = vld [vmem:[%s0 + $0xc] sm:$0xff]
  %v21 = vld [vmem:[%s0 + $0x14] sm:$0xf]
  %v22 = vld [vmem:[%s0 + $0x18] sm:$0xff]
  %v23 = vld [vmem:[%s0 + $0x20] sm:$0xf]
  %v24 = vld [vmem:[%s0 + $0x24] sm:$0xff]
  %v25 = vld [vmem:[%s0 + $0x2c] sm:$0xf]
  %v26 = vld [vmem:[%s0 + $0x30] sm:$0xff]
  %v27 = vld [vmem:[%s0 + $0x38] sm:$0xf]
  %v28 = vld [vmem:[%s0 + $0x3c] sm:$0xff]
  %v29 = vld [vmem:[%s0 + $0x44] sm:$0xf]
  %v30 = vld [vmem:[%s0 + $0x48] sm:$0xff]
  %v31 = vld [vmem:[%s0 + $0x50] sm:$0xf]
  %v32 = vld [vmem:[%s0 + $0x54] sm:$0xff]
  %v33 = vld [vmem:[%s0 + $0x5c] sm:$0xf]
  %v34 = vld [vmem:[%s0 + $0x60] sm:$0xff]
  %v35 = vld [vmem:[%s0 + $0x68] sm:$0xf]
  %v36 = vld [vmem:[%s0 + $0x6c] sm:$0xff]
  %v37 = vld [vmem:[%s0 + $0x74] sm:$0xf]
  %v38 = vld [vmem:[%s0 + $0x78] sm:$0xff]
  %v39 = vld [vmem:[%s0 + $0x80] sm:$0xf]
  %v40 = vld [vmem:[%s0 + $0x84] sm:$0xff]
  %v41 = vld [vmem:[%s0 + $0x8c] sm:$0xf]
  %v42 = vld [vmem:[%s0 + $0x90] sm:$0xff]
  %v43 = vld [vmem:[%s0 + $0x98] sm:$0xf]
  %v44 = vld [vmem:[%s0 + $0x9c] sm:$0xff]
  %v45 = vld [vmem:[%s0 + $0xa4] sm:$0xf]
  %v46 = vld [vmem:[%s0 + $0xa8] sm:$0xff]
  %v47 = vld [vmem:[%s0 + $0xb0] sm:$0xf]
  %v48 = vld [vmem:[%s0 + $0xb4] sm:$0xff]
  %v49 = vld [vmem:[%s0 + $0xbc] sm:$0xf]
  %v50 = vld [vmem:[%s1] sm:$0xf]
  %v51 = vld [vmem:[%s1 + $0x4] sm:$0xf]
  %v52 = vld [vmem:[%s1 + $0x8] sm:$0xf]
  %v53 = vld [vmem:[%s1 + $0xc] sm:$0xf]
  %v54 = vld [vmem:[%s1 + $0x10] sm:$0xf]
  %v55 = vld [vmem:[%s1 + $0x14] sm:$0xf]
  %v56 = vld [vmem:[%s1 + $0x18] sm:$0xf]
  %v57 = vld [vmem:[%s1 + $0x1c] sm:$0xf]
  %v58 = vld [vmem:[%s1 + $0x20] sm:$0xf]
  %v59 = vld [vmem:[%s1 + $0x24] sm:$0xf]
  %v60 = vld [vmem:[%s1 + $0x28] sm:$0xf]
  %v61 = vld [vmem:[%s1 + $0x2c] sm:$0xf]
  %v62 = vld [vmem:[%s1 + $0x30] sm:$0xf]
  %v63 = vld [vmem:[%s1 + $0x34] sm:$0xf]
  %v64 = vld [vmem:[%s1 + $0x38] sm:$0xf]
  %v65 = vld [vmem:[%s1 + $0x3c] sm:$0xf]
  %v66 = vld [vmem:[%s1 + $0x40] sm:$0xf]
  %v67 = vld [vmem:[%s1 + $0x44] sm:$0xf]
  %v68 = vld [vmem:[%s1 + $0x48] sm:$0xf]
  %v69 = vld [vmem:[%s1 + $0x4c] sm:$0xf]
  %v70 = vld [vmem:[%s1 + $0x50] sm:$0xf]
  %v71 = vld [vmem:[%s1 + $0x54] sm:$0xf]
  %v72 = vld [vmem:[%s1 + $0x58] sm:$0xf]
  %v73 = vld [vmem:[%s1 + $0x5c] sm:$0xf]
  %v74 = vld [vmem:[%s1 + $0x60] sm:$0xf]
  %v75 = vld [vmem:[%s1 + $0x64] sm:$0xf]
  %v76 = vld [vmem:[%s1 + $0x68] sm:$0xf]
  %v77 = vld [vmem:[%s1 + $0x6c] sm:$0xf]
  %v78 = vld [vmem:[%s1 + $0x70] sm:$0xf]
  %v79 = vld [vmem:[%s1 + $0x74] sm:$0xf]
  %v80 = vld [vmem:[%s1 + $0x78] sm:$0xf]
  %v81 = vld [vmem:[%s1 + $0x7c] sm:$0xf]
  %v82 = vld [vmem:[%s1 + $0x80] sm:$0xf]
  %v83 = vld [vmem:[%s1 + $0x84] sm:$0xf]
  %v84 = vld [vmem:[%s1 + $0x88] sm:$0xf]
  %v85 = vld [vmem:[%s1 + $0x8c] sm:$0xf]
  %v118 = vunpack.c.l.b16 %v18
  %v119 = vunpack.c.h.b16 %v18
  %v120 = vunpack.c.l.b16 %v19
  %v121 = vunpack.c.l.b16 %v20
  %v122 = vunpack.c.h.b16 %v20
  %v123 = vunpack.c.l.b16 %v21
  %v124 = vunpack.c.l.b16 %v22
  %v125 = vunpack.c.h.b16 %v22
  %v126 = vunpack.c.l.b16 %v23
  %v127 = vunpack.c.l.b16 %v24
  %v128 = vunpack.c.h.b16 %v24
  %v129 = vunpack.c.l.b16 %v25
  %v130 = vunpack.c.l.b16 %v26
  %v131 = vunpack.c.h.b16 %v26
  %v132 = vunpack.c.l.b16 %v27
  %v133 = vunpack.c.l.b16 %v28
  %v134 = vunpack.c.h.b16 %v28
  %v135 = vunpack.c.l.b16 %v29
  %v136 = vunpack.c.l.b16 %v30
  %v137 = vunpack.c.h.b16 %v30
  %v138 = vunpack.c.l.b16 %v31
  %v139 = vunpack.c.l.b16 %v32
  %v140 = vunpack.c.h.b16 %v32
  %v141 = vunpack.c.l.b16 %v33
  %v142 = vunpack.c.l.b16 %v34
  %v143 = vunpack.c.h.b16 %v34
  %v144 = vunpack.c.l.b16 %v35
  %v145 = vunpack.c.l.b16 %v36
  %v146 = vunpack.c.h.b16 %v36
  %v147 = vunpack.c.l.b16 %v37
  %v148 = vunpack.c.l.b16 %v38
  %v149 = vunpack.c.h.b16 %v38
  %v150 = vunpack.c.l.b16 %v39
  %v151 = vunpack.c.l.b16 %v40
  %v152 = vunpack.c.h.b16 %v40
  %v153 = vunpack.c.l.b16 %v41
  %v154 = vunpack.c.l.b16 %v42
  %v155 = vunpack.c.h.b16 %v42
  %v156 = vunpack.c.l.b16 %v43
  %v157 = vunpack.c.l.b16 %v44
  %v158 = vunpack.c.h.b16 %v44
  %v159 = vunpack.c.l.b16 %v45
  %v160 = vunpack.c.l.b16 %v46
  %v161 = vunpack.c.h.b16 %v46
  %v162 = vunpack.c.l.b16 %v47
  %v163 = vunpack.c.l.b16 %v48
  %v164 = vunpack.c.h.b16 %v48
  %v165 = vunpack.c.l.b16 %v49
  %v166 = vpack.c.b16 %v121, %v118
  %v167 = vpack.c.b16 %v122, %v119
  %v168 = vpack.c.b16 %v123, %v120
  %v169 = vpack.c.b16 %v127, %v124
  %v170 = vpack.c.b16 %v128, %v125
  %v171 = vpack.c.b16 %v129, %v126
  %v172 = vpack.c.b16 %v133, %v130
  %v173 = vpack.c.b16 %v134, %v131
  %v174 = vpack.c.b16 %v135, %v132
  %v175 = vpack.c.b16 %v139, %v136
  %v176 = vpack.c.b16 %v140, %v137
  %v177 = vpack.c.b16 %v141, %v138
  %v178 = vpack.c.b16 %v145, %v142
  %v179 = vpack.c.b16 %v146, %v143
  %v180 = vpack.c.b16 %v147, %v144
  %v181 = vpack.c.b16 %v151, %v148
  %v182 = vpack.c.b16 %v152, %v149
  %v183 = vpack.c.b16 %v153, %v150
  %v184 = vpack.c.b16 %v157, %v154
  %v185 = vpack.c.b16 %v158, %v155
  %v186 = vpack.c.b16 %v159, %v156
  %v187 = vpack.c.b16 %v163, %v160
  %v188 = vpack.c.b16 %v164, %v161
  %v189 = vpack.c.b16 %v165, %v162
  %v242 = vunpack.c.l.b16 %v50
  %v243 = vunpack.c.l.b16 %v51
  %v244 = vunpack.c.l.b16 %v52
  %v245 = vunpack.c.l.b16 %v53
  %v246 = vunpack.c.l.b16 %v54
  %v247 = vunpack.c.l.b16 %v55
  %v248 = vunpack.c.l.b16 %v56
  %v249 = vunpack.c.l.b16 %v57
  %v250 = vunpack.c.l.b16 %v58
  %v251 = vunpack.c.l.b16 %v59
  %v252 = vunpack.c.l.b16 %v60
  %v253 = vunpack.c.l.b16 %v61
  %v254 = vunpack.c.l.b16 %v62
  %v255 = vunpack.c.l.b16 %v63
  %v256 = vunpack.c.l.b16 %v64
  %v257 = vunpack.c.l.b16 %v65
  %v258 = vunpack.c.l.b16 %v66
  %v259 = vunpack.c.l.b16 %v67
  %v260 = vunpack.c.l.b16 %v68
  %v261 = vunpack.c.l.b16 %v69
  %v262 = vunpack.c.l.b16 %v70
  %v263 = vunpack.c.l.b16 %v71
  %v264 = vunpack.c.l.b16 %v72
  %v265 = vunpack.c.l.b16 %v73
  %v266 = vunpack.c.l.b16 %v74
  %v267 = vunpack.c.l.b16 %v75
  %v268 = vunpack.c.l.b16 %v76
  %v269 = vunpack.c.l.b16 %v77
  %v270 = vunpack.c.l.b16 %v78
  %v271 = vunpack.c.l.b16 %v79
  %v272 = vunpack.c.l.b16 %v80
  %v273 = vunpack.c.l.b16 %v81
  %v274 = vunpack.c.l.b16 %v82
  %v275 = vunpack.c.l.b16 %v83
  %v276 = vunpack.c.l.b16 %v84
  %v277 = vunpack.c.l.b16 %v85
  %v278 = vpack.c.b16 %v243, %v242
  %v279 = vpack.c.b16 %v245, %v244
  %v280 = vpack.c.b16 %v247, %v246
  %v281 = vpack.c.b16 %v249, %v248
  %v282 = vpack.c.b16 %v251, %v250
  %v283 = vpack.c.b16 %v253, %v252
  %v284 = vpack.c.b16 %v255, %v254
  %v285 = vpack.c.b16 %v257, %v256
  %v286 = vpack.c.b16 %v259, %v258
  %v287 = vpack.c.b16 %v261, %v260
  %v288 = vpack.c.b16 %v263, %v262
  %v289 = vpack.c.b16 %v265, %v264
  %v290 = vpack.c.b16 %v267, %v266
  %v291 = vpack.c.b16 %v269, %v268
  %v292 = vpack.c.b16 %v271, %v270
  %v293 = vpack.c.b16 %v273, %v272
  %v294 = vpack.c.b16 %v275, %v274
  %v295 = vpack.c.b16 %v277, %v276
  %vm314 = vcmask 261120
  %v316 = vsel %vm314, %v168, 0
  %v319 = vsel %vm314, %v171, 0
  %v322 = vsel %vm314, %v174, 0
  %v325 = vsel %vm314, %v177, 0
  %v328 = vsel %vm314, %v180, 0
  %v331 = vsel %vm314, %v183, 0
  %v334 = vsel %vm314, %v186, 0
  %v337 = vsel %vm314, %v189, 0
  %339 = vmatprep.subr.bf16.mxu0 0
  %340 = vmatpush1.bf16.msra.mxu0 %v278
  %341 = vmatprep.subr.bf16.mxu0 0
  %342 = vmatpush1.bf16.msra.mxu0 %v279
  %343 = vmatprep.subr.bf16.mxu0 0
  %344 = vmatpush1.bf16.msra.mxu0 %v280
  %345 = vmatprep.subr.bf16.mxu0 0
  %346 = vmatpush1.bf16.msra.mxu0 %v281
  %347 = vmatprep.subr.bf16.mxu0 0
  %348 = vmatpush1.bf16.msra.mxu0 %v282
  %349 = vmatprep.subr.bf16.mxu0 0
  %350 = vmatpush1.bf16.msra.mxu0 %v283
  %351 = vmatprep.subr.bf16.mxu0 0
  %352 = vmatpush1.bf16.msra.mxu0 %v284
  %353 = vmatprep.subr.bf16.mxu0 0
  %354 = vmatpush1.bf16.msra.mxu0 %v285
  %355 = vmatprep.subr.bf16.mxu0 0
  %356 = vmatpush1.bf16.msra.mxu0 %v286
  %357 = vmatprep.subr.bf16.mxu0 0
  %358 = vmatpush1.bf16.msra.mxu0 %v287
  %359 = vmatprep.subr.bf16.mxu0 0
  %360 = vmatpush1.bf16.msra.mxu0 %v288
  %361 = vmatprep.subr.bf16.mxu0 0
  %362 = vmatpush1.bf16.msra.mxu0 %v289
  %363 = vmatprep.subr.bf16.mxu0 0
  %364 = vmatpush1.bf16.msra.mxu0 %v290
  %365 = vmatprep.subr.bf16.mxu0 0
  %366 = vmatpush1.bf16.msra.mxu0 %v291
  %367 = vmatprep.subr.bf16.mxu0 0
  %368 = vmatpush1.bf16.msra.mxu0 %v292
  %369 = vmatprep.subr.bf16.mxu0 0
  %370 = vmatpush1.bf16.msra.mxu0 %v293
  %371 = vmatprep.mubr.bf16.mxu0 %v167
  %372 = vmatmul.mubr.bf16.gmra.mrb[0].mxu0 %v166
  %v373 = vpop.f32.mrb[0].mxu0
  %v374 = vadd.f32 0.0, %v373
  %v375 = vpop.f32.mrb[0].mxu0
  %v376 = vpop.f32.mrb[0].mxu0
  %v377 = vadd.f32 0.0, %v376
  %v378 = vpop.f32.mrb[0].mxu0
  %379 = vmatprep.mubr.bf16.mxu0 %v170
  %380 = vmatmul.mubr.bf16.gmra.mrb[0].mxu0 %v169
  %v381 = vpop.f32.mrb[0].mxu0
  %v382 = vadd.f32 0.0, %v381
  %v383 = vpop.f32.mrb[0].mxu0
  %v384 = vpop.f32.mrb[0].mxu0
  %v385 = vadd.f32 0.0, %v384
  %v386 = vpop.f32.mrb[0].mxu0
  %387 = vmatprep.mubr.bf16.mxu0 %v173
  %388 = vmatmul.mubr.bf16.gmra.mrb[0].mxu0 %v172
  %v389 = vpop.f32.mrb[0].mxu0
  %v390 = vadd.f32 0.0, %v389
  %v391 = vpop.f32.mrb[0].mxu0
  %v392 = vpop.f32.mrb[0].mxu0
  %v393 = vadd.f32 0.0, %v392
  %v394 = vpop.f32.mrb[0].mxu0
  %395 = vmatprep.mubr.bf16.mxu0 %v176
  %396 = vmatmul.mubr.bf16.gmra.mrb[0].mxu0 %v175
  %v397 = vpop.f32.mrb[0].mxu0
  %v398 = vadd.f32 0.0, %v397
  %v399 = vpop.f32.mrb[0].mxu0
  %v400 = vpop.f32.mrb[0].mxu0
  %v401 = vadd.f32 0.0, %v400
  %v402 = vpop.f32.mrb[0].mxu0
  %403 = vmatprep.mubr.bf16.mxu0 %v179
  %404 = vmatmul.mubr.bf16.gmra.mrb[0].mxu0 %v178
  %v405 = vpop.f32.mrb[0].mxu0
  %v406 = vadd.f32 0.0, %v405
  %v407 = vpop.f32.mrb[0].mxu0
  %v408 = vpop.f32.mrb[0].mxu0
  %v409 = vadd.f32 0.0, %v408
  %v410 = vpop.f32.mrb[0].mxu0
  %411 = vmatprep.mubr.bf16.mxu0 %v182
  %412 = vmatmul.mubr.bf16.gmra.mrb[0].mxu0 %v181
  %v413 = vpop.f32.mrb[0].mxu0
  %v414 = vadd.f32 0.0, %v413
  %v415 = vpop.f32.mrb[0].mxu0
  %v416 = vpop.f32.mrb[0].mxu0
  %v417 = vadd.f32 0.0, %v416
  %v418 = vpop.f32.mrb[0].mxu0
  %419 = vmatprep.mubr.bf16.mxu0 %v185
  %420 = vmatmul.mubr.bf16.gmra.mrb[0].mxu0 %v184
  %v421 = vpop.f32.mrb[0].mxu0
  %v422 = vadd.f32 0.0, %v421
  %v423 = vpop.f32.mrb[0].mxu0
  %v424 = vpop.f32.mrb[0].mxu0
  %v425 = vadd.f32 0.0, %v424
  %v426 = vpop.f32.mrb[0].mxu0
  %427 = vmatprep.mubr.bf16.mxu0 %v188
  %428 = vmatmul.mubr.bf16.gmra.mrb[0].mxu0 %v187
  %v429 = vpop.f32.mrb[0].mxu0
  %v430 = vadd.f32 0.0, %v429
  %v431 = vpop.f32.mrb[0].mxu0
  %v432 = vpop.f32.mrb[0].mxu0
  %v433 = vadd.f32 0.0, %v432
  %v434 = vpop.f32.mrb[0].mxu0
  %435 = vdwg.mxu0
  %436 = vmatprep.subr.bf16.mxu0 0
  %437 = vmatpush1.bf16.msra.mxu0 %v294
  %438 = vmatprep.subr.bf16.mxu0 0
  %439 = vmatpush1.bf16.msra.mxu0 %v295
  %440 = vmatprep.subr.bf16.mxu0 0
  %441 = vmatpush1.bf16.msra.mxu0 0
  %442 = vmatprep.subr.bf16.mxu0 0
  %443 = vmatpush1.bf16.msra.mxu0 0
  %444 = vmatprep.subr.bf16.mxu0 0
  %445 = vmatpush1.bf16.msra.mxu0 0
  %446 = vmatprep.subr.bf16.mxu0 0
  %447 = vmatpush1.bf16.msra.mxu0 0
  %448 = vmatprep.subr.bf16.mxu0 0
  %449 = vmatpush1.bf16.msra.mxu0 0
  %450 = vmatprep.subr.bf16.mxu0 0
  %451 = vmatpush1.bf16.msra.mxu0 0
  %452 = vmatprep.subr.bf16.mxu0 0
  %453 = vmatpush1.bf16.msra.mxu0 0
  %454 = vmatprep.subr.bf16.mxu0 0
  %455 = vmatpush1.bf16.msra.mxu0 0
  %456 = vmatprep.subr.bf16.mxu0 0
  %457 = vmatpush1.bf16.msra.mxu0 0
  %458 = vmatprep.subr.bf16.mxu0 0
  %459 = vmatpush1.bf16.msra.mxu0 0
  %460 = vmatprep.subr.bf16.mxu0 0
  %461 = vmatpush1.bf16.msra.mxu0 0
  %462 = vmatprep.subr.bf16.mxu0 0
  %463 = vmatpush1.bf16.msra.mxu0 0
  %464 = vmatprep.subr.bf16.mxu0 0
  %465 = vmatpush1.bf16.msra.mxu0 0
  %466 = vmatprep.subr.bf16.mxu0 0
  %467 = vmatpush1.bf16.msra.mxu0 0
  %468 = vmatprep.mubr.bf16.mxu0 0
  %469 = vmatmul.mubr.bf16.gmra.mrb[0].mxu0 %v316
  %v470 = vpop.f32.mrb[0].mxu0
  %v471 = vadd.f32 %v374, %v470
  %v472 = vpop.f32.mrb[0].mxu0
  %v473 = vpop.f32.mrb[0].mxu0
  %v474 = vadd.f32 %v377, %v473
  %v475 = vpop.f32.mrb[0].mxu0
  %476 = vmatprep.mubr.bf16.mxu0 0
  %477 = vmatmul.mubr.bf16.gmra.mrb[0].mxu0 %v319
  %v478 = vpop.f32.mrb[0].mxu0
  %v479 = vadd.f32 %v382, %v478
  %v480 = vpop.f32.mrb[0].mxu0
  %v481 = vpop.f32.mrb[0].mxu0
  %v482 = vadd.f32 %v385, %v481
  %v483 = vpop.f32.mrb[0].mxu0
  %484 = vmatprep.mubr.bf16.mxu0 0
  %485 = vmatmul.mubr.bf16.gmra.mrb[0].mxu0 %v322
  %v486 = vpop.f32.mrb[0].mxu0
  %v487 = vadd.f32 %v390, %v486
  %v488 = vpop.f32.mrb[0].mxu0
  %v489 = vpop.f32.mrb[0].mxu0
  %v490 = vadd.f32 %v393, %v489
  %v491 = vpop.f32.mrb[0].mxu0
  %492 = vmatprep.mubr.bf16.mxu0 0
  %493 = vmatmul.mubr.bf16.gmra.mrb[0].mxu0 %v325
  %v494 = vpop.f32.mrb[0].mxu0
  %v495 = vadd.f32 %v398, %v494
  %v496 = vpop.f32.mrb[0].mxu0
  %v497 = vpop.f32.mrb[0].mxu0
  %v498 = vadd.f32 %v401, %v497
  %v499 = vpop.f32.mrb[0].mxu0
  %500 = vmatprep.mubr.bf16.mxu0 0
  %501 = vmatmul.mubr.bf16.gmra.mrb[0].mxu0 %v328
  %v502 = vpop.f32.mrb[0].mxu0
  %v503 = vadd.f32 %v406, %v502
  %v504 = vpop.f32.mrb[0].mxu0
  %v505 = vpop.f32.mrb[0].mxu0
  %v506 = vadd.f32 %v409, %v505
  %v507 = vpop.f32.mrb[0].mxu0
  %508 = vmatprep.mubr.bf16.mxu0 0
  %509 = vmatmul.mubr.bf16.gmra.mrb[0].mxu0 %v331
  %v510 = vpop.f32.mrb[0].mxu0
  %v511 = vadd.f32 %v414, %v510
  %v512 = vpop.f32.mrb[0].mxu0
  %v513 = vpop.f32.mrb[0].mxu0
  %v514 = vadd.f32 %v417, %v513
  %v515 = vpop.f32.mrb[0].mxu0
  %516 = vmatprep.mubr.bf16.mxu0 0
  %517 = vmatmul.mubr.bf16.gmra.mrb[0].mxu0 %v334
  %v518 = vpop.f32.mrb[0].mxu0
  %v519 = vadd.f32 %v422, %v518
  %v520 = vpop.f32.mrb[0].mxu0
  %v521 = vpop.f32.mrb[0].mxu0
  %v522 = vadd.f32 %v425, %v521
  %v523 = vpop.f32.mrb[0].mxu0
  %524 = vmatprep.mubr.bf16.mxu0 0
  %525 = vmatmul.mubr.bf16.gmra.mrb[0].mxu0 %v337
  %v526 = vpop.f32.mrb[0].mxu0
  %v527 = vadd.f32 %v430, %v526
  %v528 = vpop.f32.mrb[0].mxu0
  %v529 = vpop.f32.mrb[0].mxu0
  %v530 = vadd.f32 %v433, %v529
  %v531 = vpop.f32.mrb[0].mxu0
  %532 = vdwg.mxu0
  %v533 = vld [vmem:[%s2] sm:$0x1]
  %v535 = vlaneseq
  %v536 = vshrl.u32 %v535, 7
  %v537 = vsub.s32 0, %v536
  %v538 = vrot.slane %v533, %v537
  %v540 = vmul.f32 %v471, %v538
  %v541 = vmul.f32 %v474, %v538
  %v542 = vmul.f32 %v479, %v538
  %v543 = vmul.f32 %v482, %v538
  %v544 = vmul.f32 %v487, %v538
  %v545 = vmul.f32 %v490, %v538
  %v546 = vmul.f32 %v495, %v538
  %v547 = vmul.f32 %v498, %v538
  %v548 = vmul.f32 %v503, %v538
  %v549 = vmul.f32 %v506, %v538
  %v550 = vmul.f32 %v511, %v538
  %v551 = vmul.f32 %v514, %v538
  %v552 = vmul.f32 %v519, %v538
  %v553 = vmul.f32 %v522, %v538
  %v554 = vmul.f32 %v527, %v538
  %v555 = vmul.f32 %v530, %v538
  %v556 = vld [vmem:[%s3] sm:$0x1]
  %v558 = vlaneseq
  %v559 = vshrl.u32 %v558, 7
  %v560 = vsub.s32 0, %v559
  %v561 = vrot.slane %v556, %v560
  %v563 = vadd.f32 %v540, %v561
  %v564 = vadd.f32 %v541, %v561
  %v565 = vadd.f32 %v542, %v561
  %v566 = vadd.f32 %v543, %v561
  %v567 = vadd.f32 %v544, %v561
  %v568 = vadd.f32 %v545, %v561
  %v569 = vadd.f32 %v546, %v561
  %v570 = vadd.f32 %v547, %v561
  %v571 = vadd.f32 %v548, %v561
  %v572 = vadd.f32 %v549, %v561
  %v573 = vadd.f32 %v550, %v561
  %v574 = vadd.f32 %v551, %v561
  %v575 = vadd.f32 %v552, %v561
  %v576 = vadd.f32 %v553, %v561
  %v577 = vadd.f32 %v554, %v561
  %v578 = vadd.f32 %v555, %v561
  %v579 = vmax.f32 %v563, 0.0
  %v580 = vmax.f32 %v564, 0.0
  %v581 = vmax.f32 %v565, 0.0
  %v582 = vmax.f32 %v566, 0.0
  %v583 = vmax.f32 %v567, 0.0
  %v584 = vmax.f32 %v568, 0.0
  %v585 = vmax.f32 %v569, 0.0
  %v586 = vmax.f32 %v570, 0.0
  %v587 = vmax.f32 %v571, 0.0
  %v588 = vmax.f32 %v572, 0.0
  %v589 = vmax.f32 %v573, 0.0
  %v590 = vmax.f32 %v574, 0.0
  %v591 = vmax.f32 %v575, 0.0
  %v592 = vmax.f32 %v576, 0.0
  %v593 = vmax.f32 %v577, 0.0
  %v594 = vmax.f32 %v578, 0.0
  %595 = vst [vmem:[%s4] sm:$0xff] %v579
  %596 = vst [vmem:[%s4 + $0x8] sm:$0xff] %v580
  %597 = vst [vmem:[%s4 + $0x10] sm:$0xff] %v581
  %598 = vst [vmem:[%s4 + $0x18] sm:$0xff] %v582
  %599 = vst [vmem:[%s4 + $0x20] sm:$0xff] %v583
  %600 = vst [vmem:[%s4 + $0x28] sm:$0xff] %v584
  %601 = vst [vmem:[%s4 + $0x30] sm:$0xff] %v585
  %602 = vst [vmem:[%s4 + $0x38] sm:$0xff] %v586
  %603 = vst [vmem:[%s4 + $0x40] sm:$0xff] %v587
  %604 = vst [vmem:[%s4 + $0x48] sm:$0xff] %v588
  %605 = vst [vmem:[%s4 + $0x50] sm:$0xff] %v589
  %606 = vst [vmem:[%s4 + $0x58] sm:$0xff] %v590
  %607 = vst [vmem:[%s4 + $0x60] sm:$0xff] %v591
  %608 = vst [vmem:[%s4 + $0x68] sm:$0xff] %v592
  %609 = vst [vmem:[%s4 + $0x70] sm:$0xff] %v593
  %610 = vst [vmem:[%s4 + $0x78] sm:$0xff] %v594
  // Predicated region
  $region18: #{generator_apply.14} parent=0 // pred_check
    _
  $region19: #{generator_apply.14} parent=0 // pred_check_branch
    %612 = sbr.rel (0) target = $region21
  $region20: #{generator_apply.14} parent=0 // pred_region
    _
  $region21: #{generator_apply.14} parent=0 // pred_fallthru
    _
  // Predicated region
  $region22: #{generator_apply.14} parent=0 // pred_check
    _
  $region23: #{generator_apply.14} parent=0 // pred_check_branch
    %614 = sbr.rel (0) target = $region25
  $region24: #{generator_apply.14} parent=0 // pred_region
    _
  $region25: #{generator_apply.14} parent=0 // pred_fallthru
    _

// kernel: generator_apply.15
$region0: #{generator_apply.15}
  #allocation0 [shape = 'u32[]', space=smem, size = 0x4, offset = 0x4, fixed_abs, tag = 'smem constant byte address 0x4 - core index']
  #allocation1 [shape = 'u32[144,128]{1,0:T(1,128)}', space=vmem, size = 0x12000, scoped, tag = 'internal scratch']
  %s0 = inlined_call_operand.vmem [shape: bf16[128,576], index: 0, kind: input, shape index: {}]
  %s1 = inlined_call_operand.vmem [shape: bf16[576,128], index: 1, kind: input, shape index: {}]
  %s2 = inlined_call_operand.vmem [shape: f32[1,128], index: 2, kind: input, shape index: {}]
  %s3 = inlined_call_operand.vmem [shape: f32[1,128], index: 3, kind: input, shape index: {}]
  %s4 = inlined_call_operand.vmem [shape: f32[128,128], index: 4, kind: output, shape index: {}]
  %s5 = sld [smem:[#allocation0]]
  $region26: #{generator_apply.15} parent=0
    _
  %s7 = ssub.s32 1, %s5
  %s8 = scalar_select 0, %s7, %s5
  // Predicated region
  $region2: #{generator_apply.15} parent=0 // pred_check
    _
  $region3: #{generator_apply.15} parent=0 // pred_check_branch
    %10 = sbr.rel (0) target = $region5
  $region4: #{generator_apply.15} parent=0 // pred_region
    _
  $region5: #{generator_apply.15} parent=0 // pred_fallthru
    _
  // Predicated region
  $region6: #{generator_apply.15} parent=0 // pred_check
    _
  $region7: #{generator_apply.15} parent=0 // pred_check_branch
    %12 = sbr.rel (0) target = $region9
  $region8: #{generator_apply.15} parent=0 // pred_region
    _
  $region9: #{generator_apply.15} parent=0 // pred_fallthru
    _
  // Predicated region
  $region10: #{generator_apply.15} parent=0 // pred_check
    _
  $region11: #{generator_apply.15} parent=0 // pred_check_branch
    %14 = sbr.rel (0) target = $region13
  $region12: #{generator_apply.15} parent=0 // pred_region
    _
  $region13: #{generator_apply.15} parent=0 // pred_fallthru
    _
  // Predicated region
  $region14: #{generator_apply.15} parent=0 // pred_check
    _
  $region15: #{generator_apply.15} parent=0 // pred_check_branch
    %16 = sbr.rel (0) target = $region17
  $region16: #{generator_apply.15} parent=0 // pred_region
    _
  $region17: #{generator_apply.15} parent=0 // pred_fallthru
    _
  %v18 = vld [vmem:[%s0] sm:$0xff]
  %v19 = vld [vmem:[%s0 + $0x8] sm:$0xff]
  %v20 = vld [vmem:[%s0 + $0x10] sm:$0xf]
  %v21 = vld [vmem:[%s0 + $0x14] sm:$0xff]
  %v22 = vld [vmem:[%s0 + $0x1c] sm:$0xff]
  %v23 = vld [vmem:[%s0 + $0x24] sm:$0xf]
  %v24 = vld [vmem:[%s0 + $0x28] sm:$0xff]
  %v25 = vld [vmem:[%s0 + $0x30] sm:$0xff]
  %v26 = vld [vmem:[%s0 + $0x38] sm:$0xf]
  %v27 = vld [vmem:[%s0 + $0x3c] sm:$0xff]
  %v28 = vld [vmem:[%s0 + $0x44] sm:$0xff]
  %v29 = vld [vmem:[%s0 + $0x4c] sm:$0xf]
  %v30 = vld [vmem:[%s0 + $0x50] sm:$0xff]
  %v31 = vld [vmem:[%s0 + $0x58] sm:$0xff]
  %v32 = vld [vmem:[%s0 + $0x60] sm:$0xf]
  %v33 = vld [vmem:[%s0 + $0x64] sm:$0xff]
  %v34 = vld [vmem:[%s0 + $0x6c] sm:$0xff]
  %v35 = vld [vmem:[%s0 + $0x74] sm:$0xf]
  %v36 = vld [vmem:[%s0 + $0x78] sm:$0xff]
  %v37 = vld [vmem:[%s0 + $0x80] sm:$0xff]
  %v38 = vld [vmem:[%s0 + $0x88] sm:$0xf]
  %v39 = vld [vmem:[%s0 + $0x8c] sm:$0xff]
  %v40 = vld [vmem:[%s0 + $0x94] sm:$0xff]
  %v41 = vld [vmem:[%s0 + $0x9c] sm:$0xf]
  %v42 = vld [vmem:[%s0 + $0xa0] sm:$0xff]
  %v43 = vld [vmem:[%s0 + $0xa8] sm:$0xff]
  %v44 = vld [vmem:[%s0 + $0xb0] sm:$0xf]
  %v45 = vld [vmem:[%s0 + $0xb4] sm:$0xff]
  %v46 = vld [vmem:[%s0 + $0xbc] sm:$0xff]
  %v47 = vld [vmem:[%s0 + $0xc4] sm:$0xf]
  %v48 = vld [vmem:[%s0 + $0xc8] sm:$0xff]
  %v49 = vld [vmem:[%s0 + $0xd0] sm:$0xff]
  %v50 = vld [vmem:[%s0 + $0xd8] sm:$0xf]
  %v51 = vld [vmem:[%s0 + $0xdc] sm:$0xff]
  %v52 = vld [vmem:[%s0 + $0xe4] sm:$0xff]
  %v53 = vld [vmem:[%s0 + $0xec] sm:$0xf]
  %v54 = vld [vmem:[%s0 + $0xf0] sm:$0xff]
  %v55 = vld [vmem:[%s0 + $0xf8] sm:$0xff]
  %v56 = vld [vmem:[%s0 + $0x100] sm:$0xf]
  %v57 = vld [vmem:[%s0 + $0x104] sm:$0xff]
  %v58 = vld [vmem:[%s0 + $0x10c] sm:$0xff]
  %v59 = vld [vmem:[%s0 + $0x114] sm:$0xf]
  %v60 = vld [vmem:[%s0 + $0x118] sm:$0xff]
  %v61 = vld [vmem:[%s0 + $0x120] sm:$0xff]
  %v62 = vld [vmem:[%s0 + $0x128] sm:$0xf]
  %v63 = vld [vmem:[%s0 + $0x12c] sm:$0xff]
  %v64 = vld [vmem:[%s0 + $0x134] sm:$0xff]
  %v65 = vld [vmem:[%s0 + $0x13c] sm:$0xf]
  %v66 = vld [vmem:[%s1] sm:$0xf]
  %v67 = vld [vmem:[%s1 + $0x4] sm:$0xf]
  %v68 = vld [vmem:[%s1 + $0x8] sm:$0xf]
  %v69 = vld [vmem:[%s1 + $0xc] sm:$0xf]
  %v70 = vld [vmem:[%s1 + $0x10] sm:$0xf]
  %v71 = vld [vmem:[%s1 + $0x14] sm:$0xf]
  %v72 = vld [vmem:[%s1 + $0x18] sm:$0xf]
  %v73 = vld [vmem:[%s1 + $0x1c] sm:$0xf]
  %v74 = vld [vmem:[%s1 + $0x20] sm:$0xf]
  %v75 = vld [vmem:[%s1 + $0x24] sm:$0xf]
  %v76 = vld [vmem:[%s1 + $0x28] sm:$0xf]
  %v77 = vld [vmem:[%s1 + $0x2c] sm:$0xf]
  %v78 = vld [vmem:[%s1 + $0x30] sm:$0xf]
  %v79 = vld [vmem:[%s1 + $0x34] sm:$0xf]
  %v80 = vld [vmem:[%s1 + $0x38] sm:$0xf]
  %v81 = vld [vmem:[%s1 + $0x3c] sm:$0xf]
  %v82 = vld [vmem:[%s1 + $0x40] sm:$0xf]
  %v83 = vld [vmem:[%s1 + $0x44] sm:$0xf]
  %v84 = vld [vmem:[%s1 + $0x48] sm:$0xf]
  %v85 = vld [vmem:[%s1 + $0x4c] sm:$0xf]
  %v86 = vld [vmem:[%s1 + $0x50] sm:$0xf]
  %v87 = vld [vmem:[%s1 + $0x54] sm:$0xf]
  %v88 = vld [vmem:[%s1 + $0x58] sm:$0xf]
  %v89 = vld [vmem:[%s1 + $0x5c] sm:$0xf]
  %v90 = vld [vmem:[%s1 + $0x60] sm:$0xf]
  %v91 = vld [vmem:[%s1 + $0x64] sm:$0xf]
  %v92 = vld [vmem:[%s1 + $0x68] sm:$0xf]
  %v93 = vld [vmem:[%s1 + $0x6c] sm:$0xf]
  %v94 = vld [vmem:[%s1 + $0x70] sm:$0xf]
  %v95 = vld [vmem:[%s1 + $0x74] sm:$0xf]
  %v96 = vld [vmem:[%s1 + $0x78] sm:$0xf]
  %v97 = vld [vmem:[%s1 + $0x7c] sm:$0xf]
  %v98 = vld [vmem:[%s1 + $0x80] sm:$0xf]
  %v99 = vld [vmem:[%s1 + $0x84] sm:$0xf]
  %v100 = vld [vmem:[%s1 + $0x88] sm:$0xf]
  %v101 = vld [vmem:[%s1 + $0x8c] sm:$0xf]
  %v102 = vld [vmem:[%s1 + $0x90] sm:$0xf]
  %v103 = vld [vmem:[%s1 + $0x94] sm:$0xf]
  %v104 = vld [vmem:[%s1 + $0x98] sm:$0xf]
  %v105 = vld [vmem:[%s1 + $0x9c] sm:$0xf]
  %v106 = vld [vmem:[%s1 + $0xa0] sm:$0xf]
  %v107 = vld [vmem:[%s1 + $0xa4] sm:$0xf]
  %v108 = vld [vmem:[%s1 + $0xa8] sm:$0xf]
  %v109 = vld [vmem:[%s1 + $0xac] sm:$0xf]
  %v110 = vld [vmem:[%s1 + $0xb0] sm:$0xf]
  %v111 = vld [vmem:[%s1 + $0xb4] sm:$0xf]
  %v112 = vld [vmem:[%s1 + $0xb8] sm:$0xf]
  %v113 = vld [vmem:[%s1 + $0xbc] sm:$0xf]
  %v114 = vld [vmem:[%s1 + $0xc0] sm:$0xf]
  %v115 = vld [vmem:[%s1 + $0xc4] sm:$0xf]
  %v116 = vld [vmem:[%s1 + $0xc8] sm:$0xf]
  %v117 = vld [vmem:[%s1 + $0xcc] sm:$0xf]
  %v118 = vld [vmem:[%s1 + $0xd0] sm:$0xf]
  %v119 = vld [vmem:[%s1 + $0xd4] sm:$0xf]
  %v120 = vld [vmem:[%s1 + $0xd8] sm:$0xf]
  %v121 = vld [vmem:[%s1 + $0xdc] sm:$0xf]
  %v122 = vld [vmem:[%s1 + $0xe0] sm:$0xf]
  %v123 = vld [vmem:[%s1 + $0xe4] sm:$0xf]
  %v124 = vld [vmem:[%s1 + $0xe8] sm:$0xf]
  %v125 = vld [vmem:[%s1 + $0xec] sm:$0xf]
  %v126 = vld [vmem:[%s1 + $0xf0] sm:$0xf]
  %v127 = vld [vmem:[%s1 + $0xf4] sm:$0xf]
  %v128 = vld [vmem:[%s1 + $0xf8] sm:$0xf]
  %v129 = vld [vmem:[%s1 + $0xfc] sm:$0xf]
  %v130 = vld [vmem:[%s1 + $0x100] sm:$0xf]
  %v131 = vld [vmem:[%s1 + $0x104] sm:$0xf]
  %v132 = vld [vmem:[%s1 + $0x108] sm:$0xf]
  %v133 = vld [vmem:[%s1 + $0x10c] sm:$0xf]
  %v134 = vld [vmem:[%s1 + $0x110] sm:$0xf]
  %v135 = vld [vmem:[%s1 + $0x114] sm:$0xf]
  %v136 = vld [vmem:[%s1 + $0x118] sm:$0xf]
  %v137 = vld [vmem:[%s1 + $0x11c] sm:$0xf]
  %v186 = vunpack.c.l.b16 %v18
  %v187 = vunpack.c.h.b16 %v18
  %v188 = vunpack.c.l.b16 %v19
  %v189 = vunpack.c.h.b16 %v19
  %v190 = vunpack.c.l.b16 %v20
  %v191 = vunpack.c.l.b16 %v21
  %v192 = vunpack.c.h.b16 %v21
  %v193 = vunpack.c.l.b16 %v22
  %v194 = vunpack.c.h.b16 %v22
  %v195 = vunpack.c.l.b16 %v23
  %v196 = vunpack.c.l.b16 %v24
  %v197 = vunpack.c.h.b16 %v24
  %v198 = vunpack.c.l.b16 %v25
  %v199 = vunpack.c.h.b16 %v25
  %v200 = vunpack.c.l.b16 %v26
  %v201 = vunpack.c.l.b16 %v27
  %v202 = vunpack.c.h.b16 %v27
  %v203 = vunpack.c.l.b16 %v28
  %v204 = vunpack.c.h.b16 %v28
  %v205 = vunpack.c.l.b16 %v29
  %v206 = vunpack.c.l.b16 %v30
  %v207 = vunpack.c.h.b16 %v30
  %v208 = vunpack.c.l.b16 %v31
  %v209 = vunpack.c.h.b16 %v31
  %v210 = vunpack.c.l.b16 %v32
  %v211 = vunpack.c.l.b16 %v33
  %v212 = vunpack.c.h.b16 %v33
  %v213 = vunpack.c.l.b16 %v34
  %v214 = vunpack.c.h.b16 %v34
  %v215 = vunpack.c.l.b16 %v35
  %v216 = vunpack.c.l.b16 %v36
  %v217 = vunpack.c.h.b16 %v36
  %v218 = vunpack.c.l.b16 %v37
  %v219 = vunpack.c.h.b16 %v37
  %v220 = vunpack.c.l.b16 %v38
  %v221 = vunpack.c.l.b16 %v39
  %v222 = vunpack.c.h.b16 %v39
  %v223 = vunpack.c.l.b16 %v40
  %v224 = vunpack.c.h.b16 %v40
  %v225 = vunpack.c.l.b16 %v41
  %v226 = vunpack.c.l.b16 %v42
  %v227 = vunpack.c.h.b16 %v42
  %v228 = vunpack.c.l.b16 %v43
  %v229 = vunpack.c.h.b16 %v43
  %v230 = vunpack.c.l.b16 %v44
  %v231 = vunpack.c.l.b16 %v45
  %v232 = vunpack.c.h.b16 %v45
  %v233 = vunpack.c.l.b16 %v46
  %v234 = vunpack.c.h.b16 %v46
  %v235 = vunpack.c.l.b16 %v47
  %v236 = vunpack.c.l.b16 %v48
  %v237 = vunpack.c.h.b16 %v48
  %v238 = vunpack.c.l.b16 %v49
  %v239 = vunpack.c.h.b16 %v49
  %v240 = vunpack.c.l.b16 %v50
  %v241 = vunpack.c.l.b16 %v51
  %v242 = vunpack.c.h.b16 %v51
  %v243 = vunpack.c.l.b16 %v52
  %v244 = vunpack.c.h.b16 %v52
  %v245 = vunpack.c.l.b16 %v53
  %v246 = vunpack.c.l.b16 %v54
  %v247 = vunpack.c.h.b16 %v54
  %v248 = vunpack.c.l.b16 %v55
  %v249 = vunpack.c.h.b16 %v55
  %v250 = vunpack.c.l.b16 %v56
  %v251 = vunpack.c.l.b16 %v57
  %v252 = vunpack.c.h.b16 %v57
  %v253 = vunpack.c.l.b16 %v58
  %v254 = vunpack.c.h.b16 %v58
  %v255 = vunpack.c.l.b16 %v59
  %v256 = vunpack.c.l.b16 %v60
  %v257 = vunpack.c.h.b16 %v60
  %v258 = vunpack.c.l.b16 %v61
  %v259 = vunpack.c.h.b16 %v61
  %v260 = vunpack.c.l.b16 %v62
  %v261 = vunpack.c.l.b16 %v63
  %v262 = vunpack.c.h.b16 %v63
  %v263 = vunpack.c.l.b16 %v64
  %v264 = vunpack.c.h.b16 %v64
  %v265 = vunpack.c.l.b16 %v65
  %v266 = vpack.c.b16 %v191, %v186
  %v267 = vpack.c.b16 %v192, %v187
  %v268 = vpack.c.b16 %v193, %v188
  %v269 = vpack.c.b16 %v194, %v189
  %v270 = vpack.c.b16 %v195, %v190
  %v271 = vpack.c.b16 %v201, %v196
  %v272 = vpack.c.b16 %v202, %v197
  %v273 = vpack.c.b16 %v203, %v198
  %v274 = vpack.c.b16 %v204, %v199
  %v275 = vpack.c.b16 %v205, %v200
  %v276 = vpack.c.b16 %v211, %v206
  %v277 = vpack.c.b16 %v212, %v207
  %v278 = vpack.c.b16 %v213, %v208
  %v279 = vpack.c.b16 %v214, %v209
  %v280 = vpack.c.b16 %v215, %v210
  %v281 = vpack.c.b16 %v221, %v216
  %v282 = vpack.c.b16 %v222, %v217
  %v283 = vpack.c.b16 %v223, %v218
  %v284 = vpack.c.b16 %v224, %v219
  %v285 = vpack.c.b16 %v225, %v220
  %v286 = vpack.c.b16 %v231, %v226
  %v287 = vpack.c.b16 %v232, %v227
  %v288 = vpack.c.b16 %v233, %v228
  %v289 = vpack.c.b16 %v234, %v229
  %v290 = vpack.c.b16 %v235, %v230
  %v291 = vpack.c.b16 %v241, %v236
  %v292 = vpack.c.b16 %v242, %v237
  %v293 = vpack.c.b16 %v243, %v238
  %v294 = vpack.c.b16 %v244, %v239
  %v295 = vpack.c.b16 %v245, %v240
  %v296 = vpack.c.b16 %v251, %v246
  %v297 = vpack.c.b16 %v252, %v247
  %v298 = vpack.c.b16 %v253, %v248
  %v299 = vpack.c.b16 %v254, %v249
  %v300 = vpack.c.b16 %v255, %v250
  %v301 = vpack.c.b16 %v261, %v256
  %v302 = vpack.c.b16 %v262, %v257
  %v303 = vpack.c.b16 %v263, %v258
  %v304 = vpack.c.b16 %v264, %v259
  %v305 = vpack.c.b16 %v265, %v260
  %v410 = vunpack.c.l.b16 %v66
  %v411 = vunpack.c.l.b16 %v67
  %v412 = vunpack.c.l.b16 %v68
  %v413 = vunpack.c.l.b16 %v69
  %v414 = vunpack.c.l.b16 %v70
  %v415 = vunpack.c.l.b16 %v71
  %v416 = vunpack.c.l.b16 %v72
  %v417 = vunpack.c.l.b16 %v73
  %v418 = vunpack.c.l.b16 %v74
  %v419 = vunpack.c.l.b16 %v75
  %v420 = vunpack.c.l.b16 %v76
  %v421 = vunpack.c.l.b16 %v77
  %v422 = vunpack.c.l.b16 %v78
  %v423 = vunpack.c.l.b16 %v79
  %v424 = vunpack.c.l.b16 %v80
  %v425 = vunpack.c.l.b16 %v81
  %v426 = vunpack.c.l.b16 %v82
  %v427 = vunpack.c.l.b16 %v83
  %v428 = vunpack.c.l.b16 %v84
  %v429 = vunpack.c.l.b16 %v85
  %v430 = vunpack.c.l.b16 %v86
  %v431 = vunpack.c.l.b16 %v87
  %v432 = vunpack.c.l.b16 %v88
  %v433 = vunpack.c.l.b16 %v89
  %v434 = vunpack.c.l.b16 %v90
  %v435 = vunpack.c.l.b16 %v91
  %v436 = vunpack.c.l.b16 %v92
  %v437 = vunpack.c.l.b16 %v93
  %v438 = vunpack.c.l.b16 %v94
  %v439 = vunpack.c.l.b16 %v95
  %v440 = vunpack.c.l.b16 %v96
  %v441 = vunpack.c.l.b16 %v97
  %v442 = vunpack.c.l.b16 %v98
  %v443 = vunpack.c.l.b16 %v99
  %v444 = vunpack.c.l.b16 %v100
  %v445 = vunpack.c.l.b16 %v101
  %v446 = vunpack.c.l.b16 %v102
  %v447 = vunpack.c.l.b16 %v103
  %v448 = vunpack.c.l.b16 %v104
  %v449 = vunpack.c.l.b16 %v105
  %v450 = vunpack.c.l.b16 %v106
  %v451 = vunpack.c.l.b16 %v107
  %v452 = vunpack.c.l.b16 %v108
  %v453 = vunpack.c.l.b16 %v109
  %v454 = vunpack.c.l.b16 %v110
  %v455 = vunpack.c.l.b16 %v111
  %v456 = vunpack.c.l.b16 %v112
  %v457 = vunpack.c.l.b16 %v113
  %v458 = vunpack.c.l.b16 %v114
  %v459 = vunpack.c.l.b16 %v115
  %v460 = vunpack.c.l.b16 %v116
  %v461 = vunpack.c.l.b16 %v117
  %v462 = vunpack.c.l.b16 %v118
  %v463 = vunpack.c.l.b16 %v119
  %v464 = vunpack.c.l.b16 %v120
  %v465 = vunpack.c.l.b16 %v121
  %v466 = vunpack.c.l.b16 %v122
  %v467 = vunpack.c.l.b16 %v123
  %v468 = vunpack.c.l.b16 %v124
  %v469 = vunpack.c.l.b16 %v125
  %v470 = vunpack.c.l.b16 %v126
  %v471 = vunpack.c.l.b16 %v127
  %v472 = vunpack.c.l.b16 %v128
  %v473 = vunpack.c.l.b16 %v129
  %v474 = vunpack.c.l.b16 %v130
  %v475 = vunpack.c.l.b16 %v131
  %v476 = vunpack.c.l.b16 %v132
  %v477 = vunpack.c.l.b16 %v133
  %v478 = vunpack.c.l.b16 %v134
  %v479 = vunpack.c.l.b16 %v135
  %v480 = vunpack.c.l.b16 %v136
  %v481 = vunpack.c.l.b16 %v137
  %v482 = vpack.c.b16 %v411, %v410
  %v483 = vpack.c.b16 %v413, %v412
  %v484 = vpack.c.b16 %v415, %v414
  %v485 = vpack.c.b16 %v417, %v416
  %v486 = vpack.c.b16 %v419, %v418
  %v487 = vpack.c.b16 %v421, %v420
  %v488 = vpack.c.b16 %v423, %v422
  %v489 = vpack.c.b16 %v425, %v424
  %v490 = vpack.c.b16 %v427, %v426
  %v491 = vpack.c.b16 %v429, %v428
  %v492 = vpack.c.b16 %v431, %v430
  %v493 = vpack.c.b16 %v433, %v432
  %v494 = vpack.c.b16 %v435, %v434
  %v495 = vpack.c.b16 %v437, %v436
  %v496 = vpack.c.b16 %v439, %v438
  %v497 = vpack.c.b16 %v441, %v440
  %v498 = vpack.c.b16 %v443, %v442
  %v499 = vpack.c.b16 %v445, %v444
  %v500 = vpack.c.b16 %v447, %v446
  %v501 = vpack.c.b16 %v449, %v448
  %v502 = vpack.c.b16 %v451, %v450
  %v503 = vpack.c.b16 %v453, %v452
  %v504 = vpack.c.b16 %v455, %v454
  %v505 = vpack.c.b16 %v457, %v456
  %v506 = vpack.c.b16 %v459, %v458
  %v507 = vpack.c.b16 %v461, %v460
  %v508 = vpack.c.b16 %v463, %v462
  %v509 = vpack.c.b16 %v465, %v464
  %v510 = vpack.c.b16 %v467, %v466
  %v511 = vpack.c.b16 %v469, %v468
  %v512 = vpack.c.b16 %v471, %v470
  %v513 = vpack.c.b16 %v473, %v472
  %v514 = vpack.c.b16 %v475, %v474
  %v515 = vpack.c.b16 %v477, %v476
  %v516 = vpack.c.b16 %v479, %v478
  %v517 = vpack.c.b16 %v481, %v480
  %vm554 = vcmask 523264
  %v556 = vsel %vm554, %v270, 0
  %v559 = vsel %vm554, %v275, 0
  %v562 = vsel %vm554, %v280, 0
  %v565 = vsel %vm554, %v285, 0
  %v568 = vsel %vm554, %v290, 0
  %v571 = vsel %vm554, %v295, 0
  %v574 = vsel %vm554, %v300, 0
  %v577 = vsel %vm554, %v305, 0
  %579 = vmatprep.subr.bf16.mxu0 0
  %580 = vmatpush1.bf16.msra.mxu0 %v482
  %581 = vmatprep.subr.bf16.mxu0 0
  %582 = vmatpush1.bf16.msra.mxu0 %v483
  %583 = vmatprep.subr.bf16.mxu0 0
  %584 = vmatpush1.bf16.msra.mxu0 %v484
  %585 = vmatprep.subr.bf16.mxu0 0
  %586 = vmatpush1.bf16.msra.mxu0 %v485
  %587 = vmatprep.subr.bf16.mxu0 0
  %588 = vmatpush1.bf16.msra.mxu0 %v486
  %589 = vmatprep.subr.bf16.mxu0 0
  %590 = vmatpush1.bf16.msra.mxu0 %v487
  %591 = vmatprep.subr.bf16.mxu0 0
  %592 = vmatpush1.bf16.msra.mxu0 %v488
  %593 = vmatprep.subr.bf16.mxu0 0
  %594 = vmatpush1.bf16.msra.mxu0 %v489
  %595 = vmatprep.subr.bf16.mxu0 0
  %596 = vmatpush1.bf16.msra.mxu0 %v490
  %597 = vmatprep.subr.bf16.mxu0 0
  %598 = vmatpush1.bf16.msra.mxu0 %v491
  %599 = vmatprep.subr.bf16.mxu0 0
  %600 = vmatpush1.bf16.msra.mxu0 %v492
  %601 = vmatprep.subr.bf16.mxu0 0
  %602 = vmatpush1.bf16.msra.mxu0 %v493
  %603 = vmatprep.subr.bf16.mxu0 0
  %604 = vmatpush1.bf16.msra.mxu0 %v494
  %605 = vmatprep.subr.bf16.mxu0 0
  %606 = vmatpush1.bf16.msra.mxu0 %v495
  %607 = vmatprep.subr.bf16.mxu0 0
  %608 = vmatpush1.bf16.msra.mxu0 %v496
  %609 = vmatprep.subr.bf16.mxu0 0
  %610 = vmatpush1.bf16.msra.mxu0 %v497
  %611 = vmatprep.mubr.bf16.mxu0 %v267
  %612 = vmatmul.mubr.bf16.gmra.mrb[0].mxu0 %v266
  %v613 = vpop.f32.mrb[0].mxu0
  %v614 = vadd.f32 0.0, %v613
  %v615 = vpop.f32.mrb[0].mxu0
  %v616 = vpop.f32.mrb[0].mxu0
  %v617 = vadd.f32 0.0, %v616
  %v618 = vpop.f32.mrb[0].mxu0
  %619 = vmatprep.mubr.bf16.mxu0 %v272
  %620 = vmatmul.mubr.bf16.gmra.mrb[0].mxu0 %v271
  %v621 = vpop.f32.mrb[0].mxu0
  %v622 = vadd.f32 0.0, %v621
  %v623 = vpop.f32.mrb[0].mxu0
  %v624 = vpop.f32.mrb[0].mxu0
  %v625 = vadd.f32 0.0, %v624
  %v626 = vpop.f32.mrb[0].mxu0
  %627 = vmatprep.mubr.bf16.mxu0 %v277
  %628 = vmatmul.mubr.bf16.gmra.mrb[0].mxu0 %v276
  %v629 = vpop.f32.mrb[0].mxu0
  %v630 = vadd.f32 0.0, %v629
  %v631 = vpop.f32.mrb[0].mxu0
  %v632 = vpop.f32.mrb[0].mxu0
  %v633 = vadd.f32 0.0, %v632
  %v634 = vpop.f32.mrb[0].mxu0
  %635 = vmatprep.mubr.bf16.mxu0 %v282
  %636 = vmatmul.mubr.bf16.gmra.mrb[0].mxu0 %v281
  %v637 = vpop.f32.mrb[0].mxu0
  %v638 = vadd.f32 0.0, %v637
  %v639 = vpop.f32.mrb[0].mxu0
  %v640 = vpop.f32.mrb[0].mxu0
  %v641 = vadd.f32 0.0, %v640
  %v642 = vpop.f32.mrb[0].mxu0
  %643 = vmatprep.mubr.bf16.mxu0 %v287
  %644 = vmatmul.mubr.bf16.gmra.mrb[0].mxu0 %v286
  %v645 = vpop.f32.mrb[0].mxu0
  %v646 = vadd.f32 0.0, %v645
  %v647 = vpop.f32.mrb[0].mxu0
  %v648 = vpop.f32.mrb[0].mxu0
  %v649 = vadd.f32 0.0, %v648
  %v650 = vpop.f32.mrb[0].mxu0
  %651 = vmatprep.mubr.bf16.mxu0 %v292
  %652 = vmatmul.mubr.bf16.gmra.mrb[0].mxu0 %v291
  %v653 = vpop.f32.mrb[0].mxu0
  %v654 = vadd.f32 0.0, %v653
  %v655 = vpop.f32.mrb[0].mxu0
  %v656 = vpop.f32.mrb[0].mxu0
  %v657 = vadd.f32 0.0, %v656
  %v658 = vpop.f32.mrb[0].mxu0
  %659 = vmatprep.mubr.bf16.mxu0 %v297
  %660 = vmatmul.mubr.bf16.gmra.mrb[0].mxu0 %v296
  %v661 = vpop.f32.mrb[0].mxu0
  %v662 = vadd.f32 0.0, %v661
  %v663 = vpop.f32.mrb[0].mxu0
  %v664 = vpop.f32.mrb[0].mxu0
  %v665 = vadd.f32 0.0, %v664
  %v666 = vpop.f32.mrb[0].mxu0
  %667 = vmatprep.mubr.bf16.mxu0 %v302
  %668 = vmatmul.mubr.bf16.gmra.mrb[0].mxu0 %v301
  %v669 = vpop.f32.mrb[0].mxu0
  %v670 = vadd.f32 0.0, %v669
  %v671 = vpop.f32.mrb[0].mxu0
  %v672 = vpop.f32.mrb[0].mxu0
  %v673 = vadd.f32 0.0, %v672
  %v674 = vpop.f32.mrb[0].mxu0
  %675 = vdwg.mxu0
  %676 = vmatprep.subr.bf16.mxu0 0
  %677 = vmatpush1.bf16.msra.mxu0 %v498
  %678 = vmatprep.subr.bf16.mxu0 0
  %679 = vmatpush1.bf16.msra.mxu0 %v499
  %680 = vmatprep.subr.bf16.mxu0 0
  %681 = vmatpush1.bf16.msra.mxu0 %v500
  %682 = vmatprep.subr.bf16.mxu0 0
  %683 = vmatpush1.bf16.msra.mxu0 %v501
  %684 = vmatprep.subr.bf16.mxu0 0
  %685 = vmatpush1.bf16.msra.mxu0 %v502
  %686 = vmatprep.subr.bf16.mxu0 0
  %687 = vmatpush1.bf16.msra.mxu0 %v503
  %688 = vmatprep.subr.bf16.mxu0 0
  %689 = vmatpush1.bf16.msra.mxu0 %v504
  %690 = vmatprep.subr.bf16.mxu0 0
  %691 = vmatpush1.bf16.msra.mxu0 %v505
  %692 = vmatprep.subr.bf16.mxu0 0
  %693 = vmatpush1.bf16.msra.mxu0 %v506
  %694 = vmatprep.subr.bf16.mxu0 0
  %695 = vmatpush1.bf16.msra.mxu0 %v507
  %696 = vmatprep.subr.bf16.mxu0 0
  %697 = vmatpush1.bf16.msra.mxu0 %v508
  %698 = vmatprep.subr.bf16.mxu0 0
  %699 = vmatpush1.bf16.msra.mxu0 %v509
  %700 = vmatprep.subr.bf16.mxu0 0
  %701 = vmatpush1.bf16.msra.mxu0 %v510
  %702 = vmatprep.subr.bf16.mxu0 0
  %703 = vmatpush1.bf16.msra.mxu0 %v511
  %704 = vmatprep.subr.bf16.mxu0 0
  %705 = vmatpush1.bf16.msra.mxu0 %v512
  %706 = vmatprep.subr.bf16.mxu0 0
  %707 = vmatpush1.bf16.msra.mxu0 %v513
  %708 = vmatprep.mubr.bf16.mxu0 %v269
  %709 = vmatmul.mubr.bf16.gmra.mrb[0].mxu0 %v268
  %v710 = vpop.f32.mrb[0].mxu0
  %v711 = vadd.f32 %v614, %v710
  %v712 = vpop.f32.mrb[0].mxu0
  %v713 = vpop.f32.mrb[0].mxu0
  %v714 = vadd.f32 %v617, %v713
  %v715 = vpop.f32.mrb[0].mxu0
  %716 = vmatprep.mubr.bf16.mxu0 %v274
  %717 = vmatmul.mubr.bf16.gmra.mrb[0].mxu0 %v273
  %v718 = vpop.f32.mrb[0].mxu0
  %v719 = vadd.f32 %v622, %v718
  %v720 = vpop.f32.mrb[0].mxu0
  %v721 = vpop.f32.mrb[0].mxu0
  %v722 = vadd.f32 %v625, %v721
  %v723 = vpop.f32.mrb[0].mxu0
  %724 = vmatprep.mubr.bf16.mxu0 %v279
  %725 = vmatmul.mubr.bf16.gmra.mrb[0].mxu0 %v278
  %v726 = vpop.f32.mrb[0].mxu0
  %v727 = vadd.f32 %v630, %v726
  %v728 = vpop.f32.mrb[0].mxu0
  %v729 = vpop.f32.mrb[0].mxu0
  %v730 = vadd.f32 %v633, %v729
  %v731 = vpop.f32.mrb[0].mxu0
  %732 = vmatprep.mubr.bf16.mxu0 %v284
  %733 = vmatmul.mubr.bf16.gmra.mrb[0].mxu0 %v283
  %v734 = vpop.f32.mrb[0].mxu0
  %v735 = vadd.f32 %v638, %v734
  %v736 = vpop.f32.mrb[0].mxu0
  %v737 = vpop.f32.mrb[0].mxu0
  %v738 = vadd.f32 %v641, %v737
  %v739 = vpop.f32.mrb[0].mxu0
  %740 = vmatprep.mubr.bf16.mxu0 %v289
  %741 = vmatmul.mubr.bf16.gmra.mrb[0].mxu0 %v288
  %v742 = vpop.f32.mrb[0].mxu0
  %v743 = vadd.f32 %v646, %v742
  %v744 = vpop.f32.mrb[0].mxu0
  %v745 = vpop.f32.mrb[0].mxu0
  %v746 = vadd.f32 %v649, %v745
  %v747 = vpop.f32.mrb[0].mxu0
  %748 = vmatprep.mubr.bf16.mxu0 %v294
  %749 = vmatmul.mubr.bf16.gmra.mrb[0].mxu0 %v293
  %v750 = vpop.f32.mrb[0].mxu0
  %v751 = vadd.f32 %v654, %v750
  %v752 = vpop.f32.mrb[0].mxu0
  %v753 = vpop.f32.mrb[0].mxu0
  %v754 = vadd.f32 %v657, %v753
  %v755 = vpop.f32.mrb[0].mxu0
  %756 = vmatprep.mubr.bf16.mxu0 %v299
  %757 = vmatmul.mubr.bf16.gmra.mrb[0].mxu0 %v298
  %v758 = vpop.f32.mrb[0].mxu0
  %v759 = vadd.f32 %v662, %v758
  %v760 = vpop.f32.mrb[0].mxu0
  %v761 = vpop.f32.mrb[0].mxu0
  %v762 = vadd.f32 %v665, %v761
  %v763 = vpop.f32.mrb[0].mxu0
  %764 = vmatprep.mubr.bf16.mxu0 %v304
  %765 = vmatmul.mubr.bf16.gmra.mrb[0].mxu0 %v303
  %v766 = vpop.f32.mrb[0].mxu0
  %v767 = vadd.f32 %v670, %v766
  %v768 = vpop.f32.mrb[0].mxu0
  %v769 = vpop.f32.mrb[0].mxu0
  %v770 = vadd.f32 %v673, %v769
  %v771 = vpop.f32.mrb[0].mxu0
  %772 = vdwg.mxu0
  %773 = vmatprep.subr.bf16.mxu0 0
  %774 = vmatpush1.bf16.msra.mxu0 %v514
  %775 = vmatprep.subr.bf16.mxu0 0
  %776 = vmatpush1.bf16.msra.mxu0 %v515
  %777 = vmatprep.subr.bf16.mxu0 0
  %778 = vmatpush1.bf16.msra.mxu0 %v516
  %779 = vmatprep.subr.bf16.mxu0 0
  %780 = vmatpush1.bf16.msra.mxu0 %v517
  %781 = vmatprep.subr.bf16.mxu0 0
  %782 = vmatpush1.bf16.msra.mxu0 0
  %783 = vmatprep.subr.bf16.mxu0 0
  %784 = vmatpush1.bf16.msra.mxu0 0
  %785 = vmatprep.subr.bf16.mxu0 0
  %786 = vmatpush1.bf16.msra.mxu0 0
  %787 = vmatprep.subr.bf16.mxu0 0
  %788 = vmatpush1.bf16.msra.mxu0 0
  %789 = vmatprep.subr.bf16.mxu0 0
  %790 = vmatpush1.bf16.msra.mxu0 0
  %791 = vmatprep.subr.bf16.mxu0 0
  %792 = vmatpush1.bf16.msra.mxu0 0
  %793 = vmatprep.subr.bf16.mxu0 0
  %794 = vmatpush1.bf16.msra.mxu0 0
  %795 = vmatprep.subr.bf16.mxu0 0
  %796 = vmatpush1.bf16.msra.mxu0 0
  %797 = vmatprep.subr.bf16.mxu0 0
  %798 = vmatpush1.bf16.msra.mxu0 0
  %799 = vmatprep.subr.bf16.mxu0 0
  %800 = vmatpush1.bf16.msra.mxu0 0
  %801 = vmatprep.subr.bf16.mxu0 0
  %802 = vmatpush1.bf16.msra.mxu0 0
  %803 = vmatprep.subr.bf16.mxu0 0
  %804 = vmatpush1.bf16.msra.mxu0 0
  %805 = vmatprep.mubr.bf16.mxu0 0
  %806 = vmatmul.mubr.bf16.gmra.mrb[0].mxu0 %v556
  %v807 = vpop.f32.mrb[0].mxu0
  %v808 = vadd.f32 %v711, %v807
  %v809 = vpop.f32.mrb[0].mxu0
  %v810 = vpop.f32.mrb[0].mxu0
  %v811 = vadd.f32 %v714, %v810
  %v812 = vpop.f32.mrb[0].mxu0
  %813 = vmatprep.mubr.bf16.mxu0 0
  %814 = vmatmul.mubr.bf16.gmra.mrb[0].mxu0 %v559
  %v815 = vpop.f32.mrb[0].mxu0
  %v816 = vadd.f32 %v719, %v815
  %v817 = vpop.f32.mrb[0].mxu0
  %v818 = vpop.f32.mrb[0].mxu0
  %v819 = vadd.f32 %v722, %v818
  %v820 = vpop.f32.mrb[0].mxu0
  %821 = vmatprep.mubr.bf16.mxu0 0
  %822 = vmatmul.mubr.bf16.gmra.mrb[0].mxu0 %v562
  %v823 = vpop.f32.mrb[0].mxu0
  %v824 = vadd.f32 %v727, %v823
  %v825 = vpop.f32.mrb[0].mxu0
  %v826 = vpop.f32.mrb[0].mxu0
  %v827 = vadd.f32 %v730, %v826
  %v828 = vpop.f32.mrb[0].mxu0
  %829 = vmatprep.mubr.bf16.mxu0 0
  %830 = vmatmul.mubr.bf16.gmra.mrb[0].mxu0 %v565
  %v831 = vpop.f32.mrb[0].mxu0
  %v832 = vadd.f32 %v735, %v831
  %v833 = vpop.f32.mrb[0].mxu0
  %v834 = vpop.f32.mrb[0].mxu0
  %v835 = vadd.f32 %v738, %v834
  %v836 = vpop.f32.mrb[0].mxu0
  %837 = vmatprep.mubr.bf16.mxu0 0
  %838 = vmatmul.mubr.bf16.gmra.mrb[0].mxu0 %v568
  %v839 = vpop.f32.mrb[0].mxu0
  %v840 = vadd.f32 %v743, %v839
  %v841 = vpop.f32.mrb[0].mxu0
  %v842 = vpop.f32.mrb[0].mxu0
  %v843 = vadd.f32 %v746, %v842
  %v844 = vpop.f32.mrb[0].mxu0
  %845 = vmatprep.mubr.bf16.mxu0 0
  %846 = vmatmul.mubr.bf16.gmra.mrb[0].mxu0 %v571
  %v847 = vpop.f32.mrb[0].mxu0
  %v848 = vadd.f32 %v751, %v847
  %v849 = vpop.f32.mrb[0].mxu0
  %v850 = vpop.f32.mrb[0].mxu0
  %v851 = vadd.f32 %v754, %v850
  %v852 = vpop.f32.mrb[0].mxu0
  %853 = vmatprep.mubr.bf16.mxu0 0
  %854 = vmatmul.mubr.bf16.gmra.mrb[0].mxu0 %v574
  %v855 = vpop.f32.mrb[0].mxu0
  %v856 = vadd.f32 %v759, %v855
  %v857 = vpop.f32.mrb[0].mxu0
  %v858 = vpop.f32.mrb[0].mxu0
  %v859 = vadd.f32 %v762, %v858
  %v860 = vpop.f32.mrb[0].mxu0
  %861 = vmatprep.mubr.bf16.mxu0 0
  %862 = vmatmul.mubr.bf16.gmra.mrb[0].mxu0 %v577
  %v863 = vpop.f32.mrb[0].mxu0
  %v864 = vadd.f32 %v767, %v863
  %v865 = vpop.f32.mrb[0].mxu0
  %v866 = vpop.f32.mrb[0].mxu0
  %v867 = vadd.f32 %v770, %v866
  %v868 = vpop.f32.mrb[0].mxu0
  %869 = vdwg.mxu0
  %v870 = vld [vmem:[%s2] sm:$0x1]
  %v872 = vlaneseq
  %v873 = vshrl.u32 %v872, 7
  %v874 = vsub.s32 0, %v873
  %v875 = vrot.slane %v870, %v874
  %v877 = vmul.f32 %v808, %v875
  %v878 = vmul.f32 %v811, %v875
  %v879 = vmul.f32 %v816, %v875
  %v880 = vmul.f32 %v819, %v875
  %v881 = vmul.f32 %v824, %v875
  %v882 = vmul.f32 %v827, %v875
  %v883 = vmul.f32 %v832, %v875
  %v884 = vmul.f32 %v835, %v875
  %v885 = vmul.f32 %v840, %v875
  %v886 = vmul.f32 %v843, %v875
  %v887 = vmul.f32 %v848, %v875
  %v888 = vmul.f32 %v851, %v875
  %v889 = vmul.f32 %v856, %v875
  %v890 = vmul.f32 %v859, %v875
  %v891 = vmul.f32 %v864, %v875
  %v892 = vmul.f32 %v867, %v875
  %v893 = vld [vmem:[%s3] sm:$0x1]
  %v895 = vlaneseq
  %v896 = vshrl.u32 %v895, 7
  %v897 = vsub.s32 0, %v896
  %v898 = vrot.slane %v893, %v897
  %v900 = vadd.f32 %v877, %v898
  %v901 = vadd.f32 %v878, %v898
  %v902 = vadd.f32 %v879, %v898
  %v903 = vadd.f32 %v880, %v898
  %v904 = vadd.f32 %v881, %v898
  %v905 = vadd.f32 %v882, %v898
  %v906 = vadd.f32 %v883, %v898
  %v907 = vadd.f32 %v884, %v898
  %v908 = vadd.f32 %v885, %v898
  %v909 = vadd.f32 %v886, %v898
  %v910 = vadd.f32 %v887, %v898
  %v911 = vadd.f32 %v888, %v898
  %v912 = vadd.f32 %v889, %v898
  %v913 = vadd.f32 %v890, %v898
  %v914 = vadd.f32 %v891, %v898
  %v915 = vadd.f32 %v892, %v898
  %v916 = vmax.f32 %v900, 0.0
  %v917 = vmax.f32 %v901, 0.0
  %v918 = vmax.f32 %v902, 0.0
  %v919 = vmax.f32 %v903, 0.0
  %v920 = vmax.f32 %v904, 0.0
  %v921 = vmax.f32 %v905, 0.0
  %v922 = vmax.f32 %v906, 0.0
  %v923 = vmax.f32 %v907, 0.0
  %v924 = vmax.f32 %v908, 0.0
  %v925 = vmax.f32 %v909, 0.0
  %v926 = vmax.f32 %v910, 0.0
  %v927 = vmax.f32 %v911, 0.0
  %v928 = vmax.f32 %v912, 0.0
  %v929 = vmax.f32 %v913, 0.0
  %v930 = vmax.f32 %v914, 0.0
  %v931 = vmax.f32 %v915, 0.0
  %932 = vst [vmem:[%s4] sm:$0xff] %v916
  %933 = vst [vmem:[%s4 + $0x8] sm:$0xff] %v917
  %934 = vst [vmem:[%s4 + $0x10] sm:$0xff] %v918
  %935 = vst [vmem:[%s4 + $0x18] sm:$0xff] %v919
  %936 = vst [vmem:[%s4 + $0x20] sm:$0xff] %v920
  %937 = vst [vmem:[%s4 + $0x28] sm:$0xff] %v921
  %938 = vst [vmem:[%s4 + $0x30] sm:$0xff] %v922
  %939 = vst [vmem:[%s4 + $0x38] sm:$0xff] %v923
  %940 = vst [vmem:[%s4 + $0x40] sm:$0xff] %v924
  %941 = vst [vmem:[%s4 + $0x48] sm:$0xff] %v925
  %942 = vst [vmem:[%s4 + $0x50] sm:$0xff] %v926
  %943 = vst [vmem:[%s4 + $0x58] sm:$0xff] %v927
  %944 = vst [vmem:[%s4 + $0x60] sm:$0xff] %v928
  %945 = vst [vmem:[%s4 + $0x68] sm:$0xff] %v929
  %946 = vst [vmem:[%s4 + $0x70] sm:$0xff] %v930
  %947 = vst [vmem:[%s4 + $0x78] sm:$0xff] %v931
  // Predicated region
  $region18: #{generator_apply.15} parent=0 // pred_check
    _
  $region19: #{generator_apply.15} parent=0 // pred_check_branch
    %949 = sbr.rel (0) target = $region21
  $region20: #{generator_apply.15} parent=0 // pred_region
    _
  $region21: #{generator_apply.15} parent=0 // pred_fallthru
    _
  // Predicated region
  $region22: #{generator_apply.15} parent=0 // pred_check
    _
  $region23: #{generator_apply.15} parent=0 // pred_check_branch
    %951 = sbr.rel (0) target = $region25
  $region24: #{generator_apply.15} parent=0 // pred_region
    _
  $region25: #{generator_apply.15} parent=0 // pred_fallthru
    _

// kernel: generator_apply.16
$region0: #{generator_apply.16}
  #allocation0 [shape = 'u32[]', space=smem, size = 0x4, offset = 0x4, fixed_abs, tag = 'smem constant byte address 0x4 - core index']
  #allocation1 [shape = 'u32[144,128]{1,0:T(1,128)}', space=vmem, size = 0x12000, scoped, tag = 'internal scratch']
  %s0 = inlined_call_operand.vmem [shape: bf16[128,576], index: 0, kind: input, shape index: {}]
  %s1 = inlined_call_operand.vmem [shape: bf16[576,128], index: 1, kind: input, shape index: {}]
  %s2 = inlined_call_operand.vmem [shape: f32[1,128], index: 2, kind: input, shape index: {}]
  %s3 = inlined_call_operand.vmem [shape: f32[1,128], index: 3, kind: input, shape index: {}]
  %s4 = inlined_call_operand.vmem [shape: f32[128,128], index: 4, kind: input, shape index: {}]
  %s5 = inlined_call_operand.vmem [shape: f32[128,128], index: 5, kind: output, shape index: {}]
  %s6 = sld [smem:[#allocation0]]
  $region30: #{generator_apply.16} parent=0
    _
  %s8 = ssub.s32 1, %s6
  %s9 = scalar_select 0, %s8, %s6
  // Predicated region
  $region2: #{generator_apply.16} parent=0 // pred_check
    _
  $region3: #{generator_apply.16} parent=0 // pred_check_branch
    %11 = sbr.rel (0) target = $region5
  $region4: #{generator_apply.16} parent=0 // pred_region
    _
  $region5: #{generator_apply.16} parent=0 // pred_fallthru
    _
  // Predicated region
  $region6: #{generator_apply.16} parent=0 // pred_check
    _
  $region7: #{generator_apply.16} parent=0 // pred_check_branch
    %13 = sbr.rel (0) target = $region9
  $region8: #{generator_apply.16} parent=0 // pred_region
    _
  $region9: #{generator_apply.16} parent=0 // pred_fallthru
    _
  // Predicated region
  $region10: #{generator_apply.16} parent=0 // pred_check
    _
  $region11: #{generator_apply.16} parent=0 // pred_check_branch
    %15 = sbr.rel (0) target = $region13
  $region12: #{generator_apply.16} parent=0 // pred_region
    _
  $region13: #{generator_apply.16} parent=0 // pred_fallthru
    _
  // Predicated region
  $region14: #{generator_apply.16} parent=0 // pred_check
    _
  $region15: #{generator_apply.16} parent=0 // pred_check_branch
    %17 = sbr.rel (0) target = $region17
  $region16: #{generator_apply.16} parent=0 // pred_region
    _
  $region17: #{generator_apply.16} parent=0 // pred_fallthru
    _
  // Predicated region
  $region18: #{generator_apply.16} parent=0 // pred_check
    _
  $region19: #{generator_apply.16} parent=0 // pred_check_branch
    %19 = sbr.rel (0) target = $region21
  $region20: #{generator_apply.16} parent=0 // pred_region
    _
  $region21: #{generator_apply.16} parent=0 // pred_fallthru
    _
  %v21 = vld [vmem:[%s0] sm:$0xff]
  %v22 = vld [vmem:[%s0 + $0x8] sm:$0xff]
  %v23 = vld [vmem:[%s0 + $0x10] sm:$0xf]
  %v24 = vld [vmem:[%s0 + $0x14] sm:$0xff]
  %v25 = vld [vmem:[%s0 + $0x1c] sm:$0xff]
  %v26 = vld [vmem:[%s0 + $0x24] sm:$0xf]
  %v27 = vld [vmem:[%s0 + $0x28] sm:$0xff]
  %v28 = vld [vmem:[%s0 + $0x30] sm:$0xff]
  %v29 = vld [vmem:[%s0 + $0x38] sm:$0xf]
  %v30 = vld [vmem:[%s0 + $0x3c] sm:$0xff]
  %v31 = vld [vmem:[%s0 + $0x44] sm:$0xff]
  %v32 = vld [vmem:[%s0 + $0x4c] sm:$0xf]
  %v33 = vld [vmem:[%s0 + $0x50] sm:$0xff]
  %v34 = vld [vmem:[%s0 + $0x58] sm:$0xff]
  %v35 = vld [vmem:[%s0 + $0x60] sm:$0xf]
  %v36 = vld [vmem:[%s0 + $0x64] sm:$0xff]
  %v37 = vld [vmem:[%s0 + $0x6c] sm:$0xff]
  %v38 = vld [vmem:[%s0 + $0x74] sm:$0xf]
  %v39 = vld [vmem:[%s0 + $0x78] sm:$0xff]
  %v40 = vld [vmem:[%s0 + $0x80] sm:$0xff]
  %v41 = vld [vmem:[%s0 + $0x88] sm:$0xf]
  %v42 = vld [vmem:[%s0 + $0x8c] sm:$0xff]
  %v43 = vld [vmem:[%s0 + $0x94] sm:$0xff]
  %v44 = vld [vmem:[%s0 + $0x9c] sm:$0xf]
  %v45 = vld [vmem:[%s0 + $0xa0] sm:$0xff]
  %v46 = vld [vmem:[%s0 + $0xa8] sm:$0xff]
  %v47 = vld [vmem:[%s0 + $0xb0] sm:$0xf]
  %v48 = vld [vmem:[%s0 + $0xb4] sm:$0xff]
  %v49 = vld [vmem:[%s0 + $0xbc] sm:$0xff]
  %v50 = vld [vmem:[%s0 + $0xc4] sm:$0xf]
  %v51 = vld [vmem:[%s0 + $0xc8] sm:$0xff]
  %v52 = vld [vmem:[%s0 + $0xd0] sm:$0xff]
  %v53 = vld [vmem:[%s0 + $0xd8] sm:$0xf]
  %v54 = vld [vmem:[%s0 + $0xdc] sm:$0xff]
  %v55 = vld [vmem:[%s0 + $0xe4] sm:$0xff]
  %v56 = vld [vmem:[%s0 + $0xec] sm:$0xf]
  %v57 = vld [vmem:[%s0 + $0xf0] sm:$0xff]
  %v58 = vld [vmem:[%s0 + $0xf8] sm:$0xff]
  %v59 = vld [vmem:[%s0 + $0x100] sm:$0xf]
  %v60 = vld [vmem:[%s0 + $0x104] sm:$0xff]
  %v61 = vld [vmem:[%s0 + $0x10c] sm:$0xff]
  %v62 = vld [vmem:[%s0 + $0x114] sm:$0xf]
  %v63 = vld [vmem:[%s0 + $0x118] sm:$0xff]
  %v64 = vld [vmem:[%s0 + $0x120] sm:$0xff]
  %v65 = vld [vmem:[%s0 + $0x128] sm:$0xf]
  %v66 = vld [vmem:[%s0 + $0x12c] sm:$0xff]
  %v67 = vld [vmem:[%s0 + $0x134] sm:$0xff]
  %v68 = vld [vmem:[%s0 + $0x13c] sm:$0xf]
  %v69 = vld [vmem:[%s1] sm:$0xf]
  %v70 = vld [vmem:[%s1 + $0x4] sm:$0xf]
  %v71 = vld [vmem:[%s1 + $0x8] sm:$0xf]
  %v72 = vld [vmem:[%s1 + $0xc] sm:$0xf]
  %v73 = vld [vmem:[%s1 + $0x10] sm:$0xf]
  %v74 = vld [vmem:[%s1 + $0x14] sm:$0xf]
  %v75 = vld [vmem:[%s1 + $0x18] sm:$0xf]
  %v76 = vld [vmem:[%s1 + $0x1c] sm:$0xf]
  %v77 = vld [vmem:[%s1 + $0x20] sm:$0xf]
  %v78 = vld [vmem:[%s1 + $0x24] sm:$0xf]
  %v79 = vld [vmem:[%s1 + $0x28] sm:$0xf]
  %v80 = vld [vmem:[%s1 + $0x2c] sm:$0xf]
  %v81 = vld [vmem:[%s1 + $0x30] sm:$0xf]
  %v82 = vld [vmem:[%s1 + $0x34] sm:$0xf]
  %v83 = vld [vmem:[%s1 + $0x38] sm:$0xf]
  %v84 = vld [vmem:[%s1 + $0x3c] sm:$0xf]
  %v85 = vld [vmem:[%s1 + $0x40] sm:$0xf]
  %v86 = vld [vmem:[%s1 + $0x44] sm:$0xf]
  %v87 = vld [vmem:[%s1 + $0x48] sm:$0xf]
  %v88 = vld [vmem:[%s1 + $0x4c] sm:$0xf]
  %v89 = vld [vmem:[%s1 + $0x50] sm:$0xf]
  %v90 = vld [vmem:[%s1 + $0x54] sm:$0xf]
  %v91 = vld [vmem:[%s1 + $0x58] sm:$0xf]
  %v92 = vld [vmem:[%s1 + $0x5c] sm:$0xf]
  %v93 = vld [vmem:[%s1 + $0x60] sm:$0xf]
  %v94 = vld [vmem:[%s1 + $0x64] sm:$0xf]
  %v95 = vld [vmem:[%s1 + $0x68] sm:$0xf]
  %v96 = vld [vmem:[%s1 + $0x6c] sm:$0xf]
  %v97 = vld [vmem:[%s1 + $0x70] sm:$0xf]
  %v98 = vld [vmem:[%s1 + $0x74] sm:$0xf]
  %v99 = vld [vmem:[%s1 + $0x78] sm:$0xf]
  %v100 = vld [vmem:[%s1 + $0x7c] sm:$0xf]
  %v101 = vld [vmem:[%s1 + $0x80] sm:$0xf]
  %v102 = vld [vmem:[%s1 + $0x84] sm:$0xf]
  %v103 = vld [vmem:[%s1 + $0x88] sm:$0xf]
  %v104 = vld [vmem:[%s1 + $0x8c] sm:$0xf]
  %v105 = vld [vmem:[%s1 + $0x90] sm:$0xf]
  %v106 = vld [vmem:[%s1 + $0x94] sm:$0xf]
  %v107 = vld [vmem:[%s1 + $0x98] sm:$0xf]
  %v108 = vld [vmem:[%s1 + $0x9c] sm:$0xf]
  %v109 = vld [vmem:[%s1 + $0xa0] sm:$0xf]
  %v110 = vld [vmem:[%s1 + $0xa4] sm:$0xf]
  %v111 = vld [vmem:[%s1 + $0xa8] sm:$0xf]
  %v112 = vld [vmem:[%s1 + $0xac] sm:$0xf]
  %v113 = vld [vmem:[%s1 + $0xb0] sm:$0xf]
  %v114 = vld [vmem:[%s1 + $0xb4] sm:$0xf]
  %v115 = vld [vmem:[%s1 + $0xb8] sm:$0xf]
  %v116 = vld [vmem:[%s1 + $0xbc] sm:$0xf]
  %v117 = vld [vmem:[%s1 + $0xc0] sm:$0xf]
  %v118 = vld [vmem:[%s1 + $0xc4] sm:$0xf]
  %v119 = vld [vmem:[%s1 + $0xc8] sm:$0xf]
  %v120 = vld [vmem:[%s1 + $0xcc] sm:$0xf]
  %v121 = vld [vmem:[%s1 + $0xd0] sm:$0xf]
  %v122 = vld [vmem:[%s1 + $0xd4] sm:$0xf]
  %v123 = vld [vmem:[%s1 + $0xd8] sm:$0xf]
  %v124 = vld [vmem:[%s1 + $0xdc] sm:$0xf]
  %v125 = vld [vmem:[%s1 + $0xe0] sm:$0xf]
  %v126 = vld [vmem:[%s1 + $0xe4] sm:$0xf]
  %v127 = vld [vmem:[%s1 + $0xe8] sm:$0xf]
  %v128 = vld [vmem:[%s1 + $0xec] sm:$0xf]
  %v129 = vld [vmem:[%s1 + $0xf0] sm:$0xf]
  %v130 = vld [vmem:[%s1 + $0xf4] sm:$0xf]
  %v131 = vld [vmem:[%s1 + $0xf8] sm:$0xf]
  %v132 = vld [vmem:[%s1 + $0xfc] sm:$0xf]
  %v133 = vld [vmem:[%s1 + $0x100] sm:$0xf]
  %v134 = vld [vmem:[%s1 + $0x104] sm:$0xf]
  %v135 = vld [vmem:[%s1 + $0x108] sm:$0xf]
  %v136 = vld [vmem:[%s1 + $0x10c] sm:$0xf]
  %v137 = vld [vmem:[%s1 + $0x110] sm:$0xf]
  %v138 = vld [vmem:[%s1 + $0x114] sm:$0xf]
  %v139 = vld [vmem:[%s1 + $0x118] sm:$0xf]
  %v140 = vld [vmem:[%s1 + $0x11c] sm:$0xf]
  %v189 = vunpack.c.l.b16 %v21
  %v190 = vunpack.c.h.b16 %v21
  %v191 = vunpack.c.l.b16 %v22
  %v192 = vunpack.c.h.b16 %v22
  %v193 = vunpack.c.l.b16 %v23
  %v194 = vunpack.c.l.b16 %v24
  %v195 = vunpack.c.h.b16 %v24
  %v196 = vunpack.c.l.b16 %v25
  %v197 = vunpack.c.h.b16 %v25
  %v198 = vunpack.c.l.b16 %v26
  %v199 = vunpack.c.l.b16 %v27
  %v200 = vunpack.c.h.b16 %v27
  %v201 = vunpack.c.l.b16 %v28
  %v202 = vunpack.c.h.b16 %v28
  %v203 = vunpack.c.l.b16 %v29
  %v204 = vunpack.c.l.b16 %v30
  %v205 = vunpack.c.h.b16 %v30
  %v206 = vunpack.c.l.b16 %v31
  %v207 = vunpack.c.h.b16 %v31
  %v208 = vunpack.c.l.b16 %v32
  %v209 = vunpack.c.l.b16 %v33
  %v210 = vunpack.c.h.b16 %v33
  %v211 = vunpack.c.l.b16 %v34
  %v212 = vunpack.c.h.b16 %v34
  %v213 = vunpack.c.l.b16 %v35
  %v214 = vunpack.c.l.b16 %v36
  %v215 = vunpack.c.h.b16 %v36
  %v216 = vunpack.c.l.b16 %v37
  %v217 = vunpack.c.h.b16 %v37
  %v218 = vunpack.c.l.b16 %v38
  %v219 = vunpack.c.l.b16 %v39
  %v220 = vunpack.c.h.b16 %v39
  %v221 = vunpack.c.l.b16 %v40
  %v222 = vunpack.c.h.b16 %v40
  %v223 = vunpack.c.l.b16 %v41
  %v224 = vunpack.c.l.b16 %v42
  %v225 = vunpack.c.h.b16 %v42
  %v226 = vunpack.c.l.b16 %v43
  %v227 = vunpack.c.h.b16 %v43
  %v228 = vunpack.c.l.b16 %v44
  %v229 = vunpack.c.l.b16 %v45
  %v230 = vunpack.c.h.b16 %v45
  %v231 = vunpack.c.l.b16 %v46
  %v232 = vunpack.c.h.b16 %v46
  %v233 = vunpack.c.l.b16 %v47
  %v234 = vunpack.c.l.b16 %v48
  %v235 = vunpack.c.h.b16 %v48
  %v236 = vunpack.c.l.b16 %v49
  %v237 = vunpack.c.h.b16 %v49
  %v238 = vunpack.c.l.b16 %v50
  %v239 = vunpack.c.l.b16 %v51
  %v240 = vunpack.c.h.b16 %v51
  %v241 = vunpack.c.l.b16 %v52
  %v242 = vunpack.c.h.b16 %v52
  %v243 = vunpack.c.l.b16 %v53
  %v244 = vunpack.c.l.b16 %v54
  %v245 = vunpack.c.h.b16 %v54
  %v246 = vunpack.c.l.b16 %v55
  %v247 = vunpack.c.h.b16 %v55
  %v248 = vunpack.c.l.b16 %v56
  %v249 = vunpack.c.l.b16 %v57
  %v250 = vunpack.c.h.b16 %v57
  %v251 = vunpack.c.l.b16 %v58
  %v252 = vunpack.c.h.b16 %v58
  %v253 = vunpack.c.l.b16 %v59
  %v254 = vunpack.c.l.b16 %v60
  %v255 = vunpack.c.h.b16 %v60
  %v256 = vunpack.c.l.b16 %v61
  %v257 = vunpack.c.h.b16 %v61
  %v258 = vunpack.c.l.b16 %v62
  %v259 = vunpack.c.l.b16 %v63
  %v260 = vunpack.c.h.b16 %v63
  %v261 = vunpack.c.l.b16 %v64
  %v262 = vunpack.c.h.b16 %v64
  %v263 = vunpack.c.l.b16 %v65
  %v264 = vunpack.c.l.b16 %v66
  %v265 = vunpack.c.h.b16 %v66
  %v266 = vunpack.c.l.b16 %v67
  %v267 = vunpack.c.h.b16 %v67
  %v268 = vunpack.c.l.b16 %v68
  %v269 = vpack.c.b16 %v194, %v189
  %v270 = vpack.c.b16 %v195, %v190
  %v271 = vpack.c.b16 %v196, %v191
  %v272 = vpack.c.b16 %v197, %v192
  %v273 = vpack.c.b16 %v198, %v193
  %v274 = vpack.c.b16 %v204, %v199
  %v275 = vpack.c.b16 %v205, %v200
  %v276 = vpack.c.b16 %v206, %v201
  %v277 = vpack.c.b16 %v207, %v202
  %v278 = vpack.c.b16 %v208, %v203
  %v279 = vpack.c.b16 %v214, %v209
  %v280 = vpack.c.b16 %v215, %v210
  %v281 = vpack.c.b16 %v216, %v211
  %v282 = vpack.c.b16 %v217, %v212
  %v283 = vpack.c.b16 %v218, %v213
  %v284 = vpack.c.b16 %v224, %v219
  %v285 = vpack.c.b16 %v225, %v220
  %v286 = vpack.c.b16 %v226, %v221
  %v287 = vpack.c.b16 %v227, %v222
  %v288 = vpack.c.b16 %v228, %v223
  %v289 = vpack.c.b16 %v234, %v229
  %v290 = vpack.c.b16 %v235, %v230
  %v291 = vpack.c.b16 %v236, %v231
  %v292 = vpack.c.b16 %v237, %v232
  %v293 = vpack.c.b16 %v238, %v233
  %v294 = vpack.c.b16 %v244, %v239
  %v295 = vpack.c.b16 %v245, %v240
  %v296 = vpack.c.b16 %v246, %v241
  %v297 = vpack.c.b16 %v247, %v242
  %v298 = vpack.c.b16 %v248, %v243
  %v299 = vpack.c.b16 %v254, %v249
  %v300 = vpack.c.b16 %v255, %v250
  %v301 = vpack.c.b16 %v256, %v251
  %v302 = vpack.c.b16 %v257, %v252
  %v303 = vpack.c.b16 %v258, %v253
  %v304 = vpack.c.b16 %v264, %v259
  %v305 = vpack.c.b16 %v265, %v260
  %v306 = vpack.c.b16 %v266, %v261
  %v307 = vpack.c.b16 %v267, %v262
  %v308 = vpack.c.b16 %v268, %v263
  %v413 = vunpack.c.l.b16 %v69
  %v414 = vunpack.c.l.b16 %v70
  %v415 = vunpack.c.l.b16 %v71
  %v416 = vunpack.c.l.b16 %v72
  %v417 = vunpack.c.l.b16 %v73
  %v418 = vunpack.c.l.b16 %v74
  %v419 = vunpack.c.l.b16 %v75
  %v420 = vunpack.c.l.b16 %v76
  %v421 = vunpack.c.l.b16 %v77
  %v422 = vunpack.c.l.b16 %v78
  %v423 = vunpack.c.l.b16 %v79
  %v424 = vunpack.c.l.b16 %v80
  %v425 = vunpack.c.l.b16 %v81
  %v426 = vunpack.c.l.b16 %v82
  %v427 = vunpack.c.l.b16 %v83
  %v428 = vunpack.c.l.b16 %v84
  %v429 = vunpack.c.l.b16 %v85
  %v430 = vunpack.c.l.b16 %v86
  %v431 = vunpack.c.l.b16 %v87
  %v432 = vunpack.c.l.b16 %v88
  %v433 = vunpack.c.l.b16 %v89
  %v434 = vunpack.c.l.b16 %v90
  %v435 = vunpack.c.l.b16 %v91
  %v436 = vunpack.c.l.b16 %v92
  %v437 = vunpack.c.l.b16 %v93
  %v438 = vunpack.c.l.b16 %v94
  %v439 = vunpack.c.l.b16 %v95
  %v440 = vunpack.c.l.b16 %v96
  %v441 = vunpack.c.l.b16 %v97
  %v442 = vunpack.c.l.b16 %v98
  %v443 = vunpack.c.l.b16 %v99
  %v444 = vunpack.c.l.b16 %v100
  %v445 = vunpack.c.l.b16 %v101
  %v446 = vunpack.c.l.b16 %v102
  %v447 = vunpack.c.l.b16 %v103
  %v448 = vunpack.c.l.b16 %v104
  %v449 = vunpack.c.l.b16 %v105
  %v450 = vunpack.c.l.b16 %v106
  %v451 = vunpack.c.l.b16 %v107
  %v452 = vunpack.c.l.b16 %v108
  %v453 = vunpack.c.l.b16 %v109
  %v454 = vunpack.c.l.b16 %v110
  %v455 = vunpack.c.l.b16 %v111
  %v456 = vunpack.c.l.b16 %v112
  %v457 = vunpack.c.l.b16 %v113
  %v458 = vunpack.c.l.b16 %v114
  %v459 = vunpack.c.l.b16 %v115
  %v460 = vunpack.c.l.b16 %v116
  %v461 = vunpack.c.l.b16 %v117
  %v462 = vunpack.c.l.b16 %v118
  %v463 = vunpack.c.l.b16 %v119
  %v464 = vunpack.c.l.b16 %v120
  %v465 = vunpack.c.l.b16 %v121
  %v466 = vunpack.c.l.b16 %v122
  %v467 = vunpack.c.l.b16 %v123
  %v468 = vunpack.c.l.b16 %v124
  %v469 = vunpack.c.l.b16 %v125
  %v470 = vunpack.c.l.b16 %v126
  %v471 = vunpack.c.l.b16 %v127
  %v472 = vunpack.c.l.b16 %v128
  %v473 = vunpack.c.l.b16 %v129
  %v474 = vunpack.c.l.b16 %v130
  %v475 = vunpack.c.l.b16 %v131
  %v476 = vunpack.c.l.b16 %v132
  %v477 = vunpack.c.l.b16 %v133
  %v478 = vunpack.c.l.b16 %v134
  %v479 = vunpack.c.l.b16 %v135
  %v480 = vunpack.c.l.b16 %v136
  %v481 = vunpack.c.l.b16 %v137
  %v482 = vunpack.c.l.b16 %v138
  %v483 = vunpack.c.l.b16 %v139
  %v484 = vunpack.c.l.b16 %v140
  %v485 = vpack.c.b16 %v414, %v413
  %v486 = vpack.c.b16 %v416, %v415
  %v487 = vpack.c.b16 %v418, %v417
  %v488 = vpack.c.b16 %v420, %v419
  %v489 = vpack.c.b16 %v422, %v421
  %v490 = vpack.c.b16 %v424, %v423
  %v491 = vpack.c.b16 %v426, %v425
  %v492 = vpack.c.b16 %v428, %v427
  %v493 = vpack.c.b16 %v430, %v429
  %v494 = vpack.c.b16 %v432, %v431
  %v495 = vpack.c.b16 %v434, %v433
  %v496 = vpack.c.b16 %v436, %v435
  %v497 = vpack.c.b16 %v438, %v437
  %v498 = vpack.c.b16 %v440, %v439
  %v499 = vpack.c.b16 %v442, %v441
  %v500 = vpack.c.b16 %v444, %v443
  %v501 = vpack.c.b16 %v446, %v445
  %v502 = vpack.c.b16 %v448, %v447
  %v503 = vpack.c.b16 %v450, %v449
  %v504 = vpack.c.b16 %v452, %v451
  %v505 = vpack.c.b16 %v454, %v453
  %v506 = vpack.c.b16 %v456, %v455
  %v507 = vpack.c.b16 %v458, %v457
  %v508 = vpack.c.b16 %v460, %v459
  %v509 = vpack.c.b16 %v462, %v461
  %v510 = vpack.c.b16 %v464, %v463
  %v511 = vpack.c.b16 %v466, %v465
  %v512 = vpack.c.b16 %v468, %v467
  %v513 = vpack.c.b16 %v470, %v469
  %v514 = vpack.c.b16 %v472, %v471
  %v515 = vpack.c.b16 %v474, %v473
  %v516 = vpack.c.b16 %v476, %v475
  %v517 = vpack.c.b16 %v478, %v477
  %v518 = vpack.c.b16 %v480, %v479
  %v519 = vpack.c.b16 %v482, %v481
  %v520 = vpack.c.b16 %v484, %v483
  %vm557 = vcmask 523264
  %v559 = vsel %vm557, %v273, 0
  %v562 = vsel %vm557, %v278, 0
  %v565 = vsel %vm557, %v283, 0
  %v568 = vsel %vm557, %v288, 0
  %v571 = vsel %vm557, %v293, 0
  %v574 = vsel %vm557, %v298, 0
  %v577 = vsel %vm557, %v303, 0
  %v580 = vsel %vm557, %v308, 0
  %582 = vmatprep.subr.bf16.mxu0 0
  %583 = vmatpush1.bf16.msra.mxu0 %v485
  %584 = vmatprep.subr.bf16.mxu0 0
  %585 = vmatpush1.bf16.msra.mxu0 %v486
  %586 = vmatprep.subr.bf16.mxu0 0
  %587 = vmatpush1.bf16.msra.mxu0 %v487
  %588 = vmatprep.subr.bf16.mxu0 0
  %589 = vmatpush1.bf16.msra.mxu0 %v488
  %590 = vmatprep.subr.bf16.mxu0 0
  %591 = vmatpush1.bf16.msra.mxu0 %v489
  %592 = vmatprep.subr.bf16.mxu0 0
  %593 = vmatpush1.bf16.msra.mxu0 %v490
  %594 = vmatprep.subr.bf16.mxu0 0
  %595 = vmatpush1.bf16.msra.mxu0 %v491
  %596 = vmatprep.subr.bf16.mxu0 0
  %597 = vmatpush1.bf16.msra.mxu0 %v492
  %598 = vmatprep.subr.bf16.mxu0 0
  %599 = vmatpush1.bf16.msra.mxu0 %v493
  %600 = vmatprep.subr.bf16.mxu0 0
  %601 = vmatpush1.bf16.msra.mxu0 %v494
  %602 = vmatprep.subr.bf16.mxu0 0
  %603 = vmatpush1.bf16.msra.mxu0 %v495
  %604 = vmatprep.subr.bf16.mxu0 0
  %605 = vmatpush1.bf16.msra.mxu0 %v496
  %606 = vmatprep.subr.bf16.mxu0 0
  %607 = vmatpush1.bf16.msra.mxu0 %v497
  %608 = vmatprep.subr.bf16.mxu0 0
  %609 = vmatpush1.bf16.msra.mxu0 %v498
  %610 = vmatprep.subr.bf16.mxu0 0
  %611 = vmatpush1.bf16.msra.mxu0 %v499
  %612 = vmatprep.subr.bf16.mxu0 0
  %613 = vmatpush1.bf16.msra.mxu0 %v500
  %614 = vmatprep.mubr.bf16.mxu0 %v270
  %615 = vmatmul.mubr.bf16.gmra.mrb[0].mxu0 %v269
  %v616 = vpop.f32.mrb[0].mxu0
  %v617 = vadd.f32 0.0, %v616
  %v618 = vpop.f32.mrb[0].mxu0
  %v619 = vpop.f32.mrb[0].mxu0
  %v620 = vadd.f32 0.0, %v619
  %v621 = vpop.f32.mrb[0].mxu0
  %622 = vmatprep.mubr.bf16.mxu0 %v275
  %623 = vmatmul.mubr.bf16.gmra.mrb[0].mxu0 %v274
  %v624 = vpop.f32.mrb[0].mxu0
  %v625 = vadd.f32 0.0, %v624
  %v626 = vpop.f32.mrb[0].mxu0
  %v627 = vpop.f32.mrb[0].mxu0
  %v628 = vadd.f32 0.0, %v627
  %v629 = vpop.f32.mrb[0].mxu0
  %630 = vmatprep.mubr.bf16.mxu0 %v280
  %631 = vmatmul.mubr.bf16.gmra.mrb[0].mxu0 %v279
  %v632 = vpop.f32.mrb[0].mxu0
  %v633 = vadd.f32 0.0, %v632
  %v634 = vpop.f32.mrb[0].mxu0
  %v635 = vpop.f32.mrb[0].mxu0
  %v636 = vadd.f32 0.0, %v635
  %v637 = vpop.f32.mrb[0].mxu0
  %638 = vmatprep.mubr.bf16.mxu0 %v285
  %639 = vmatmul.mubr.bf16.gmra.mrb[0].mxu0 %v284
  %v640 = vpop.f32.mrb[0].mxu0
  %v641 = vadd.f32 0.0, %v640
  %v642 = vpop.f32.mrb[0].mxu0
  %v643 = vpop.f32.mrb[0].mxu0
  %v644 = vadd.f32 0.0, %v643
  %v645 = vpop.f32.mrb[0].mxu0
  %646 = vmatprep.mubr.bf16.mxu0 %v290
  %647 = vmatmul.mubr.bf16.gmra.mrb[0].mxu0 %v289
  %v648 = vpop.f32.mrb[0].mxu0
  %v649 = vadd.f32 0.0, %v648
  %v650 = vpop.f32.mrb[0].mxu0
  %v651 = vpop.f32.mrb[0].mxu0
  %v652 = vadd.f32 0.0, %v651
  %v653 = vpop.f32.mrb[0].mxu0
  %654 = vmatprep.mubr.bf16.mxu0 %v295
  %655 = vmatmul.mubr.bf16.gmra.mrb[0].mxu0 %v294
  %v656 = vpop.f32.mrb[0].mxu0
  %v657 = vadd.f32 0.0, %v656
  %v658 = vpop.f32.mrb[0].mxu0
  %v659 = vpop.f32.mrb[0].mxu0
  %v660 = vadd.f32 0.0, %v659
  %v661 = vpop.f32.mrb[0].mxu0
  %662 = vmatprep.mubr.bf16.mxu0 %v300
  %663 = vmatmul.mubr.bf16.gmra.mrb[0].mxu0 %v299
  %v664 = vpop.f32.mrb[0].mxu0
  %v665 = vadd.f32 0.0, %v664
  %v666 = vpop.f32.mrb[0].mxu0
  %v667 = vpop.f32.mrb[0].mxu0
  %v668 = vadd.f32 0.0, %v667
  %v669 = vpop.f32.mrb[0].mxu0
  %670 = vmatprep.mubr.bf16.mxu0 %v305
  %671 = vmatmul.mubr.bf16.gmra.mrb[0].mxu0 %v304
  %v672 = vpop.f32.mrb[0].mxu0
  %v673 = vadd.f32 0.0, %v672
  %v674 = vpop.f32.mrb[0].mxu0
  %v675 = vpop.f32.mrb[0].mxu0
  %v676 = vadd.f32 0.0, %v675
  %v677 = vpop.f32.mrb[0].mxu0
  %678 = vdwg.mxu0
  %679 = vmatprep.subr.bf16.mxu0 0
  %680 = vmatpush1.bf16.msra.mxu0 %v501
  %681 = vmatprep.subr.bf16.mxu0 0
  %682 = vmatpush1.bf16.msra.mxu0 %v502
  %683 = vmatprep.subr.bf16.mxu0 0
  %684 = vmatpush1.bf16.msra.mxu0 %v503
  %685 = vmatprep.subr.bf16.mxu0 0
  %686 = vmatpush1.bf16.msra.mxu0 %v504
  %687 = vmatprep.subr.bf16.mxu0 0
  %688 = vmatpush1.bf16.msra.mxu0 %v505
  %689 = vmatprep.subr.bf16.mxu0 0
  %690 = vmatpush1.bf16.msra.mxu0 %v506
  %691 = vmatprep.subr.bf16.mxu0 0
  %692 = vmatpush1.bf16.msra.mxu0 %v507
  %693 = vmatprep.subr.bf16.mxu0 0
  %694 = vmatpush1.bf16.msra.mxu0 %v508
  %695 = vmatprep.subr.bf16.mxu0 0
  %696 = vmatpush1.bf16.msra.mxu0 %v509
  %697 = vmatprep.subr.bf16.mxu0 0
  %698 = vmatpush1.bf16.msra.mxu0 %v510
  %699 = vmatprep.subr.bf16.mxu0 0
  %700 = vmatpush1.bf16.msra.mxu0 %v511
  %701 = vmatprep.subr.bf16.mxu0 0
  %702 = vmatpush1.bf16.msra.mxu0 %v512
  %703 = vmatprep.subr.bf16.mxu0 0
  %704 = vmatpush1.bf16.msra.mxu0 %v513
  %705 = vmatprep.subr.bf16.mxu0 0
  %706 = vmatpush1.bf16.msra.mxu0 %v514
  %707 = vmatprep.subr.bf16.mxu0 0
  %708 = vmatpush1.bf16.msra.mxu0 %v515
  %709 = vmatprep.subr.bf16.mxu0 0
  %710 = vmatpush1.bf16.msra.mxu0 %v516
  %711 = vmatprep.mubr.bf16.mxu0 %v272
  %712 = vmatmul.mubr.bf16.gmra.mrb[0].mxu0 %v271
  %v713 = vpop.f32.mrb[0].mxu0
  %v714 = vadd.f32 %v617, %v713
  %v715 = vpop.f32.mrb[0].mxu0
  %v716 = vpop.f32.mrb[0].mxu0
  %v717 = vadd.f32 %v620, %v716
  %v718 = vpop.f32.mrb[0].mxu0
  %719 = vmatprep.mubr.bf16.mxu0 %v277
  %720 = vmatmul.mubr.bf16.gmra.mrb[0].mxu0 %v276
  %v721 = vpop.f32.mrb[0].mxu0
  %v722 = vadd.f32 %v625, %v721
  %v723 = vpop.f32.mrb[0].mxu0
  %v724 = vpop.f32.mrb[0].mxu0
  %v725 = vadd.f32 %v628, %v724
  %v726 = vpop.f32.mrb[0].mxu0
  %727 = vmatprep.mubr.bf16.mxu0 %v282
  %728 = vmatmul.mubr.bf16.gmra.mrb[0].mxu0 %v281
  %v729 = vpop.f32.mrb[0].mxu0
  %v730 = vadd.f32 %v633, %v729
  %v731 = vpop.f32.mrb[0].mxu0
  %v732 = vpop.f32.mrb[0].mxu0
  %v733 = vadd.f32 %v636, %v732
  %v734 = vpop.f32.mrb[0].mxu0
  %735 = vmatprep.mubr.bf16.mxu0 %v287
  %736 = vmatmul.mubr.bf16.gmra.mrb[0].mxu0 %v286
  %v737 = vpop.f32.mrb[0].mxu0
  %v738 = vadd.f32 %v641, %v737
  %v739 = vpop.f32.mrb[0].mxu0
  %v740 = vpop.f32.mrb[0].mxu0
  %v741 = vadd.f32 %v644, %v740
  %v742 = vpop.f32.mrb[0].mxu0
  %743 = vmatprep.mubr.bf16.mxu0 %v292
  %744 = vmatmul.mubr.bf16.gmra.mrb[0].mxu0 %v291
  %v745 = vpop.f32.mrb[0].mxu0
  %v746 = vadd.f32 %v649, %v745
  %v747 = vpop.f32.mrb[0].mxu0
  %v748 = vpop.f32.mrb[0].mxu0
  %v749 = vadd.f32 %v652, %v748
  %v750 = vpop.f32.mrb[0].mxu0
  %751 = vmatprep.mubr.bf16.mxu0 %v297
  %752 = vmatmul.mubr.bf16.gmra.mrb[0].mxu0 %v296
  %v753 = vpop.f32.mrb[0].mxu0
  %v754 = vadd.f32 %v657, %v753
  %v755 = vpop.f32.mrb[0].mxu0
  %v756 = vpop.f32.mrb[0].mxu0
  %v757 = vadd.f32 %v660, %v756
  %v758 = vpop.f32.mrb[0].mxu0
  %759 = vmatprep.mubr.bf16.mxu0 %v302
  %760 = vmatmul.mubr.bf16.gmra.mrb[0].mxu0 %v301
  %v761 = vpop.f32.mrb[0].mxu0
  %v762 = vadd.f32 %v665, %v761
  %v763 = vpop.f32.mrb[0].mxu0
  %v764 = vpop.f32.mrb[0].mxu0
  %v765 = vadd.f32 %v668, %v764
  %v766 = vpop.f32.mrb[0].mxu0
  %767 = vmatprep.mubr.bf16.mxu0 %v307
  %768 = vmatmul.mubr.bf16.gmra.mrb[0].mxu0 %v306
  %v769 = vpop.f32.mrb[0].mxu0
  %v770 = vadd.f32 %v673, %v769
  %v771 = vpop.f32.mrb[0].mxu0
  %v772 = vpop.f32.mrb[0].mxu0
  %v773 = vadd.f32 %v676, %v772
  %v774 = vpop.f32.mrb[0].mxu0
  %775 = vdwg.mxu0
  %776 = vmatprep.subr.bf16.mxu0 0
  %777 = vmatpush1.bf16.msra.mxu0 %v517
  %778 = vmatprep.subr.bf16.mxu0 0
  %779 = vmatpush1.bf16.msra.mxu0 %v518
  %780 = vmatprep.subr.bf16.mxu0 0
  %781 = vmatpush1.bf16.msra.mxu0 %v519
  %782 = vmatprep.subr.bf16.mxu0 0
  %783 = vmatpush1.bf16.msra.mxu0 %v520
  %784 = vmatprep.subr.bf16.mxu0 0
  %785 = vmatpush1.bf16.msra.mxu0 0
  %786 = vmatprep.subr.bf16.mxu0 0
  %787 = vmatpush1.bf16.msra.mxu0 0
  %788 = vmatprep.subr.bf16.mxu0 0
  %789 = vmatpush1.bf16.msra.mxu0 0
  %790 = vmatprep.subr.bf16.mxu0 0
  %791 = vmatpush1.bf16.msra.mxu0 0
  %792 = vmatprep.subr.bf16.mxu0 0
  %793 = vmatpush1.bf16.msra.mxu0 0
  %794 = vmatprep.subr.bf16.mxu0 0
  %795 = vmatpush1.bf16.msra.mxu0 0
  %796 = vmatprep.subr.bf16.mxu0 0
  %797 = vmatpush1.bf16.msra.mxu0 0
  %798 = vmatprep.subr.bf16.mxu0 0
  %799 = vmatpush1.bf16.msra.mxu0 0
  %800 = vmatprep.subr.bf16.mxu0 0
  %801 = vmatpush1.bf16.msra.mxu0 0
  %802 = vmatprep.subr.bf16.mxu0 0
  %803 = vmatpush1.bf16.msra.mxu0 0
  %804 = vmatprep.subr.bf16.mxu0 0
  %805 = vmatpush1.bf16.msra.mxu0 0
  %806 = vmatprep.subr.bf16.mxu0 0
  %807 = vmatpush1.bf16.msra.mxu0 0
  %808 = vmatprep.mubr.bf16.mxu0 0
  %809 = vmatmul.mubr.bf16.gmra.mrb[0].mxu0 %v559
  %v810 = vpop.f32.mrb[0].mxu0
  %v811 = vadd.f32 %v714, %v810
  %v812 = vpop.f32.mrb[0].mxu0
  %v813 = vpop.f32.mrb[0].mxu0
  %v814 = vadd.f32 %v717, %v813
  %v815 = vpop.f32.mrb[0].mxu0
  %816 = vmatprep.mubr.bf16.mxu0 0
  %817 = vmatmul.mubr.bf16.gmra.mrb[0].mxu0 %v562
  %v818 = vpop.f32.mrb[0].mxu0
  %v819 = vadd.f32 %v722, %v818
  %v820 = vpop.f32.mrb[0].mxu0
  %v821 = vpop.f32.mrb[0].mxu0
  %v822 = vadd.f32 %v725, %v821
  %v823 = vpop.f32.mrb[0].mxu0
  %824 = vmatprep.mubr.bf16.mxu0 0
  %825 = vmatmul.mubr.bf16.gmra.mrb[0].mxu0 %v565
  %v826 = vpop.f32.mrb[0].mxu0
  %v827 = vadd.f32 %v730, %v826
  %v828 = vpop.f32.mrb[0].mxu0
  %v829 = vpop.f32.mrb[0].mxu0
  %v830 = vadd.f32 %v733, %v829
  %v831 = vpop.f32.mrb[0].mxu0
  %832 = vmatprep.mubr.bf16.mxu0 0
  %833 = vmatmul.mubr.bf16.gmra.mrb[0].mxu0 %v568
  %v834 = vpop.f32.mrb[0].mxu0
  %v835 = vadd.f32 %v738, %v834
  %v836 = vpop.f32.mrb[0].mxu0
  %v837 = vpop.f32.mrb[0].mxu0
  %v838 = vadd.f32 %v741, %v837
  %v839 = vpop.f32.mrb[0].mxu0
  %840 = vmatprep.mubr.bf16.mxu0 0
  %841 = vmatmul.mubr.bf16.gmra.mrb[0].mxu0 %v571
  %v842 = vpop.f32.mrb[0].mxu0
  %v843 = vadd.f32 %v746, %v842
  %v844 = vpop.f32.mrb[0].mxu0
  %v845 = vpop.f32.mrb[0].mxu0
  %v846 = vadd.f32 %v749, %v845
  %v847 = vpop.f32.mrb[0].mxu0
  %848 = vmatprep.mubr.bf16.mxu0 0
  %849 = vmatmul.mubr.bf16.gmra.mrb[0].mxu0 %v574
  %v850 = vpop.f32.mrb[0].mxu0
  %v851 = vadd.f32 %v754, %v850
  %v852 = vpop.f32.mrb[0].mxu0
  %v853 = vpop.f32.mrb[0].mxu0
  %v854 = vadd.f32 %v757, %v853
  %v855 = vpop.f32.mrb[0].mxu0
  %856 = vmatprep.mubr.bf16.mxu0 0
  %857 = vmatmul.mubr.bf16.gmra.mrb[0].mxu0 %v577
  %v858 = vpop.f32.mrb[0].mxu0
  %v859 = vadd.f32 %v762, %v858
  %v860 = vpop.f32.mrb[0].mxu0
  %v861 = vpop.f32.mrb[0].mxu0
  %v862 = vadd.f32 %v765, %v861
  %v863 = vpop.f32.mrb[0].mxu0
  %864 = vmatprep.mubr.bf16.mxu0 0
  %865 = vmatmul.mubr.bf16.gmra.mrb[0].mxu0 %v580
  %v866 = vpop.f32.mrb[0].mxu0
  %v867 = vadd.f32 %v770, %v866
  %v868 = vpop.f32.mrb[0].mxu0
  %v869 = vpop.f32.mrb[0].mxu0
  %v870 = vadd.f32 %v773, %v869
  %v871 = vpop.f32.mrb[0].mxu0
  %872 = vdwg.mxu0
  %v873 = vld [vmem:[%s2] sm:$0x1]
  %v875 = vlaneseq
  %v876 = vshrl.u32 %v875, 7
  %v877 = vsub.s32 0, %v876
  %v878 = vrot.slane %v873, %v877
  %v880 = vmul.f32 %v811, %v878
  %v881 = vmul.f32 %v814, %v878
  %v882 = vmul.f32 %v819, %v878
  %v883 = vmul.f32 %v822, %v878
  %v884 = vmul.f32 %v827, %v878
  %v885 = vmul.f32 %v830, %v878
  %v886 = vmul.f32 %v835, %v878
  %v887 = vmul.f32 %v838, %v878
  %v888 = vmul.f32 %v843, %v878
  %v889 = vmul.f32 %v846, %v878
  %v890 = vmul.f32 %v851, %v878
  %v891 = vmul.f32 %v854, %v878
  %v892 = vmul.f32 %v859, %v878
  %v893 = vmul.f32 %v862, %v878
  %v894 = vmul.f32 %v867, %v878
  %v895 = vmul.f32 %v870, %v878
  %v896 = vld [vmem:[%s3] sm:$0x1]
  %v898 = vlaneseq
  %v899 = vshrl.u32 %v898, 7
  %v900 = vsub.s32 0, %v899
  %v901 = vrot.slane %v896, %v900
  %v903 = vadd.f32 %v880, %v901
  %v904 = vadd.f32 %v881, %v901
  %v905 = vadd.f32 %v882, %v901
  %v906 = vadd.f32 %v883, %v901
  %v907 = vadd.f32 %v884, %v901
  %v908 = vadd.f32 %v885, %v901
  %v909 = vadd.f32 %v886, %v901
  %v910 = vadd.f32 %v887, %v901
  %v911 = vadd.f32 %v888, %v901
  %v912 = vadd.f32 %v889, %v901
  %v913 = vadd.f32 %v890, %v901
  %v914 = vadd.f32 %v891, %v901
  %v915 = vadd.f32 %v892, %v901
  %v916 = vadd.f32 %v893, %v901
  %v917 = vadd.f32 %v894, %v901
  %v918 = vadd.f32 %v895, %v901
  %v919 = vld [vmem:[%s4] sm:$0xff]
  %v920 = vld [vmem:[%s4 + $0x8] sm:$0xff]
  %v921 = vld [vmem:[%s4 + $0x10] sm:$0xff]
  %v922 = vld [vmem:[%s4 + $0x18] sm:$0xff]
  %v923 = vld [vmem:[%s4 + $0x20] sm:$0xff]
  %v924 = vld [vmem:[%s4 + $0x28] sm:$0xff]
  %v925 = vld [vmem:[%s4 + $0x30] sm:$0xff]
  %v926 = vld [vmem:[%s4 + $0x38] sm:$0xff]
  %v927 = vld [vmem:[%s4 + $0x40] sm:$0xff]
  %v928 = vld [vmem:[%s4 + $0x48] sm:$0xff]
  %v929 = vld [vmem:[%s4 + $0x50] sm:$0xff]
  %v930 = vld [vmem:[%s4 + $0x58] sm:$0xff]
  %v931 = vld [vmem:[%s4 + $0x60] sm:$0xff]
  %v932 = vld [vmem:[%s4 + $0x68] sm:$0xff]
  %v933 = vld [vmem:[%s4 + $0x70] sm:$0xff]
  %v934 = vld [vmem:[%s4 + $0x78] sm:$0xff]
  %v935 = vadd.f32 %v903, %v919
  %v936 = vadd.f32 %v904, %v920
  %v937 = vadd.f32 %v905, %v921
  %v938 = vadd.f32 %v906, %v922
  %v939 = vadd.f32 %v907, %v923
  %v940 = vadd.f32 %v908, %v924
  %v941 = vadd.f32 %v909, %v925
  %v942 = vadd.f32 %v910, %v926
  %v943 = vadd.f32 %v911, %v927
  %v944 = vadd.f32 %v912, %v928
  %v945 = vadd.f32 %v913, %v929
  %v946 = vadd.f32 %v914, %v930
  %v947 = vadd.f32 %v915, %v931
  %v948 = vadd.f32 %v916, %v932
  %v949 = vadd.f32 %v917, %v933
  %v950 = vadd.f32 %v918, %v934
  %951 = vst [vmem:[%s5] sm:$0xff] %v935
  %952 = vst [vmem:[%s5 + $0x8] sm:$0xff] %v936
  %953 = vst [vmem:[%s5 + $0x10] sm:$0xff] %v937
  %954 = vst [vmem:[%s5 + $0x18] sm:$0xff] %v938
  %955 = vst [vmem:[%s5 + $0x20] sm:$0xff] %v939
  %956 = vst [vmem:[%s5 + $0x28] sm:$0xff] %v940
  %957 = vst [vmem:[%s5 + $0x30] sm:$0xff] %v941
  %958 = vst [vmem:[%s5 + $0x38] sm:$0xff] %v942
  %959 = vst [vmem:[%s5 + $0x40] sm:$0xff] %v943
  %960 = vst [vmem:[%s5 + $0x48] sm:$0xff] %v944
  %961 = vst [vmem:[%s5 + $0x50] sm:$0xff] %v945
  %962 = vst [vmem:[%s5 + $0x58] sm:$0xff] %v946
  %963 = vst [vmem:[%s5 + $0x60] sm:$0xff] %v947
  %964 = vst [vmem:[%s5 + $0x68] sm:$0xff] %v948
  %965 = vst [vmem:[%s5 + $0x70] sm:$0xff] %v949
  %966 = vst [vmem:[%s5 + $0x78] sm:$0xff] %v950
  // Predicated region
  $region22: #{generator_apply.16} parent=0 // pred_check
    _
  $region23: #{generator_apply.16} parent=0 // pred_check_branch
    %968 = sbr.rel (0) target = $region25
  $region24: #{generator_apply.16} parent=0 // pred_region
    _
  $region25: #{generator_apply.16} parent=0 // pred_fallthru
    _
  // Predicated region
  $region26: #{generator_apply.16} parent=0 // pred_check
    _
  $region27: #{generator_apply.16} parent=0 // pred_check_branch
    %970 = sbr.rel (0) target = $region29
  $region28: #{generator_apply.16} parent=0 // pred_region
    _
  $region29: #{generator_apply.16} parent=0 // pred_fallthru
    _

// kernel: generator_apply.21
$region0: #{generator_apply.21}
  #allocation0 [shape = 'u32[]', space=smem, size = 0x4, offset = 0x4, fixed_abs, tag = 'smem constant byte address 0x4 - core index']
  #allocation1 [shape = 'u32[144,128]{1,0:T(1,128)}', space=vmem, size = 0x12000, scoped, tag = 'internal scratch']
  %s0 = inlined_call_operand.vmem [shape: bf16[128,256], index: 0, kind: input, shape index: {}]
  %s1 = inlined_call_operand.vmem [shape: bf16[256,128], index: 1, kind: input, shape index: {}]
  %s2 = inlined_call_operand.vmem [shape: f32[1,128], index: 2, kind: input, shape index: {}]
  %s3 = inlined_call_operand.vmem [shape: f32[1,128], index: 3, kind: input, shape index: {}]
  %s4 = inlined_call_operand.vmem [shape: f32[128,128], index: 4, kind: output, shape index: {}]
  %s5 = sld [smem:[#allocation0]]
  $region26: #{generator_apply.21} parent=0
    _
  %s7 = ssub.s32 1, %s5
  %s8 = scalar_select 0, %s7, %s5
  // Predicated region
  $region2: #{generator_apply.21} parent=0 // pred_check
    _
  $region3: #{generator_apply.21} parent=0 // pred_check_branch
    %10 = sbr.rel (0) target = $region5
  $region4: #{generator_apply.21} parent=0 // pred_region
    _
  $region5: #{generator_apply.21} parent=0 // pred_fallthru
    _
  // Predicated region
  $region6: #{generator_apply.21} parent=0 // pred_check
    _
  $region7: #{generator_apply.21} parent=0 // pred_check_branch
    %12 = sbr.rel (0) target = $region9
  $region8: #{generator_apply.21} parent=0 // pred_region
    _
  $region9: #{generator_apply.21} parent=0 // pred_fallthru
    _
  // Predicated region
  $region10: #{generator_apply.21} parent=0 // pred_check
    _
  $region11: #{generator_apply.21} parent=0 // pred_check_branch
    %14 = sbr.rel (0) target = $region13
  $region12: #{generator_apply.21} parent=0 // pred_region
    _
  $region13: #{generator_apply.21} parent=0 // pred_fallthru
    _
  // Predicated region
  $region14: #{generator_apply.21} parent=0 // pred_check
    _
  $region15: #{generator_apply.21} parent=0 // pred_check_branch
    %16 = sbr.rel (0) target = $region17
  $region16: #{generator_apply.21} parent=0 // pred_region
    _
  $region17: #{generator_apply.21} parent=0 // pred_fallthru
    _
  %v18 = vld [vmem:[%s0] sm:$0xff]
  %v19 = vld [vmem:[%s0 + $0x8] sm:$0xff]
  %v20 = vld [vmem:[%s0 + $0x10] sm:$0xff]
  %v21 = vld [vmem:[%s0 + $0x18] sm:$0xff]
  %v22 = vld [vmem:[%s0 + $0x20] sm:$0xff]
  %v23 = vld [vmem:[%s0 + $0x28] sm:$0xff]
  %v24 = vld [vmem:[%s0 + $0x30] sm:$0xff]
  %v25 = vld [vmem:[%s0 + $0x38] sm:$0xff]
  %v26 = vld [vmem:[%s0 + $0x40] sm:$0xff]
  %v27 = vld [vmem:[%s0 + $0x48] sm:$0xff]
  %v28 = vld [vmem:[%s0 + $0x50] sm:$0xff]
  %v29 = vld [vmem:[%s0 + $0x58] sm:$0xff]
  %v30 = vld [vmem:[%s0 + $0x60] sm:$0xff]
  %v31 = vld [vmem:[%s0 + $0x68] sm:$0xff]
  %v32 = vld [vmem:[%s0 + $0x70] sm:$0xff]
  %v33 = vld [vmem:[%s0 + $0x78] sm:$0xff]
  %v34 = vld [vmem:[%s1] sm:$0xf]
  %v35 = vld [vmem:[%s1 + $0x4] sm:$0xf]
  %v36 = vld [vmem:[%s1 + $0x8] sm:$0xf]
  %v37 = vld [vmem:[%s1 + $0xc] sm:$0xf]
  %v38 = vld [vmem:[%s1 + $0x10] sm:$0xf]
  %v39 = vld [vmem:[%s1 + $0x14] sm:$0xf]
  %v40 = vld [vmem:[%s1 + $0x18] sm:$0xf]
  %v41 = vld [vmem:[%s1 + $0x1c] sm:$0xf]
  %v42 = vld [vmem:[%s1 + $0x20] sm:$0xf]
  %v43 = vld [vmem:[%s1 + $0x24] sm:$0xf]
  %v44 = vld [vmem:[%s1 + $0x28] sm:$0xf]
  %v45 = vld [vmem:[%s1 + $0x2c] sm:$0xf]
  %v46 = vld [vmem:[%s1 + $0x30] sm:$0xf]
  %v47 = vld [vmem:[%s1 + $0x34] sm:$0xf]
  %v48 = vld [vmem:[%s1 + $0x38] sm:$0xf]
  %v49 = vld [vmem:[%s1 + $0x3c] sm:$0xf]
  %v50 = vld [vmem:[%s1 + $0x40] sm:$0xf]
  %v51 = vld [vmem:[%s1 + $0x44] sm:$0xf]
  %v52 = vld [vmem:[%s1 + $0x48] sm:$0xf]
  %v53 = vld [vmem:[%s1 + $0x4c] sm:$0xf]
  %v54 = vld [vmem:[%s1 + $0x50] sm:$0xf]
  %v55 = vld [vmem:[%s1 + $0x54] sm:$0xf]
  %v56 = vld [vmem:[%s1 + $0x58] sm:$0xf]
  %v57 = vld [vmem:[%s1 + $0x5c] sm:$0xf]
  %v58 = vld [vmem:[%s1 + $0x60] sm:$0xf]
  %v59 = vld [vmem:[%s1 + $0x64] sm:$0xf]
  %v60 = vld [vmem:[%s1 + $0x68] sm:$0xf]
  %v61 = vld [vmem:[%s1 + $0x6c] sm:$0xf]
  %v62 = vld [vmem:[%s1 + $0x70] sm:$0xf]
  %v63 = vld [vmem:[%s1 + $0x74] sm:$0xf]
  %v64 = vld [vmem:[%s1 + $0x78] sm:$0xf]
  %v65 = vld [vmem:[%s1 + $0x7c] sm:$0xf]
  %v82 = vunpack.c.l.b16 %v18
  %v83 = vunpack.c.h.b16 %v18
  %v84 = vunpack.c.l.b16 %v19
  %v85 = vunpack.c.h.b16 %v19
  %v86 = vunpack.c.l.b16 %v20
  %v87 = vunpack.c.h.b16 %v20
  %v88 = vunpack.c.l.b16 %v21
  %v89 = vunpack.c.h.b16 %v21
  %v90 = vunpack.c.l.b16 %v22
  %v91 = vunpack.c.h.b16 %v22
  %v92 = vunpack.c.l.b16 %v23
  %v93 = vunpack.c.h.b16 %v23
  %v94 = vunpack.c.l.b16 %v24
  %v95 = vunpack.c.h.b16 %v24
  %v96 = vunpack.c.l.b16 %v25
  %v97 = vunpack.c.h.b16 %v25
  %v98 = vunpack.c.l.b16 %v26
  %v99 = vunpack.c.h.b16 %v26
  %v100 = vunpack.c.l.b16 %v27
  %v101 = vunpack.c.h.b16 %v27
  %v102 = vunpack.c.l.b16 %v28
  %v103 = vunpack.c.h.b16 %v28
  %v104 = vunpack.c.l.b16 %v29
  %v105 = vunpack.c.h.b16 %v29
  %v106 = vunpack.c.l.b16 %v30
  %v107 = vunpack.c.h.b16 %v30
  %v108 = vunpack.c.l.b16 %v31
  %v109 = vunpack.c.h.b16 %v31
  %v110 = vunpack.c.l.b16 %v32
  %v111 = vunpack.c.h.b16 %v32
  %v112 = vunpack.c.l.b16 %v33
  %v113 = vunpack.c.h.b16 %v33
  %v114 = vpack.c.b16 %v84, %v82
  %v115 = vpack.c.b16 %v85, %v83
  %v116 = vpack.c.b16 %v88, %v86
  %v117 = vpack.c.b16 %v89, %v87
  %v118 = vpack.c.b16 %v92, %v90
  %v119 = vpack.c.b16 %v93, %v91
  %v120 = vpack.c.b16 %v96, %v94
  %v121 = vpack.c.b16 %v97, %v95
  %v122 = vpack.c.b16 %v100, %v98
  %v123 = vpack.c.b16 %v101, %v99
  %v124 = vpack.c.b16 %v104, %v102
  %v125 = vpack.c.b16 %v105, %v103
  %v126 = vpack.c.b16 %v108, %v106
  %v127 = vpack.c.b16 %v109, %v107
  %v128 = vpack.c.b16 %v112, %v110
  %v129 = vpack.c.b16 %v113, %v111
  %v178 = vunpack.c.l.b16 %v34
  %v179 = vunpack.c.l.b16 %v35
  %v180 = vunpack.c.l.b16 %v36
  %v181 = vunpack.c.l.b16 %v37
  %v182 = vunpack.c.l.b16 %v38
  %v183 = vunpack.c.l.b16 %v39
  %v184 = vunpack.c.l.b16 %v40
  %v185 = vunpack.c.l.b16 %v41
  %v186 = vunpack.c.l.b16 %v42
  %v187 = vunpack.c.l.b16 %v43
  %v188 = vunpack.c.l.b16 %v44
  %v189 = vunpack.c.l.b16 %v45
  %v190 = vunpack.c.l.b16 %v46
  %v191 = vunpack.c.l.b16 %v47
  %v192 = vunpack.c.l.b16 %v48
  %v193 = vunpack.c.l.b16 %v49
  %v194 = vunpack.c.l.b16 %v50
  %v195 = vunpack.c.l.b16 %v51
  %v196 = vunpack.c.l.b16 %v52
  %v197 = vunpack.c.l.b16 %v53
  %v198 = vunpack.c.l.b16 %v54
  %v199 = vunpack.c.l.b16 %v55
  %v200 = vunpack.c.l.b16 %v56
  %v201 = vunpack.c.l.b16 %v57
  %v202 = vunpack.c.l.b16 %v58
  %v203 = vunpack.c.l.b16 %v59
  %v204 = vunpack.c.l.b16 %v60
  %v205 = vunpack.c.l.b16 %v61
  %v206 = vunpack.c.l.b16 %v62
  %v207 = vunpack.c.l.b16 %v63
  %v208 = vunpack.c.l.b16 %v64
  %v209 = vunpack.c.l.b16 %v65
  %v210 = vpack.c.b16 %v179, %v178
  %v211 = vpack.c.b16 %v181, %v180
  %v212 = vpack.c.b16 %v183, %v182
  %v213 = vpack.c.b16 %v185, %v184
  %v214 = vpack.c.b16 %v187, %v186
  %v215 = vpack.c.b16 %v189, %v188
  %v216 = vpack.c.b16 %v191, %v190
  %v217 = vpack.c.b16 %v193, %v192
  %v218 = vpack.c.b16 %v195, %v194
  %v219 = vpack.c.b16 %v197, %v196
  %v220 = vpack.c.b16 %v199, %v198
  %v221 = vpack.c.b16 %v201, %v200
  %v222 = vpack.c.b16 %v203, %v202
  %v223 = vpack.c.b16 %v205, %v204
  %v224 = vpack.c.b16 %v207, %v206
  %v225 = vpack.c.b16 %v209, %v208
  %242 = vmatprep.subr.bf16.mxu0 0
  %243 = vmatpush1.bf16.msra.mxu0 %v210
  %244 = vmatprep.subr.bf16.mxu0 0
  %245 = vmatpush1.bf16.msra.mxu0 %v211
  %246 = vmatprep.subr.bf16.mxu0 0
  %247 = vmatpush1.bf16.msra.mxu0 %v212
  %248 = vmatprep.subr.bf16.mxu0 0
  %249 = vmatpush1.bf16.msra.mxu0 %v213
  %250 = vmatprep.subr.bf16.mxu0 0
  %251 = vmatpush1.bf16.msra.mxu0 %v214
  %252 = vmatprep.subr.bf16.mxu0 0
  %253 = vmatpush1.bf16.msra.mxu0 %v215
  %254 = vmatprep.subr.bf16.mxu0 0
  %255 = vmatpush1.bf16.msra.mxu0 %v216
  %256 = vmatprep.subr.bf16.mxu0 0
  %257 = vmatpush1.bf16.msra.mxu0 %v217
  %258 = vmatprep.subr.bf16.mxu0 0
  %259 = vmatpush1.bf16.msra.mxu0 %v218
  %260 = vmatprep.subr.bf16.mxu0 0
  %261 = vmatpush1.bf16.msra.mxu0 %v219
  %262 = vmatprep.subr.bf16.mxu0 0
  %263 = vmatpush1.bf16.msra.mxu0 %v220
  %264 = vmatprep.subr.bf16.mxu0 0
  %265 = vmatpush1.bf16.msra.mxu0 %v221
  %266 = vmatprep.subr.bf16.mxu0 0
  %267 = vmatpush1.bf16.msra.mxu0 %v222
  %268 = vmatprep.subr.bf16.mxu0 0
  %269 = vmatpush1.bf16.msra.mxu0 %v223
  %270 = vmatprep.subr.bf16.mxu0 0
  %271 = vmatpush1.bf16.msra.mxu0 %v224
  %272 = vmatprep.subr.bf16.mxu0 0
  %273 = vmatpush1.bf16.msra.mxu0 %v225
  %274 = vmatprep.mubr.bf16.mxu0 %v115
  %275 = vmatmul.mubr.bf16.gmra.mrb[0].mxu0 %v114
  %v276 = vpop.f32.mrb[0].mxu0
  %v277 = vadd.f32 0.0, %v276
  %v278 = vpop.f32.mrb[0].mxu0
  %v279 = vpop.f32.mrb[0].mxu0
  %v280 = vadd.f32 0.0, %v279
  %v281 = vpop.f32.mrb[0].mxu0
  %282 = vmatprep.mubr.bf16.mxu0 %v117
  %283 = vmatmul.mubr.bf16.gmra.mrb[0].mxu0 %v116
  %v284 = vpop.f32.mrb[0].mxu0
  %v285 = vadd.f32 0.0, %v284
  %v286 = vpop.f32.mrb[0].mxu0
  %v287 = vpop.f32.mrb[0].mxu0
  %v288 = vadd.f32 0.0, %v287
  %v289 = vpop.f32.mrb[0].mxu0
  %290 = vmatprep.mubr.bf16.mxu0 %v119
  %291 = vmatmul.mubr.bf16.gmra.mrb[0].mxu0 %v118
  %v292 = vpop.f32.mrb[0].mxu0
  %v293 = vadd.f32 0.0, %v292
  %v294 = vpop.f32.mrb[0].mxu0
  %v295 = vpop.f32.mrb[0].mxu0
  %v296 = vadd.f32 0.0, %v295
  %v297 = vpop.f32.mrb[0].mxu0
  %298 = vmatprep.mubr.bf16.mxu0 %v121
  %299 = vmatmul.mubr.bf16.gmra.mrb[0].mxu0 %v120
  %v300 = vpop.f32.mrb[0].mxu0
  %v301 = vadd.f32 0.0, %v300
  %v302 = vpop.f32.mrb[0].mxu0
  %v303 = vpop.f32.mrb[0].mxu0
  %v304 = vadd.f32 0.0, %v303
  %v305 = vpop.f32.mrb[0].mxu0
  %306 = vmatprep.mubr.bf16.mxu0 %v123
  %307 = vmatmul.mubr.bf16.gmra.mrb[0].mxu0 %v122
  %v308 = vpop.f32.mrb[0].mxu0
  %v309 = vadd.f32 0.0, %v308
  %v310 = vpop.f32.mrb[0].mxu0
  %v311 = vpop.f32.mrb[0].mxu0
  %v312 = vadd.f32 0.0, %v311
  %v313 = vpop.f32.mrb[0].mxu0
  %314 = vmatprep.mubr.bf16.mxu0 %v125
  %315 = vmatmul.mubr.bf16.gmra.mrb[0].mxu0 %v124
  %v316 = vpop.f32.mrb[0].mxu0
  %v317 = vadd.f32 0.0, %v316
  %v318 = vpop.f32.mrb[0].mxu0
  %v319 = vpop.f32.mrb[0].mxu0
  %v320 = vadd.f32 0.0, %v319
  %v321 = vpop.f32.mrb[0].mxu0
  %322 = vmatprep.mubr.bf16.mxu0 %v127
  %323 = vmatmul.mubr.bf16.gmra.mrb[0].mxu0 %v126
  %v324 = vpop.f32.mrb[0].mxu0
  %v325 = vadd.f32 0.0, %v324
  %v326 = vpop.f32.mrb[0].mxu0
  %v327 = vpop.f32.mrb[0].mxu0
  %v328 = vadd.f32 0.0, %v327
  %v329 = vpop.f32.mrb[0].mxu0
  %330 = vmatprep.mubr.bf16.mxu0 %v129
  %331 = vmatmul.mubr.bf16.gmra.mrb[0].mxu0 %v128
  %v332 = vpop.f32.mrb[0].mxu0
  %v333 = vadd.f32 0.0, %v332
  %v334 = vpop.f32.mrb[0].mxu0
  %v335 = vpop.f32.mrb[0].mxu0
  %v336 = vadd.f32 0.0, %v335
  %v337 = vpop.f32.mrb[0].mxu0
  %338 = vdwg.mxu0
  %v339 = vld [vmem:[%s2] sm:$0x1]
  %v341 = vlaneseq
  %v342 = vshrl.u32 %v341, 7
  %v343 = vsub.s32 0, %v342
  %v344 = vrot.slane %v339, %v343
  %v346 = vmul.f32 %v277, %v344
  %v347 = vmul.f32 %v280, %v344
  %v348 = vmul.f32 %v285, %v344
  %v349 = vmul.f32 %v288, %v344
  %v350 = vmul.f32 %v293, %v344
  %v351 = vmul.f32 %v296, %v344
  %v352 = vmul.f32 %v301, %v344
  %v353 = vmul.f32 %v304, %v344
  %v354 = vmul.f32 %v309, %v344
  %v355 = vmul.f32 %v312, %v344
  %v356 = vmul.f32 %v317, %v344
  %v357 = vmul.f32 %v320, %v344
  %v358 = vmul.f32 %v325, %v344
  %v359 = vmul.f32 %v328, %v344
  %v360 = vmul.f32 %v333, %v344
  %v361 = vmul.f32 %v336, %v344
  %v362 = vld [vmem:[%s3] sm:$0x1]
  %v364 = vlaneseq
  %v365 = vshrl.u32 %v364, 7
  %v366 = vsub.s32 0, %v365
  %v367 = vrot.slane %v362, %v366
  %v369 = vadd.f32 %v346, %v367
  %v370 = vadd.f32 %v347, %v367
  %v371 = vadd.f32 %v348, %v367
  %v372 = vadd.f32 %v349, %v367
  %v373 = vadd.f32 %v350, %v367
  %v374 = vadd.f32 %v351, %v367
  %v375 = vadd.f32 %v352, %v367
  %v376 = vadd.f32 %v353, %v367
  %v377 = vadd.f32 %v354, %v367
  %v378 = vadd.f32 %v355, %v367
  %v379 = vadd.f32 %v356, %v367
  %v380 = vadd.f32 %v357, %v367
  %v381 = vadd.f32 %v358, %v367
  %v382 = vadd.f32 %v359, %v367
  %v383 = vadd.f32 %v360, %v367
  %v384 = vadd.f32 %v361, %v367
  %v385 = vmax.f32 %v369, 0.0
  %v386 = vmax.f32 %v370, 0.0
  %v387 = vmax.f32 %v371, 0.0
  %v388 = vmax.f32 %v372, 0.0
  %v389 = vmax.f32 %v373, 0.0
  %v390 = vmax.f32 %v374, 0.0
  %v391 = vmax.f32 %v375, 0.0
  %v392 = vmax.f32 %v376, 0.0
  %v393 = vmax.f32 %v377, 0.0
  %v394 = vmax.f32 %v378, 0.0
  %v395 = vmax.f32 %v379, 0.0
  %v396 = vmax.f32 %v380, 0.0
  %v397 = vmax.f32 %v381, 0.0
  %v398 = vmax.f32 %v382, 0.0
  %v399 = vmax.f32 %v383, 0.0
  %v400 = vmax.f32 %v384, 0.0
  %401 = vst [vmem:[%s4] sm:$0xff] %v385
  %402 = vst [vmem:[%s4 + $0x8] sm:$0xff] %v386
  %403 = vst [vmem:[%s4 + $0x10] sm:$0xff] %v387
  %404 = vst [vmem:[%s4 + $0x18] sm:$0xff] %v388
  %405 = vst [vmem:[%s4 + $0x20] sm:$0xff] %v389
  %406 = vst [vmem:[%s4 + $0x28] sm:$0xff] %v390
  %407 = vst [vmem:[%s4 + $0x30] sm:$0xff] %v391
  %408 = vst [vmem:[%s4 + $0x38] sm:$0xff] %v392
  %409 = vst [vmem:[%s4 + $0x40] sm:$0xff] %v393
  %410 = vst [vmem:[%s4 + $0x48] sm:$0xff] %v394
  %411 = vst [vmem:[%s4 + $0x50] sm:$0xff] %v395
  %412 = vst [vmem:[%s4 + $0x58] sm:$0xff] %v396
  %413 = vst [vmem:[%s4 + $0x60] sm:$0xff] %v397
  %414 = vst [vmem:[%s4 + $0x68] sm:$0xff] %v398
  %415 = vst [vmem:[%s4 + $0x70] sm:$0xff] %v399
  %416 = vst [vmem:[%s4 + $0x78] sm:$0xff] %v400
  // Predicated region
  $region18: #{generator_apply.21} parent=0 // pred_check
    _
  $region19: #{generator_apply.21} parent=0 // pred_check_branch
    %418 = sbr.rel (0) target = $region21
  $region20: #{generator_apply.21} parent=0 // pred_region
    _
  $region21: #{generator_apply.21} parent=0 // pred_fallthru
    _
  // Predicated region
  $region22: #{generator_apply.21} parent=0 // pred_check
    _
  $region23: #{generator_apply.21} parent=0 // pred_check_branch
    %420 = sbr.rel (0) target = $region25
  $region24: #{generator_apply.21} parent=0 // pred_region
    _
  $region25: #{generator_apply.21} parent=0 // pred_fallthru
    _

// kernel: generator_apply.22
$region0: #{generator_apply.22}
  #allocation0 [shape = 'u32[]', space=smem, size = 0x4, offset = 0x4, fixed_abs, tag = 'smem constant byte address 0x4 - core index']
  #allocation1 [shape = 'u32[144,128]{1,0:T(1,128)}', space=vmem, size = 0x12000, scoped, tag = 'internal scratch']
  %s0 = inlined_call_operand.vmem [shape: bf16[512,128], index: 0, kind: input, shape index: {}]
  %s1 = inlined_call_operand.vmem [shape: bf16[128,128], index: 1, kind: input, shape index: {}]
  %s2 = inlined_call_operand.vmem [shape: f32[1,128], index: 2, kind: input, shape index: {}]
  %s3 = inlined_call_operand.vmem [shape: f32[1,128], index: 3, kind: input, shape index: {}]
  %s4 = inlined_call_operand.vmem [shape: f32[512,128], index: 4, kind: output, shape index: {}]
  %s5 = sld [smem:[#allocation0]]
  $region49: #{generator_apply.22} parent=0
    _
  %s7 = ssub.s32 1, %s5
  %s8 = scalar_select 0, %s7, %s5
  loop: start=0, step=1, limit=4
  $region2: #{generator_apply.22} parent=0 // loop_pre_header
    _
  $region3: #{generator_apply.22} parent=0 // loop_header
    %s10 = sphi 0, %s14
    %p11 = scmp.ge.s32.totalorder %s10, 4
    %s20 = sphi 0, %s22
    %s23 = sphi 0, %s20
    %s24 = sphi 0, %s23
    %s40 = sphi 0, %s24
    %s44 = sphi 0, %s44
    %s46 = sphi 0, %s44
    %s47 = sphi 0, %s46
    %s61 = sphi 0, %s47
    %s65 = sphi 0, %s65
    %s67 = sphi 0, %s65
    %s68 = sphi 0, %s67
    %s82 = sphi 0, %s68
    %s86 = sphi 0, %s86
    %s88 = sphi 0, %s86
    %s89 = sphi 0, %s88
    %s103 = sphi 0, %s89
    %s109 = sphi 0, %s111
    %s112 = sphi 0, %s109
    %s113 = sphi 0, %s112
    %s129 = sphi 0, %s113
  $region4: #{generator_apply.22} parent=0 // loop_header_branch
    %13 = sbr.rel (%p11) target = $region8
  $region5: #{generator_apply.22} parent=0 // loop_body
    %s15 = ssub.s32 %s10, 1
    %s16 = ssub.s32 %s10, 2
    %s17 = sadd.s32 %s10, 1
    %s18 = ssub.s32 %s10, %s17
    %p19 = scmp.eq.s32.totalorder %s18, 0
    %s21 = sadd.s32 %s20, 1
    %s22 = scalar_select %p19, %s20, %s21
    %p25 = pneg %p19
    %p26 = scmp.eq.s32.totalorder %s10, 1
    %p27 = por %p25, %p26
    %p28 = scmp.ne.s32.totalorder %s20, %s23
    %p29 = scmp.eq.s32.totalorder %s10, 0
    %p30 = por %p28, %p29
    %p31 = scmp.ne.s32.totalorder %s20, %s23
    %p32 = scmp.eq.s32.totalorder %s15, 1
    %p33 = por %p31, %p32
    %p34 = scmp.ne.s32.totalorder %s23, %s24
    %p35 = scmp.eq.s32.totalorder %s15, 0
    %p36 = por %p34, %p35
    %p37 = scmp.ne.s32.totalorder %s23, %s24
    %p38 = scmp.eq.s32.totalorder %s16, 1
    %p39 = por %p37, %p38
    %p41 = scmp.ne.s32.totalorder %s24, %s40
    %p42 = scmp.eq.s32.totalorder %s16, 0
    %p43 = por %p41, %p42
    %s45 = sadd.s32 %s44, 1
    %p48 = scmp.eq.s32.totalorder %s10, 1
    %p49 = scmp.ne.s32.totalorder %s44, %s46
    %p50 = scmp.eq.s32.totalorder %s10, 0
    %p51 = por %p49, %p50
    %p52 = scmp.ne.s32.totalorder %s44, %s46
    %p53 = scmp.eq.s32.totalorder %s15, 1
    %p54 = por %p52, %p53
    %p55 = scmp.ne.s32.totalorder %s46, %s47
    %p56 = scmp.eq.s32.totalorder %s15, 0
    %p57 = por %p55, %p56
    %p58 = scmp.ne.s32.totalorder %s46, %s47
    %p59 = scmp.eq.s32.totalorder %s16, 1
    %p60 = por %p58, %p59
    %p62 = scmp.ne.s32.totalorder %s47, %s61
    %p63 = scmp.eq.s32.totalorder %s16, 0
    %p64 = por %p62, %p63
    %s66 = sadd.s32 %s65, 1
    %p69 = scmp.eq.s32.totalorder %s10, 1
    %p70 = scmp.ne.s32.totalorder %s65, %s67
    %p71 = scmp.eq.s32.totalorder %s10, 0
    %p72 = por %p70, %p71
    %p73 = scmp.ne.s32.totalorder %s65, %s67
    %p74 = scmp.eq.s32.totalorder %s15, 1
    %p75 = por %p73, %p74
    %p76 = scmp.ne.s32.totalorder %s67, %s68
    %p77 = scmp.eq.s32.totalorder %s15, 0
    %p78 = por %p76, %p77
    %p79 = scmp.ne.s32.totalorder %s67, %s68
    %p80 = scmp.eq.s32.totalorder %s16, 1
    %p81 = por %p79, %p80
    %p83 = scmp.ne.s32.totalorder %s68, %s82
    %p84 = scmp.eq.s32.totalorder %s16, 0
    %p85 = por %p83, %p84
    %s87 = sadd.s32 %s86, 1
    %p90 = scmp.eq.s32.totalorder %s10, 1
    %p91 = scmp.ne.s32.totalorder %s86, %s88
    %p92 = scmp.eq.s32.totalorder %s10, 0
    %p93 = por %p91, %p92
    %p94 = scmp.ne.s32.totalorder %s86, %s88
    %p95 = scmp.eq.s32.totalorder %s15, 1
    %p96 = por %p94, %p95
    %p97 = scmp.ne.s32.totalorder %s88, %s89
    %p98 = scmp.eq.s32.totalorder %s15, 0
    %p99 = por %p97, %p98
    %p100 = scmp.ne.s32.totalorder %s88, %s89
    %p101 = scmp.eq.s32.totalorder %s16, 1
    %p102 = por %p100, %p101
    %p104 = scmp.ne.s32.totalorder %s89, %s103
    %p105 = scmp.eq.s32.totalorder %s16, 0
    %p106 = por %p104, %p105
    %s107 = ssub.s32 %s10, %s17
    %p108 = scmp.eq.s32.totalorder %s107, 0
    %s110 = sadd.s32 %s109, 1
    %s111 = scalar_select %p108, %s109, %s110
    %p114 = pneg %p108
    %p115 = scmp.eq.s32.totalorder %s10, 1
    %p116 = por %p114, %p115
    %p117 = scmp.ne.s32.totalorder %s109, %s112
    %p118 = scmp.eq.s32.totalorder %s10, 0
    %p119 = por %p117, %p118
    %p120 = scmp.ne.s32.totalorder %s109, %s112
    %p121 = scmp.eq.s32.totalorder %s15, 1
    %p122 = por %p120, %p121
    %p123 = scmp.ne.s32.totalorder %s112, %s113
    %p124 = scmp.eq.s32.totalorder %s15, 0
    %p125 = por %p123, %p124
    %p126 = scmp.ne.s32.totalorder %s112, %s113
    %p127 = scmp.eq.s32.totalorder %s16, 1
    %p128 = por %p126, %p127
    %p130 = scmp.ne.s32.totalorder %s113, %s129
    %p131 = scmp.eq.s32.totalorder %s16, 0
    %p132 = por %p130, %p131
    %p133 = scmp.le.s32.totalorder 1, %s10
    %p134 = scmp.lt.s32.totalorder %s10, 3
    %p135 = pnand %p133, %p134
    %p136 = pneg %p135
    // Predicated region
    $region9: #{generator_apply.22} parent=5 // pred_check
      _
    $region10: #{generator_apply.22} parent=5 // pred_check_branch
      %138 = sbr.rel (%p135) target = $region12
    $region11: #{generator_apply.22} parent=5 // pred_region
      %s139 = ssub.s32 %s10, 1
      // Predicated region
      $region13: #{generator_apply.22} parent=11 // pred_check
        %p140 = pneg %p57
      $region14: #{generator_apply.22} parent=11 // pred_check_branch
        %142 = sbr.rel (%p140) target = $region16
      $region15: #{generator_apply.22} parent=11 // pred_region
        _
      $region16: #{generator_apply.22} parent=11 // pred_fallthru
        _
      // Predicated region
      $region17: #{generator_apply.22} parent=11 // pred_check
        %p143 = pneg %p78
      $region18: #{generator_apply.22} parent=11 // pred_check_branch
        %145 = sbr.rel (%p143) target = $region20
      $region19: #{generator_apply.22} parent=11 // pred_region
        _
      $region20: #{generator_apply.22} parent=11 // pred_fallthru
        _
      // Predicated region
      $region21: #{generator_apply.22} parent=11 // pred_check
        %p146 = pneg %p99
      $region22: #{generator_apply.22} parent=11 // pred_check_branch
        %148 = sbr.rel (%p146) target = $region24
      $region23: #{generator_apply.22} parent=11 // pred_region
        _
      $region24: #{generator_apply.22} parent=11 // pred_fallthru
        _
    $region12: #{generator_apply.22} parent=5 // pred_fallthru
      _
    %p149 = scmp.lt.s32.totalorder %s10, 2
    // Predicated region
    $region25: #{generator_apply.22} parent=5 // pred_check
      %p150 = pneg %p149
    $region26: #{generator_apply.22} parent=5 // pred_check_branch
      %152 = sbr.rel (%p150) target = $region28
    $region27: #{generator_apply.22} parent=5 // pred_region
      // Predicated region
      $region29: #{generator_apply.22} parent=27 // pred_check
        %p153 = pneg %p30
      $region30: #{generator_apply.22} parent=27 // pred_check_branch
        %155 = sbr.rel (%p153) target = $region32
      $region31: #{generator_apply.22} parent=27 // pred_region
        %s156 = smul.u32 32, %s10
        %p157 = scmp.lt.s32.totalorder %s156, 63
        %s158 = scalar_select %p157, %s156, 63
        %s159 = smul.addr %s158, 4
        %s160 = scalar_lea.vmem %s0, %s159
        %s161 = smul.u32 32, %s10
      $region32: #{generator_apply.22} parent=27 // pred_fallthru
        _
    $region28: #{generator_apply.22} parent=5 // pred_fallthru
      _
    %p162 = scmp.le.s32.totalorder 1, %s10
    %p163 = scmp.lt.s32.totalorder %s10, 3
    %p164 = pnand %p162, %p163
    %p165 = pneg %p164
    // Predicated region
    $region33: #{generator_apply.22} parent=5 // pred_check
      _
    $region34: #{generator_apply.22} parent=5 // pred_check_branch
      %167 = sbr.rel (%p164) target = $region36
    $region35: #{generator_apply.22} parent=5 // pred_region
      %s168 = ssub.s32 %s10, 1
      %s169 = smul.u32 32, %s15
      %p170 = scmp.lt.s32.totalorder %s169, 63
      %s171 = scalar_select %p170, %s169, 63
      %s172 = smul.addr %s171, 4
      %s173 = scalar_lea.vmem %s0, %s172
      %p174 = pneg %p36
      %p175 = pneg %p33
      %p176 = pneg %p57
      %p177 = pneg %p54
      %p178 = pneg %p78
      %p179 = pneg %p75
      %p180 = pneg %p99
      %p181 = pneg %p96
      %p182 = pneg %p125
      %p183 = pneg %p122
      %s184 = smul.u32 32, %s15
      %p185 = scmp.lt.s32.totalorder %s184, 63
      %s186 = scalar_select %p185, %s184, 63
      %s187 = smul.addr %s186, 8
      %s188 = scalar_lea.vmem %s4, %s187
      %s189 = smul.u32 32, %s15
      %p190 = scmp.lt.s32.totalorder %s189, 63
      %s191 = scalar_select %p190, %s189, 63
      %s192 = smul.addr %s191, 4
      %s193 = scalar_lea.vmem %s0, %s192
      %s194 = smul.u32 32, %s15
      %s195 = smul.u32 32, %s15
      %p196 = scmp.lt.s32.totalorder %s195, 63
      %s197 = scalar_select %p196, %s195, 63
      %s198 = smul.addr %s197, 8
      %s199 = scalar_lea.vmem %s4, %s198
      %s200 = smul.u32 32, %s15
      %v202 = vld [vmem:[%s193] sm:$0xf]
      %v203 = vld [vmem:[%s193 + $0x4] sm:$0xf]
      %v204 = vld [vmem:[%s193 + $0x8] sm:$0xf]
      %v205 = vld [vmem:[%s193 + $0xc] sm:$0xf]
      %v206 = vld [vmem:[%s193 + $0x10] sm:$0xf]
      %v207 = vld [vmem:[%s193 + $0x14] sm:$0xf]
      %v208 = vld [vmem:[%s193 + $0x18] sm:$0xf]
      %v209 = vld [vmem:[%s193 + $0x1c] sm:$0xf]
      %v210 = vld [vmem:[%s193 + $0x20] sm:$0xf]
      %v211 = vld [vmem:[%s193 + $0x24] sm:$0xf]
      %v212 = vld [vmem:[%s193 + $0x28] sm:$0xf]
      %v213 = vld [vmem:[%s193 + $0x2c] sm:$0xf]
      %v214 = vld [vmem:[%s193 + $0x30] sm:$0xf]
      %v215 = vld [vmem:[%s193 + $0x34] sm:$0xf]
      %v216 = vld [vmem:[%s193 + $0x38] sm:$0xf]
      %v217 = vld [vmem:[%s193 + $0x3c] sm:$0xf]
      %v218 = vld [vmem:[%s193 + $0x40] sm:$0xf]
      %v219 = vld [vmem:[%s193 + $0x44] sm:$0xf]
      %v220 = vld [vmem:[%s193 + $0x48] sm:$0xf]
      %v221 = vld [vmem:[%s193 + $0x4c] sm:$0xf]
      %v222 = vld [vmem:[%s193 + $0x50] sm:$0xf]
      %v223 = vld [vmem:[%s193 + $0x54] sm:$0xf]
      %v224 = vld [vmem:[%s193 + $0x58] sm:$0xf]
      %v225 = vld [vmem:[%s193 + $0x5c] sm:$0xf]
      %v226 = vld [vmem:[%s193 + $0x60] sm:$0xf]
      %v227 = vld [vmem:[%s193 + $0x64] sm:$0xf]
      %v228 = vld [vmem:[%s193 + $0x68] sm:$0xf]
      %v229 = vld [vmem:[%s193 + $0x6c] sm:$0xf]
      %v230 = vld [vmem:[%s193 + $0x70] sm:$0xf]
      %v231 = vld [vmem:[%s193 + $0x74] sm:$0xf]
      %v232 = vld [vmem:[%s193 + $0x78] sm:$0xf]
      %v233 = vld [vmem:[%s193 + $0x7c] sm:$0xf]
      %v234 = vld [vmem:[%s1] sm:$0xf]
      %v235 = vld [vmem:[%s1 + $0x4] sm:$0xf]
      %v236 = vld [vmem:[%s1 + $0x8] sm:$0xf]
      %v237 = vld [vmem:[%s1 + $0xc] sm:$0xf]
      %v238 = vld [vmem:[%s1 + $0x10] sm:$0xf]
      %v239 = vld [vmem:[%s1 + $0x14] sm:$0xf]
      %v240 = vld [vmem:[%s1 + $0x18] sm:$0xf]
      %v241 = vld [vmem:[%s1 + $0x1c] sm:$0xf]
      %v242 = vld [vmem:[%s1 + $0x20] sm:$0xf]
      %v243 = vld [vmem:[%s1 + $0x24] sm:$0xf]
      %v244 = vld [vmem:[%s1 + $0x28] sm:$0xf]
      %v245 = vld [vmem:[%s1 + $0x2c] sm:$0xf]
      %v246 = vld [vmem:[%s1 + $0x30] sm:$0xf]
      %v247 = vld [vmem:[%s1 + $0x34] sm:$0xf]
      %v248 = vld [vmem:[%s1 + $0x38] sm:$0xf]
      %v249 = vld [vmem:[%s1 + $0x3c] sm:$0xf]
      %v282 = vunpack.c.l.b16 %v202
      %v283 = vunpack.c.l.b16 %v203
      %v284 = vunpack.c.l.b16 %v204
      %v285 = vunpack.c.l.b16 %v205
      %v286 = vunpack.c.l.b16 %v206
      %v287 = vunpack.c.l.b16 %v207
      %v288 = vunpack.c.l.b16 %v208
      %v289 = vunpack.c.l.b16 %v209
      %v290 = vunpack.c.l.b16 %v210
      %v291 = vunpack.c.l.b16 %v211
      %v292 = vunpack.c.l.b16 %v212
      %v293 = vunpack.c.l.b16 %v213
      %v294 = vunpack.c.l.b16 %v214
      %v295 = vunpack.c.l.b16 %v215
      %v296 = vunpack.c.l.b16 %v216
      %v297 = vunpack.c.l.b16 %v217
      %v298 = vunpack.c.l.b16 %v218
      %v299 = vunpack.c.l.b16 %v219
      %v300 = vunpack.c.l.b16 %v220
      %v301 = vunpack.c.l.b16 %v221
      %v302 = vunpack.c.l.b16 %v222
      %v303 = vunpack.c.l.b16 %v223
      %v304 = vunpack.c.l.b16 %v224
      %v305 = vunpack.c.l.b16 %v225
      %v306 = vunpack.c.l.b16 %v226
      %v307 = vunpack.c.l.b16 %v227
      %v308 = vunpack.c.l.b16 %v228
      %v309 = vunpack.c.l.b16 %v229
      %v310 = vunpack.c.l.b16 %v230
      %v311 = vunpack.c.l.b16 %v231
      %v312 = vunpack.c.l.b16 %v232
      %v313 = vunpack.c.l.b16 %v233
      %v314 = vpack.c.b16 %v283, %v282
      %v315 = vpack.c.b16 %v285, %v284
      %v316 = vpack.c.b16 %v287, %v286
      %v317 = vpack.c.b16 %v289, %v288
      %v318 = vpack.c.b16 %v291, %v290
      %v319 = vpack.c.b16 %v293, %v292
      %v320 = vpack.c.b16 %v295, %v294
      %v321 = vpack.c.b16 %v297, %v296
      %v322 = vpack.c.b16 %v299, %v298
      %v323 = vpack.c.b16 %v301, %v300
      %v324 = vpack.c.b16 %v303, %v302
      %v325 = vpack.c.b16 %v305, %v304
      %v326 = vpack.c.b16 %v307, %v306
      %v327 = vpack.c.b16 %v309, %v308
      %v328 = vpack.c.b16 %v311, %v310
      %v329 = vpack.c.b16 %v313, %v312
      %v362 = vunpack.c.l.b16 %v234
      %v363 = vunpack.c.l.b16 %v235
      %v364 = vunpack.c.l.b16 %v236
      %v365 = vunpack.c.l.b16 %v237
      %v366 = vunpack.c.l.b16 %v238
      %v367 = vunpack.c.l.b16 %v239
      %v368 = vunpack.c.l.b16 %v240
      %v369 = vunpack.c.l.b16 %v241
      %v370 = vunpack.c.l.b16 %v242
      %v371 = vunpack.c.l.b16 %v243
      %v372 = vunpack.c.l.b16 %v244
      %v373 = vunpack.c.l.b16 %v245
      %v374 = vunpack.c.l.b16 %v246
      %v375 = vunpack.c.l.b16 %v247
      %v376 = vunpack.c.l.b16 %v248
      %v377 = vunpack.c.l.b16 %v249
      %v378 = vpack.c.b16 %v363, %v362
      %v379 = vpack.c.b16 %v365, %v364
      %v380 = vpack.c.b16 %v367, %v366
      %v381 = vpack.c.b16 %v369, %v368
      %v382 = vpack.c.b16 %v371, %v370
      %v383 = vpack.c.b16 %v373, %v372
      %v384 = vpack.c.b16 %v375, %v374
      %v385 = vpack.c.b16 %v377, %v376
      %394 = vmatprep.subr.bf16.mxu0 0
      %395 = vmatpush1.bf16.msra.mxu0 %v378
      %396 = vmatprep.subr.bf16.mxu0 0
      %397 = vmatpush1.bf16.msra.mxu0 %v379
      %398 = vmatprep.subr.bf16.mxu0 0
      %399 = vmatpush1.bf16.msra.mxu0 %v380
      %400 = vmatprep.subr.bf16.mxu0 0
      %401 = vmatpush1.bf16.msra.mxu0 %v381
      %402 = vmatprep.subr.bf16.mxu0 0
      %403 = vmatpush1.bf16.msra.mxu0 %v382
      %404 = vmatprep.subr.bf16.mxu0 0
      %405 = vmatpush1.bf16.msra.mxu0 %v383
      %406 = vmatprep.subr.bf16.mxu0 0
      %407 = vmatpush1.bf16.msra.mxu0 %v384
      %408 = vmatprep.subr.bf16.mxu0 0
      %409 = vmatpush1.bf16.msra.mxu0 %v385
      %410 = vmatprep.subr.bf16.mxu0 0
      %411 = vmatpush1.bf16.msra.mxu0 0
      %412 = vmatprep.subr.bf16.mxu0 0
      %413 = vmatpush1.bf16.msra.mxu0 0
      %414 = vmatprep.subr.bf16.mxu0 0
      %415 = vmatpush1.bf16.msra.mxu0 0
      %416 = vmatprep.subr.bf16.mxu0 0
      %417 = vmatpush1.bf16.msra.mxu0 0
      %418 = vmatprep.subr.bf16.mxu0 0
      %419 = vmatpush1.bf16.msra.mxu0 0
      %420 = vmatprep.subr.bf16.mxu0 0
      %421 = vmatpush1.bf16.msra.mxu0 0
      %422 = vmatprep.subr.bf16.mxu0 0
      %423 = vmatpush1.bf16.msra.mxu0 0
      %424 = vmatprep.subr.bf16.mxu0 0
      %425 = vmatpush1.bf16.msra.mxu0 0
      %426 = vmatprep.mubr.bf16.mxu0 0
      %427 = vmatmul.mubr.bf16.gmra.mrb[0].mxu0 %v314
      %v428 = vpop.f32.mrb[0].mxu0
      %v429 = vadd.f32 0.0, %v428
      %v430 = vpop.f32.mrb[0].mxu0
      %v431 = vpop.f32.mrb[0].mxu0
      %v432 = vadd.f32 0.0, %v431
      %v433 = vpop.f32.mrb[0].mxu0
      %434 = vmatprep.mubr.bf16.mxu0 0
      %435 = vmatmul.mubr.bf16.gmra.mrb[0].mxu0 %v315
      %v436 = vpop.f32.mrb[0].mxu0
      %v437 = vadd.f32 0.0, %v436
      %v438 = vpop.f32.mrb[0].mxu0
      %v439 = vpop.f32.mrb[0].mxu0
      %v440 = vadd.f32 0.0, %v439
      %v441 = vpop.f32.mrb[0].mxu0
      %442 = vmatprep.mubr.bf16.mxu0 0
      %443 = vmatmul.mubr.bf16.gmra.mrb[0].mxu0 %v316
      %v444 = vpop.f32.mrb[0].mxu0
      %v445 = vadd.f32 0.0, %v444
      %v446 = vpop.f32.mrb[0].mxu0
      %v447 = vpop.f32.mrb[0].mxu0
      %v448 = vadd.f32 0.0, %v447
      %v449 = vpop.f32.mrb[0].mxu0
      %450 = vmatprep.mubr.bf16.mxu0 0
      %451 = vmatmul.mubr.bf16.gmra.mrb[0].mxu0 %v317
      %v452 = vpop.f32.mrb[0].mxu0
      %v453 = vadd.f32 0.0, %v452
      %v454 = vpop.f32.mrb[0].mxu0
      %v455 = vpop.f32.mrb[0].mxu0
      %v456 = vadd.f32 0.0, %v455
      %v457 = vpop.f32.mrb[0].mxu0
      %458 = vmatprep.mubr.bf16.mxu0 0
      %459 = vmatmul.mubr.bf16.gmra.mrb[0].mxu0 %v318
      %v460 = vpop.f32.mrb[0].mxu0
      %v461 = vadd.f32 0.0, %v460
      %v462 = vpop.f32.mrb[0].mxu0
      %v463 = vpop.f32.mrb[0].mxu0
      %v464 = vadd.f32 0.0, %v463
      %v465 = vpop.f32.mrb[0].mxu0
      %466 = vmatprep.mubr.bf16.mxu0 0
      %467 = vmatmul.mubr.bf16.gmra.mrb[0].mxu0 %v319
      %v468 = vpop.f32.mrb[0].mxu0
      %v469 = vadd.f32 0.0, %v468
      %v470 = vpop.f32.mrb[0].mxu0
      %v471 = vpop.f32.mrb[0].mxu0
      %v472 = vadd.f32 0.0, %v471
      %v473 = vpop.f32.mrb[0].mxu0
      %474 = vmatprep.mubr.bf16.mxu0 0
      %475 = vmatmul.mubr.bf16.gmra.mrb[0].mxu0 %v320
      %v476 = vpop.f32.mrb[0].mxu0
      %v477 = vadd.f32 0.0, %v476
      %v478 = vpop.f32.mrb[0].mxu0
      %v479 = vpop.f32.mrb[0].mxu0
      %v480 = vadd.f32 0.0, %v479
      %v481 = vpop.f32.mrb[0].mxu0
      %482 = vmatprep.mubr.bf16.mxu0 0
      %483 = vmatmul.mubr.bf16.gmra.mrb[0].mxu0 %v321
      %v484 = vpop.f32.mrb[0].mxu0
      %v485 = vadd.f32 0.0, %v484
      %v486 = vpop.f32.mrb[0].mxu0
      %v487 = vpop.f32.mrb[0].mxu0
      %v488 = vadd.f32 0.0, %v487
      %v489 = vpop.f32.mrb[0].mxu0
      %490 = vmatprep.mubr.bf16.mxu0 0
      %491 = vmatmul.mubr.bf16.gmra.mrb[0].mxu0 %v322
      %v492 = vpop.f32.mrb[0].mxu0
      %v493 = vadd.f32 0.0, %v492
      %v494 = vpop.f32.mrb[0].mxu0
      %v495 = vpop.f32.mrb[0].mxu0
      %v496 = vadd.f32 0.0, %v495
      %v497 = vpop.f32.mrb[0].mxu0
      %498 = vmatprep.mubr.bf16.mxu0 0
      %499 = vmatmul.mubr.bf16.gmra.mrb[0].mxu0 %v323
      %v500 = vpop.f32.mrb[0].mxu0
      %v501 = vadd.f32 0.0, %v500
      %v502 = vpop.f32.mrb[0].mxu0
      %v503 = vpop.f32.mrb[0].mxu0
      %v504 = vadd.f32 0.0, %v503
      %v505 = vpop.f32.mrb[0].mxu0
      %506 = vmatprep.mubr.bf16.mxu0 0
      %507 = vmatmul.mubr.bf16.gmra.mrb[0].mxu0 %v324
      %v508 = vpop.f32.mrb[0].mxu0
      %v509 = vadd.f32 0.0, %v508
      %v510 = vpop.f32.mrb[0].mxu0
      %v511 = vpop.f32.mrb[0].mxu0
      %v512 = vadd.f32 0.0, %v511
      %v513 = vpop.f32.mrb[0].mxu0
      %514 = vmatprep.mubr.bf16.mxu0 0
      %515 = vmatmul.mubr.bf16.gmra.mrb[0].mxu0 %v325
      %v516 = vpop.f32.mrb[0].mxu0
      %v517 = vadd.f32 0.0, %v516
      %v518 = vpop.f32.mrb[0].mxu0
      %v519 = vpop.f32.mrb[0].mxu0
      %v520 = vadd.f32 0.0, %v519
      %v521 = vpop.f32.mrb[0].mxu0
      %522 = vmatprep.mubr.bf16.mxu0 0
      %523 = vmatmul.mubr.bf16.gmra.mrb[0].mxu0 %v326
      %v524 = vpop.f32.mrb[0].mxu0
      %v525 = vadd.f32 0.0, %v524
      %v526 = vpop.f32.mrb[0].mxu0
      %v527 = vpop.f32.mrb[0].mxu0
      %v528 = vadd.f32 0.0, %v527
      %v529 = vpop.f32.mrb[0].mxu0
      %530 = vmatprep.mubr.bf16.mxu0 0
      %531 = vmatmul.mubr.bf16.gmra.mrb[0].mxu0 %v327
      %v532 = vpop.f32.mrb[0].mxu0
      %v533 = vadd.f32 0.0, %v532
      %v534 = vpop.f32.mrb[0].mxu0
      %v535 = vpop.f32.mrb[0].mxu0
      %v536 = vadd.f32 0.0, %v535
      %v537 = vpop.f32.mrb[0].mxu0
      %538 = vmatprep.mubr.bf16.mxu0 0
      %539 = vmatmul.mubr.bf16.gmra.mrb[0].mxu0 %v328
      %v540 = vpop.f32.mrb[0].mxu0
      %v541 = vadd.f32 0.0, %v540
      %v542 = vpop.f32.mrb[0].mxu0
      %v543 = vpop.f32.mrb[0].mxu0
      %v544 = vadd.f32 0.0, %v543
      %v545 = vpop.f32.mrb[0].mxu0
      %546 = vmatprep.mubr.bf16.mxu0 0
      %547 = vmatmul.mubr.bf16.gmra.mrb[0].mxu0 %v329
      %v548 = vpop.f32.mrb[0].mxu0
      %v549 = vadd.f32 0.0, %v548
      %v550 = vpop.f32.mrb[0].mxu0
      %v551 = vpop.f32.mrb[0].mxu0
      %v552 = vadd.f32 0.0, %v551
      %v553 = vpop.f32.mrb[0].mxu0
      %554 = vdwg.mxu0
      %v555 = vld [vmem:[%s2] sm:$0x1]
      %v557 = vlaneseq
      %v558 = vshrl.u32 %v557, 7
      %v559 = vsub.s32 0, %v558
      %v560 = vrot.slane %v555, %v559
      %v562 = vmul.f32 %v429, %v560
      %v563 = vmul.f32 %v432, %v560
      %v564 = vmul.f32 %v437, %v560
      %v565 = vmul.f32 %v440, %v560
      %v566 = vmul.f32 %v445, %v560
      %v567 = vmul.f32 %v448, %v560
      %v568 = vmul.f32 %v453, %v560
      %v569 = vmul.f32 %v456, %v560
      %v570 = vmul.f32 %v461, %v560
      %v571 = vmul.f32 %v464, %v560
      %v572 = vmul.f32 %v469, %v560
      %v573 = vmul.f32 %v472, %v560
      %v574 = vmul.f32 %v477, %v560
      %v575 = vmul.f32 %v480, %v560
      %v576 = vmul.f32 %v485, %v560
      %v577 = vmul.f32 %v488, %v560
      %v578 = vmul.f32 %v493, %v560
      %v579 = vmul.f32 %v496, %v560
      %v580 = vmul.f32 %v501, %v560
      %v581 = vmul.f32 %v504, %v560
      %v582 = vmul.f32 %v509, %v560
      %v583 = vmul.f32 %v512, %v560
      %v584 = vmul.f32 %v517, %v560
      %v585 = vmul.f32 %v520, %v560
      %v586 = vmul.f32 %v525, %v560
      %v587 = vmul.f32 %v528, %v560
      %v588 = vmul.f32 %v533, %v560
      %v589 = vmul.f32 %v536, %v560
      %v590 = vmul.f32 %v541, %v560
      %v591 = vmul.f32 %v544, %v560
      %v592 = vmul.f32 %v549, %v560
      %v593 = vmul.f32 %v552, %v560
      %v594 = vld [vmem:[%s3] sm:$0x1]
      %v596 = vlaneseq
      %v597 = vshrl.u32 %v596, 7
      %v598 = vsub.s32 0, %v597
      %v599 = vrot.slane %v594, %v598
      %v601 = vadd.f32 %v562, %v599
      %v602 = vadd.f32 %v563, %v599
      %v603 = vadd.f32 %v564, %v599
      %v604 = vadd.f32 %v565, %v599
      %v605 = vadd.f32 %v566, %v599
      %v606 = vadd.f32 %v567, %v599
      %v607 = vadd.f32 %v568, %v599
      %v608 = vadd.f32 %v569, %v599
      %v609 = vadd.f32 %v570, %v599
      %v610 = vadd.f32 %v571, %v599
      %v611 = vadd.f32 %v572, %v599
      %v612 = vadd.f32 %v573, %v599
      %v613 = vadd.f32 %v574, %v599
      %v614 = vadd.f32 %v575, %v599
      %v615 = vadd.f32 %v576, %v599
      %v616 = vadd.f32 %v577, %v599
      %v617 = vadd.f32 %v578, %v599
      %v618 = vadd.f32 %v579, %v599
      %v619 = vadd.f32 %v580, %v599
      %v620 = vadd.f32 %v581, %v599
      %v621 = vadd.f32 %v582, %v599
      %v622 = vadd.f32 %v583, %v599
      %v623 = vadd.f32 %v584, %v599
      %v624 = vadd.f32 %v585, %v599
      %v625 = vadd.f32 %v586, %v599
      %v626 = vadd.f32 %v587, %v599
      %v627 = vadd.f32 %v588, %v599
      %v628 = vadd.f32 %v589, %v599
      %v629 = vadd.f32 %v590, %v599
      %v630 = vadd.f32 %v591, %v599
      %v631 = vadd.f32 %v592, %v599
      %v632 = vadd.f32 %v593, %v599
      %v633 = vmax.f32 %v601, 0.0
      %v634 = vmax.f32 %v602, 0.0
      %v635 = vmax.f32 %v603, 0.0
      %v636 = vmax.f32 %v604, 0.0
      %v637 = vmax.f32 %v605, 0.0
      %v638 = vmax.f32 %v606, 0.0
      %v639 = vmax.f32 %v607, 0.0
      %v640 = vmax.f32 %v608, 0.0
      %v641 = vmax.f32 %v609, 0.0
      %v642 = vmax.f32 %v610, 0.0
      %v643 = vmax.f32 %v611, 0.0
      %v644 = vmax.f32 %v612, 0.0
      %v645 = vmax.f32 %v613, 0.0
      %v646 = vmax.f32 %v614, 0.0
      %v647 = vmax.f32 %v615, 0.0
      %v648 = vmax.f32 %v616, 0.0
      %v649 = vmax.f32 %v617, 0.0
      %v650 = vmax.f32 %v618, 0.0
      %v651 = vmax.f32 %v619, 0.0
      %v652 = vmax.f32 %v620, 0.0
      %v653 = vmax.f32 %v621, 0.0
      %v654 = vmax.f32 %v622, 0.0
      %v655 = vmax.f32 %v623, 0.0
      %v656 = vmax.f32 %v624, 0.0
      %v657 = vmax.f32 %v625, 0.0
      %v658 = vmax.f32 %v626, 0.0
      %v659 = vmax.f32 %v627, 0.0
      %v660 = vmax.f32 %v628, 0.0
      %v661 = vmax.f32 %v629, 0.0
      %v662 = vmax.f32 %v630, 0.0
      %v663 = vmax.f32 %v631, 0.0
      %v664 = vmax.f32 %v632, 0.0
      %665 = vst [vmem:[%s199] sm:$0xff] %v633
      %666 = vst [vmem:[%s199 + $0x8] sm:$0xff] %v634
      %667 = vst [vmem:[%s199 + $0x10] sm:$0xff] %v635
      %668 = vst [vmem:[%s199 + $0x18] sm:$0xff] %v636
      %669 = vst [vmem:[%s199 + $0x20] sm:$0xff] %v637
      %670 = vst [vmem:[%s199 + $0x28] sm:$0xff] %v638
      %671 = vst [vmem:[%s199 + $0x30] sm:$0xff] %v639
      %672 = vst [vmem:[%s199 + $0x38] sm:$0xff] %v640
      %673 = vst [vmem:[%s199 + $0x40] sm:$0xff] %v641
      %674 = vst [vmem:[%s199 + $0x48] sm:$0xff] %v642
      %675 = vst [vmem:[%s199 + $0x50] sm:$0xff] %v643
      %676 = vst [vmem:[%s199 + $0x58] sm:$0xff] %v644
      %677 = vst [vmem:[%s199 + $0x60] sm:$0xff] %v645
      %678 = vst [vmem:[%s199 + $0x68] sm:$0xff] %v646
      %679 = vst [vmem:[%s199 + $0x70] sm:$0xff] %v647
      %680 = vst [vmem:[%s199 + $0x78] sm:$0xff] %v648
      %681 = vst [vmem:[%s199 + $0x80] sm:$0xff] %v649
      %682 = vst [vmem:[%s199 + $0x88] sm:$0xff] %v650
      %683 = vst [vmem:[%s199 + $0x90] sm:$0xff] %v651
      %684 = vst [vmem:[%s199 + $0x98] sm:$0xff] %v652
      %685 = vst [vmem:[%s199 + $0xa0] sm:$0xff] %v653
      %686 = vst [vmem:[%s199 + $0xa8] sm:$0xff] %v654
      %687 = vst [vmem:[%s199 + $0xb0] sm:$0xff] %v655
      %688 = vst [vmem:[%s199 + $0xb8] sm:$0xff] %v656
      %689 = vst [vmem:[%s199 + $0xc0] sm:$0xff] %v657
      %690 = vst [vmem:[%s199 + $0xc8] sm:$0xff] %v658
      %691 = vst [vmem:[%s199 + $0xd0] sm:$0xff] %v659
      %692 = vst [vmem:[%s199 + $0xd8] sm:$0xff] %v660
      %693 = vst [vmem:[%s199 + $0xe0] sm:$0xff] %v661
      %694 = vst [vmem:[%s199 + $0xe8] sm:$0xff] %v662
      %695 = vst [vmem:[%s199 + $0xf0] sm:$0xff] %v663
      %696 = vst [vmem:[%s199 + $0xf8] sm:$0xff] %v664
      %s697 = smul.u32 32, %s15
      %p698 = scmp.lt.s32.totalorder %s697, 63
      %s699 = scalar_select %p698, %s697, 63
      %s700 = smul.addr %s699, 8
      %s701 = scalar_lea.vmem %s4, %s700
      // Predicated region
      $region37: #{generator_apply.22} parent=35 // pred_check
        %p702 = pneg %p122
      $region38: #{generator_apply.22} parent=35 // pred_check_branch
        %704 = sbr.rel (%p702) target = $region40
      $region39: #{generator_apply.22} parent=35 // pred_region
        %s705 = smul.u32 32, %s15
      $region40: #{generator_apply.22} parent=35 // pred_fallthru
        _
    $region36: #{generator_apply.22} parent=5 // pred_fallthru
      _
    %p706 = scmp.le.s32.totalorder 2, %s10
    // Predicated region
    $region41: #{generator_apply.22} parent=5 // pred_check
      %p707 = pneg %p706
    $region42: #{generator_apply.22} parent=5 // pred_check_branch
      %709 = sbr.rel (%p707) target = $region44
    $region43: #{generator_apply.22} parent=5 // pred_region
      %s710 = ssub.s32 %s10, 2
      // Predicated region
      $region45: #{generator_apply.22} parent=43 // pred_check
        %p711 = pneg %p128
      $region46: #{generator_apply.22} parent=43 // pred_check_branch
        %713 = sbr.rel (%p711) target = $region48
      $region47: #{generator_apply.22} parent=43 // pred_region
        %s714 = smul.u32 32, %s16
        %p715 = scmp.lt.s32.totalorder %s714, 63
        %s716 = scalar_select %p715, %s714, 63
        %s717 = smul.addr %s716, 8
        %s718 = scalar_lea.vmem %s4, %s717
      $region48: #{generator_apply.22} parent=43 // pred_fallthru
        _
    $region44: #{generator_apply.22} parent=5 // pred_fallthru
      _
  $region6: #{generator_apply.22} parent=0 // loop_footer
    %s14 = sadd.s32 1, %s10
  $region7: #{generator_apply.22} parent=0 // loop_footer_branch
    %9 = sbr.rel target = $region3
  $region8: #{generator_apply.22} parent=0 // loop_exit
    _

// kernel: generator_apply.23
$region0: #{generator_apply.23}
  #allocation0 [shape = 'u32[]', space=smem, size = 0x4, offset = 0x4, fixed_abs, tag = 'smem constant byte address 0x4 - core index']
  #allocation1 [shape = 'u32[144,128]{1,0:T(1,128)}', space=vmem, size = 0x12000, scoped, tag = 'internal scratch']
  %s0 = inlined_call_operand.vmem [shape: bf16[2048,784], index: 0, kind: input, shape index: {}]
  %s1 = inlined_call_operand.vmem [shape: bf16[784,128], index: 1, kind: input, shape index: {}]
  %s2 = inlined_call_operand.vmem [shape: f32[1,128], index: 2, kind: input, shape index: {}]
  %s3 = inlined_call_operand.vmem [shape: f32[1,128], index: 3, kind: input, shape index: {}]
  %s4 = inlined_call_operand.vmem [shape: f32[2048,128], index: 4, kind: output, shape index: {}]
  %s5 = sld [smem:[#allocation0]]
  $region49: #{generator_apply.23} parent=0
    _
  %s7 = ssub.s32 1, %s5
  %s8 = scalar_select 0, %s7, %s5
  loop: start=0, step=1, limit=4
  $region2: #{generator_apply.23} parent=0 // loop_pre_header
    _
  $region3: #{generator_apply.23} parent=0 // loop_header
    %s10 = sphi 0, %s14
    %p11 = scmp.ge.s32.totalorder %s10, 4
    %s20 = sphi 0, %s22
    %s23 = sphi 0, %s20
    %s24 = sphi 0, %s23
    %s40 = sphi 0, %s24
    %s44 = sphi 0, %s44
    %s46 = sphi 0, %s44
    %s47 = sphi 0, %s46
    %s61 = sphi 0, %s47
    %s65 = sphi 0, %s65
    %s67 = sphi 0, %s65
    %s68 = sphi 0, %s67
    %s82 = sphi 0, %s68
    %s86 = sphi 0, %s86
    %s88 = sphi 0, %s86
    %s89 = sphi 0, %s88
    %s103 = sphi 0, %s89
    %s109 = sphi 0, %s111
    %s112 = sphi 0, %s109
    %s113 = sphi 0, %s112
    %s129 = sphi 0, %s113
  $region4: #{generator_apply.23} parent=0 // loop_header_branch
    %13 = sbr.rel (%p11) target = $region8
  $region5: #{generator_apply.23} parent=0 // loop_body
    %s15 = ssub.s32 %s10, 1
    %s16 = ssub.s32 %s10, 2
    %s17 = sadd.s32 %s10, 1
    %s18 = ssub.s32 %s10, %s17
    %p19 = scmp.eq.s32.totalorder %s18, 0
    %s21 = sadd.s32 %s20, 1
    %s22 = scalar_select %p19, %s20, %s21
    %p25 = pneg %p19
    %p26 = scmp.eq.s32.totalorder %s10, 1
    %p27 = por %p25, %p26
    %p28 = scmp.ne.s32.totalorder %s20, %s23
    %p29 = scmp.eq.s32.totalorder %s10, 0
    %p30 = por %p28, %p29
    %p31 = scmp.ne.s32.totalorder %s20, %s23
    %p32 = scmp.eq.s32.totalorder %s15, 1
    %p33 = por %p31, %p32
    %p34 = scmp.ne.s32.totalorder %s23, %s24
    %p35 = scmp.eq.s32.totalorder %s15, 0
    %p36 = por %p34, %p35
    %p37 = scmp.ne.s32.totalorder %s23, %s24
    %p38 = scmp.eq.s32.totalorder %s16, 1
    %p39 = por %p37, %p38
    %p41 = scmp.ne.s32.totalorder %s24, %s40
    %p42 = scmp.eq.s32.totalorder %s16, 0
    %p43 = por %p41, %p42
    %s45 = sadd.s32 %s44, 1
    %p48 = scmp.eq.s32.totalorder %s10, 1
    %p49 = scmp.ne.s32.totalorder %s44, %s46
    %p50 = scmp.eq.s32.totalorder %s10, 0
    %p51 = por %p49, %p50
    %p52 = scmp.ne.s32.totalorder %s44, %s46
    %p53 = scmp.eq.s32.totalorder %s15, 1
    %p54 = por %p52, %p53
    %p55 = scmp.ne.s32.totalorder %s46, %s47
    %p56 = scmp.eq.s32.totalorder %s15, 0
    %p57 = por %p55, %p56
    %p58 = scmp.ne.s32.totalorder %s46, %s47
    %p59 = scmp.eq.s32.totalorder %s16, 1
    %p60 = por %p58, %p59
    %p62 = scmp.ne.s32.totalorder %s47, %s61
    %p63 = scmp.eq.s32.totalorder %s16, 0
    %p64 = por %p62, %p63
    %s66 = sadd.s32 %s65, 1
    %p69 = scmp.eq.s32.totalorder %s10, 1
    %p70 = scmp.ne.s32.totalorder %s65, %s67
    %p71 = scmp.eq.s32.totalorder %s10, 0
    %p72 = por %p70, %p71
    %p73 = scmp.ne.s32.totalorder %s65, %s67
    %p74 = scmp.eq.s32.totalorder %s15, 1
    %p75 = por %p73, %p74
    %p76 = scmp.ne.s32.totalorder %s67, %s68
    %p77 = scmp.eq.s32.totalorder %s15, 0
    %p78 = por %p76, %p77
    %p79 = scmp.ne.s32.totalorder %s67, %s68
    %p80 = scmp.eq.s32.totalorder %s16, 1
    %p81 = por %p79, %p80
    %p83 = scmp.ne.s32.totalorder %s68, %s82
    %p84 = scmp.eq.s32.totalorder %s16, 0
    %p85 = por %p83, %p84
    %s87 = sadd.s32 %s86, 1
    %p90 = scmp.eq.s32.totalorder %s10, 1
    %p91 = scmp.ne.s32.totalorder %s86, %s88
    %p92 = scmp.eq.s32.totalorder %s10, 0
    %p93 = por %p91, %p92
    %p94 = scmp.ne.s32.totalorder %s86, %s88
    %p95 = scmp.eq.s32.totalorder %s15, 1
    %p96 = por %p94, %p95
    %p97 = scmp.ne.s32.totalorder %s88, %s89
    %p98 = scmp.eq.s32.totalorder %s15, 0
    %p99 = por %p97, %p98
    %p100 = scmp.ne.s32.totalorder %s88, %s89
    %p101 = scmp.eq.s32.totalorder %s16, 1
    %p102 = por %p100, %p101
    %p104 = scmp.ne.s32.totalorder %s89, %s103
    %p105 = scmp.eq.s32.totalorder %s16, 0
    %p106 = por %p104, %p105
    %s107 = ssub.s32 %s10, %s17
    %p108 = scmp.eq.s32.totalorder %s107, 0
    %s110 = sadd.s32 %s109, 1
    %s111 = scalar_select %p108, %s109, %s110
    %p114 = pneg %p108
    %p115 = scmp.eq.s32.totalorder %s10, 1
    %p116 = por %p114, %p115
    %p117 = scmp.ne.s32.totalorder %s109, %s112
    %p118 = scmp.eq.s32.totalorder %s10, 0
    %p119 = por %p117, %p118
    %p120 = scmp.ne.s32.totalorder %s109, %s112
    %p121 = scmp.eq.s32.totalorder %s15, 1
    %p122 = por %p120, %p121
    %p123 = scmp.ne.s32.totalorder %s112, %s113
    %p124 = scmp.eq.s32.totalorder %s15, 0
    %p125 = por %p123, %p124
    %p126 = scmp.ne.s32.totalorder %s112, %s113
    %p127 = scmp.eq.s32.totalorder %s16, 1
    %p128 = por %p126, %p127
    %p130 = scmp.ne.s32.totalorder %s113, %s129
    %p131 = scmp.eq.s32.totalorder %s16, 0
    %p132 = por %p130, %p131
    %p133 = scmp.le.s32.totalorder 1, %s10
    %p134 = scmp.lt.s32.totalorder %s10, 3
    %p135 = pnand %p133, %p134
    %p136 = pneg %p135
    // Predicated region
    $region9: #{generator_apply.23} parent=5 // pred_check
      _
    $region10: #{generator_apply.23} parent=5 // pred_check_branch
      %138 = sbr.rel (%p135) target = $region12
    $region11: #{generator_apply.23} parent=5 // pred_region
      %s139 = ssub.s32 %s10, 1
      // Predicated region
      $region13: #{generator_apply.23} parent=11 // pred_check
        %p140 = pneg %p57
      $region14: #{generator_apply.23} parent=11 // pred_check_branch
        %142 = sbr.rel (%p140) target = $region16
      $region15: #{generator_apply.23} parent=11 // pred_region
        _
      $region16: #{generator_apply.23} parent=11 // pred_fallthru
        _
      // Predicated region
      $region17: #{generator_apply.23} parent=11 // pred_check
        %p143 = pneg %p78
      $region18: #{generator_apply.23} parent=11 // pred_check_branch
        %145 = sbr.rel (%p143) target = $region20
      $region19: #{generator_apply.23} parent=11 // pred_region
        _
      $region20: #{generator_apply.23} parent=11 // pred_fallthru
        _
      // Predicated region
      $region21: #{generator_apply.23} parent=11 // pred_check
        %p146 = pneg %p99
      $region22: #{generator_apply.23} parent=11 // pred_check_branch
        %148 = sbr.rel (%p146) target = $region24
      $region23: #{generator_apply.23} parent=11 // pred_region
        _
      $region24: #{generator_apply.23} parent=11 // pred_fallthru
        _
    $region12: #{generator_apply.23} parent=5 // pred_fallthru
      _
    %p149 = scmp.lt.s32.totalorder %s10, 2
    // Predicated region
    $region25: #{generator_apply.23} parent=5 // pred_check
      %p150 = pneg %p149
    $region26: #{generator_apply.23} parent=5 // pred_check_branch
      %152 = sbr.rel (%p150) target = $region28
    $region27: #{generator_apply.23} parent=5 // pred_region
      // Predicated region
      $region29: #{generator_apply.23} parent=27 // pred_check
        %p153 = pneg %p30
      $region30: #{generator_apply.23} parent=27 // pred_check_branch
        %155 = sbr.rel (%p153) target = $region32
      $region31: #{generator_apply.23} parent=27 // pred_region
        %s156 = smul.u32 128, %s10
        %p157 = scmp.lt.s32.totalorder %s156, 255
        %s158 = scalar_select %p157, %s156, 255
        %s159 = smul.addr %s158, 7
        %s160 = smul.addr %s159, 4
        %s161 = scalar_lea.vmem %s0, %s160
        %s162 = smul.u32 128, %s10
      $region32: #{generator_apply.23} parent=27 // pred_fallthru
        _
    $region28: #{generator_apply.23} parent=5 // pred_fallthru
      _
    %p163 = scmp.le.s32.totalorder 1, %s10
    %p164 = scmp.lt.s32.totalorder %s10, 3
    %p165 = pnand %p163, %p164
    %p166 = pneg %p165
    // Predicated region
    $region33: #{generator_apply.23} parent=5 // pred_check
      _
    $region34: #{generator_apply.23} parent=5 // pred_check_branch
      %168 = sbr.rel (%p165) target = $region36
    $region35: #{generator_apply.23} parent=5 // pred_region
      %s169 = ssub.s32 %s10, 1
      %s170 = smul.u32 128, %s15
      %p171 = scmp.lt.s32.totalorder %s170, 255
      %s172 = scalar_select %p171, %s170, 255
      %s173 = smul.addr %s172, 7
      %s174 = smul.addr %s173, 4
      %s175 = scalar_lea.vmem %s0, %s174
      %p176 = pneg %p36
      %p177 = pneg %p33
      %p178 = pneg %p57
      %p179 = pneg %p54
      %p180 = pneg %p78
      %p181 = pneg %p75
      %p182 = pneg %p99
      %p183 = pneg %p96
      %p184 = pneg %p125
      %p185 = pneg %p122
      %s186 = smul.u32 128, %s15
      %p187 = scmp.lt.s32.totalorder %s186, 255
      %s188 = scalar_select %p187, %s186, 255
      %s189 = smul.addr %s188, 8
      %s190 = scalar_lea.vmem %s4, %s189
      %s191 = smul.u32 128, %s15
      %p192 = scmp.lt.s32.totalorder %s191, 255
      %s193 = scalar_select %p192, %s191, 255
      %s194 = smul.addr %s193, 7
      %s195 = smul.addr %s194, 4
      %s196 = scalar_lea.vmem %s0, %s195
      %s197 = smul.u32 128, %s15
      %s198 = smul.u32 128, %s15
      %p199 = scmp.lt.s32.totalorder %s198, 255
      %s200 = scalar_select %p199, %s198, 255
      %s201 = smul.addr %s200, 8
      %s202 = scalar_lea.vmem %s4, %s201
      %s203 = smul.u32 128, %s15
      %v205 = vld [vmem:[%s196] sm:$0xff]
      %v206 = vld [vmem:[%s196 + $0x8] sm:$0xff]
      %v207 = vld [vmem:[%s196 + $0x10] sm:$0xff]
      %v208 = vld [vmem:[%s196 + $0x18] sm:$0xf]
      %v209 = vld [vmem:[%s196 + $0x1c] sm:$0xff]
      %v210 = vld [vmem:[%s196 + $0x24] sm:$0xff]
      %v211 = vld [vmem:[%s196 + $0x2c] sm:$0xff]
      %v212 = vld [vmem:[%s196 + $0x34] sm:$0xf]
      %v213 = vld [vmem:[%s196 + $0x38] sm:$0xff]
      %v214 = vld [vmem:[%s196 + $0x40] sm:$0xff]
      %v215 = vld [vmem:[%s196 + $0x48] sm:$0xff]
      %v216 = vld [vmem:[%s196 + $0x50] sm:$0xf]
      %v217 = vld [vmem:[%s196 + $0x54] sm:$0xff]
      %v218 = vld [vmem:[%s196 + $0x5c] sm:$0xff]
      %v219 = vld [vmem:[%s196 + $0x64] sm:$0xff]
      %v220 = vld [vmem:[%s196 + $0x6c] sm:$0xf]
      %v221 = vld [vmem:[%s196 + $0x70] sm:$0xff]
      %v222 = vld [vmem:[%s196 + $0x78] sm:$0xff]
      %v223 = vld [vmem:[%s196 + $0x80] sm:$0xff]
      %v224 = vld [vmem:[%s196 + $0x88] sm:$0xf]
      %v225 = vld [vmem:[%s196 + $0x8c] sm:$0xff]
      %v226 = vld [vmem:[%s196 + $0x94] sm:$0xff]
      %v227 = vld [vmem:[%s196 + $0x9c] sm:$0xff]
      %v228 = vld [vmem:[%s196 + $0xa4] sm:$0xf]
      %v229 = vld [vmem:[%s196 + $0xa8] sm:$0xff]
      %v230 = vld [vmem:[%s196 + $0xb0] sm:$0xff]
      %v231 = vld [vmem:[%s196 + $0xb8] sm:$0xff]
      %v232 = vld [vmem:[%s196 + $0xc0] sm:$0xf]
      %v233 = vld [vmem:[%s196 + $0xc4] sm:$0xff]
      %v234 = vld [vmem:[%s196 + $0xcc] sm:$0xff]
      %v235 = vld [vmem:[%s196 + $0xd4] sm:$0xff]
      %v236 = vld [vmem:[%s196 + $0xdc] sm:$0xf]
      %v237 = vld [vmem:[%s196 + $0xe0] sm:$0xff]
      %v238 = vld [vmem:[%s196 + $0xe8] sm:$0xff]
      %v239 = vld [vmem:[%s196 + $0xf0] sm:$0xff]
      %v240 = vld [vmem:[%s196 + $0xf8] sm:$0xf]
      %v241 = vld [vmem:[%s196 + $0xfc] sm:$0xff]
      %v242 = vld [vmem:[%s196 + $0x104] sm:$0xff]
      %v243 = vld [vmem:[%s196 + $0x10c] sm:$0xff]
      %v244 = vld [vmem:[%s196 + $0x114] sm:$0xf]
      %v245 = vld [vmem:[%s196 + $0x118] sm:$0xff]
      %v246 = vld [vmem:[%s196 + $0x120] sm:$0xff]
      %v247 = vld [vmem:[%s196 + $0x128] sm:$0xff]
      %v248 = vld [vmem:[%s196 + $0x130] sm:$0xf]
      %v249 = vld [vmem:[%s196 + $0x134] sm:$0xff]
      %v250 = vld [vmem:[%s196 + $0x13c] sm:$0xff]
      %v251 = vld [vmem:[%s196 + $0x144] sm:$0xff]
      %v252 = vld [vmem:[%s196 + $0x14c] sm:$0xf]
      %v253 = vld [vmem:[%s196 + $0x150] sm:$0xff]
      %v254 = vld [vmem:[%s196 + $0x158] sm:$0xff]
      %v255 = vld [vmem:[%s196 + $0x160] sm:$0xff]
      %v256 = vld [vmem:[%s196 + $0x168] sm:$0xf]
      %v257 = vld [vmem:[%s196 + $0x16c] sm:$0xff]
      %v258 = vld [vmem:[%s196 + $0x174] sm:$0xff]
      %v259 = vld [vmem:[%s196 + $0x17c] sm:$0xff]
      %v260 = vld [vmem:[%s196 + $0x184] sm:$0xf]
      %v261 = vld [vmem:[%s196 + $0x188] sm:$0xff]
      %v262 = vld [vmem:[%s196 + $0x190] sm:$0xff]
      %v263 = vld [vmem:[%s196 + $0x198] sm:$0xff]
      %v264 = vld [vmem:[%s196 + $0x1a0] sm:$0xf]
      %v265 = vld [vmem:[%s196 + $0x1a4] sm:$0xff]
      %v266 = vld [vmem:[%s196 + $0x1ac] sm:$0xff]
      %v267 = vld [vmem:[%s196 + $0x1b4] sm:$0xff]
      %v268 = vld [vmem:[%s196 + $0x1bc] sm:$0xf]
      %v269 = vld [vmem:[%s196 + $0x1c0] sm:$0xff]
      %v270 = vld [vmem:[%s196 + $0x1c8] sm:$0xff]
      %v271 = vld [vmem:[%s196 + $0x1d0] sm:$0xff]
      %v272 = vld [vmem:[%s196 + $0x1d8] sm:$0xf]
      %v273 = vld [vmem:[%s196 + $0x1dc] sm:$0xff]
      %v274 = vld [vmem:[%s196 + $0x1e4] sm:$0xff]
      %v275 = vld [vmem:[%s196 + $0x1ec] sm:$0xff]
      %v276 = vld [vmem:[%s196 + $0x1f4] sm:$0xf]
      %v277 = vld [vmem:[%s196 + $0x1f8] sm:$0xff]
      %v278 = vld [vmem:[%s196 + $0x200] sm:$0xff]
      %v279 = vld [vmem:[%s196 + $0x208] sm:$0xff]
      %v280 = vld [vmem:[%s196 + $0x210] sm:$0xf]
      %v281 = vld [vmem:[%s196 + $0x214] sm:$0xff]
      %v282 = vld [vmem:[%s196 + $0x21c] sm:$0xff]
      %v283 = vld [vmem:[%s196 + $0x224] sm:$0xff]
      %v284 = vld [vmem:[%s196 + $0x22c] sm:$0xf]
      %v285 = vld [vmem:[%s196 + $0x230] sm:$0xff]
      %v286 = vld [vmem:[%s196 + $0x238] sm:$0xff]
      %v287 = vld [vmem:[%s196 + $0x240] sm:$0xff]
      %v288 = vld [vmem:[%s196 + $0x248] sm:$0xf]
      %v289 = vld [vmem:[%s196 + $0x24c] sm:$0xff]
      %v290 = vld [vmem:[%s196 + $0x254] sm:$0xff]
      %v291 = vld [vmem:[%s196 + $0x25c] sm:$0xff]
      %v292 = vld [vmem:[%s196 + $0x264] sm:$0xf]
      %v293 = vld [vmem:[%s196 + $0x268] sm:$0xff]
      %v294 = vld [vmem:[%s196 + $0x270] sm:$0xff]
      %v295 = vld [vmem:[%s196 + $0x278] sm:$0xff]
      %v296 = vld [vmem:[%s196 + $0x280] sm:$0xf]
      %v297 = vld [vmem:[%s196 + $0x284] sm:$0xff]
      %v298 = vld [vmem:[%s196 + $0x28c] sm:$0xff]
      %v299 = vld [vmem:[%s196 + $0x294] sm:$0xff]
      %v300 = vld [vmem:[%s196 + $0x29c] sm:$0xf]
      %v301 = vld [vmem:[%s196 + $0x2a0] sm:$0xff]
      %v302 = vld [vmem:[%s196 + $0x2a8] sm:$0xff]
      %v303 = vld [vmem:[%s196 + $0x2b0] sm:$0xff]
      %v304 = vld [vmem:[%s196 + $0x2b8] sm:$0xf]
      %v305 = vld [vmem:[%s196 + $0x2bc] sm:$0xff]
      %v306 = vld [vmem:[%s196 + $0x2c4] sm:$0xff]
      %v307 = vld [vmem:[%s196 + $0x2cc] sm:$0xff]
      %v308 = vld [vmem:[%s196 + $0x2d4] sm:$0xf]
      %v309 = vld [vmem:[%s196 + $0x2d8] sm:$0xff]
      %v310 = vld [vmem:[%s196 + $0x2e0] sm:$0xff]
      %v311 = vld [vmem:[%s196 + $0x2e8] sm:$0xff]
      %v312 = vld [vmem:[%s196 + $0x2f0] sm:$0xf]
      %v313 = vld [vmem:[%s196 + $0x2f4] sm:$0xff]
      %v314 = vld [vmem:[%s196 + $0x2fc] sm:$0xff]
      %v315 = vld [vmem:[%s196 + $0x304] sm:$0xff]
      %v316 = vld [vmem:[%s196 + $0x30c] sm:$0xf]
      %v317 = vld [vmem:[%s196 + $0x310] sm:$0xff]
      %v318 = vld [vmem:[%s196 + $0x318] sm:$0xff]
      %v319 = vld [vmem:[%s196 + $0x320] sm:$0xff]
      %v320 = vld [vmem:[%s196 + $0x328] sm:$0xf]
      %v321 = vld [vmem:[%s196 + $0x32c] sm:$0xff]
      %v322 = vld [vmem:[%s196 + $0x334] sm:$0xff]
      %v323 = vld [vmem:[%s196 + $0x33c] sm:$0xff]
      %v324 = vld [vmem:[%s196 + $0x344] sm:$0xf]
      %v325 = vld [vmem:[%s196 + $0x348] sm:$0xff]
      %v326 = vld [vmem:[%s196 + $0x350] sm:$0xff]
      %v327 = vld [vmem:[%s196 + $0x358] sm:$0xff]
      %v328 = vld [vmem:[%s196 + $0x360] sm:$0xf]
      %v329 = vld [vmem:[%s196 + $0x364] sm:$0xff]
      %v330 = vld [vmem:[%s196 + $0x36c] sm:$0xff]
      %v331 = vld [vmem:[%s196 + $0x374] sm:$0xff]
      %v332 = vld [vmem:[%s196 + $0x37c] sm:$0xf]
      %v333 = vld [vmem:[%s196 + $0x380] sm:$0xff]
      %v334 = vld [vmem:[%s196 + $0x388] sm:$0xff]
      %v335 = vld [vmem:[%s196 + $0x390] sm:$0xff]
      %v336 = vld [vmem:[%s196 + $0x398] sm:$0xf]
      %v337 = vld [vmem:[%s196 + $0x39c] sm:$0xff]
      %v338 = vld [vmem:[%s196 + $0x3a4] sm:$0xff]
      %v339 = vld [vmem:[%s196 + $0x3ac] sm:$0xff]
      %v340 = vld [vmem:[%s196 + $0x3b4] sm:$0xf]
      %v341 = vld [vmem:[%s196 + $0x3b8] sm:$0xff]
      %v342 = vld [vmem:[%s196 + $0x3c0] sm:$0xff]
      %v343 = vld [vmem:[%s196 + $0x3c8] sm:$0xff]
      %v344 = vld [vmem:[%s196 + $0x3d0] sm:$0xf]
      %v345 = vld [vmem:[%s196 + $0x3d4] sm:$0xff]
      %v346 = vld [vmem:[%s196 + $0x3dc] sm:$0xff]
      %v347 = vld [vmem:[%s196 + $0x3e4] sm:$0xff]
      %v348 = vld [vmem:[%s196 + $0x3ec] sm:$0xf]
      %v349 = vld [vmem:[%s196 + $0x3f0] sm:$0xff]
      %v350 = vld [vmem:[%s196 + $0x3f8] sm:$0xff]
      %v351 = vld [vmem:[%s196 + $0x400] sm:$0xff]
      %v352 = vld [vmem:[%s196 + $0x408] sm:$0xf]
      %v353 = vld [vmem:[%s196 + $0x40c] sm:$0xff]
      %v354 = vld [vmem:[%s196 + $0x414] sm:$0xff]
      %v355 = vld [vmem:[%s196 + $0x41c] sm:$0xff]
      %v356 = vld [vmem:[%s196 + $0x424] sm:$0xf]
      %v357 = vld [vmem:[%s196 + $0x428] sm:$0xff]
      %v358 = vld [vmem:[%s196 + $0x430] sm:$0xff]
      %v359 = vld [vmem:[%s196 + $0x438] sm:$0xff]
      %v360 = vld [vmem:[%s196 + $0x440] sm:$0xf]
      %v361 = vld [vmem:[%s196 + $0x444] sm:$0xff]
      %v362 = vld [vmem:[%s196 + $0x44c] sm:$0xff]
      %v363 = vld [vmem:[%s196 + $0x454] sm:$0xff]
      %v364 = vld [vmem:[%s196 + $0x45c] sm:$0xf]
      %v365 = vld [vmem:[%s196 + $0x460] sm:$0xff]
      %v366 = vld [vmem:[%s196 + $0x468] sm:$0xff]
      %v367 = vld [vmem:[%s196 + $0x470] sm:$0xff]
      %v368 = vld [vmem:[%s196 + $0x478] sm:$0xf]
      %v369 = vld [vmem:[%s196 + $0x47c] sm:$0xff]
      %v370 = vld [vmem:[%s196 + $0x484] sm:$0xff]
      %v371 = vld [vmem:[%s196 + $0x48c] sm:$0xff]
      %v372 = vld [vmem:[%s196 + $0x494] sm:$0xf]
      %v373 = vld [vmem:[%s196 + $0x498] sm:$0xff]
      %v374 = vld [vmem:[%s196 + $0x4a0] sm:$0xff]
      %v375 = vld [vmem:[%s196 + $0x4a8] sm:$0xff]
      %v376 = vld [vmem:[%s196 + $0x4b0] sm:$0xf]
      %v377 = vld [vmem:[%s196 + $0x4b4] sm:$0xff]
      %v378 = vld [vmem:[%s196 + $0x4bc] sm:$0xff]
      %v379 = vld [vmem:[%s196 + $0x4c4] sm:$0xff]
      %v380 = vld [vmem:[%s196 + $0x4cc] sm:$0xf]
      %v381 = vld [vmem:[%s196 + $0x4d0] sm:$0xff]
      %v382 = vld [vmem:[%s196 + $0x4d8] sm:$0xff]
      %v383 = vld [vmem:[%s196 + $0x4e0] sm:$0xff]
      %v384 = vld [vmem:[%s196 + $0x4e8] sm:$0xf]
      %v385 = vld [vmem:[%s196 + $0x4ec] sm:$0xff]
      %v386 = vld [vmem:[%s196 + $0x4f4] sm:$0xff]
      %v387 = vld [vmem:[%s196 + $0x4fc] sm:$0xff]
      %v388 = vld [vmem:[%s196 + $0x504] sm:$0xf]
      %v389 = vld [vmem:[%s196 + $0x508] sm:$0xff]
      %v390 = vld [vmem:[%s196 + $0x510] sm:$0xff]
      %v391 = vld [vmem:[%s196 + $0x518] sm:$0xff]
      %v392 = vld [vmem:[%s196 + $0x520] sm:$0xf]
      %v393 = vld [vmem:[%s196 + $0x524] sm:$0xff]
      %v394 = vld [vmem:[%s196 + $0x52c] sm:$0xff]
      %v395 = vld [vmem:[%s196 + $0x534] sm:$0xff]
      %v396 = vld [vmem:[%s196 + $0x53c] sm:$0xf]
      %v397 = vld [vmem:[%s196 + $0x540] sm:$0xff]
      %v398 = vld [vmem:[%s196 + $0x548] sm:$0xff]
      %v399 = vld [vmem:[%s196 + $0x550] sm:$0xff]
      %v400 = vld [vmem:[%s196 + $0x558] sm:$0xf]
      %v401 = vld [vmem:[%s196 + $0x55c] sm:$0xff]
      %v402 = vld [vmem:[%s196 + $0x564] sm:$0xff]
      %v403 = vld [vmem:[%s196 + $0x56c] sm:$0xff]
      %v404 = vld [vmem:[%s196 + $0x574] sm:$0xf]
      %v405 = vld [vmem:[%s196 + $0x578] sm:$0xff]
      %v406 = vld [vmem:[%s196 + $0x580] sm:$0xff]
      %v407 = vld [vmem:[%s196 + $0x588] sm:$0xff]
      %v408 = vld [vmem:[%s196 + $0x590] sm:$0xf]
      %v409 = vld [vmem:[%s196 + $0x594] sm:$0xff]
      %v410 = vld [vmem:[%s196 + $0x59c] sm:$0xff]
      %v411 = vld [vmem:[%s196 + $0x5a4] sm:$0xff]
      %v412 = vld [vmem:[%s196 + $0x5ac] sm:$0xf]
      %v413 = vld [vmem:[%s196 + $0x5b0] sm:$0xff]
      %v414 = vld [vmem:[%s196 + $0x5b8] sm:$0xff]
      %v415 = vld [vmem:[%s196 + $0x5c0] sm:$0xff]
      %v416 = vld [vmem:[%s196 + $0x5c8] sm:$0xf]
      %v417 = vld [vmem:[%s196 + $0x5cc] sm:$0xff]
      %v418 = vld [vmem:[%s196 + $0x5d4] sm:$0xff]
      %v419 = vld [vmem:[%s196 + $0x5dc] sm:$0xff]
      %v420 = vld [vmem:[%s196 + $0x5e4] sm:$0xf]
      %v421 = vld [vmem:[%s196 + $0x5e8] sm:$0xff]
      %v422 = vld [vmem:[%s196 + $0x5f0] sm:$0xff]
      %v423 = vld [vmem:[%s196 + $0x5f8] sm:$0xff]
      %v424 = vld [vmem:[%s196 + $0x600] sm:$0xf]
      %v425 = vld [vmem:[%s196 + $0x604] sm:$0xff]
      %v426 = vld [vmem:[%s196 + $0x60c] sm:$0xff]
      %v427 = vld [vmem:[%s196 + $0x614] sm:$0xff]
      %v428 = vld [vmem:[%s196 + $0x61c] sm:$0xf]
      %v429 = vld [vmem:[%s196 + $0x620] sm:$0xff]
      %v430 = vld [vmem:[%s196 + $0x628] sm:$0xff]
      %v431 = vld [vmem:[%s196 + $0x630] sm:$0xff]
      %v432 = vld [vmem:[%s196 + $0x638] sm:$0xf]
      %v433 = vld [vmem:[%s196 + $0x63c] sm:$0xff]
      %v434 = vld [vmem:[%s196 + $0x644] sm:$0xff]
      %v435 = vld [vmem:[%s196 + $0x64c] sm:$0xff]
      %v436 = vld [vmem:[%s196 + $0x654] sm:$0xf]
      %v437 = vld [vmem:[%s196 + $0x658] sm:$0xff]
      %v438 = vld [vmem:[%s196 + $0x660] sm:$0xff]
      %v439 = vld [vmem:[%s196 + $0x668] sm:$0xff]
      %v440 = vld [vmem:[%s196 + $0x670] sm:$0xf]
      %v441 = vld [vmem:[%s196 + $0x674] sm:$0xff]
      %v442 = vld [vmem:[%s196 + $0x67c] sm:$0xff]
      %v443 = vld [vmem:[%s196 + $0x684] sm:$0xff]
      %v444 = vld [vmem:[%s196 + $0x68c] sm:$0xf]
      %v445 = vld [vmem:[%s196 + $0x690] sm:$0xff]
      %v446 = vld [vmem:[%s196 + $0x698] sm:$0xff]
      %v447 = vld [vmem:[%s196 + $0x6a0] sm:$0xff]
      %v448 = vld [vmem:[%s196 + $0x6a8] sm:$0xf]
      %v449 = vld [vmem:[%s196 + $0x6ac] sm:$0xff]
      %v450 = vld [vmem:[%s196 + $0x6b4] sm:$0xff]
      %v451 = vld [vmem:[%s196 + $0x6bc] sm:$0xff]
      %v452 = vld [vmem:[%s196 + $0x6c4] sm:$0xf]
      %v453 = vld [vmem:[%s196 + $0x6c8] sm:$0xff]
      %v454 = vld [vmem:[%s196 + $0x6d0] sm:$0xff]
      %v455 = vld [vmem:[%s196 + $0x6d8] sm:$0xff]
      %v456 = vld [vmem:[%s196 + $0x6e0] sm:$0xf]
      %v457 = vld [vmem:[%s196 + $0x6e4] sm:$0xff]
      %v458 = vld [vmem:[%s196 + $0x6ec] sm:$0xff]
      %v459 = vld [vmem:[%s196 + $0x6f4] sm:$0xff]
      %v460 = vld [vmem:[%s196 + $0x6fc] sm:$0xf]
      %v461 = vld [vmem:[%s196 + $0x700] sm:$0xff]
      %v462 = vld [vmem:[%s196 + $0x708] sm:$0xff]
      %v463 = vld [vmem:[%s196 + $0x710] sm:$0xff]
      %v464 = vld [vmem:[%s196 + $0x718] sm:$0xf]
      %v465 = vld [vmem:[%s196 + $0x71c] sm:$0xff]
      %v466 = vld [vmem:[%s196 + $0x724] sm:$0xff]
      %v467 = vld [vmem:[%s196 + $0x72c] sm:$0xff]
      %v468 = vld [vmem:[%s196 + $0x734] sm:$0xf]
      %v469 = vld [vmem:[%s196 + $0x738] sm:$0xff]
      %v470 = vld [vmem:[%s196 + $0x740] sm:$0xff]
      %v471 = vld [vmem:[%s196 + $0x748] sm:$0xff]
      %v472 = vld [vmem:[%s196 + $0x750] sm:$0xf]
      %v473 = vld [vmem:[%s196 + $0x754] sm:$0xff]
      %v474 = vld [vmem:[%s196 + $0x75c] sm:$0xff]
      %v475 = vld [vmem:[%s196 + $0x764] sm:$0xff]
      %v476 = vld [vmem:[%s196 + $0x76c] sm:$0xf]
      %v477 = vld [vmem:[%s196 + $0x770] sm:$0xff]
      %v478 = vld [vmem:[%s196 + $0x778] sm:$0xff]
      %v479 = vld [vmem:[%s196 + $0x780] sm:$0xff]
      %v480 = vld [vmem:[%s196 + $0x788] sm:$0xf]
      %v481 = vld [vmem:[%s196 + $0x78c] sm:$0xff]
      %v482 = vld [vmem:[%s196 + $0x794] sm:$0xff]
      %v483 = vld [vmem:[%s196 + $0x79c] sm:$0xff]
      %v484 = vld [vmem:[%s196 + $0x7a4] sm:$0xf]
      %v485 = vld [vmem:[%s196 + $0x7a8] sm:$0xff]
      %v486 = vld [vmem:[%s196 + $0x7b0] sm:$0xff]
      %v487 = vld [vmem:[%s196 + $0x7b8] sm:$0xff]
      %v488 = vld [vmem:[%s196 + $0x7c0] sm:$0xf]
      %v489 = vld [vmem:[%s196 + $0x7c4] sm:$0xff]
      %v490 = vld [vmem:[%s196 + $0x7cc] sm:$0xff]
      %v491 = vld [vmem:[%s196 + $0x7d4] sm:$0xff]
      %v492 = vld [vmem:[%s196 + $0x7dc] sm:$0xf]
      %v493 = vld [vmem:[%s196 + $0x7e0] sm:$0xff]
      %v494 = vld [vmem:[%s196 + $0x7e8] sm:$0xff]
      %v495 = vld [vmem:[%s196 + $0x7f0] sm:$0xff]
      %v496 = vld [vmem:[%s196 + $0x7f8] sm:$0xf]
      %v497 = vld [vmem:[%s196 + $0x7fc] sm:$0xff]
      %v498 = vld [vmem:[%s196 + $0x804] sm:$0xff]
      %v499 = vld [vmem:[%s196 + $0x80c] sm:$0xff]
      %v500 = vld [vmem:[%s196 + $0x814] sm:$0xf]
      %v501 = vld [vmem:[%s196 + $0x818] sm:$0xff]
      %v502 = vld [vmem:[%s196 + $0x820] sm:$0xff]
      %v503 = vld [vmem:[%s196 + $0x828] sm:$0xff]
      %v504 = vld [vmem:[%s196 + $0x830] sm:$0xf]
      %v505 = vld [vmem:[%s196 + $0x834] sm:$0xff]
      %v506 = vld [vmem:[%s196 + $0x83c] sm:$0xff]
      %v507 = vld [vmem:[%s196 + $0x844] sm:$0xff]
      %v508 = vld [vmem:[%s196 + $0x84c] sm:$0xf]
      %v509 = vld [vmem:[%s196 + $0x850] sm:$0xff]
      %v510 = vld [vmem:[%s196 + $0x858] sm:$0xff]
      %v511 = vld [vmem:[%s196 + $0x860] sm:$0xff]
      %v512 = vld [vmem:[%s196 + $0x868] sm:$0xf]
      %v513 = vld [vmem:[%s196 + $0x86c] sm:$0xff]
      %v514 = vld [vmem:[%s196 + $0x874] sm:$0xff]
      %v515 = vld [vmem:[%s196 + $0x87c] sm:$0xff]
      %v516 = vld [vmem:[%s196 + $0x884] sm:$0xf]
      %v517 = vld [vmem:[%s196 + $0x888] sm:$0xff]
      %v518 = vld [vmem:[%s196 + $0x890] sm:$0xff]
      %v519 = vld [vmem:[%s196 + $0x898] sm:$0xff]
      %v520 = vld [vmem:[%s196 + $0x8a0] sm:$0xf]
      %v521 = vld [vmem:[%s196 + $0x8a4] sm:$0xff]
      %v522 = vld [vmem:[%s196 + $0x8ac] sm:$0xff]
      %v523 = vld [vmem:[%s196 + $0x8b4] sm:$0xff]
      %v524 = vld [vmem:[%s196 + $0x8bc] sm:$0xf]
      %v525 = vld [vmem:[%s196 + $0x8c0] sm:$0xff]
      %v526 = vld [vmem:[%s196 + $0x8c8] sm:$0xff]
      %v527 = vld [vmem:[%s196 + $0x8d0] sm:$0xff]
      %v528 = vld [vmem:[%s196 + $0x8d8] sm:$0xf]
      %v529 = vld [vmem:[%s196 + $0x8dc] sm:$0xff]
      %v530 = vld [vmem:[%s196 + $0x8e4] sm:$0xff]
      %v531 = vld [vmem:[%s196 + $0x8ec] sm:$0xff]
      %v532 = vld [vmem:[%s196 + $0x8f4] sm:$0xf]
      %v533 = vld [vmem:[%s196 + $0x8f8] sm:$0xff]
      %v534 = vld [vmem:[%s196 + $0x900] sm:$0xff]
      %v535 = vld [vmem:[%s196 + $0x908] sm:$0xff]
      %v536 = vld [vmem:[%s196 + $0x910] sm:$0xf]
      %v537 = vld [vmem:[%s196 + $0x914] sm:$0xff]
      %v538 = vld [vmem:[%s196 + $0x91c] sm:$0xff]
      %v539 = vld [vmem:[%s196 + $0x924] sm:$0xff]
      %v540 = vld [vmem:[%s196 + $0x92c] sm:$0xf]
      %v541 = vld [vmem:[%s196 + $0x930] sm:$0xff]
      %v542 = vld [vmem:[%s196 + $0x938] sm:$0xff]
      %v543 = vld [vmem:[%s196 + $0x940] sm:$0xff]
      %v544 = vld [vmem:[%s196 + $0x948] sm:$0xf]
      %v545 = vld [vmem:[%s196 + $0x94c] sm:$0xff]
      %v546 = vld [vmem:[%s196 + $0x954] sm:$0xff]
      %v547 = vld [vmem:[%s196 + $0x95c] sm:$0xff]
      %v548 = vld [vmem:[%s196 + $0x964] sm:$0xf]
      %v549 = vld [vmem:[%s196 + $0x968] sm:$0xff]
      %v550 = vld [vmem:[%s196 + $0x970] sm:$0xff]
      %v551 = vld [vmem:[%s196 + $0x978] sm:$0xff]
      %v552 = vld [vmem:[%s196 + $0x980] sm:$0xf]
      %v553 = vld [vmem:[%s196 + $0x984] sm:$0xff]
      %v554 = vld [vmem:[%s196 + $0x98c] sm:$0xff]
      %v555 = vld [vmem:[%s196 + $0x994] sm:$0xff]
      %v556 = vld [vmem:[%s196 + $0x99c] sm:$0xf]
      %v557 = vld [vmem:[%s196 + $0x9a0] sm:$0xff]
      %v558 = vld [vmem:[%s196 + $0x9a8] sm:$0xff]
      %v559 = vld [vmem:[%s196 + $0x9b0] sm:$0xff]
      %v560 = vld [vmem:[%s196 + $0x9b8] sm:$0xf]
      %v561 = vld [vmem:[%s196 + $0x9bc] sm:$0xff]
      %v562 = vld [vmem:[%s196 + $0x9c4] sm:$0xff]
      %v563 = vld [vmem:[%s196 + $0x9cc] sm:$0xff]
      %v564 = vld [vmem:[%s196 + $0x9d4] sm:$0xf]
      %v565 = vld [vmem:[%s196 + $0x9d8] sm:$0xff]
      %v566 = vld [vmem:[%s196 + $0x9e0] sm:$0xff]
      %v567 = vld [vmem:[%s196 + $0x9e8] sm:$0xff]
      %v568 = vld [vmem:[%s196 + $0x9f0] sm:$0xf]
      %v569 = vld [vmem:[%s196 + $0x9f4] sm:$0xff]
      %v570 = vld [vmem:[%s196 + $0x9fc] sm:$0xff]
      %v571 = vld [vmem:[%s196 + $0xa04] sm:$0xff]
      %v572 = vld [vmem:[%s196 + $0xa0c] sm:$0xf]
      %v573 = vld [vmem:[%s196 + $0xa10] sm:$0xff]
      %v574 = vld [vmem:[%s196 + $0xa18] sm:$0xff]
      %v575 = vld [vmem:[%s196 + $0xa20] sm:$0xff]
      %v576 = vld [vmem:[%s196 + $0xa28] sm:$0xf]
      %v577 = vld [vmem:[%s196 + $0xa2c] sm:$0xff]
      %v578 = vld [vmem:[%s196 + $0xa34] sm:$0xff]
      %v579 = vld [vmem:[%s196 + $0xa3c] sm:$0xff]
      %v580 = vld [vmem:[%s196 + $0xa44] sm:$0xf]
      %v581 = vld [vmem:[%s196 + $0xa48] sm:$0xff]
      %v582 = vld [vmem:[%s196 + $0xa50] sm:$0xff]
      %v583 = vld [vmem:[%s196 + $0xa58] sm:$0xff]
      %v584 = vld [vmem:[%s196 + $0xa60] sm:$0xf]
      %v585 = vld [vmem:[%s196 + $0xa64] sm:$0xff]
      %v586 = vld [vmem:[%s196 + $0xa6c] sm:$0xff]
      %v587 = vld [vmem:[%s196 + $0xa74] sm:$0xff]
      %v588 = vld [vmem:[%s196 + $0xa7c] sm:$0xf]
      %v589 = vld [vmem:[%s196 + $0xa80] sm:$0xff]
      %v590 = vld [vmem:[%s196 + $0xa88] sm:$0xff]
      %v591 = vld [vmem:[%s196 + $0xa90] sm:$0xff]
      %v592 = vld [vmem:[%s196 + $0xa98] sm:$0xf]
      %v593 = vld [vmem:[%s196 + $0xa9c] sm:$0xff]
      %v594 = vld [vmem:[%s196 + $0xaa4] sm:$0xff]
      %v595 = vld [vmem:[%s196 + $0xaac] sm:$0xff]
      %v596 = vld [vmem:[%s196 + $0xab4] sm:$0xf]
      %v597 = vld [vmem:[%s196 + $0xab8] sm:$0xff]
      %v598 = vld [vmem:[%s196 + $0xac0] sm:$0xff]
      %v599 = vld [vmem:[%s196 + $0xac8] sm:$0xff]
      %v600 = vld [vmem:[%s196 + $0xad0] sm:$0xf]
      %v601 = vld [vmem:[%s196 + $0xad4] sm:$0xff]
      %v602 = vld [vmem:[%s196 + $0xadc] sm:$0xff]
      %v603 = vld [vmem:[%s196 + $0xae4] sm:$0xff]
      %v604 = vld [vmem:[%s196 + $0xaec] sm:$0xf]
      %v605 = vld [vmem:[%s196 + $0xaf0] sm:$0xff]
      %v606 = vld [vmem:[%s196 + $0xaf8] sm:$0xff]
      %v607 = vld [vmem:[%s196 + $0xb00] sm:$0xff]
      %v608 = vld [vmem:[%s196 + $0xb08] sm:$0xf]
      %v609 = vld [vmem:[%s196 + $0xb0c] sm:$0xff]
      %v610 = vld [vmem:[%s196 + $0xb14] sm:$0xff]
      %v611 = vld [vmem:[%s196 + $0xb1c] sm:$0xff]
      %v612 = vld [vmem:[%s196 + $0xb24] sm:$0xf]
      %v613 = vld [vmem:[%s196 + $0xb28] sm:$0xff]
      %v614 = vld [vmem:[%s196 + $0xb30] sm:$0xff]
      %v615 = vld [vmem:[%s196 + $0xb38] sm:$0xff]
      %v616 = vld [vmem:[%s196 + $0xb40] sm:$0xf]
      %v617 = vld [vmem:[%s196 + $0xb44] sm:$0xff]
      %v618 = vld [vmem:[%s196 + $0xb4c] sm:$0xff]
      %v619 = vld [vmem:[%s196 + $0xb54] sm:$0xff]
      %v620 = vld [vmem:[%s196 + $0xb5c] sm:$0xf]
      %v621 = vld [vmem:[%s196 + $0xb60] sm:$0xff]
      %v622 = vld [vmem:[%s196 + $0xb68] sm:$0xff]
      %v623 = vld [vmem:[%s196 + $0xb70] sm:$0xff]
      %v624 = vld [vmem:[%s196 + $0xb78] sm:$0xf]
      %v625 = vld [vmem:[%s196 + $0xb7c] sm:$0xff]
      %v626 = vld [vmem:[%s196 + $0xb84] sm:$0xff]
      %v627 = vld [vmem:[%s196 + $0xb8c] sm:$0xff]
      %v628 = vld [vmem:[%s196 + $0xb94] sm:$0xf]
      %v629 = vld [vmem:[%s196 + $0xb98] sm:$0xff]
      %v630 = vld [vmem:[%s196 + $0xba0] sm:$0xff]
      %v631 = vld [vmem:[%s196 + $0xba8] sm:$0xff]
      %v632 = vld [vmem:[%s196 + $0xbb0] sm:$0xf]
      %v633 = vld [vmem:[%s196 + $0xbb4] sm:$0xff]
      %v634 = vld [vmem:[%s196 + $0xbbc] sm:$0xff]
      %v635 = vld [vmem:[%s196 + $0xbc4] sm:$0xff]
      %v636 = vld [vmem:[%s196 + $0xbcc] sm:$0xf]
      %v637 = vld [vmem:[%s196 + $0xbd0] sm:$0xff]
      %v638 = vld [vmem:[%s196 + $0xbd8] sm:$0xff]
      %v639 = vld [vmem:[%s196 + $0xbe0] sm:$0xff]
      %v640 = vld [vmem:[%s196 + $0xbe8] sm:$0xf]
      %v641 = vld [vmem:[%s196 + $0xbec] sm:$0xff]
      %v642 = vld [vmem:[%s196 + $0xbf4] sm:$0xff]
      %v643 = vld [vmem:[%s196 + $0xbfc] sm:$0xff]
      %v644 = vld [vmem:[%s196 + $0xc04] sm:$0xf]
      %v645 = vld [vmem:[%s196 + $0xc08] sm:$0xff]
      %v646 = vld [vmem:[%s196 + $0xc10] sm:$0xff]
      %v647 = vld [vmem:[%s196 + $0xc18] sm:$0xff]
      %v648 = vld [vmem:[%s196 + $0xc20] sm:$0xf]
      %v649 = vld [vmem:[%s196 + $0xc24] sm:$0xff]
      %v650 = vld [vmem:[%s196 + $0xc2c] sm:$0xff]
      %v651 = vld [vmem:[%s196 + $0xc34] sm:$0xff]
      %v652 = vld [vmem:[%s196 + $0xc3c] sm:$0xf]
      %v653 = vld [vmem:[%s196 + $0xc40] sm:$0xff]
      %v654 = vld [vmem:[%s196 + $0xc48] sm:$0xff]
      %v655 = vld [vmem:[%s196 + $0xc50] sm:$0xff]
      %v656 = vld [vmem:[%s196 + $0xc58] sm:$0xf]
      %v657 = vld [vmem:[%s196 + $0xc5c] sm:$0xff]
      %v658 = vld [vmem:[%s196 + $0xc64] sm:$0xff]
      %v659 = vld [vmem:[%s196 + $0xc6c] sm:$0xff]
      %v660 = vld [vmem:[%s196 + $0xc74] sm:$0xf]
      %v661 = vld [vmem:[%s196 + $0xc78] sm:$0xff]
      %v662 = vld [vmem:[%s196 + $0xc80] sm:$0xff]
      %v663 = vld [vmem:[%s196 + $0xc88] sm:$0xff]
      %v664 = vld [vmem:[%s196 + $0xc90] sm:$0xf]
      %v665 = vld [vmem:[%s196 + $0xc94] sm:$0xff]
      %v666 = vld [vmem:[%s196 + $0xc9c] sm:$0xff]
      %v667 = vld [vmem:[%s196 + $0xca4] sm:$0xff]
      %v668 = vld [vmem:[%s196 + $0xcac] sm:$0xf]
      %v669 = vld [vmem:[%s196 + $0xcb0] sm:$0xff]
      %v670 = vld [vmem:[%s196 + $0xcb8] sm:$0xff]
      %v671 = vld [vmem:[%s196 + $0xcc0] sm:$0xff]
      %v672 = vld [vmem:[%s196 + $0xcc8] sm:$0xf]
      %v673 = vld [vmem:[%s196 + $0xccc] sm:$0xff]
      %v674 = vld [vmem:[%s196 + $0xcd4] sm:$0xff]
      %v675 = vld [vmem:[%s196 + $0xcdc] sm:$0xff]
      %v676 = vld [vmem:[%s196 + $0xce4] sm:$0xf]
      %v677 = vld [vmem:[%s196 + $0xce8] sm:$0xff]
      %v678 = vld [vmem:[%s196 + $0xcf0] sm:$0xff]
      %v679 = vld [vmem:[%s196 + $0xcf8] sm:$0xff]
      %v680 = vld [vmem:[%s196 + $0xd00] sm:$0xf]
      %v681 = vld [vmem:[%s196 + $0xd04] sm:$0xff]
      %v682 = vld [vmem:[%s196 + $0xd0c] sm:$0xff]
      %v683 = vld [vmem:[%s196 + $0xd14] sm:$0xff]
      %v684 = vld [vmem:[%s196 + $0xd1c] sm:$0xf]
      %v685 = vld [vmem:[%s196 + $0xd20] sm:$0xff]
      %v686 = vld [vmem:[%s196 + $0xd28] sm:$0xff]
      %v687 = vld [vmem:[%s196 + $0xd30] sm:$0xff]
      %v688 = vld [vmem:[%s196 + $0xd38] sm:$0xf]
      %v689 = vld [vmem:[%s196 + $0xd3c] sm:$0xff]
      %v690 = vld [vmem:[%s196 + $0xd44] sm:$0xff]
      %v691 = vld [vmem:[%s196 + $0xd4c] sm:$0xff]
      %v692 = vld [vmem:[%s196 + $0xd54] sm:$0xf]
      %v693 = vld [vmem:[%s196 + $0xd58] sm:$0xff]
      %v694 = vld [vmem:[%s196 + $0xd60] sm:$0xff]
      %v695 = vld [vmem:[%s196 + $0xd68] sm:$0xff]
      %v696 = vld [vmem:[%s196 + $0xd70] sm:$0xf]
      %v697 = vld [vmem:[%s196 + $0xd74] sm:$0xff]
      %v698 = vld [vmem:[%s196 + $0xd7c] sm:$0xff]
      %v699 = vld [vmem:[%s196 + $0xd84] sm:$0xff]
      %v700 = vld [vmem:[%s196 + $0xd8c] sm:$0xf]
      %v701 = vld [vmem:[%s196 + $0xd90] sm:$0xff]
      %v702 = vld [vmem:[%s196 + $0xd98] sm:$0xff]
      %v703 = vld [vmem:[%s196 + $0xda0] sm:$0xff]
      %v704 = vld [vmem:[%s196 + $0xda8] sm:$0xf]
      %v705 = vld [vmem:[%s196 + $0xdac] sm:$0xff]
      %v706 = vld [vmem:[%s196 + $0xdb4] sm:$0xff]
      %v707 = vld [vmem:[%s196 + $0xdbc] sm:$0xff]
      %v708 = vld [vmem:[%s196 + $0xdc4] sm:$0xf]
      %v709 = vld [vmem:[%s196 + $0xdc8] sm:$0xff]
      %v710 = vld [vmem:[%s196 + $0xdd0] sm:$0xff]
      %v711 = vld [vmem:[%s196 + $0xdd8] sm:$0xff]
      %v712 = vld [vmem:[%s196 + $0xde0] sm:$0xf]
      %v713 = vld [vmem:[%s196 + $0xde4] sm:$0xff]
      %v714 = vld [vmem:[%s196 + $0xdec] sm:$0xff]
      %v715 = vld [vmem:[%s196 + $0xdf4] sm:$0xff]
      %v716 = vld [vmem:[%s196 + $0xdfc] sm:$0xf]
      %v717 = vld [vmem:[%s1] sm:$0xf]
      %v718 = vld [vmem:[%s1 + $0x4] sm:$0xf]
      %v719 = vld [vmem:[%s1 + $0x8] sm:$0xf]
      %v720 = vld [vmem:[%s1 + $0xc] sm:$0xf]
      %v721 = vld [vmem:[%s1 + $0x10] sm:$0xf]
      %v722 = vld [vmem:[%s1 + $0x14] sm:$0xf]
      %v723 = vld [vmem:[%s1 + $0x18] sm:$0xf]
      %v724 = vld [vmem:[%s1 + $0x1c] sm:$0xf]
      %v725 = vld [vmem:[%s1 + $0x20] sm:$0xf]
      %v726 = vld [vmem:[%s1 + $0x24] sm:$0xf]
      %v727 = vld [vmem:[%s1 + $0x28] sm:$0xf]
      %v728 = vld [vmem:[%s1 + $0x2c] sm:$0xf]
      %v729 = vld [vmem:[%s1 + $0x30] sm:$0xf]
      %v730 = vld [vmem:[%s1 + $0x34] sm:$0xf]
      %v731 = vld [vmem:[%s1 + $0x38] sm:$0xf]
      %v732 = vld [vmem:[%s1 + $0x3c] sm:$0xf]
      %v733 = vld [vmem:[%s1 + $0x40] sm:$0xf]
      %v734 = vld [vmem:[%s1 + $0x44] sm:$0xf]
      %v735 = vld [vmem:[%s1 + $0x48] sm:$0xf]
      %v736 = vld [vmem:[%s1 + $0x4c] sm:$0xf]
      %v737 = vld [vmem:[%s1 + $0x50] sm:$0xf]
      %v738 = vld [vmem:[%s1 + $0x54] sm:$0xf]
      %v739 = vld [vmem:[%s1 + $0x58] sm:$0xf]
      %v740 = vld [vmem:[%s1 + $0x5c] sm:$0xf]
      %v741 = vld [vmem:[%s1 + $0x60] sm:$0xf]
      %v742 = vld [vmem:[%s1 + $0x64] sm:$0xf]
      %v743 = vld [vmem:[%s1 + $0x68] sm:$0xf]
      %v744 = vld [vmem:[%s1 + $0x6c] sm:$0xf]
      %v745 = vld [vmem:[%s1 + $0x70] sm:$0xf]
      %v746 = vld [vmem:[%s1 + $0x74] sm:$0xf]
      %v747 = vld [vmem:[%s1 + $0x78] sm:$0xf]
      %v748 = vld [vmem:[%s1 + $0x7c] sm:$0xf]
      %v749 = vld [vmem:[%s1 + $0x80] sm:$0xf]
      %v750 = vld [vmem:[%s1 + $0x84] sm:$0xf]
      %v751 = vld [vmem:[%s1 + $0x88] sm:$0xf]
      %v752 = vld [vmem:[%s1 + $0x8c] sm:$0xf]
      %v753 = vld [vmem:[%s1 + $0x90] sm:$0xf]
      %v754 = vld [vmem:[%s1 + $0x94] sm:$0xf]
      %v755 = vld [vmem:[%s1 + $0x98] sm:$0xf]
      %v756 = vld [vmem:[%s1 + $0x9c] sm:$0xf]
      %v757 = vld [vmem:[%s1 + $0xa0] sm:$0xf]
      %v758 = vld [vmem:[%s1 + $0xa4] sm:$0xf]
      %v759 = vld [vmem:[%s1 + $0xa8] sm:$0xf]
      %v760 = vld [vmem:[%s1 + $0xac] sm:$0xf]
      %v761 = vld [vmem:[%s1 + $0xb0] sm:$0xf]
      %v762 = vld [vmem:[%s1 + $0xb4] sm:$0xf]
      %v763 = vld [vmem:[%s1 + $0xb8] sm:$0xf]
      %v764 = vld [vmem:[%s1 + $0xbc] sm:$0xf]
      %v765 = vld [vmem:[%s1 + $0xc0] sm:$0xf]
      %v766 = vld [vmem:[%s1 + $0xc4] sm:$0xf]
      %v767 = vld [vmem:[%s1 + $0xc8] sm:$0xf]
      %v768 = vld [vmem:[%s1 + $0xcc] sm:$0xf]
      %v769 = vld [vmem:[%s1 + $0xd0] sm:$0xf]
      %v770 = vld [vmem:[%s1 + $0xd4] sm:$0xf]
      %v771 = vld [vmem:[%s1 + $0xd8] sm:$0xf]
      %v772 = vld [vmem:[%s1 + $0xdc] sm:$0xf]
      %v773 = vld [vmem:[%s1 + $0xe0] sm:$0xf]
      %v774 = vld [vmem:[%s1 + $0xe4] sm:$0xf]
      %v775 = vld [vmem:[%s1 + $0xe8] sm:$0xf]
      %v776 = vld [vmem:[%s1 + $0xec] sm:$0xf]
      %v777 = vld [vmem:[%s1 + $0xf0] sm:$0xf]
      %v778 = vld [vmem:[%s1 + $0xf4] sm:$0xf]
      %v779 = vld [vmem:[%s1 + $0xf8] sm:$0xf]
      %v780 = vld [vmem:[%s1 + $0xfc] sm:$0xf]
      %v781 = vld [vmem:[%s1 + $0x100] sm:$0xf]
      %v782 = vld [vmem:[%s1 + $0x104] sm:$0xf]
      %v783 = vld [vmem:[%s1 + $0x108] sm:$0xf]
      %v784 = vld [vmem:[%s1 + $0x10c] sm:$0xf]
      %v785 = vld [vmem:[%s1 + $0x110] sm:$0xf]
      %v786 = vld [vmem:[%s1 + $0x114] sm:$0xf]
      %v787 = vld [vmem:[%s1 + $0x118] sm:$0xf]
      %v788 = vld [vmem:[%s1 + $0x11c] sm:$0xf]
      %v789 = vld [vmem:[%s1 + $0x120] sm:$0xf]
      %v790 = vld [vmem:[%s1 + $0x124] sm:$0xf]
      %v791 = vld [vmem:[%s1 + $0x128] sm:$0xf]
      %v792 = vld [vmem:[%s1 + $0x12c] sm:$0xf]
      %v793 = vld [vmem:[%s1 + $0x130] sm:$0xf]
      %v794 = vld [vmem:[%s1 + $0x134] sm:$0xf]
      %v795 = vld [vmem:[%s1 + $0x138] sm:$0xf]
      %v796 = vld [vmem:[%s1 + $0x13c] sm:$0xf]
      %v797 = vld [vmem:[%s1 + $0x140] sm:$0xf]
      %v798 = vld [vmem:[%s1 + $0x144] sm:$0xf]
      %v799 = vld [vmem:[%s1 + $0x148] sm:$0xf]
      %v800 = vld [vmem:[%s1 + $0x14c] sm:$0xf]
      %v801 = vld [vmem:[%s1 + $0x150] sm:$0xf]
      %v802 = vld [vmem:[%s1 + $0x154] sm:$0xf]
      %v803 = vld [vmem:[%s1 + $0x158] sm:$0xf]
      %v804 = vld [vmem:[%s1 + $0x15c] sm:$0xf]
      %v805 = vld [vmem:[%s1 + $0x160] sm:$0xf]
      %v806 = vld [vmem:[%s1 + $0x164] sm:$0xf]
      %v807 = vld [vmem:[%s1 + $0x168] sm:$0xf]
      %v808 = vld [vmem:[%s1 + $0x16c] sm:$0xf]
      %v809 = vld [vmem:[%s1 + $0x170] sm:$0xf]
      %v810 = vld [vmem:[%s1 + $0x174] sm:$0xf]
      %v811 = vld [vmem:[%s1 + $0x178] sm:$0xf]
      %v812 = vld [vmem:[%s1 + $0x17c] sm:$0xf]
      %v813 = vld [vmem:[%s1 + $0x180] sm:$0xf]
      %v814 = vld [vmem:[%s1 + $0x184] sm:$0xf]
      %v1327 = vunpack.c.l.b16 %v205
      %v1328 = vunpack.c.h.b16 %v205
      %v1329 = vunpack.c.l.b16 %v206
      %v1330 = vunpack.c.h.b16 %v206
      %v1331 = vunpack.c.l.b16 %v207
      %v1332 = vunpack.c.h.b16 %v207
      %v1333 = vunpack.c.l.b16 %v208
      %v1334 = vunpack.c.l.b16 %v209
      %v1335 = vunpack.c.h.b16 %v209
      %v1336 = vunpack.c.l.b16 %v210
      %v1337 = vunpack.c.h.b16 %v210
      %v1338 = vunpack.c.l.b16 %v211
      %v1339 = vunpack.c.h.b16 %v211
      %v1340 = vunpack.c.l.b16 %v212
      %v1341 = vunpack.c.l.b16 %v213
      %v1342 = vunpack.c.h.b16 %v213
      %v1343 = vunpack.c.l.b16 %v214
      %v1344 = vunpack.c.h.b16 %v214
      %v1345 = vunpack.c.l.b16 %v215
      %v1346 = vunpack.c.h.b16 %v215
      %v1347 = vunpack.c.l.b16 %v216
      %v1348 = vunpack.c.l.b16 %v217
      %v1349 = vunpack.c.h.b16 %v217
      %v1350 = vunpack.c.l.b16 %v218
      %v1351 = vunpack.c.h.b16 %v218
      %v1352 = vunpack.c.l.b16 %v219
      %v1353 = vunpack.c.h.b16 %v219
      %v1354 = vunpack.c.l.b16 %v220
      %v1355 = vunpack.c.l.b16 %v221
      %v1356 = vunpack.c.h.b16 %v221
      %v1357 = vunpack.c.l.b16 %v222
      %v1358 = vunpack.c.h.b16 %v222
      %v1359 = vunpack.c.l.b16 %v223
      %v1360 = vunpack.c.h.b16 %v223
      %v1361 = vunpack.c.l.b16 %v224
      %v1362 = vunpack.c.l.b16 %v225
      %v1363 = vunpack.c.h.b16 %v225
      %v1364 = vunpack.c.l.b16 %v226
      %v1365 = vunpack.c.h.b16 %v226
      %v1366 = vunpack.c.l.b16 %v227
      %v1367 = vunpack.c.h.b16 %v227
      %v1368 = vunpack.c.l.b16 %v228
      %v1369 = vunpack.c.l.b16 %v229
      %v1370 = vunpack.c.h.b16 %v229
      %v1371 = vunpack.c.l.b16 %v230
      %v1372 = vunpack.c.h.b16 %v230
      %v1373 = vunpack.c.l.b16 %v231
      %v1374 = vunpack.c.h.b16 %v231
      %v1375 = vunpack.c.l.b16 %v232
      %v1376 = vunpack.c.l.b16 %v233
      %v1377 = vunpack.c.h.b16 %v233
      %v1378 = vunpack.c.l.b16 %v234
      %v1379 = vunpack.c.h.b16 %v234
      %v1380 = vunpack.c.l.b16 %v235
      %v1381 = vunpack.c.h.b16 %v235
      %v1382 = vunpack.c.l.b16 %v236
      %v1383 = vunpack.c.l.b16 %v237
      %v1384 = vunpack.c.h.b16 %v237
      %v1385 = vunpack.c.l.b16 %v238
      %v1386 = vunpack.c.h.b16 %v238
      %v1387 = vunpack.c.l.b16 %v239
      %v1388 = vunpack.c.h.b16 %v239
      %v1389 = vunpack.c.l.b16 %v240
      %v1390 = vunpack.c.l.b16 %v241
      %v1391 = vunpack.c.h.b16 %v241
      %v1392 = vunpack.c.l.b16 %v242
      %v1393 = vunpack.c.h.b16 %v242
      %v1394 = vunpack.c.l.b16 %v243
      %v1395 = vunpack.c.h.b16 %v243
      %v1396 = vunpack.c.l.b16 %v244
      %v1397 = vunpack.c.l.b16 %v245
      %v1398 = vunpack.c.h.b16 %v245
      %v1399 = vunpack.c.l.b16 %v246
      %v1400 = vunpack.c.h.b16 %v246
      %v1401 = vunpack.c.l.b16 %v247
      %v1402 = vunpack.c.h.b16 %v247
      %v1403 = vunpack.c.l.b16 %v248
      %v1404 = vunpack.c.l.b16 %v249
      %v1405 = vunpack.c.h.b16 %v249
      %v1406 = vunpack.c.l.b16 %v250
      %v1407 = vunpack.c.h.b16 %v250
      %v1408 = vunpack.c.l.b16 %v251
      %v1409 = vunpack.c.h.b16 %v251
      %v1410 = vunpack.c.l.b16 %v252
      %v1411 = vunpack.c.l.b16 %v253
      %v1412 = vunpack.c.h.b16 %v253
      %v1413 = vunpack.c.l.b16 %v254
      %v1414 = vunpack.c.h.b16 %v254
      %v1415 = vunpack.c.l.b16 %v255
      %v1416 = vunpack.c.h.b16 %v255
      %v1417 = vunpack.c.l.b16 %v256
      %v1418 = vunpack.c.l.b16 %v257
      %v1419 = vunpack.c.h.b16 %v257
      %v1420 = vunpack.c.l.b16 %v258
      %v1421 = vunpack.c.h.b16 %v258
      %v1422 = vunpack.c.l.b16 %v259
      %v1423 = vunpack.c.h.b16 %v259
      %v1424 = vunpack.c.l.b16 %v260
      %v1425 = vunpack.c.l.b16 %v261
      %v1426 = vunpack.c.h.b16 %v261
      %v1427 = vunpack.c.l.b16 %v262
      %v1428 = vunpack.c.h.b16 %v262
      %v1429 = vunpack.c.l.b16 %v263
      %v1430 = vunpack.c.h.b16 %v263
      %v1431 = vunpack.c.l.b16 %v264
      %v1432 = vunpack.c.l.b16 %v265
      %v1433 = vunpack.c.h.b16 %v265
      %v1434 = vunpack.c.l.b16 %v266
      %v1435 = vunpack.c.h.b16 %v266
      %v1436 = vunpack.c.l.b16 %v267
      %v1437 = vunpack.c.h.b16 %v267
      %v1438 = vunpack.c.l.b16 %v268
      %v1439 = vunpack.c.l.b16 %v269
      %v1440 = vunpack.c.h.b16 %v269
      %v1441 = vunpack.c.l.b16 %v270
      %v1442 = vunpack.c.h.b16 %v270
      %v1443 = vunpack.c.l.b16 %v271
      %v1444 = vunpack.c.h.b16 %v271
      %v1445 = vunpack.c.l.b16 %v272
      %v1446 = vunpack.c.l.b16 %v273
      %v1447 = vunpack.c.h.b16 %v273
      %v1448 = vunpack.c.l.b16 %v274
      %v1449 = vunpack.c.h.b16 %v274
      %v1450 = vunpack.c.l.b16 %v275
      %v1451 = vunpack.c.h.b16 %v275
      %v1452 = vunpack.c.l.b16 %v276
      %v1453 = vunpack.c.l.b16 %v277
      %v1454 = vunpack.c.h.b16 %v277
      %v1455 = vunpack.c.l.b16 %v278
      %v1456 = vunpack.c.h.b16 %v278
      %v1457 = vunpack.c.l.b16 %v279
      %v1458 = vunpack.c.h.b16 %v279
      %v1459 = vunpack.c.l.b16 %v280
      %v1460 = vunpack.c.l.b16 %v281
      %v1461 = vunpack.c.h.b16 %v281
      %v1462 = vunpack.c.l.b16 %v282
      %v1463 = vunpack.c.h.b16 %v282
      %v1464 = vunpack.c.l.b16 %v283
      %v1465 = vunpack.c.h.b16 %v283
      %v1466 = vunpack.c.l.b16 %v284
      %v1467 = vunpack.c.l.b16 %v285
      %v1468 = vunpack.c.h.b16 %v285
      %v1469 = vunpack.c.l.b16 %v286
      %v1470 = vunpack.c.h.b16 %v286
      %v1471 = vunpack.c.l.b16 %v287
      %v1472 = vunpack.c.h.b16 %v287
      %v1473 = vunpack.c.l.b16 %v288
      %v1474 = vunpack.c.l.b16 %v289
      %v1475 = vunpack.c.h.b16 %v289
      %v1476 = vunpack.c.l.b16 %v290
      %v1477 = vunpack.c.h.b16 %v290
      %v1478 = vunpack.c.l.b16 %v291
      %v1479 = vunpack.c.h.b16 %v291
      %v1480 = vunpack.c.l.b16 %v292
      %v1481 = vunpack.c.l.b16 %v293
      %v1482 = vunpack.c.h.b16 %v293
      %v1483 = vunpack.c.l.b16 %v294
      %v1484 = vunpack.c.h.b16 %v294
      %v1485 = vunpack.c.l.b16 %v295
      %v1486 = vunpack.c.h.b16 %v295
      %v1487 = vunpack.c.l.b16 %v296
      %v1488 = vunpack.c.l.b16 %v297
      %v1489 = vunpack.c.h.b16 %v297
      %v1490 = vunpack.c.l.b16 %v298
      %v1491 = vunpack.c.h.b16 %v298
      %v1492 = vunpack.c.l.b16 %v299
      %v1493 = vunpack.c.h.b16 %v299
      %v1494 = vunpack.c.l.b16 %v300
      %v1495 = vunpack.c.l.b16 %v301
      %v1496 = vunpack.c.h.b16 %v301
      %v1497 = vunpack.c.l.b16 %v302
      %v1498 = vunpack.c.h.b16 %v302
      %v1499 = vunpack.c.l.b16 %v303
      %v1500 = vunpack.c.h.b16 %v303
      %v1501 = vunpack.c.l.b16 %v304
      %v1502 = vunpack.c.l.b16 %v305
      %v1503 = vunpack.c.h.b16 %v305
      %v1504 = vunpack.c.l.b16 %v306
      %v1505 = vunpack.c.h.b16 %v306
      %v1506 = vunpack.c.l.b16 %v307
      %v1507 = vunpack.c.h.b16 %v307
      %v1508 = vunpack.c.l.b16 %v308
      %v1509 = vunpack.c.l.b16 %v309
      %v1510 = vunpack.c.h.b16 %v309
      %v1511 = vunpack.c.l.b16 %v310
      %v1512 = vunpack.c.h.b16 %v310
      %v1513 = vunpack.c.l.b16 %v311
      %v1514 = vunpack.c.h.b16 %v311
      %v1515 = vunpack.c.l.b16 %v312
      %v1516 = vunpack.c.l.b16 %v313
      %v1517 = vunpack.c.h.b16 %v313
      %v1518 = vunpack.c.l.b16 %v314
      %v1519 = vunpack.c.h.b16 %v314
      %v1520 = vunpack.c.l.b16 %v315
      %v1521 = vunpack.c.h.b16 %v315
      %v1522 = vunpack.c.l.b16 %v316
      %v1523 = vunpack.c.l.b16 %v317
      %v1524 = vunpack.c.h.b16 %v317
      %v1525 = vunpack.c.l.b16 %v318
      %v1526 = vunpack.c.h.b16 %v318
      %v1527 = vunpack.c.l.b16 %v319
      %v1528 = vunpack.c.h.b16 %v319
      %v1529 = vunpack.c.l.b16 %v320
      %v1530 = vunpack.c.l.b16 %v321
      %v1531 = vunpack.c.h.b16 %v321
      %v1532 = vunpack.c.l.b16 %v322
      %v1533 = vunpack.c.h.b16 %v322
      %v1534 = vunpack.c.l.b16 %v323
      %v1535 = vunpack.c.h.b16 %v323
      %v1536 = vunpack.c.l.b16 %v324
      %v1537 = vunpack.c.l.b16 %v325
      %v1538 = vunpack.c.h.b16 %v325
      %v1539 = vunpack.c.l.b16 %v326
      %v1540 = vunpack.c.h.b16 %v326
      %v1541 = vunpack.c.l.b16 %v327
      %v1542 = vunpack.c.h.b16 %v327
      %v1543 = vunpack.c.l.b16 %v328
      %v1544 = vunpack.c.l.b16 %v329
      %v1545 = vunpack.c.h.b16 %v329
      %v1546 = vunpack.c.l.b16 %v330
      %v1547 = vunpack.c.h.b16 %v330
      %v1548 = vunpack.c.l.b16 %v331
      %v1549 = vunpack.c.h.b16 %v331
      %v1550 = vunpack.c.l.b16 %v332
      %v1551 = vunpack.c.l.b16 %v333
      %v1552 = vunpack.c.h.b16 %v333
      %v1553 = vunpack.c.l.b16 %v334
      %v1554 = vunpack.c.h.b16 %v334
      %v1555 = vunpack.c.l.b16 %v335
      %v1556 = vunpack.c.h.b16 %v335
      %v1557 = vunpack.c.l.b16 %v336
      %v1558 = vunpack.c.l.b16 %v337
      %v1559 = vunpack.c.h.b16 %v337
      %v1560 = vunpack.c.l.b16 %v338
      %v1561 = vunpack.c.h.b16 %v338
      %v1562 = vunpack.c.l.b16 %v339
      %v1563 = vunpack.c.h.b16 %v339
      %v1564 = vunpack.c.l.b16 %v340
      %v1565 = vunpack.c.l.b16 %v341
      %v1566 = vunpack.c.h.b16 %v341
      %v1567 = vunpack.c.l.b16 %v342
      %v1568 = vunpack.c.h.b16 %v342
      %v1569 = vunpack.c.l.b16 %v343
      %v1570 = vunpack.c.h.b16 %v343
      %v1571 = vunpack.c.l.b16 %v344
      %v1572 = vunpack.c.l.b16 %v345
      %v1573 = vunpack.c.h.b16 %v345
      %v1574 = vunpack.c.l.b16 %v346
      %v1575 = vunpack.c.h.b16 %v346
      %v1576 = vunpack.c.l.b16 %v347
      %v1577 = vunpack.c.h.b16 %v347
      %v1578 = vunpack.c.l.b16 %v348
      %v1579 = vunpack.c.l.b16 %v349
      %v1580 = vunpack.c.h.b16 %v349
      %v1581 = vunpack.c.l.b16 %v350
      %v1582 = vunpack.c.h.b16 %v350
      %v1583 = vunpack.c.l.b16 %v351
      %v1584 = vunpack.c.h.b16 %v351
      %v1585 = vunpack.c.l.b16 %v352
      %v1586 = vunpack.c.l.b16 %v353
      %v1587 = vunpack.c.h.b16 %v353
      %v1588 = vunpack.c.l.b16 %v354
      %v1589 = vunpack.c.h.b16 %v354
      %v1590 = vunpack.c.l.b16 %v355
      %v1591 = vunpack.c.h.b16 %v355
      %v1592 = vunpack.c.l.b16 %v356
      %v1593 = vunpack.c.l.b16 %v357
      %v1594 = vunpack.c.h.b16 %v357
      %v1595 = vunpack.c.l.b16 %v358
      %v1596 = vunpack.c.h.b16 %v358
      %v1597 = vunpack.c.l.b16 %v359
      %v1598 = vunpack.c.h.b16 %v359
      %v1599 = vunpack.c.l.b16 %v360
      %v1600 = vunpack.c.l.b16 %v361
      %v1601 = vunpack.c.h.b16 %v361
      %v1602 = vunpack.c.l.b16 %v362
      %v1603 = vunpack.c.h.b16 %v362
      %v1604 = vunpack.c.l.b16 %v363
      %v1605 = vunpack.c.h.b16 %v363
      %v1606 = vunpack.c.l.b16 %v364
      %v1607 = vunpack.c.l.b16 %v365
      %v1608 = vunpack.c.h.b16 %v365
      %v1609 = vunpack.c.l.b16 %v366
      %v1610 = vunpack.c.h.b16 %v366
      %v1611 = vunpack.c.l.b16 %v367
      %v1612 = vunpack.c.h.b16 %v367
      %v1613 = vunpack.c.l.b16 %v368
      %v1614 = vunpack.c.l.b16 %v369
      %v1615 = vunpack.c.h.b16 %v369
      %v1616 = vunpack.c.l.b16 %v370
      %v1617 = vunpack.c.h.b16 %v370
      %v1618 = vunpack.c.l.b16 %v371
      %v1619 = vunpack.c.h.b16 %v371
      %v1620 = vunpack.c.l.b16 %v372
      %v1621 = vunpack.c.l.b16 %v373
      %v1622 = vunpack.c.h.b16 %v373
      %v1623 = vunpack.c.l.b16 %v374
      %v1624 = vunpack.c.h.b16 %v374
      %v1625 = vunpack.c.l.b16 %v375
      %v1626 = vunpack.c.h.b16 %v375
      %v1627 = vunpack.c.l.b16 %v376
      %v1628 = vunpack.c.l.b16 %v377
      %v1629 = vunpack.c.h.b16 %v377
      %v1630 = vunpack.c.l.b16 %v378
      %v1631 = vunpack.c.h.b16 %v378
      %v1632 = vunpack.c.l.b16 %v379
      %v1633 = vunpack.c.h.b16 %v379
      %v1634 = vunpack.c.l.b16 %v380
      %v1635 = vunpack.c.l.b16 %v381
      %v1636 = vunpack.c.h.b16 %v381
      %v1637 = vunpack.c.l.b16 %v382
      %v1638 = vunpack.c.h.b16 %v382
      %v1639 = vunpack.c.l.b16 %v383
      %v1640 = vunpack.c.h.b16 %v383
      %v1641 = vunpack.c.l.b16 %v384
      %v1642 = vunpack.c.l.b16 %v385
      %v1643 = vunpack.c.h.b16 %v385
      %v1644 = vunpack.c.l.b16 %v386
      %v1645 = vunpack.c.h.b16 %v386
      %v1646 = vunpack.c.l.b16 %v387
      %v1647 = vunpack.c.h.b16 %v387
      %v1648 = vunpack.c.l.b16 %v388
      %v1649 = vunpack.c.l.b16 %v389
      %v1650 = vunpack.c.h.b16 %v389
      %v1651 = vunpack.c.l.b16 %v390
      %v1652 = vunpack.c.h.b16 %v390
      %v1653 = vunpack.c.l.b16 %v391
      %v1654 = vunpack.c.h.b16 %v391
      %v1655 = vunpack.c.l.b16 %v392
      %v1656 = vunpack.c.l.b16 %v393
      %v1657 = vunpack.c.h.b16 %v393
      %v1658 = vunpack.c.l.b16 %v394
      %v1659 = vunpack.c.h.b16 %v394
      %v1660 = vunpack.c.l.b16 %v395
      %v1661 = vunpack.c.h.b16 %v395
      %v1662 = vunpack.c.l.b16 %v396
      %v1663 = vunpack.c.l.b16 %v397
      %v1664 = vunpack.c.h.b16 %v397
      %v1665 = vunpack.c.l.b16 %v398
      %v1666 = vunpack.c.h.b16 %v398
      %v1667 = vunpack.c.l.b16 %v399
      %v1668 = vunpack.c.h.b16 %v399
      %v1669 = vunpack.c.l.b16 %v400
      %v1670 = vunpack.c.l.b16 %v401
      %v1671 = vunpack.c.h.b16 %v401
      %v1672 = vunpack.c.l.b16 %v402
      %v1673 = vunpack.c.h.b16 %v402
      %v1674 = vunpack.c.l.b16 %v403
      %v1675 = vunpack.c.h.b16 %v403
      %v1676 = vunpack.c.l.b16 %v404
      %v1677 = vunpack.c.l.b16 %v405
      %v1678 = vunpack.c.h.b16 %v405
      %v1679 = vunpack.c.l.b16 %v406
      %v1680 = vunpack.c.h.b16 %v406
      %v1681 = vunpack.c.l.b16 %v407
      %v1682 = vunpack.c.h.b16 %v407
      %v1683 = vunpack.c.l.b16 %v408
      %v1684 = vunpack.c.l.b16 %v409
      %v1685 = vunpack.c.h.b16 %v409
      %v1686 = vunpack.c.l.b16 %v410
      %v1687 = vunpack.c.h.b16 %v410
      %v1688 = vunpack.c.l.b16 %v411
      %v1689 = vunpack.c.h.b16 %v411
      %v1690 = vunpack.c.l.b16 %v412
      %v1691 = vunpack.c.l.b16 %v413
      %v1692 = vunpack.c.h.b16 %v413
      %v1693 = vunpack.c.l.b16 %v414
      %v1694 = vunpack.c.h.b16 %v414
      %v1695 = vunpack.c.l.b16 %v415
      %v1696 = vunpack.c.h.b16 %v415
      %v1697 = vunpack.c.l.b16 %v416
      %v1698 = vunpack.c.l.b16 %v417
      %v1699 = vunpack.c.h.b16 %v417
      %v1700 = vunpack.c.l.b16 %v418
      %v1701 = vunpack.c.h.b16 %v418
      %v1702 = vunpack.c.l.b16 %v419
      %v1703 = vunpack.c.h.b16 %v419
      %v1704 = vunpack.c.l.b16 %v420
      %v1705 = vunpack.c.l.b16 %v421
      %v1706 = vunpack.c.h.b16 %v421
      %v1707 = vunpack.c.l.b16 %v422
      %v1708 = vunpack.c.h.b16 %v422
      %v1709 = vunpack.c.l.b16 %v423
      %v1710 = vunpack.c.h.b16 %v423
      %v1711 = vunpack.c.l.b16 %v424
      %v1712 = vunpack.c.l.b16 %v425
      %v1713 = vunpack.c.h.b16 %v425
      %v1714 = vunpack.c.l.b16 %v426
      %v1715 = vunpack.c.h.b16 %v426
      %v1716 = vunpack.c.l.b16 %v427
      %v1717 = vunpack.c.h.b16 %v427
      %v1718 = vunpack.c.l.b16 %v428
      %v1719 = vunpack.c.l.b16 %v429
      %v1720 = vunpack.c.h.b16 %v429
      %v1721 = vunpack.c.l.b16 %v430
      %v1722 = vunpack.c.h.b16 %v430
      %v1723 = vunpack.c.l.b16 %v431
      %v1724 = vunpack.c.h.b16 %v431
      %v1725 = vunpack.c.l.b16 %v432
      %v1726 = vunpack.c.l.b16 %v433
      %v1727 = vunpack.c.h.b16 %v433
      %v1728 = vunpack.c.l.b16 %v434
      %v1729 = vunpack.c.h.b16 %v434
      %v1730 = vunpack.c.l.b16 %v435
      %v1731 = vunpack.c.h.b16 %v435
      %v1732 = vunpack.c.l.b16 %v436
      %v1733 = vunpack.c.l.b16 %v437
      %v1734 = vunpack.c.h.b16 %v437
      %v1735 = vunpack.c.l.b16 %v438
      %v1736 = vunpack.c.h.b16 %v438
      %v1737 = vunpack.c.l.b16 %v439
      %v1738 = vunpack.c.h.b16 %v439
      %v1739 = vunpack.c.l.b16 %v440
      %v1740 = vunpack.c.l.b16 %v441
      %v1741 = vunpack.c.h.b16 %v441
      %v1742 = vunpack.c.l.b16 %v442
      %v1743 = vunpack.c.h.b16 %v442
      %v1744 = vunpack.c.l.b16 %v443
      %v1745 = vunpack.c.h.b16 %v443
      %v1746 = vunpack.c.l.b16 %v444
      %v1747 = vunpack.c.l.b16 %v445
      %v1748 = vunpack.c.h.b16 %v445
      %v1749 = vunpack.c.l.b16 %v446
      %v1750 = vunpack.c.h.b16 %v446
      %v1751 = vunpack.c.l.b16 %v447
      %v1752 = vunpack.c.h.b16 %v447
      %v1753 = vunpack.c.l.b16 %v448
      %v1754 = vunpack.c.l.b16 %v449
      %v1755 = vunpack.c.h.b16 %v449
      %v1756 = vunpack.c.l.b16 %v450
      %v1757 = vunpack.c.h.b16 %v450
      %v1758 = vunpack.c.l.b16 %v451
      %v1759 = vunpack.c.h.b16 %v451
      %v1760 = vunpack.c.l.b16 %v452
      %v1761 = vunpack.c.l.b16 %v453
      %v1762 = vunpack.c.h.b16 %v453
      %v1763 = vunpack.c.l.b16 %v454
      %v1764 = vunpack.c.h.b16 %v454
      %v1765 = vunpack.c.l.b16 %v455
      %v1766 = vunpack.c.h.b16 %v455
      %v1767 = vunpack.c.l.b16 %v456
      %v1768 = vunpack.c.l.b16 %v457
      %v1769 = vunpack.c.h.b16 %v457
      %v1770 = vunpack.c.l.b16 %v458
      %v1771 = vunpack.c.h.b16 %v458
      %v1772 = vunpack.c.l.b16 %v459
      %v1773 = vunpack.c.h.b16 %v459
      %v1774 = vunpack.c.l.b16 %v460
      %v1775 = vunpack.c.l.b16 %v461
      %v1776 = vunpack.c.h.b16 %v461
      %v1777 = vunpack.c.l.b16 %v462
      %v1778 = vunpack.c.h.b16 %v462
      %v1779 = vunpack.c.l.b16 %v463
      %v1780 = vunpack.c.h.b16 %v463
      %v1781 = vunpack.c.l.b16 %v464
      %v1782 = vunpack.c.l.b16 %v465
      %v1783 = vunpack.c.h.b16 %v465
      %v1784 = vunpack.c.l.b16 %v466
      %v1785 = vunpack.c.h.b16 %v466
      %v1786 = vunpack.c.l.b16 %v467
      %v1787 = vunpack.c.h.b16 %v467
      %v1788 = vunpack.c.l.b16 %v468
      %v1789 = vunpack.c.l.b16 %v469
      %v1790 = vunpack.c.h.b16 %v469
      %v1791 = vunpack.c.l.b16 %v470
      %v1792 = vunpack.c.h.b16 %v470
      %v1793 = vunpack.c.l.b16 %v471
      %v1794 = vunpack.c.h.b16 %v471
      %v1795 = vunpack.c.l.b16 %v472
      %v1796 = vunpack.c.l.b16 %v473
      %v1797 = vunpack.c.h.b16 %v473
      %v1798 = vunpack.c.l.b16 %v474
      %v1799 = vunpack.c.h.b16 %v474
      %v1800 = vunpack.c.l.b16 %v475
      %v1801 = vunpack.c.h.b16 %v475
      %v1802 = vunpack.c.l.b16 %v476
      %v1803 = vunpack.c.l.b16 %v477
      %v1804 = vunpack.c.h.b16 %v477
      %v1805 = vunpack.c.l.b16 %v478
      %v1806 = vunpack.c.h.b16 %v478
      %v1807 = vunpack.c.l.b16 %v479
      %v1808 = vunpack.c.h.b16 %v479
      %v1809 = vunpack.c.l.b16 %v480
      %v1810 = vunpack.c.l.b16 %v481
      %v1811 = vunpack.c.h.b16 %v481
      %v1812 = vunpack.c.l.b16 %v482
      %v1813 = vunpack.c.h.b16 %v482
      %v1814 = vunpack.c.l.b16 %v483
      %v1815 = vunpack.c.h.b16 %v483
      %v1816 = vunpack.c.l.b16 %v484
      %v1817 = vunpack.c.l.b16 %v485
      %v1818 = vunpack.c.h.b16 %v485
      %v1819 = vunpack.c.l.b16 %v486
      %v1820 = vunpack.c.h.b16 %v486
      %v1821 = vunpack.c.l.b16 %v487
      %v1822 = vunpack.c.h.b16 %v487
      %v1823 = vunpack.c.l.b16 %v488
      %v1824 = vunpack.c.l.b16 %v489
      %v1825 = vunpack.c.h.b16 %v489
      %v1826 = vunpack.c.l.b16 %v490
      %v1827 = vunpack.c.h.b16 %v490
      %v1828 = vunpack.c.l.b16 %v491
      %v1829 = vunpack.c.h.b16 %v491
      %v1830 = vunpack.c.l.b16 %v492
      %v1831 = vunpack.c.l.b16 %v493
      %v1832 = vunpack.c.h.b16 %v493
      %v1833 = vunpack.c.l.b16 %v494
      %v1834 = vunpack.c.h.b16 %v494
      %v1835 = vunpack.c.l.b16 %v495
      %v1836 = vunpack.c.h.b16 %v495
      %v1837 = vunpack.c.l.b16 %v496
      %v1838 = vunpack.c.l.b16 %v497
      %v1839 = vunpack.c.h.b16 %v497
      %v1840 = vunpack.c.l.b16 %v498
      %v1841 = vunpack.c.h.b16 %v498
      %v1842 = vunpack.c.l.b16 %v499
      %v1843 = vunpack.c.h.b16 %v499
      %v1844 = vunpack.c.l.b16 %v500
      %v1845 = vunpack.c.l.b16 %v501
      %v1846 = vunpack.c.h.b16 %v501
      %v1847 = vunpack.c.l.b16 %v502
      %v1848 = vunpack.c.h.b16 %v502
      %v1849 = vunpack.c.l.b16 %v503
      %v1850 = vunpack.c.h.b16 %v503
      %v1851 = vunpack.c.l.b16 %v504
      %v1852 = vunpack.c.l.b16 %v505
      %v1853 = vunpack.c.h.b16 %v505
      %v1854 = vunpack.c.l.b16 %v506
      %v1855 = vunpack.c.h.b16 %v506
      %v1856 = vunpack.c.l.b16 %v507
      %v1857 = vunpack.c.h.b16 %v507
      %v1858 = vunpack.c.l.b16 %v508
      %v1859 = vunpack.c.l.b16 %v509
      %v1860 = vunpack.c.h.b16 %v509
      %v1861 = vunpack.c.l.b16 %v510
      %v1862 = vunpack.c.h.b16 %v510
      %v1863 = vunpack.c.l.b16 %v511
      %v1864 = vunpack.c.h.b16 %v511
      %v1865 = vunpack.c.l.b16 %v512
      %v1866 = vunpack.c.l.b16 %v513
      %v1867 = vunpack.c.h.b16 %v513
      %v1868 = vunpack.c.l.b16 %v514
      %v1869 = vunpack.c.h.b16 %v514
      %v1870 = vunpack.c.l.b16 %v515
      %v1871 = vunpack.c.h.b16 %v515
      %v1872 = vunpack.c.l.b16 %v516
      %v1873 = vunpack.c.l.b16 %v517
      %v1874 = vunpack.c.h.b16 %v517
      %v1875 = vunpack.c.l.b16 %v518
      %v1876 = vunpack.c.h.b16 %v518
      %v1877 = vunpack.c.l.b16 %v519
      %v1878 = vunpack.c.h.b16 %v519
      %v1879 = vunpack.c.l.b16 %v520
      %v1880 = vunpack.c.l.b16 %v521
      %v1881 = vunpack.c.h.b16 %v521
      %v1882 = vunpack.c.l.b16 %v522
      %v1883 = vunpack.c.h.b16 %v522
      %v1884 = vunpack.c.l.b16 %v523
      %v1885 = vunpack.c.h.b16 %v523
      %v1886 = vunpack.c.l.b16 %v524
      %v1887 = vunpack.c.l.b16 %v525
      %v1888 = vunpack.c.h.b16 %v525
      %v1889 = vunpack.c.l.b16 %v526
      %v1890 = vunpack.c.h.b16 %v526
      %v1891 = vunpack.c.l.b16 %v527
      %v1892 = vunpack.c.h.b16 %v527
      %v1893 = vunpack.c.l.b16 %v528
      %v1894 = vunpack.c.l.b16 %v529
      %v1895 = vunpack.c.h.b16 %v529
      %v1896 = vunpack.c.l.b16 %v530
      %v1897 = vunpack.c.h.b16 %v530
      %v1898 = vunpack.c.l.b16 %v531
      %v1899 = vunpack.c.h.b16 %v531
      %v1900 = vunpack.c.l.b16 %v532
      %v1901 = vunpack.c.l.b16 %v533
      %v1902 = vunpack.c.h.b16 %v533
      %v1903 = vunpack.c.l.b16 %v534
      %v1904 = vunpack.c.h.b16 %v534
      %v1905 = vunpack.c.l.b16 %v535
      %v1906 = vunpack.c.h.b16 %v535
      %v1907 = vunpack.c.l.b16 %v536
      %v1908 = vunpack.c.l.b16 %v537
      %v1909 = vunpack.c.h.b16 %v537
      %v1910 = vunpack.c.l.b16 %v538
      %v1911 = vunpack.c.h.b16 %v538
      %v1912 = vunpack.c.l.b16 %v539
      %v1913 = vunpack.c.h.b16 %v539
      %v1914 = vunpack.c.l.b16 %v540
      %v1915 = vunpack.c.l.b16 %v541
      %v1916 = vunpack.c.h.b16 %v541
      %v1917 = vunpack.c.l.b16 %v542
      %v1918 = vunpack.c.h.b16 %v542
      %v1919 = vunpack.c.l.b16 %v543
      %v1920 = vunpack.c.h.b16 %v543
      %v1921 = vunpack.c.l.b16 %v544
      %v1922 = vunpack.c.l.b16 %v545
      %v1923 = vunpack.c.h.b16 %v545
      %v1924 = vunpack.c.l.b16 %v546
      %v1925 = vunpack.c.h.b16 %v546
      %v1926 = vunpack.c.l.b16 %v547
      %v1927 = vunpack.c.h.b16 %v547
      %v1928 = vunpack.c.l.b16 %v548
      %v1929 = vunpack.c.l.b16 %v549
      %v1930 = vunpack.c.h.b16 %v549
      %v1931 = vunpack.c.l.b16 %v550
      %v1932 = vunpack.c.h.b16 %v550
      %v1933 = vunpack.c.l.b16 %v551
      %v1934 = vunpack.c.h.b16 %v551
      %v1935 = vunpack.c.l.b16 %v552
      %v1936 = vunpack.c.l.b16 %v553
      %v1937 = vunpack.c.h.b16 %v553
      %v1938 = vunpack.c.l.b16 %v554
      %v1939 = vunpack.c.h.b16 %v554
      %v1940 = vunpack.c.l.b16 %v555
      %v1941 = vunpack.c.h.b16 %v555
      %v1942 = vunpack.c.l.b16 %v556
      %v1943 = vunpack.c.l.b16 %v557
      %v1944 = vunpack.c.h.b16 %v557
      %v1945 = vunpack.c.l.b16 %v558
      %v1946 = vunpack.c.h.b16 %v558
      %v1947 = vunpack.c.l.b16 %v559
      %v1948 = vunpack.c.h.b16 %v559
      %v1949 = vunpack.c.l.b16 %v560
      %v1950 = vunpack.c.l.b16 %v561
      %v1951 = vunpack.c.h.b16 %v561
      %v1952 = vunpack.c.l.b16 %v562
      %v1953 = vunpack.c.h.b16 %v562
      %v1954 = vunpack.c.l.b16 %v563
      %v1955 = vunpack.c.h.b16 %v563
      %v1956 = vunpack.c.l.b16 %v564
      %v1957 = vunpack.c.l.b16 %v565
      %v1958 = vunpack.c.h.b16 %v565
      %v1959 = vunpack.c.l.b16 %v566
      %v1960 = vunpack.c.h.b16 %v566
      %v1961 = vunpack.c.l.b16 %v567
      %v1962 = vunpack.c.h.b16 %v567
      %v1963 = vunpack.c.l.b16 %v568
      %v1964 = vunpack.c.l.b16 %v569
      %v1965 = vunpack.c.h.b16 %v569
      %v1966 = vunpack.c.l.b16 %v570
      %v1967 = vunpack.c.h.b16 %v570
      %v1968 = vunpack.c.l.b16 %v571
      %v1969 = vunpack.c.h.b16 %v571
      %v1970 = vunpack.c.l.b16 %v572
      %v1971 = vunpack.c.l.b16 %v573
      %v1972 = vunpack.c.h.b16 %v573
      %v1973 = vunpack.c.l.b16 %v574
      %v1974 = vunpack.c.h.b16 %v574
      %v1975 = vunpack.c.l.b16 %v575
      %v1976 = vunpack.c.h.b16 %v575
      %v1977 = vunpack.c.l.b16 %v576
      %v1978 = vunpack.c.l.b16 %v577
      %v1979 = vunpack.c.h.b16 %v577
      %v1980 = vunpack.c.l.b16 %v578
      %v1981 = vunpack.c.h.b16 %v578
      %v1982 = vunpack.c.l.b16 %v579
      %v1983 = vunpack.c.h.b16 %v579
      %v1984 = vunpack.c.l.b16 %v580
      %v1985 = vunpack.c.l.b16 %v581
      %v1986 = vunpack.c.h.b16 %v581
      %v1987 = vunpack.c.l.b16 %v582
      %v1988 = vunpack.c.h.b16 %v582
      %v1989 = vunpack.c.l.b16 %v583
      %v1990 = vunpack.c.h.b16 %v583
      %v1991 = vunpack.c.l.b16 %v584
      %v1992 = vunpack.c.l.b16 %v585
      %v1993 = vunpack.c.h.b16 %v585
      %v1994 = vunpack.c.l.b16 %v586
      %v1995 = vunpack.c.h.b16 %v586
      %v1996 = vunpack.c.l.b16 %v587
      %v1997 = vunpack.c.h.b16 %v587
      %v1998 = vunpack.c.l.b16 %v588
      %v1999 = vunpack.c.l.b16 %v589
      %v2000 = vunpack.c.h.b16 %v589
      %v2001 = vunpack.c.l.b16 %v590
      %v2002 = vunpack.c.h.b16 %v590
      %v2003 = vunpack.c.l.b16 %v591
      %v2004 = vunpack.c.h.b16 %v591
      %v2005 = vunpack.c.l.b16 %v592
      %v2006 = vunpack.c.l.b16 %v593
      %v2007 = vunpack.c.h.b16 %v593
      %v2008 = vunpack.c.l.b16 %v594
      %v2009 = vunpack.c.h.b16 %v594
      %v2010 = vunpack.c.l.b16 %v595
      %v2011 = vunpack.c.h.b16 %v595
      %v2012 = vunpack.c.l.b16 %v596
      %v2013 = vunpack.c.l.b16 %v597
      %v2014 = vunpack.c.h.b16 %v597
      %v2015 = vunpack.c.l.b16 %v598
      %v2016 = vunpack.c.h.b16 %v598
      %v2017 = vunpack.c.l.b16 %v599
      %v2018 = vunpack.c.h.b16 %v599
      %v2019 = vunpack.c.l.b16 %v600
      %v2020 = vunpack.c.l.b16 %v601
      %v2021 = vunpack.c.h.b16 %v601
      %v2022 = vunpack.c.l.b16 %v602
      %v2023 = vunpack.c.h.b16 %v602
      %v2024 = vunpack.c.l.b16 %v603
      %v2025 = vunpack.c.h.b16 %v603
      %v2026 = vunpack.c.l.b16 %v604
      %v2027 = vunpack.c.l.b16 %v605
      %v2028 = vunpack.c.h.b16 %v605
      %v2029 = vunpack.c.l.b16 %v606
      %v2030 = vunpack.c.h.b16 %v606
      %v2031 = vunpack.c.l.b16 %v607
      %v2032 = vunpack.c.h.b16 %v607
      %v2033 = vunpack.c.l.b16 %v608
      %v2034 = vunpack.c.l.b16 %v609
      %v2035 = vunpack.c.h.b16 %v609
      %v2036 = vunpack.c.l.b16 %v610
      %v2037 = vunpack.c.h.b16 %v610
      %v2038 = vunpack.c.l.b16 %v611
      %v2039 = vunpack.c.h.b16 %v611
      %v2040 = vunpack.c.l.b16 %v612
      %v2041 = vunpack.c.l.b16 %v613
      %v2042 = vunpack.c.h.b16 %v613
      %v2043 = vunpack.c.l.b16 %v614
      %v2044 = vunpack.c.h.b16 %v614
      %v2045 = vunpack.c.l.b16 %v615
      %v2046 = vunpack.c.h.b16 %v615
      %v2047 = vunpack.c.l.b16 %v616
      %v2048 = vunpack.c.l.b16 %v617
      %v2049 = vunpack.c.h.b16 %v617
      %v2050 = vunpack.c.l.b16 %v618
      %v2051 = vunpack.c.h.b16 %v618
      %v2052 = vunpack.c.l.b16 %v619
      %v2053 = vunpack.c.h.b16 %v619
      %v2054 = vunpack.c.l.b16 %v620
      %v2055 = vunpack.c.l.b16 %v621
      %v2056 = vunpack.c.h.b16 %v621
      %v2057 = vunpack.c.l.b16 %v622
      %v2058 = vunpack.c.h.b16 %v622
      %v2059 = vunpack.c.l.b16 %v623
      %v2060 = vunpack.c.h.b16 %v623
      %v2061 = vunpack.c.l.b16 %v624
      %v2062 = vunpack.c.l.b16 %v625
      %v2063 = vunpack.c.h.b16 %v625
      %v2064 = vunpack.c.l.b16 %v626
      %v2065 = vunpack.c.h.b16 %v626
      %v2066 = vunpack.c.l.b16 %v627
      %v2067 = vunpack.c.h.b16 %v627
      %v2068 = vunpack.c.l.b16 %v628
      %v2069 = vunpack.c.l.b16 %v629
      %v2070 = vunpack.c.h.b16 %v629
      %v2071 = vunpack.c.l.b16 %v630
      %v2072 = vunpack.c.h.b16 %v630
      %v2073 = vunpack.c.l.b16 %v631
      %v2074 = vunpack.c.h.b16 %v631
      %v2075 = vunpack.c.l.b16 %v632
      %v2076 = vunpack.c.l.b16 %v633
      %v2077 = vunpack.c.h.b16 %v633
      %v2078 = vunpack.c.l.b16 %v634
      %v2079 = vunpack.c.h.b16 %v634
      %v2080 = vunpack.c.l.b16 %v635
      %v2081 = vunpack.c.h.b16 %v635
      %v2082 = vunpack.c.l.b16 %v636
      %v2083 = vunpack.c.l.b16 %v637
      %v2084 = vunpack.c.h.b16 %v637
      %v2085 = vunpack.c.l.b16 %v638
      %v2086 = vunpack.c.h.b16 %v638
      %v2087 = vunpack.c.l.b16 %v639
      %v2088 = vunpack.c.h.b16 %v639
      %v2089 = vunpack.c.l.b16 %v640
      %v2090 = vunpack.c.l.b16 %v641
      %v2091 = vunpack.c.h.b16 %v641
      %v2092 = vunpack.c.l.b16 %v642
      %v2093 = vunpack.c.h.b16 %v642
      %v2094 = vunpack.c.l.b16 %v643
      %v2095 = vunpack.c.h.b16 %v643
      %v2096 = vunpack.c.l.b16 %v644
      %v2097 = vunpack.c.l.b16 %v645
      %v2098 = vunpack.c.h.b16 %v645
      %v2099 = vunpack.c.l.b16 %v646
      %v2100 = vunpack.c.h.b16 %v646
      %v2101 = vunpack.c.l.b16 %v647
      %v2102 = vunpack.c.h.b16 %v647
      %v2103 = vunpack.c.l.b16 %v648
      %v2104 = vunpack.c.l.b16 %v649
      %v2105 = vunpack.c.h.b16 %v649
      %v2106 = vunpack.c.l.b16 %v650
      %v2107 = vunpack.c.h.b16 %v650
      %v2108 = vunpack.c.l.b16 %v651
      %v2109 = vunpack.c.h.b16 %v651
      %v2110 = vunpack.c.l.b16 %v652
      %v2111 = vunpack.c.l.b16 %v653
      %v2112 = vunpack.c.h.b16 %v653
      %v2113 = vunpack.c.l.b16 %v654
      %v2114 = vunpack.c.h.b16 %v654
      %v2115 = vunpack.c.l.b16 %v655
      %v2116 = vunpack.c.h.b16 %v655
      %v2117 = vunpack.c.l.b16 %v656
      %v2118 = vunpack.c.l.b16 %v657
      %v2119 = vunpack.c.h.b16 %v657
      %v2120 = vunpack.c.l.b16 %v658
      %v2121 = vunpack.c.h.b16 %v658
      %v2122 = vunpack.c.l.b16 %v659
      %v2123 = vunpack.c.h.b16 %v659
      %v2124 = vunpack.c.l.b16 %v660
      %v2125 = vunpack.c.l.b16 %v661
      %v2126 = vunpack.c.h.b16 %v661
      %v2127 = vunpack.c.l.b16 %v662
      %v2128 = vunpack.c.h.b16 %v662
      %v2129 = vunpack.c.l.b16 %v663
      %v2130 = vunpack.c.h.b16 %v663
      %v2131 = vunpack.c.l.b16 %v664
      %v2132 = vunpack.c.l.b16 %v665
      %v2133 = vunpack.c.h.b16 %v665
      %v2134 = vunpack.c.l.b16 %v666
      %v2135 = vunpack.c.h.b16 %v666
      %v2136 = vunpack.c.l.b16 %v667
      %v2137 = vunpack.c.h.b16 %v667
      %v2138 = vunpack.c.l.b16 %v668
      %v2139 = vunpack.c.l.b16 %v669
      %v2140 = vunpack.c.h.b16 %v669
      %v2141 = vunpack.c.l.b16 %v670
      %v2142 = vunpack.c.h.b16 %v670
      %v2143 = vunpack.c.l.b16 %v671
      %v2144 = vunpack.c.h.b16 %v671
      %v2145 = vunpack.c.l.b16 %v672
      %v2146 = vunpack.c.l.b16 %v673
      %v2147 = vunpack.c.h.b16 %v673
      %v2148 = vunpack.c.l.b16 %v674
      %v2149 = vunpack.c.h.b16 %v674
      %v2150 = vunpack.c.l.b16 %v675
      %v2151 = vunpack.c.h.b16 %v675
      %v2152 = vunpack.c.l.b16 %v676
      %v2153 = vunpack.c.l.b16 %v677
      %v2154 = vunpack.c.h.b16 %v677
      %v2155 = vunpack.c.l.b16 %v678
      %v2156 = vunpack.c.h.b16 %v678
      %v2157 = vunpack.c.l.b16 %v679
      %v2158 = vunpack.c.h.b16 %v679
      %v2159 = vunpack.c.l.b16 %v680
      %v2160 = vunpack.c.l.b16 %v681
      %v2161 = vunpack.c.h.b16 %v681
      %v2162 = vunpack.c.l.b16 %v682
      %v2163 = vunpack.c.h.b16 %v682
      %v2164 = vunpack.c.l.b16 %v683
      %v2165 = vunpack.c.h.b16 %v683
      %v2166 = vunpack.c.l.b16 %v684
      %v2167 = vunpack.c.l.b16 %v685
      %v2168 = vunpack.c.h.b16 %v685
      %v2169 = vunpack.c.l.b16 %v686
      %v2170 = vunpack.c.h.b16 %v686
      %v2171 = vunpack.c.l.b16 %v687
      %v2172 = vunpack.c.h.b16 %v687
      %v2173 = vunpack.c.l.b16 %v688
      %v2174 = vunpack.c.l.b16 %v689
      %v2175 = vunpack.c.h.b16 %v689
      %v2176 = vunpack.c.l.b16 %v690
      %v2177 = vunpack.c.h.b16 %v690
      %v2178 = vunpack.c.l.b16 %v691
      %v2179 = vunpack.c.h.b16 %v691
      %v2180 = vunpack.c.l.b16 %v692
      %v2181 = vunpack.c.l.b16 %v693
      %v2182 = vunpack.c.h.b16 %v693
      %v2183 = vunpack.c.l.b16 %v694
      %v2184 = vunpack.c.h.b16 %v694
      %v2185 = vunpack.c.l.b16 %v695
      %v2186 = vunpack.c.h.b16 %v695
      %v2187 = vunpack.c.l.b16 %v696
      %v2188 = vunpack.c.l.b16 %v697
      %v2189 = vunpack.c.h.b16 %v697
      %v2190 = vunpack.c.l.b16 %v698
      %v2191 = vunpack.c.h.b16 %v698
      %v2192 = vunpack.c.l.b16 %v699
      %v2193 = vunpack.c.h.b16 %v699
      %v2194 = vunpack.c.l.b16 %v700
      %v2195 = vunpack.c.l.b16 %v701
      %v2196 = vunpack.c.h.b16 %v701
      %v2197 = vunpack.c.l.b16 %v702
      %v2198 = vunpack.c.h.b16 %v702
      %v2199 = vunpack.c.l.b16 %v703
      %v2200 = vunpack.c.h.b16 %v703
      %v2201 = vunpack.c.l.b16 %v704
      %v2202 = vunpack.c.l.b16 %v705
      %v2203 = vunpack.c.h.b16 %v705
      %v2204 = vunpack.c.l.b16 %v706
      %v2205 = vunpack.c.h.b16 %v706
      %v2206 = vunpack.c.l.b16 %v707
      %v2207 = vunpack.c.h.b16 %v707
      %v2208 = vunpack.c.l.b16 %v708
      %v2209 = vunpack.c.l.b16 %v709
      %v2210 = vunpack.c.h.b16 %v709
      %v2211 = vunpack.c.l.b16 %v710
      %v2212 = vunpack.c.h.b16 %v710
      %v2213 = vunpack.c.l.b16 %v711
      %v2214 = vunpack.c.h.b16 %v711
      %v2215 = vunpack.c.l.b16 %v712
      %v2216 = vunpack.c.l.b16 %v713
      %v2217 = vunpack.c.h.b16 %v713
      %v2218 = vunpack.c.l.b16 %v714
      %v2219 = vunpack.c.h.b16 %v714
      %v2220 = vunpack.c.l.b16 %v715
      %v2221 = vunpack.c.h.b16 %v715
      %v2222 = vunpack.c.l.b16 %v716
      %v2223 = vpack.c.b16 %v1334, %v1327
      %v2224 = vpack.c.b16 %v1335, %v1328
      %v2225 = vpack.c.b16 %v1336, %v1329
      %v2226 = vpack.c.b16 %v1337, %v1330
      %v2227 = vpack.c.b16 %v1338, %v1331
      %v2228 = vpack.c.b16 %v1339, %v1332
      %v2229 = vpack.c.b16 %v1340, %v1333
      %v2230 = vpack.c.b16 %v1348, %v1341
      %v2231 = vpack.c.b16 %v1349, %v1342
      %v2232 = vpack.c.b16 %v1350, %v1343
      %v2233 = vpack.c.b16 %v1351, %v1344
      %v2234 = vpack.c.b16 %v1352, %v1345
      %v2235 = vpack.c.b16 %v1353, %v1346
      %v2236 = vpack.c.b16 %v1354, %v1347
      %v2237 = vpack.c.b16 %v1362, %v1355
      %v2238 = vpack.c.b16 %v1363, %v1356
      %v2239 = vpack.c.b16 %v1364, %v1357
      %v2240 = vpack.c.b16 %v1365, %v1358
      %v2241 = vpack.c.b16 %v1366, %v1359
      %v2242 = vpack.c.b16 %v1367, %v1360
      %v2243 = vpack.c.b16 %v1368, %v1361
      %v2244 = vpack.c.b16 %v1376, %v1369
      %v2245 = vpack.c.b16 %v1377, %v1370
      %v2246 = vpack.c.b16 %v1378, %v1371
      %v2247 = vpack.c.b16 %v1379, %v1372
      %v2248 = vpack.c.b16 %v1380, %v1373
      %v2249 = vpack.c.b16 %v1381, %v1374
      %v2250 = vpack.c.b16 %v1382, %v1375
      %v2251 = vpack.c.b16 %v1390, %v1383
      %v2252 = vpack.c.b16 %v1391, %v1384
      %v2253 = vpack.c.b16 %v1392, %v1385
      %v2254 = vpack.c.b16 %v1393, %v1386
      %v2255 = vpack.c.b16 %v1394, %v1387
      %v2256 = vpack.c.b16 %v1395, %v1388
      %v2257 = vpack.c.b16 %v1396, %v1389
      %v2258 = vpack.c.b16 %v1404, %v1397
      %v2259 = vpack.c.b16 %v1405, %v1398
      %v2260 = vpack.c.b16 %v1406, %v1399
      %v2261 = vpack.c.b16 %v1407, %v1400
      %v2262 = vpack.c.b16 %v1408, %v1401
      %v2263 = vpack.c.b16 %v1409, %v1402
      %v2264 = vpack.c.b16 %v1410, %v1403
      %v2265 = vpack.c.b16 %v1418, %v1411
      %v2266 = vpack.c.b16 %v1419, %v1412
      %v2267 = vpack.c.b16 %v1420, %v1413
      %v2268 = vpack.c.b16 %v1421, %v1414
      %v2269 = vpack.c.b16 %v1422, %v1415
      %v2270 = vpack.c.b16 %v1423, %v1416
      %v2271 = vpack.c.b16 %v1424, %v1417
      %v2272 = vpack.c.b16 %v1432, %v1425
      %v2273 = vpack.c.b16 %v1433, %v1426
      %v2274 = vpack.c.b16 %v1434, %v1427
      %v2275 = vpack.c.b16 %v1435, %v1428
      %v2276 = vpack.c.b16 %v1436, %v1429
      %v2277 = vpack.c.b16 %v1437, %v1430
      %v2278 = vpack.c.b16 %v1438, %v1431
      %v2279 = vpack.c.b16 %v1446, %v1439
      %v2280 = vpack.c.b16 %v1447, %v1440
      %v2281 = vpack.c.b16 %v1448, %v1441
      %v2282 = vpack.c.b16 %v1449, %v1442
      %v2283 = vpack.c.b16 %v1450, %v1443
      %v2284 = vpack.c.b16 %v1451, %v1444
      %v2285 = vpack.c.b16 %v1452, %v1445
      %v2286 = vpack.c.b16 %v1460, %v1453
      %v2287 = vpack.c.b16 %v1461, %v1454
      %v2288 = vpack.c.b16 %v1462, %v1455
      %v2289 = vpack.c.b16 %v1463, %v1456
      %v2290 = vpack.c.b16 %v1464, %v1457
      %v2291 = vpack.c.b16 %v1465, %v1458
      %v2292 = vpack.c.b16 %v1466, %v1459
      %v2293 = vpack.c.b16 %v1474, %v1467
      %v2294 = vpack.c.b16 %v1475, %v1468
      %v2295 = vpack.c.b16 %v1476, %v1469
      %v2296 = vpack.c.b16 %v1477, %v1470
      %v2297 = vpack.c.b16 %v1478, %v1471
      %v2298 = vpack.c.b16 %v1479, %v1472
      %v2299 = vpack.c.b16 %v1480, %v1473
      %v2300 = vpack.c.b16 %v1488, %v1481
      %v2301 = vpack.c.b16 %v1489, %v1482
      %v2302 = vpack.c.b16 %v1490, %v1483
      %v2303 = vpack.c.b16 %v1491, %v1484
      %v2304 = vpack.c.b16 %v1492, %v1485
      %v2305 = vpack.c.b16 %v1493, %v1486
      %v2306 = vpack.c.b16 %v1494, %v1487
      %v2307 = vpack.c.b16 %v1502, %v1495
      %v2308 = vpack.c.b16 %v1503, %v1496
      %v2309 = vpack.c.b16 %v1504, %v1497
      %v2310 = vpack.c.b16 %v1505, %v1498
      %v2311 = vpack.c.b16 %v1506, %v1499
      %v2312 = vpack.c.b16 %v1507, %v1500
      %v2313 = vpack.c.b16 %v1508, %v1501
      %v2314 = vpack.c.b16 %v1516, %v1509
      %v2315 = vpack.c.b16 %v1517, %v1510
      %v2316 = vpack.c.b16 %v1518, %v1511
      %v2317 = vpack.c.b16 %v1519, %v1512
      %v2318 = vpack.c.b16 %v1520, %v1513
      %v2319 = vpack.c.b16 %v1521, %v1514
      %v2320 = vpack.c.b16 %v1522, %v1515
      %v2321 = vpack.c.b16 %v1530, %v1523
      %v2322 = vpack.c.b16 %v1531, %v1524
      %v2323 = vpack.c.b16 %v1532, %v1525
      %v2324 = vpack.c.b16 %v1533, %v1526
      %v2325 = vpack.c.b16 %v1534, %v1527
      %v2326 = vpack.c.b16 %v1535, %v1528
      %v2327 = vpack.c.b16 %v1536, %v1529
      %v2328 = vpack.c.b16 %v1544, %v1537
      %v2329 = vpack.c.b16 %v1545, %v1538
      %v2330 = vpack.c.b16 %v1546, %v1539
      %v2331 = vpack.c.b16 %v1547, %v1540
      %v2332 = vpack.c.b16 %v1548, %v1541
      %v2333 = vpack.c.b16 %v1549, %v1542
      %v2334 = vpack.c.b16 %v1550, %v1543
      %v2335 = vpack.c.b16 %v1558, %v1551
      %v2336 = vpack.c.b16 %v1559, %v1552
      %v2337 = vpack.c.b16 %v1560, %v1553
      %v2338 = vpack.c.b16 %v1561, %v1554
      %v2339 = vpack.c.b16 %v1562, %v1555
      %v2340 = vpack.c.b16 %v1563, %v1556
      %v2341 = vpack.c.b16 %v1564, %v1557
      %v2342 = vpack.c.b16 %v1572, %v1565
      %v2343 = vpack.c.b16 %v1573, %v1566
      %v2344 = vpack.c.b16 %v1574, %v1567
      %v2345 = vpack.c.b16 %v1575, %v1568
      %v2346 = vpack.c.b16 %v1576, %v1569
      %v2347 = vpack.c.b16 %v1577, %v1570
      %v2348 = vpack.c.b16 %v1578, %v1571
      %v2349 = vpack.c.b16 %v1586, %v1579
      %v2350 = vpack.c.b16 %v1587, %v1580
      %v2351 = vpack.c.b16 %v1588, %v1581
      %v2352 = vpack.c.b16 %v1589, %v1582
      %v2353 = vpack.c.b16 %v1590, %v1583
      %v2354 = vpack.c.b16 %v1591, %v1584
      %v2355 = vpack.c.b16 %v1592, %v1585
      %v2356 = vpack.c.b16 %v1600, %v1593
      %v2357 = vpack.c.b16 %v1601, %v1594
      %v2358 = vpack.c.b16 %v1602, %v1595
      %v2359 = vpack.c.b16 %v1603, %v1596
      %v2360 = vpack.c.b16 %v1604, %v1597
      %v2361 = vpack.c.b16 %v1605, %v1598
      %v2362 = vpack.c.b16 %v1606, %v1599
      %v2363 = vpack.c.b16 %v1614, %v1607
      %v2364 = vpack.c.b16 %v1615, %v1608
      %v2365 = vpack.c.b16 %v1616, %v1609
      %v2366 = vpack.c.b16 %v1617, %v1610
      %v2367 = vpack.c.b16 %v1618, %v1611
      %v2368 = vpack.c.b16 %v1619, %v1612
      %v2369 = vpack.c.b16 %v1620, %v1613
      %v2370 = vpack.c.b16 %v1628, %v1621
      %v2371 = vpack.c.b16 %v1629, %v1622
      %v2372 = vpack.c.b16 %v1630, %v1623
      %v2373 = vpack.c.b16 %v1631, %v1624
      %v2374 = vpack.c.b16 %v1632, %v1625
      %v2375 = vpack.c.b16 %v1633, %v1626
      %v2376 = vpack.c.b16 %v1634, %v1627
      %v2377 = vpack.c.b16 %v1642, %v1635
      %v2378 = vpack.c.b16 %v1643, %v1636
      %v2379 = vpack.c.b16 %v1644, %v1637
      %v2380 = vpack.c.b16 %v1645, %v1638
      %v2381 = vpack.c.b16 %v1646, %v1639
      %v2382 = vpack.c.b16 %v1647, %v1640
      %v2383 = vpack.c.b16 %v1648, %v1641
      %v2384 = vpack.c.b16 %v1656, %v1649
      %v2385 = vpack.c.b16 %v1657, %v1650
      %v2386 = vpack.c.b16 %v1658, %v1651
      %v2387 = vpack.c.b16 %v1659, %v1652
      %v2388 = vpack.c.b16 %v1660, %v1653
      %v2389 = vpack.c.b16 %v1661, %v1654
      %v2390 = vpack.c.b16 %v1662, %v1655
      %v2391 = vpack.c.b16 %v1670, %v1663
      %v2392 = vpack.c.b16 %v1671, %v1664
      %v2393 = vpack.c.b16 %v1672, %v1665
      %v2394 = vpack.c.b16 %v1673, %v1666
      %v2395 = vpack.c.b16 %v1674, %v1667
      %v2396 = vpack.c.b16 %v1675, %v1668
      %v2397 = vpack.c.b16 %v1676, %v1669
      %v2398 = vpack.c.b16 %v1684, %v1677
      %v2399 = vpack.c.b16 %v1685, %v1678
      %v2400 = vpack.c.b16 %v1686, %v1679
      %v2401 = vpack.c.b16 %v1687, %v1680
      %v2402 = vpack.c.b16 %v1688, %v1681
      %v2403 = vpack.c.b16 %v1689, %v1682
      %v2404 = vpack.c.b16 %v1690, %v1683
      %v2405 = vpack.c.b16 %v1698, %v1691
      %v2406 = vpack.c.b16 %v1699, %v1692
      %v2407 = vpack.c.b16 %v1700, %v1693
      %v2408 = vpack.c.b16 %v1701, %v1694
      %v2409 = vpack.c.b16 %v1702, %v1695
      %v2410 = vpack.c.b16 %v1703, %v1696
      %v2411 = vpack.c.b16 %v1704, %v1697
      %v2412 = vpack.c.b16 %v1712, %v1705
      %v2413 = vpack.c.b16 %v1713, %v1706
      %v2414 = vpack.c.b16 %v1714, %v1707
      %v2415 = vpack.c.b16 %v1715, %v1708
      %v2416 = vpack.c.b16 %v1716, %v1709
      %v2417 = vpack.c.b16 %v1717, %v1710
      %v2418 = vpack.c.b16 %v1718, %v1711
      %v2419 = vpack.c.b16 %v1726, %v1719
      %v2420 = vpack.c.b16 %v1727, %v1720
      %v2421 = vpack.c.b16 %v1728, %v1721
      %v2422 = vpack.c.b16 %v1729, %v1722
      %v2423 = vpack.c.b16 %v1730, %v1723
      %v2424 = vpack.c.b16 %v1731, %v1724
      %v2425 = vpack.c.b16 %v1732, %v1725
      %v2426 = vpack.c.b16 %v1740, %v1733
      %v2427 = vpack.c.b16 %v1741, %v1734
      %v2428 = vpack.c.b16 %v1742, %v1735
      %v2429 = vpack.c.b16 %v1743, %v1736
      %v2430 = vpack.c.b16 %v1744, %v1737
      %v2431 = vpack.c.b16 %v1745, %v1738
      %v2432 = vpack.c.b16 %v1746, %v1739
      %v2433 = vpack.c.b16 %v1754, %v1747
      %v2434 = vpack.c.b16 %v1755, %v1748
      %v2435 = vpack.c.b16 %v1756, %v1749
      %v2436 = vpack.c.b16 %v1757, %v1750
      %v2437 = vpack.c.b16 %v1758, %v1751
      %v2438 = vpack.c.b16 %v1759, %v1752
      %v2439 = vpack.c.b16 %v1760, %v1753
      %v2440 = vpack.c.b16 %v1768, %v1761
      %v2441 = vpack.c.b16 %v1769, %v1762
      %v2442 = vpack.c.b16 %v1770, %v1763
      %v2443 = vpack.c.b16 %v1771, %v1764
      %v2444 = vpack.c.b16 %v1772, %v1765
      %v2445 = vpack.c.b16 %v1773, %v1766
      %v2446 = vpack.c.b16 %v1774, %v1767
      %v2447 = vpack.c.b16 %v1782, %v1775
      %v2448 = vpack.c.b16 %v1783, %v1776
      %v2449 = vpack.c.b16 %v1784, %v1777
      %v2450 = vpack.c.b16 %v1785, %v1778
      %v2451 = vpack.c.b16 %v1786, %v1779
      %v2452 = vpack.c.b16 %v1787, %v1780
      %v2453 = vpack.c.b16 %v1788, %v1781
      %v2454 = vpack.c.b16 %v1796, %v1789
      %v2455 = vpack.c.b16 %v1797, %v1790
      %v2456 = vpack.c.b16 %v1798, %v1791
      %v2457 = vpack.c.b16 %v1799, %v1792
      %v2458 = vpack.c.b16 %v1800, %v1793
      %v2459 = vpack.c.b16 %v1801, %v1794
      %v2460 = vpack.c.b16 %v1802, %v1795
      %v2461 = vpack.c.b16 %v1810, %v1803
      %v2462 = vpack.c.b16 %v1811, %v1804
      %v2463 = vpack.c.b16 %v1812, %v1805
      %v2464 = vpack.c.b16 %v1813, %v1806
      %v2465 = vpack.c.b16 %v1814, %v1807
      %v2466 = vpack.c.b16 %v1815, %v1808
      %v2467 = vpack.c.b16 %v1816, %v1809
      %v2468 = vpack.c.b16 %v1824, %v1817
      %v2469 = vpack.c.b16 %v1825, %v1818
      %v2470 = vpack.c.b16 %v1826, %v1819
      %v2471 = vpack.c.b16 %v1827, %v1820
      %v2472 = vpack.c.b16 %v1828, %v1821
      %v2473 = vpack.c.b16 %v1829, %v1822
      %v2474 = vpack.c.b16 %v1830, %v1823
      %v2475 = vpack.c.b16 %v1838, %v1831
      %v2476 = vpack.c.b16 %v1839, %v1832
      %v2477 = vpack.c.b16 %v1840, %v1833
      %v2478 = vpack.c.b16 %v1841, %v1834
      %v2479 = vpack.c.b16 %v1842, %v1835
      %v2480 = vpack.c.b16 %v1843, %v1836
      %v2481 = vpack.c.b16 %v1844, %v1837
      %v2482 = vpack.c.b16 %v1852, %v1845
      %v2483 = vpack.c.b16 %v1853, %v1846
      %v2484 = vpack.c.b16 %v1854, %v1847
      %v2485 = vpack.c.b16 %v1855, %v1848
      %v2486 = vpack.c.b16 %v1856, %v1849
      %v2487 = vpack.c.b16 %v1857, %v1850
      %v2488 = vpack.c.b16 %v1858, %v1851
      %v2489 = vpack.c.b16 %v1866, %v1859
      %v2490 = vpack.c.b16 %v1867, %v1860
      %v2491 = vpack.c.b16 %v1868, %v1861
      %v2492 = vpack.c.b16 %v1869, %v1862
      %v2493 = vpack.c.b16 %v1870, %v1863
      %v2494 = vpack.c.b16 %v1871, %v1864
      %v2495 = vpack.c.b16 %v1872, %v1865
      %v2496 = vpack.c.b16 %v1880, %v1873
      %v2497 = vpack.c.b16 %v1881, %v1874
      %v2498 = vpack.c.b16 %v1882, %v1875
      %v2499 = vpack.c.b16 %v1883, %v1876
      %v2500 = vpack.c.b16 %v1884, %v1877
      %v2501 = vpack.c.b16 %v1885, %v1878
      %v2502 = vpack.c.b16 %v1886, %v1879
      %v2503 = vpack.c.b16 %v1894, %v1887
      %v2504 = vpack.c.b16 %v1895, %v1888
      %v2505 = vpack.c.b16 %v1896, %v1889
      %v2506 = vpack.c.b16 %v1897, %v1890
      %v2507 = vpack.c.b16 %v1898, %v1891
      %v2508 = vpack.c.b16 %v1899, %v1892
      %v2509 = vpack.c.b16 %v1900, %v1893
      %v2510 = vpack.c.b16 %v1908, %v1901
      %v2511 = vpack.c.b16 %v1909, %v1902
      %v2512 = vpack.c.b16 %v1910, %v1903
      %v2513 = vpack.c.b16 %v1911, %v1904
      %v2514 = vpack.c.b16 %v1912, %v1905
      %v2515 = vpack.c.b16 %v1913, %v1906
      %v2516 = vpack.c.b16 %v1914, %v1907
      %v2517 = vpack.c.b16 %v1922, %v1915
      %v2518 = vpack.c.b16 %v1923, %v1916
      %v2519 = vpack.c.b16 %v1924, %v1917
      %v2520 = vpack.c.b16 %v1925, %v1918
      %v2521 = vpack.c.b16 %v1926, %v1919
      %v2522 = vpack.c.b16 %v1927, %v1920
      %v2523 = vpack.c.b16 %v1928, %v1921
      %v2524 = vpack.c.b16 %v1936, %v1929
      %v2525 = vpack.c.b16 %v1937, %v1930
      %v2526 = vpack.c.b16 %v1938, %v1931
      %v2527 = vpack.c.b16 %v1939, %v1932
      %v2528 = vpack.c.b16 %v1940, %v1933
      %v2529 = vpack.c.b16 %v1941, %v1934
      %v2530 = vpack.c.b16 %v1942, %v1935
      %v2531 = vpack.c.b16 %v1950, %v1943
      %v2532 = vpack.c.b16 %v1951, %v1944
      %v2533 = vpack.c.b16 %v1952, %v1945
      %v2534 = vpack.c.b16 %v1953, %v1946
      %v2535 = vpack.c.b16 %v1954, %v1947
      %v2536 = vpack.c.b16 %v1955, %v1948
      %v2537 = vpack.c.b16 %v1956, %v1949
      %v2538 = vpack.c.b16 %v1964, %v1957
      %v2539 = vpack.c.b16 %v1965, %v1958
      %v2540 = vpack.c.b16 %v1966, %v1959
      %v2541 = vpack.c.b16 %v1967, %v1960
      %v2542 = vpack.c.b16 %v1968, %v1961
      %v2543 = vpack.c.b16 %v1969, %v1962
      %v2544 = vpack.c.b16 %v1970, %v1963
      %v2545 = vpack.c.b16 %v1978, %v1971
      %v2546 = vpack.c.b16 %v1979, %v1972
      %v2547 = vpack.c.b16 %v1980, %v1973
      %v2548 = vpack.c.b16 %v1981, %v1974
      %v2549 = vpack.c.b16 %v1982, %v1975
      %v2550 = vpack.c.b16 %v1983, %v1976
      %v2551 = vpack.c.b16 %v1984, %v1977
      %v2552 = vpack.c.b16 %v1992, %v1985
      %v2553 = vpack.c.b16 %v1993, %v1986
      %v2554 = vpack.c.b16 %v1994, %v1987
      %v2555 = vpack.c.b16 %v1995, %v1988
      %v2556 = vpack.c.b16 %v1996, %v1989
      %v2557 = vpack.c.b16 %v1997, %v1990
      %v2558 = vpack.c.b16 %v1998, %v1991
      %v2559 = vpack.c.b16 %v2006, %v1999
      %v2560 = vpack.c.b16 %v2007, %v2000
      %v2561 = vpack.c.b16 %v2008, %v2001
      %v2562 = vpack.c.b16 %v2009, %v2002
      %v2563 = vpack.c.b16 %v2010, %v2003
      %v2564 = vpack.c.b16 %v2011, %v2004
      %v2565 = vpack.c.b16 %v2012, %v2005
      %v2566 = vpack.c.b16 %v2020, %v2013
      %v2567 = vpack.c.b16 %v2021, %v2014
      %v2568 = vpack.c.b16 %v2022, %v2015
      %v2569 = vpack.c.b16 %v2023, %v2016
      %v2570 = vpack.c.b16 %v2024, %v2017
      %v2571 = vpack.c.b16 %v2025, %v2018
      %v2572 = vpack.c.b16 %v2026, %v2019
      %v2573 = vpack.c.b16 %v2034, %v2027
      %v2574 = vpack.c.b16 %v2035, %v2028
      %v2575 = vpack.c.b16 %v2036, %v2029
      %v2576 = vpack.c.b16 %v2037, %v2030
      %v2577 = vpack.c.b16 %v2038, %v2031
      %v2578 = vpack.c.b16 %v2039, %v2032
      %v2579 = vpack.c.b16 %v2040, %v2033
      %v2580 = vpack.c.b16 %v2048, %v2041
      %v2581 = vpack.c.b16 %v2049, %v2042
      %v2582 = vpack.c.b16 %v2050, %v2043
      %v2583 = vpack.c.b16 %v2051, %v2044
      %v2584 = vpack.c.b16 %v2052, %v2045
      %v2585 = vpack.c.b16 %v2053, %v2046
      %v2586 = vpack.c.b16 %v2054, %v2047
      %v2587 = vpack.c.b16 %v2062, %v2055
      %v2588 = vpack.c.b16 %v2063, %v2056
      %v2589 = vpack.c.b16 %v2064, %v2057
      %v2590 = vpack.c.b16 %v2065, %v2058
      %v2591 = vpack.c.b16 %v2066, %v2059
      %v2592 = vpack.c.b16 %v2067, %v2060
      %v2593 = vpack.c.b16 %v2068, %v2061
      %v2594 = vpack.c.b16 %v2076, %v2069
      %v2595 = vpack.c.b16 %v2077, %v2070
      %v2596 = vpack.c.b16 %v2078, %v2071
      %v2597 = vpack.c.b16 %v2079, %v2072
      %v2598 = vpack.c.b16 %v2080, %v2073
      %v2599 = vpack.c.b16 %v2081, %v2074
      %v2600 = vpack.c.b16 %v2082, %v2075
      %v2601 = vpack.c.b16 %v2090, %v2083
      %v2602 = vpack.c.b16 %v2091, %v2084
      %v2603 = vpack.c.b16 %v2092, %v2085
      %v2604 = vpack.c.b16 %v2093, %v2086
      %v2605 = vpack.c.b16 %v2094, %v2087
      %v2606 = vpack.c.b16 %v2095, %v2088
      %v2607 = vpack.c.b16 %v2096, %v2089
      %v2608 = vpack.c.b16 %v2104, %v2097
      %v2609 = vpack.c.b16 %v2105, %v2098
      %v2610 = vpack.c.b16 %v2106, %v2099
      %v2611 = vpack.c.b16 %v2107, %v2100
      %v2612 = vpack.c.b16 %v2108, %v2101
      %v2613 = vpack.c.b16 %v2109, %v2102
      %v2614 = vpack.c.b16 %v2110, %v2103
      %v2615 = vpack.c.b16 %v2118, %v2111
      %v2616 = vpack.c.b16 %v2119, %v2112
      %v2617 = vpack.c.b16 %v2120, %v2113
      %v2618 = vpack.c.b16 %v2121, %v2114
      %v2619 = vpack.c.b16 %v2122, %v2115
      %v2620 = vpack.c.b16 %v2123, %v2116
      %v2621 = vpack.c.b16 %v2124, %v2117
      %v2622 = vpack.c.b16 %v2132, %v2125
      %v2623 = vpack.c.b16 %v2133, %v2126
      %v2624 = vpack.c.b16 %v2134, %v2127
      %v2625 = vpack.c.b16 %v2135, %v2128
      %v2626 = vpack.c.b16 %v2136, %v2129
      %v2627 = vpack.c.b16 %v2137, %v2130
      %v2628 = vpack.c.b16 %v2138, %v2131
      %v2629 = vpack.c.b16 %v2146, %v2139
      %v2630 = vpack.c.b16 %v2147, %v2140
      %v2631 = vpack.c.b16 %v2148, %v2141
      %v2632 = vpack.c.b16 %v2149, %v2142
      %v2633 = vpack.c.b16 %v2150, %v2143
      %v2634 = vpack.c.b16 %v2151, %v2144
      %v2635 = vpack.c.b16 %v2152, %v2145
      %v2636 = vpack.c.b16 %v2160, %v2153
      %v2637 = vpack.c.b16 %v2161, %v2154
      %v2638 = vpack.c.b16 %v2162, %v2155
      %v2639 = vpack.c.b16 %v2163, %v2156
      %v2640 = vpack.c.b16 %v2164, %v2157
      %v2641 = vpack.c.b16 %v2165, %v2158
      %v2642 = vpack.c.b16 %v2166, %v2159
      %v2643 = vpack.c.b16 %v2174, %v2167
      %v2644 = vpack.c.b16 %v2175, %v2168
      %v2645 = vpack.c.b16 %v2176, %v2169
      %v2646 = vpack.c.b16 %v2177, %v2170
      %v2647 = vpack.c.b16 %v2178, %v2171
      %v2648 = vpack.c.b16 %v2179, %v2172
      %v2649 = vpack.c.b16 %v2180, %v2173
      %v2650 = vpack.c.b16 %v2188, %v2181
      %v2651 = vpack.c.b16 %v2189, %v2182
      %v2652 = vpack.c.b16 %v2190, %v2183
      %v2653 = vpack.c.b16 %v2191, %v2184
      %v2654 = vpack.c.b16 %v2192, %v2185
      %v2655 = vpack.c.b16 %v2193, %v2186
      %v2656 = vpack.c.b16 %v2194, %v2187
      %v2657 = vpack.c.b16 %v2202, %v2195
      %v2658 = vpack.c.b16 %v2203, %v2196
      %v2659 = vpack.c.b16 %v2204, %v2197
      %v2660 = vpack.c.b16 %v2205, %v2198
      %v2661 = vpack.c.b16 %v2206, %v2199
      %v2662 = vpack.c.b16 %v2207, %v2200
      %v2663 = vpack.c.b16 %v2208, %v2201
      %v2664 = vpack.c.b16 %v2216, %v2209
      %v2665 = vpack.c.b16 %v2217, %v2210
      %v2666 = vpack.c.b16 %v2218, %v2211
      %v2667 = vpack.c.b16 %v2219, %v2212
      %v2668 = vpack.c.b16 %v2220, %v2213
      %v2669 = vpack.c.b16 %v2221, %v2214
      %v2670 = vpack.c.b16 %v2222, %v2215
      %v3153 = vunpack.c.l.b16 %v717
      %v3154 = vunpack.c.l.b16 %v718
      %v3155 = vunpack.c.l.b16 %v719
      %v3156 = vunpack.c.l.b16 %v720
      %v3157 = vunpack.c.l.b16 %v721
      %v3158 = vunpack.c.l.b16 %v722
      %v3159 = vunpack.c.l.b16 %v723
      %v3160 = vunpack.c.l.b16 %v724
      %v3161 = vunpack.c.l.b16 %v725
      %v3162 = vunpack.c.l.b16 %v726
      %v3163 = vunpack.c.l.b16 %v727
      %v3164 = vunpack.c.l.b16 %v728
      %v3165 = vunpack.c.l.b16 %v729
      %v3166 = vunpack.c.l.b16 %v730
      %v3167 = vunpack.c.l.b16 %v731
      %v3168 = vunpack.c.l.b16 %v732
      %v3169 = vunpack.c.l.b16 %v733
      %v3170 = vunpack.c.l.b16 %v734
      %v3171 = vunpack.c.l.b16 %v735
      %v3172 = vunpack.c.l.b16 %v736
      %v3173 = vunpack.c.l.b16 %v737
      %v3174 = vunpack.c.l.b16 %v738
      %v3175 = vunpack.c.l.b16 %v739
      %v3176 = vunpack.c.l.b16 %v740
      %v3177 = vunpack.c.l.b16 %v741
      %v3178 = vunpack.c.l.b16 %v742
      %v3179 = vunpack.c.l.b16 %v743
      %v3180 = vunpack.c.l.b16 %v744
      %v3181 = vunpack.c.l.b16 %v745
      %v3182 = vunpack.c.l.b16 %v746
      %v3183 = vunpack.c.l.b16 %v747
      %v3184 = vunpack.c.l.b16 %v748
      %v3185 = vunpack.c.l.b16 %v749
      %v3186 = vunpack.c.l.b16 %v750
      %v3187 = vunpack.c.l.b16 %v751
      %v3188 = vunpack.c.l.b16 %v752
      %v3189 = vunpack.c.l.b16 %v753
      %v3190 = vunpack.c.l.b16 %v754
      %v3191 = vunpack.c.l.b16 %v755
      %v3192 = vunpack.c.l.b16 %v756
      %v3193 = vunpack.c.l.b16 %v757
      %v3194 = vunpack.c.l.b16 %v758
      %v3195 = vunpack.c.l.b16 %v759
      %v3196 = vunpack.c.l.b16 %v760
      %v3197 = vunpack.c.l.b16 %v761
      %v3198 = vunpack.c.l.b16 %v762
      %v3199 = vunpack.c.l.b16 %v763
      %v3200 = vunpack.c.l.b16 %v764
      %v3201 = vunpack.c.l.b16 %v765
      %v3202 = vunpack.c.l.b16 %v766
      %v3203 = vunpack.c.l.b16 %v767
      %v3204 = vunpack.c.l.b16 %v768
      %v3205 = vunpack.c.l.b16 %v769
      %v3206 = vunpack.c.l.b16 %v770
      %v3207 = vunpack.c.l.b16 %v771
      %v3208 = vunpack.c.l.b16 %v772
      %v3209 = vunpack.c.l.b16 %v773
      %v3210 = vunpack.c.l.b16 %v774
      %v3211 = vunpack.c.l.b16 %v775
      %v3212 = vunpack.c.l.b16 %v776
      %v3213 = vunpack.c.l.b16 %v777
      %v3214 = vunpack.c.l.b16 %v778
      %v3215 = vunpack.c.l.b16 %v779
      %v3216 = vunpack.c.l.b16 %v780
      %v3217 = vunpack.c.l.b16 %v781
      %v3218 = vunpack.c.l.b16 %v782
      %v3219 = vunpack.c.l.b16 %v783
      %v3220 = vunpack.c.l.b16 %v784
      %v3221 = vunpack.c.l.b16 %v785
      %v3222 = vunpack.c.l.b16 %v786
      %v3223 = vunpack.c.l.b16 %v787
      %v3224 = vunpack.c.l.b16 %v788
      %v3225 = vunpack.c.l.b16 %v789
      %v3226 = vunpack.c.l.b16 %v790
      %v3227 = vunpack.c.l.b16 %v791
      %v3228 = vunpack.c.l.b16 %v792
      %v3229 = vunpack.c.l.b16 %v793
      %v3230 = vunpack.c.l.b16 %v794
      %v3231 = vunpack.c.l.b16 %v795
      %v3232 = vunpack.c.l.b16 %v796
      %v3233 = vunpack.c.l.b16 %v797
      %v3234 = vunpack.c.l.b16 %v798
      %v3235 = vunpack.c.l.b16 %v799
      %v3236 = vunpack.c.l.b16 %v800
      %v3237 = vunpack.c.l.b16 %v801
      %v3238 = vunpack.c.l.b16 %v802
      %v3239 = vunpack.c.l.b16 %v803
      %v3240 = vunpack.c.l.b16 %v804
      %v3241 = vunpack.c.l.b16 %v805
      %v3242 = vunpack.c.l.b16 %v806
      %v3243 = vunpack.c.l.b16 %v807
      %v3244 = vunpack.c.l.b16 %v808
      %v3245 = vunpack.c.l.b16 %v809
      %v3246 = vunpack.c.l.b16 %v810
      %v3247 = vunpack.c.l.b16 %v811
      %v3248 = vunpack.c.l.b16 %v812
      %v3249 = vunpack.c.l.b16 %v813
      %v3250 = vunpack.c.l.b16 %v814
      %v3251 = vpack.c.b16 %v3154, %v3153
      %v3252 = vpack.c.b16 %v3156, %v3155
      %v3253 = vpack.c.b16 %v3158, %v3157
      %v3254 = vpack.c.b16 %v3160, %v3159
      %v3255 = vpack.c.b16 %v3162, %v3161
      %v3256 = vpack.c.b16 %v3164, %v3163
      %v3257 = vpack.c.b16 %v3166, %v3165
      %v3258 = vpack.c.b16 %v3168, %v3167
      %v3259 = vpack.c.b16 %v3170, %v3169
      %v3260 = vpack.c.b16 %v3172, %v3171
      %v3261 = vpack.c.b16 %v3174, %v3173
      %v3262 = vpack.c.b16 %v3176, %v3175
      %v3263 = vpack.c.b16 %v3178, %v3177
      %v3264 = vpack.c.b16 %v3180, %v3179
      %v3265 = vpack.c.b16 %v3182, %v3181
      %v3266 = vpack.c.b16 %v3184, %v3183
      %v3267 = vpack.c.b16 %v3186, %v3185
      %v3268 = vpack.c.b16 %v3188, %v3187
      %v3269 = vpack.c.b16 %v3190, %v3189
      %v3270 = vpack.c.b16 %v3192, %v3191
      %v3271 = vpack.c.b16 %v3194, %v3193
      %v3272 = vpack.c.b16 %v3196, %v3195
      %v3273 = vpack.c.b16 %v3198, %v3197
      %v3274 = vpack.c.b16 %v3200, %v3199
      %v3275 = vpack.c.b16 %v3202, %v3201
      %v3276 = vpack.c.b16 %v3204, %v3203
      %v3277 = vpack.c.b16 %v3206, %v3205
      %v3278 = vpack.c.b16 %v3208, %v3207
      %v3279 = vpack.c.b16 %v3210, %v3209
      %v3280 = vpack.c.b16 %v3212, %v3211
      %v3281 = vpack.c.b16 %v3214, %v3213
      %v3282 = vpack.c.b16 %v3216, %v3215
      %v3283 = vpack.c.b16 %v3218, %v3217
      %v3284 = vpack.c.b16 %v3220, %v3219
      %v3285 = vpack.c.b16 %v3222, %v3221
      %v3286 = vpack.c.b16 %v3224, %v3223
      %v3287 = vpack.c.b16 %v3226, %v3225
      %v3288 = vpack.c.b16 %v3228, %v3227
      %v3289 = vpack.c.b16 %v3230, %v3229
      %v3290 = vpack.c.b16 %v3232, %v3231
      %v3291 = vpack.c.b16 %v3234, %v3233
      %v3292 = vpack.c.b16 %v3236, %v3235
      %v3293 = vpack.c.b16 %v3238, %v3237
      %v3294 = vpack.c.b16 %v3240, %v3239
      %v3295 = vpack.c.b16 %v3242, %v3241
      %v3296 = vpack.c.b16 %v3244, %v3243
      %v3297 = vpack.c.b16 %v3246, %v3245
      %v3298 = vpack.c.b16 %v3248, %v3247
      %v3299 = vpack.c.b16 %v3250, %v3249
      %vm3349 = vcmask 130048
      %v3351 = vsel %vm3349, %v2229, 0
      %v3354 = vsel %vm3349, %v2236, 0
      %v3357 = vsel %vm3349, %v2243, 0
      %v3360 = vsel %vm3349, %v2250, 0
      %v3363 = vsel %vm3349, %v2257, 0
      %v3366 = vsel %vm3349, %v2264, 0
      %v3369 = vsel %vm3349, %v2271, 0
      %v3372 = vsel %vm3349, %v2278, 0
      %v3375 = vsel %vm3349, %v2285, 0
      %v3378 = vsel %vm3349, %v2292, 0
      %v3381 = vsel %vm3349, %v2299, 0
      %v3384 = vsel %vm3349, %v2306, 0
      %v3387 = vsel %vm3349, %v2313, 0
      %v3390 = vsel %vm3349, %v2320, 0
      %v3393 = vsel %vm3349, %v2327, 0
      %v3396 = vsel %vm3349, %v2334, 0
      %v3399 = vsel %vm3349, %v2341, 0
      %v3402 = vsel %vm3349, %v2348, 0
      %v3405 = vsel %vm3349, %v2355, 0
      %v3408 = vsel %vm3349, %v2362, 0
      %v3411 = vsel %vm3349, %v2369, 0
      %v3414 = vsel %vm3349, %v2376, 0
      %v3417 = vsel %vm3349, %v2383, 0
      %v3420 = vsel %vm3349, %v2390, 0
      %v3423 = vsel %vm3349, %v2397, 0
      %v3426 = vsel %vm3349, %v2404, 0
      %v3429 = vsel %vm3349, %v2411, 0
      %v3432 = vsel %vm3349, %v2418, 0
      %v3435 = vsel %vm3349, %v2425, 0
      %v3438 = vsel %vm3349, %v2432, 0
      %v3441 = vsel %vm3349, %v2439, 0
      %v3444 = vsel %vm3349, %v2446, 0
      %v3447 = vsel %vm3349, %v2453, 0
      %v3450 = vsel %vm3349, %v2460, 0
      %v3453 = vsel %vm3349, %v2467, 0
      %v3456 = vsel %vm3349, %v2474, 0
      %v3459 = vsel %vm3349, %v2481, 0
      %v3462 = vsel %vm3349, %v2488, 0
      %v3465 = vsel %vm3349, %v2495, 0
      %v3468 = vsel %vm3349, %v2502, 0
      %v3471 = vsel %vm3349, %v2509, 0
      %v3474 = vsel %vm3349, %v2516, 0
      %v3477 = vsel %vm3349, %v2523, 0
      %v3480 = vsel %vm3349, %v2530, 0
      %v3483 = vsel %vm3349, %v2537, 0
      %v3486 = vsel %vm3349, %v2544, 0
      %v3489 = vsel %vm3349, %v2551, 0
      %v3492 = vsel %vm3349, %v2558, 0
      %v3495 = vsel %vm3349, %v2565, 0
      %v3498 = vsel %vm3349, %v2572, 0
      %v3501 = vsel %vm3349, %v2579, 0
      %v3504 = vsel %vm3349, %v2586, 0
      %v3507 = vsel %vm3349, %v2593, 0
      %v3510 = vsel %vm3349, %v2600, 0
      %v3513 = vsel %vm3349, %v2607, 0
      %v3516 = vsel %vm3349, %v2614, 0
      %v3519 = vsel %vm3349, %v2621, 0
      %v3522 = vsel %vm3349, %v2628, 0
      %v3525 = vsel %vm3349, %v2635, 0
      %v3528 = vsel %vm3349, %v2642, 0
      %v3531 = vsel %vm3349, %v2649, 0
      %v3534 = vsel %vm3349, %v2656, 0
      %v3537 = vsel %vm3349, %v2663, 0
      %v3540 = vsel %vm3349, %v2670, 0
      %3542 = vmatprep.subr.bf16.mxu0 0
      %3543 = vmatpush1.bf16.msra.mxu0 %v3251
      %3544 = vmatprep.subr.bf16.mxu0 0
      %3545 = vmatpush1.bf16.msra.mxu0 %v3252
      %3546 = vmatprep.subr.bf16.mxu0 0
      %3547 = vmatpush1.bf16.msra.mxu0 %v3253
      %3548 = vmatprep.subr.bf16.mxu0 0
      %3549 = vmatpush1.bf16.msra.mxu0 %v3254
      %3550 = vmatprep.subr.bf16.mxu0 0
      %3551 = vmatpush1.bf16.msra.mxu0 %v3255
      %3552 = vmatprep.subr.bf16.mxu0 0
      %3553 = vmatpush1.bf16.msra.mxu0 %v3256
      %3554 = vmatprep.subr.bf16.mxu0 0
      %3555 = vmatpush1.bf16.msra.mxu0 %v3257
      %3556 = vmatprep.subr.bf16.mxu0 0
      %3557 = vmatpush1.bf16.msra.mxu0 %v3258
      %3558 = vmatprep.subr.bf16.mxu0 0
      %3559 = vmatpush1.bf16.msra.mxu0 %v3259
      %3560 = vmatprep.subr.bf16.mxu0 0
      %3561 = vmatpush1.bf16.msra.mxu0 %v3260
      %3562 = vmatprep.subr.bf16.mxu0 0
      %3563 = vmatpush1.bf16.msra.mxu0 %v3261
      %3564 = vmatprep.subr.bf16.mxu0 0
      %3565 = vmatpush1.bf16.msra.mxu0 %v3262
      %3566 = vmatprep.subr.bf16.mxu0 0
      %3567 = vmatpush1.bf16.msra.mxu0 %v3263
      %3568 = vmatprep.subr.bf16.mxu0 0
      %3569 = vmatpush1.bf16.msra.mxu0 %v3264
      %3570 = vmatprep.subr.bf16.mxu0 0
      %3571 = vmatpush1.bf16.msra.mxu0 %v3265
      %3572 = vmatprep.subr.bf16.mxu0 0
      %3573 = vmatpush1.bf16.msra.mxu0 %v3266
      %3574 = vmatprep.mubr.bf16.mxu0 %v2224
      %3575 = vmatmul.mubr.bf16.gmra.mrb[0].mxu0 %v2223
      %v3576 = vpop.f32.mrb[0].mxu0
      %v3577 = vadd.f32 0.0, %v3576
      %v3578 = vpop.f32.mrb[0].mxu0
      %v3579 = vpop.f32.mrb[0].mxu0
      %v3580 = vadd.f32 0.0, %v3579
      %v3581 = vpop.f32.mrb[0].mxu0
      %3582 = vmatprep.mubr.bf16.mxu0 %v2231
      %3583 = vmatmul.mubr.bf16.gmra.mrb[0].mxu0 %v2230
      %v3584 = vpop.f32.mrb[0].mxu0
      %v3585 = vadd.f32 0.0, %v3584
      %v3586 = vpop.f32.mrb[0].mxu0
      %v3587 = vpop.f32.mrb[0].mxu0
      %v3588 = vadd.f32 0.0, %v3587
      %v3589 = vpop.f32.mrb[0].mxu0
      %3590 = vmatprep.mubr.bf16.mxu0 %v2238
      %3591 = vmatmul.mubr.bf16.gmra.mrb[0].mxu0 %v2237
      %v3592 = vpop.f32.mrb[0].mxu0
      %v3593 = vadd.f32 0.0, %v3592
      %v3594 = vpop.f32.mrb[0].mxu0
      %v3595 = vpop.f32.mrb[0].mxu0
      %v3596 = vadd.f32 0.0, %v3595
      %v3597 = vpop.f32.mrb[0].mxu0
      %3598 = vmatprep.mubr.bf16.mxu0 %v2245
      %3599 = vmatmul.mubr.bf16.gmra.mrb[0].mxu0 %v2244
      %v3600 = vpop.f32.mrb[0].mxu0
      %v3601 = vadd.f32 0.0, %v3600
      %v3602 = vpop.f32.mrb[0].mxu0
      %v3603 = vpop.f32.mrb[0].mxu0
      %v3604 = vadd.f32 0.0, %v3603
      %v3605 = vpop.f32.mrb[0].mxu0
      %3606 = vmatprep.mubr.bf16.mxu0 %v2252
      %3607 = vmatmul.mubr.bf16.gmra.mrb[0].mxu0 %v2251
      %v3608 = vpop.f32.mrb[0].mxu0
      %v3609 = vadd.f32 0.0, %v3608
      %v3610 = vpop.f32.mrb[0].mxu0
      %v3611 = vpop.f32.mrb[0].mxu0
      %v3612 = vadd.f32 0.0, %v3611
      %v3613 = vpop.f32.mrb[0].mxu0
      %3614 = vmatprep.mubr.bf16.mxu0 %v2259
      %3615 = vmatmul.mubr.bf16.gmra.mrb[0].mxu0 %v2258
      %v3616 = vpop.f32.mrb[0].mxu0
      %v3617 = vadd.f32 0.0, %v3616
      %v3618 = vpop.f32.mrb[0].mxu0
      %v3619 = vpop.f32.mrb[0].mxu0
      %v3620 = vadd.f32 0.0, %v3619
      %v3621 = vpop.f32.mrb[0].mxu0
      %3622 = vmatprep.mubr.bf16.mxu0 %v2266
      %3623 = vmatmul.mubr.bf16.gmra.mrb[0].mxu0 %v2265
      %v3624 = vpop.f32.mrb[0].mxu0
      %v3625 = vadd.f32 0.0, %v3624
      %v3626 = vpop.f32.mrb[0].mxu0
      %v3627 = vpop.f32.mrb[0].mxu0
      %v3628 = vadd.f32 0.0, %v3627
      %v3629 = vpop.f32.mrb[0].mxu0
      %3630 = vmatprep.mubr.bf16.mxu0 %v2273
      %3631 = vmatmul.mubr.bf16.gmra.mrb[0].mxu0 %v2272
      %v3632 = vpop.f32.mrb[0].mxu0
      %v3633 = vadd.f32 0.0, %v3632
      %v3634 = vpop.f32.mrb[0].mxu0
      %v3635 = vpop.f32.mrb[0].mxu0
      %v3636 = vadd.f32 0.0, %v3635
      %v3637 = vpop.f32.mrb[0].mxu0
      %3638 = vmatprep.mubr.bf16.mxu0 %v2280
      %3639 = vmatmul.mubr.bf16.gmra.mrb[0].mxu0 %v2279
      %v3640 = vpop.f32.mrb[0].mxu0
      %v3641 = vadd.f32 0.0, %v3640
      %v3642 = vpop.f32.mrb[0].mxu0
      %v3643 = vpop.f32.mrb[0].mxu0
      %v3644 = vadd.f32 0.0, %v3643
      %v3645 = vpop.f32.mrb[0].mxu0
      %3646 = vmatprep.mubr.bf16.mxu0 %v2287
      %3647 = vmatmul.mubr.bf16.gmra.mrb[0].mxu0 %v2286
      %v3648 = vpop.f32.mrb[0].mxu0
      %v3649 = vadd.f32 0.0, %v3648
      %v3650 = vpop.f32.mrb[0].mxu0
      %v3651 = vpop.f32.mrb[0].mxu0
      %v3652 = vadd.f32 0.0, %v3651
      %v3653 = vpop.f32.mrb[0].mxu0
      %3654 = vmatprep.mubr.bf16.mxu0 %v2294
      %3655 = vmatmul.mubr.bf16.gmra.mrb[0].mxu0 %v2293
      %v3656 = vpop.f32.mrb[0].mxu0
      %v3657 = vadd.f32 0.0, %v3656
      %v3658 = vpop.f32.mrb[0].mxu0
      %v3659 = vpop.f32.mrb[0].mxu0
      %v3660 = vadd.f32 0.0, %v3659
      %v3661 = vpop.f32.mrb[0].mxu0
      %3662 = vmatprep.mubr.bf16.mxu0 %v2301
      %3663 = vmatmul.mubr.bf16.gmra.mrb[0].mxu0 %v2300
      %v3664 = vpop.f32.mrb[0].mxu0
      %v3665 = vadd.f32 0.0, %v3664
      %v3666 = vpop.f32.mrb[0].mxu0
      %v3667 = vpop.f32.mrb[0].mxu0
      %v3668 = vadd.f32 0.0, %v3667
      %v3669 = vpop.f32.mrb[0].mxu0
      %3670 = vmatprep.mubr.bf16.mxu0 %v2308
      %3671 = vmatmul.mubr.bf16.gmra.mrb[0].mxu0 %v2307
      %v3672 = vpop.f32.mrb[0].mxu0
      %v3673 = vadd.f32 0.0, %v3672
      %v3674 = vpop.f32.mrb[0].mxu0
      %v3675 = vpop.f32.mrb[0].mxu0
      %v3676 = vadd.f32 0.0, %v3675
      %v3677 = vpop.f32.mrb[0].mxu0
      %3678 = vmatprep.mubr.bf16.mxu0 %v2315
      %3679 = vmatmul.mubr.bf16.gmra.mrb[0].mxu0 %v2314
      %v3680 = vpop.f32.mrb[0].mxu0
      %v3681 = vadd.f32 0.0, %v3680
      %v3682 = vpop.f32.mrb[0].mxu0
      %v3683 = vpop.f32.mrb[0].mxu0
      %v3684 = vadd.f32 0.0, %v3683
      %v3685 = vpop.f32.mrb[0].mxu0
      %3686 = vmatprep.mubr.bf16.mxu0 %v2322
      %3687 = vmatmul.mubr.bf16.gmra.mrb[0].mxu0 %v2321
      %v3688 = vpop.f32.mrb[0].mxu0
      %v3689 = vadd.f32 0.0, %v3688
      %v3690 = vpop.f32.mrb[0].mxu0
      %v3691 = vpop.f32.mrb[0].mxu0
      %v3692 = vadd.f32 0.0, %v3691
      %v3693 = vpop.f32.mrb[0].mxu0
      %3694 = vmatprep.mubr.bf16.mxu0 %v2329
      %3695 = vmatmul.mubr.bf16.gmra.mrb[0].mxu0 %v2328
      %v3696 = vpop.f32.mrb[0].mxu0
      %v3697 = vadd.f32 0.0, %v3696
      %v3698 = vpop.f32.mrb[0].mxu0
      %v3699 = vpop.f32.mrb[0].mxu0
      %v3700 = vadd.f32 0.0, %v3699
      %v3701 = vpop.f32.mrb[0].mxu0
      %3702 = vmatprep.mubr.bf16.mxu0 %v2336
      %3703 = vmatmul.mubr.bf16.gmra.mrb[0].mxu0 %v2335
      %v3704 = vpop.f32.mrb[0].mxu0
      %v3705 = vadd.f32 0.0, %v3704
      %v3706 = vpop.f32.mrb[0].mxu0
      %v3707 = vpop.f32.mrb[0].mxu0
      %v3708 = vadd.f32 0.0, %v3707
      %v3709 = vpop.f32.mrb[0].mxu0
      %3710 = vmatprep.mubr.bf16.mxu0 %v2343
      %3711 = vmatmul.mubr.bf16.gmra.mrb[0].mxu0 %v2342
      %v3712 = vpop.f32.mrb[0].mxu0
      %v3713 = vadd.f32 0.0, %v3712
      %v3714 = vpop.f32.mrb[0].mxu0
      %v3715 = vpop.f32.mrb[0].mxu0
      %v3716 = vadd.f32 0.0, %v3715
      %v3717 = vpop.f32.mrb[0].mxu0
      %3718 = vmatprep.mubr.bf16.mxu0 %v2350
      %3719 = vmatmul.mubr.bf16.gmra.mrb[0].mxu0 %v2349
      %v3720 = vpop.f32.mrb[0].mxu0
      %v3721 = vadd.f32 0.0, %v3720
      %v3722 = vpop.f32.mrb[0].mxu0
      %v3723 = vpop.f32.mrb[0].mxu0
      %v3724 = vadd.f32 0.0, %v3723
      %v3725 = vpop.f32.mrb[0].mxu0
      %3726 = vmatprep.mubr.bf16.mxu0 %v2357
      %3727 = vmatmul.mubr.bf16.gmra.mrb[0].mxu0 %v2356
      %v3728 = vpop.f32.mrb[0].mxu0
      %v3729 = vadd.f32 0.0, %v3728
      %v3730 = vpop.f32.mrb[0].mxu0
      %v3731 = vpop.f32.mrb[0].mxu0
      %v3732 = vadd.f32 0.0, %v3731
      %v3733 = vpop.f32.mrb[0].mxu0
      %3734 = vmatprep.mubr.bf16.mxu0 %v2364
      %3735 = vmatmul.mubr.bf16.gmra.mrb[0].mxu0 %v2363
      %v3736 = vpop.f32.mrb[0].mxu0
      %v3737 = vadd.f32 0.0, %v3736
      %v3738 = vpop.f32.mrb[0].mxu0
      %v3739 = vpop.f32.mrb[0].mxu0
      %v3740 = vadd.f32 0.0, %v3739
      %v3741 = vpop.f32.mrb[0].mxu0
      %3742 = vmatprep.mubr.bf16.mxu0 %v2371
      %3743 = vmatmul.mubr.bf16.gmra.mrb[0].mxu0 %v2370
      %v3744 = vpop.f32.mrb[0].mxu0
      %v3745 = vadd.f32 0.0, %v3744
      %v3746 = vpop.f32.mrb[0].mxu0
      %v3747 = vpop.f32.mrb[0].mxu0
      %v3748 = vadd.f32 0.0, %v3747
      %v3749 = vpop.f32.mrb[0].mxu0
      %3750 = vmatprep.mubr.bf16.mxu0 %v2378
      %3751 = vmatmul.mubr.bf16.gmra.mrb[0].mxu0 %v2377
      %v3752 = vpop.f32.mrb[0].mxu0
      %v3753 = vadd.f32 0.0, %v3752
      %v3754 = vpop.f32.mrb[0].mxu0
      %v3755 = vpop.f32.mrb[0].mxu0
      %v3756 = vadd.f32 0.0, %v3755
      %v3757 = vpop.f32.mrb[0].mxu0
      %3758 = vmatprep.mubr.bf16.mxu0 %v2385
      %3759 = vmatmul.mubr.bf16.gmra.mrb[0].mxu0 %v2384
      %v3760 = vpop.f32.mrb[0].mxu0
      %v3761 = vadd.f32 0.0, %v3760
      %v3762 = vpop.f32.mrb[0].mxu0
      %v3763 = vpop.f32.mrb[0].mxu0
      %v3764 = vadd.f32 0.0, %v3763
      %v3765 = vpop.f32.mrb[0].mxu0
      %3766 = vmatprep.mubr.bf16.mxu0 %v2392
      %3767 = vmatmul.mubr.bf16.gmra.mrb[0].mxu0 %v2391
      %v3768 = vpop.f32.mrb[0].mxu0
      %v3769 = vadd.f32 0.0, %v3768
      %v3770 = vpop.f32.mrb[0].mxu0
      %v3771 = vpop.f32.mrb[0].mxu0
      %v3772 = vadd.f32 0.0, %v3771
      %v3773 = vpop.f32.mrb[0].mxu0
      %3774 = vmatprep.mubr.bf16.mxu0 %v2399
      %3775 = vmatmul.mubr.bf16.gmra.mrb[0].mxu0 %v2398
      %v3776 = vpop.f32.mrb[0].mxu0
      %v3777 = vadd.f32 0.0, %v3776
      %v3778 = vpop.f32.mrb[0].mxu0
      %v3779 = vpop.f32.mrb[0].mxu0
      %v3780 = vadd.f32 0.0, %v3779
      %v3781 = vpop.f32.mrb[0].mxu0
      %3782 = vmatprep.mubr.bf16.mxu0 %v2406
      %3783 = vmatmul.mubr.bf16.gmra.mrb[0].mxu0 %v2405
      %v3784 = vpop.f32.mrb[0].mxu0
      %v3785 = vadd.f32 0.0, %v3784
      %v3786 = vpop.f32.mrb[0].mxu0
      %v3787 = vpop.f32.mrb[0].mxu0
      %v3788 = vadd.f32 0.0, %v3787
      %v3789 = vpop.f32.mrb[0].mxu0
      %3790 = vmatprep.mubr.bf16.mxu0 %v2413
      %3791 = vmatmul.mubr.bf16.gmra.mrb[0].mxu0 %v2412
      %v3792 = vpop.f32.mrb[0].mxu0
      %v3793 = vadd.f32 0.0, %v3792
      %v3794 = vpop.f32.mrb[0].mxu0
      %v3795 = vpop.f32.mrb[0].mxu0
      %v3796 = vadd.f32 0.0, %v3795
      %v3797 = vpop.f32.mrb[0].mxu0
      %3798 = vmatprep.mubr.bf16.mxu0 %v2420
      %3799 = vmatmul.mubr.bf16.gmra.mrb[0].mxu0 %v2419
      %v3800 = vpop.f32.mrb[0].mxu0
      %v3801 = vadd.f32 0.0, %v3800
      %v3802 = vpop.f32.mrb[0].mxu0
      %v3803 = vpop.f32.mrb[0].mxu0
      %v3804 = vadd.f32 0.0, %v3803
      %v3805 = vpop.f32.mrb[0].mxu0
      %3806 = vmatprep.mubr.bf16.mxu0 %v2427
      %3807 = vmatmul.mubr.bf16.gmra.mrb[0].mxu0 %v2426
      %v3808 = vpop.f32.mrb[0].mxu0
      %v3809 = vadd.f32 0.0, %v3808
      %v3810 = vpop.f32.mrb[0].mxu0
      %v3811 = vpop.f32.mrb[0].mxu0
      %v3812 = vadd.f32 0.0, %v3811
      %v3813 = vpop.f32.mrb[0].mxu0
      %3814 = vmatprep.mubr.bf16.mxu0 %v2434
      %3815 = vmatmul.mubr.bf16.gmra.mrb[0].mxu0 %v2433
      %v3816 = vpop.f32.mrb[0].mxu0
      %v3817 = vadd.f32 0.0, %v3816
      %v3818 = vpop.f32.mrb[0].mxu0
      %v3819 = vpop.f32.mrb[0].mxu0
      %v3820 = vadd.f32 0.0, %v3819
      %v3821 = vpop.f32.mrb[0].mxu0
      %3822 = vmatprep.mubr.bf16.mxu0 %v2441
      %3823 = vmatmul.mubr.bf16.gmra.mrb[0].mxu0 %v2440
      %v3824 = vpop.f32.mrb[0].mxu0
      %v3825 = vadd.f32 0.0, %v3824
      %v3826 = vpop.f32.mrb[0].mxu0
      %v3827 = vpop.f32.mrb[0].mxu0
      %v3828 = vadd.f32 0.0, %v3827
      %v3829 = vpop.f32.mrb[0].mxu0
      %3830 = vmatprep.mubr.bf16.mxu0 %v2448
      %3831 = vmatmul.mubr.bf16.gmra.mrb[0].mxu0 %v2447
      %v3832 = vpop.f32.mrb[0].mxu0
      %v3833 = vadd.f32 0.0, %v3832
      %v3834 = vpop.f32.mrb[0].mxu0
      %v3835 = vpop.f32.mrb[0].mxu0
      %v3836 = vadd.f32 0.0, %v3835
      %v3837 = vpop.f32.mrb[0].mxu0
      %3838 = vmatprep.mubr.bf16.mxu0 %v2455
      %3839 = vmatmul.mubr.bf16.gmra.mrb[0].mxu0 %v2454
      %v3840 = vpop.f32.mrb[0].mxu0
      %v3841 = vadd.f32 0.0, %v3840
      %v3842 = vpop.f32.mrb[0].mxu0
      %v3843 = vpop.f32.mrb[0].mxu0
      %v3844 = vadd.f32 0.0, %v3843
      %v3845 = vpop.f32.mrb[0].mxu0
      %3846 = vmatprep.mubr.bf16.mxu0 %v2462
      %3847 = vmatmul.mubr.bf16.gmra.mrb[0].mxu0 %v2461
      %v3848 = vpop.f32.mrb[0].mxu0
      %v3849 = vadd.f32 0.0, %v3848
      %v3850 = vpop.f32.mrb[0].mxu0
      %v3851 = vpop.f32.mrb[0].mxu0
      %v3852 = vadd.f32 0.0, %v3851
      %v3853 = vpop.f32.mrb[0].mxu0
      %3854 = vmatprep.mubr.bf16.mxu0 %v2469
      %3855 = vmatmul.mubr.bf16.gmra.mrb[0].mxu0 %v2468
      %v3856 = vpop.f32.mrb[0].mxu0
      %v3857 = vadd.f32 0.0, %v3856
      %v3858 = vpop.f32.mrb[0].mxu0
      %v3859 = vpop.f32.mrb[0].mxu0
      %v3860 = vadd.f32 0.0, %v3859
      %v3861 = vpop.f32.mrb[0].mxu0
      %3862 = vmatprep.mubr.bf16.mxu0 %v2476
      %3863 = vmatmul.mubr.bf16.gmra.mrb[0].mxu0 %v2475
      %v3864 = vpop.f32.mrb[0].mxu0
      %v3865 = vadd.f32 0.0, %v3864
      %v3866 = vpop.f32.mrb[0].mxu0
      %v3867 = vpop.f32.mrb[0].mxu0
      %v3868 = vadd.f32 0.0, %v3867
      %v3869 = vpop.f32.mrb[0].mxu0
      %3870 = vmatprep.mubr.bf16.mxu0 %v2483
      %3871 = vmatmul.mubr.bf16.gmra.mrb[0].mxu0 %v2482
      %v3872 = vpop.f32.mrb[0].mxu0
      %v3873 = vadd.f32 0.0, %v3872
      %v3874 = vpop.f32.mrb[0].mxu0
      %v3875 = vpop.f32.mrb[0].mxu0
      %v3876 = vadd.f32 0.0, %v3875
      %v3877 = vpop.f32.mrb[0].mxu0
      %3878 = vmatprep.mubr.bf16.mxu0 %v2490
      %3879 = vmatmul.mubr.bf16.gmra.mrb[0].mxu0 %v2489
      %v3880 = vpop.f32.mrb[0].mxu0
      %v3881 = vadd.f32 0.0, %v3880
      %v3882 = vpop.f32.mrb[0].mxu0
      %v3883 = vpop.f32.mrb[0].mxu0
      %v3884 = vadd.f32 0.0, %v3883
      %v3885 = vpop.f32.mrb[0].mxu0
      %3886 = vmatprep.mubr.bf16.mxu0 %v2497
      %3887 = vmatmul.mubr.bf16.gmra.mrb[0].mxu0 %v2496
      %v3888 = vpop.f32.mrb[0].mxu0
      %v3889 = vadd.f32 0.0, %v3888
      %v3890 = vpop.f32.mrb[0].mxu0
      %v3891 = vpop.f32.mrb[0].mxu0
      %v3892 = vadd.f32 0.0, %v3891
      %v3893 = vpop.f32.mrb[0].mxu0
      %3894 = vmatprep.mubr.bf16.mxu0 %v2504
      %3895 = vmatmul.mubr.bf16.gmra.mrb[0].mxu0 %v2503
      %v3896 = vpop.f32.mrb[0].mxu0
      %v3897 = vadd.f32 0.0, %v3896
      %v3898 = vpop.f32.mrb[0].mxu0
      %v3899 = vpop.f32.mrb[0].mxu0
      %v3900 = vadd.f32 0.0, %v3899
      %v3901 = vpop.f32.mrb[0].mxu0
      %3902 = vmatprep.mubr.bf16.mxu0 %v2511
      %3903 = vmatmul.mubr.bf16.gmra.mrb[0].mxu0 %v2510
      %v3904 = vpop.f32.mrb[0].mxu0
      %v3905 = vadd.f32 0.0, %v3904
      %v3906 = vpop.f32.mrb[0].mxu0
      %v3907 = vpop.f32.mrb[0].mxu0
      %v3908 = vadd.f32 0.0, %v3907
      %v3909 = vpop.f32.mrb[0].mxu0
      %3910 = vmatprep.mubr.bf16.mxu0 %v2518
      %3911 = vmatmul.mubr.bf16.gmra.mrb[0].mxu0 %v2517
      %v3912 = vpop.f32.mrb[0].mxu0
      %v3913 = vadd.f32 0.0, %v3912
      %v3914 = vpop.f32.mrb[0].mxu0
      %v3915 = vpop.f32.mrb[0].mxu0
      %v3916 = vadd.f32 0.0, %v3915
      %v3917 = vpop.f32.mrb[0].mxu0
      %3918 = vmatprep.mubr.bf16.mxu0 %v2525
      %3919 = vmatmul.mubr.bf16.gmra.mrb[0].mxu0 %v2524
      %v3920 = vpop.f32.mrb[0].mxu0
      %v3921 = vadd.f32 0.0, %v3920
      %v3922 = vpop.f32.mrb[0].mxu0
      %v3923 = vpop.f32.mrb[0].mxu0
      %v3924 = vadd.f32 0.0, %v3923
      %v3925 = vpop.f32.mrb[0].mxu0
      %3926 = vmatprep.mubr.bf16.mxu0 %v2532
      %3927 = vmatmul.mubr.bf16.gmra.mrb[0].mxu0 %v2531
      %v3928 = vpop.f32.mrb[0].mxu0
      %v3929 = vadd.f32 0.0, %v3928
      %v3930 = vpop.f32.mrb[0].mxu0
      %v3931 = vpop.f32.mrb[0].mxu0
      %v3932 = vadd.f32 0.0, %v3931
      %v3933 = vpop.f32.mrb[0].mxu0
      %3934 = vmatprep.mubr.bf16.mxu0 %v2539
      %3935 = vmatmul.mubr.bf16.gmra.mrb[0].mxu0 %v2538
      %v3936 = vpop.f32.mrb[0].mxu0
      %v3937 = vadd.f32 0.0, %v3936
      %v3938 = vpop.f32.mrb[0].mxu0
      %v3939 = vpop.f32.mrb[0].mxu0
      %v3940 = vadd.f32 0.0, %v3939
      %v3941 = vpop.f32.mrb[0].mxu0
      %3942 = vmatprep.mubr.bf16.mxu0 %v2546
      %3943 = vmatmul.mubr.bf16.gmra.mrb[0].mxu0 %v2545
      %v3944 = vpop.f32.mrb[0].mxu0
      %v3945 = vadd.f32 0.0, %v3944
      %v3946 = vpop.f32.mrb[0].mxu0
      %v3947 = vpop.f32.mrb[0].mxu0
      %v3948 = vadd.f32 0.0, %v3947
      %v3949 = vpop.f32.mrb[0].mxu0
      %3950 = vmatprep.mubr.bf16.mxu0 %v2553
      %3951 = vmatmul.mubr.bf16.gmra.mrb[0].mxu0 %v2552
      %v3952 = vpop.f32.mrb[0].mxu0
      %v3953 = vadd.f32 0.0, %v3952
      %v3954 = vpop.f32.mrb[0].mxu0
      %v3955 = vpop.f32.mrb[0].mxu0
      %v3956 = vadd.f32 0.0, %v3955
      %v3957 = vpop.f32.mrb[0].mxu0
      %3958 = vmatprep.mubr.bf16.mxu0 %v2560
      %3959 = vmatmul.mubr.bf16.gmra.mrb[0].mxu0 %v2559
      %v3960 = vpop.f32.mrb[0].mxu0
      %v3961 = vadd.f32 0.0, %v3960
      %v3962 = vpop.f32.mrb[0].mxu0
      %v3963 = vpop.f32.mrb[0].mxu0
      %v3964 = vadd.f32 0.0, %v3963
      %v3965 = vpop.f32.mrb[0].mxu0
      %3966 = vmatprep.mubr.bf16.mxu0 %v2567
      %3967 = vmatmul.mubr.bf16.gmra.mrb[0].mxu0 %v2566
      %v3968 = vpop.f32.mrb[0].mxu0
      %v3969 = vadd.f32 0.0, %v3968
      %v3970 = vpop.f32.mrb[0].mxu0
      %v3971 = vpop.f32.mrb[0].mxu0
      %v3972 = vadd.f32 0.0, %v3971
      %v3973 = vpop.f32.mrb[0].mxu0
      %3974 = vmatprep.mubr.bf16.mxu0 %v2574
      %3975 = vmatmul.mubr.bf16.gmra.mrb[0].mxu0 %v2573
      %v3976 = vpop.f32.mrb[0].mxu0
      %v3977 = vadd.f32 0.0, %v3976
      %v3978 = vpop.f32.mrb[0].mxu0
      %v3979 = vpop.f32.mrb[0].mxu0
      %v3980 = vadd.f32 0.0, %v3979
      %v3981 = vpop.f32.mrb[0].mxu0
      %3982 = vmatprep.mubr.bf16.mxu0 %v2581
      %3983 = vmatmul.mubr.bf16.gmra.mrb[0].mxu0 %v2580
      %v3984 = vpop.f32.mrb[0].mxu0
      %v3985 = vadd.f32 0.0, %v3984
      %v3986 = vpop.f32.mrb[0].mxu0
      %v3987 = vpop.f32.mrb[0].mxu0
      %v3988 = vadd.f32 0.0, %v3987
      %v3989 = vpop.f32.mrb[0].mxu0
      %3990 = vmatprep.mubr.bf16.mxu0 %v2588
      %3991 = vmatmul.mubr.bf16.gmra.mrb[0].mxu0 %v2587
      %v3992 = vpop.f32.mrb[0].mxu0
      %v3993 = vadd.f32 0.0, %v3992
      %v3994 = vpop.f32.mrb[0].mxu0
      %v3995 = vpop.f32.mrb[0].mxu0
      %v3996 = vadd.f32 0.0, %v3995
      %v3997 = vpop.f32.mrb[0].mxu0
      %3998 = vmatprep.mubr.bf16.mxu0 %v2595
      %3999 = vmatmul.mubr.bf16.gmra.mrb[0].mxu0 %v2594
      %v4000 = vpop.f32.mrb[0].mxu0
      %v4001 = vadd.f32 0.0, %v4000
      %v4002 = vpop.f32.mrb[0].mxu0
      %v4003 = vpop.f32.mrb[0].mxu0
      %v4004 = vadd.f32 0.0, %v4003
      %v4005 = vpop.f32.mrb[0].mxu0
      %4006 = vmatprep.mubr.bf16.mxu0 %v2602
      %4007 = vmatmul.mubr.bf16.gmra.mrb[0].mxu0 %v2601
      %v4008 = vpop.f32.mrb[0].mxu0
      %v4009 = vadd.f32 0.0, %v4008
      %v4010 = vpop.f32.mrb[0].mxu0
      %v4011 = vpop.f32.mrb[0].mxu0
      %v4012 = vadd.f32 0.0, %v4011
      %v4013 = vpop.f32.mrb[0].mxu0
      %4014 = vmatprep.mubr.bf16.mxu0 %v2609
      %4015 = vmatmul.mubr.bf16.gmra.mrb[0].mxu0 %v2608
      %v4016 = vpop.f32.mrb[0].mxu0
      %v4017 = vadd.f32 0.0, %v4016
      %v4018 = vpop.f32.mrb[0].mxu0
      %v4019 = vpop.f32.mrb[0].mxu0
      %v4020 = vadd.f32 0.0, %v4019
      %v4021 = vpop.f32.mrb[0].mxu0
      %4022 = vmatprep.mubr.bf16.mxu0 %v2616
      %4023 = vmatmul.mubr.bf16.gmra.mrb[0].mxu0 %v2615
      %v4024 = vpop.f32.mrb[0].mxu0
      %v4025 = vadd.f32 0.0, %v4024
      %v4026 = vpop.f32.mrb[0].mxu0
      %v4027 = vpop.f32.mrb[0].mxu0
      %v4028 = vadd.f32 0.0, %v4027
      %v4029 = vpop.f32.mrb[0].mxu0
      %4030 = vmatprep.mubr.bf16.mxu0 %v2623
      %4031 = vmatmul.mubr.bf16.gmra.mrb[0].mxu0 %v2622
      %v4032 = vpop.f32.mrb[0].mxu0
      %v4033 = vadd.f32 0.0, %v4032
      %v4034 = vpop.f32.mrb[0].mxu0
      %v4035 = vpop.f32.mrb[0].mxu0
      %v4036 = vadd.f32 0.0, %v4035
      %v4037 = vpop.f32.mrb[0].mxu0
      %4038 = vmatprep.mubr.bf16.mxu0 %v2630
      %4039 = vmatmul.mubr.bf16.gmra.mrb[0].mxu0 %v2629
      %v4040 = vpop.f32.mrb[0].mxu0
      %v4041 = vadd.f32 0.0, %v4040
      %v4042 = vpop.f32.mrb[0].mxu0
      %v4043 = vpop.f32.mrb[0].mxu0
      %v4044 = vadd.f32 0.0, %v4043
      %v4045 = vpop.f32.mrb[0].mxu0
      %4046 = vmatprep.mubr.bf16.mxu0 %v2637
      %4047 = vmatmul.mubr.bf16.gmra.mrb[0].mxu0 %v2636
      %v4048 = vpop.f32.mrb[0].mxu0
      %v4049 = vadd.f32 0.0, %v4048
      %v4050 = vpop.f32.mrb[0].mxu0
      %v4051 = vpop.f32.mrb[0].mxu0
      %v4052 = vadd.f32 0.0, %v4051
      %v4053 = vpop.f32.mrb[0].mxu0
      %4054 = vmatprep.mubr.bf16.mxu0 %v2644
      %4055 = vmatmul.mubr.bf16.gmra.mrb[0].mxu0 %v2643
      %v4056 = vpop.f32.mrb[0].mxu0
      %v4057 = vadd.f32 0.0, %v4056
      %v4058 = vpop.f32.mrb[0].mxu0
      %v4059 = vpop.f32.mrb[0].mxu0
      %v4060 = vadd.f32 0.0, %v4059
      %v4061 = vpop.f32.mrb[0].mxu0
      %4062 = vmatprep.mubr.bf16.mxu0 %v2651
      %4063 = vmatmul.mubr.bf16.gmra.mrb[0].mxu0 %v2650
      %v4064 = vpop.f32.mrb[0].mxu0
      %v4065 = vadd.f32 0.0, %v4064
      %v4066 = vpop.f32.mrb[0].mxu0
      %v4067 = vpop.f32.mrb[0].mxu0
      %v4068 = vadd.f32 0.0, %v4067
      %v4069 = vpop.f32.mrb[0].mxu0
      %4070 = vmatprep.mubr.bf16.mxu0 %v2658
      %4071 = vmatmul.mubr.bf16.gmra.mrb[0].mxu0 %v2657
      %v4072 = vpop.f32.mrb[0].mxu0
      %v4073 = vadd.f32 0.0, %v4072
      %v4074 = vpop.f32.mrb[0].mxu0
      %v4075 = vpop.f32.mrb[0].mxu0
      %v4076 = vadd.f32 0.0, %v4075
      %v4077 = vpop.f32.mrb[0].mxu0
      %4078 = vmatprep.mubr.bf16.mxu0 %v2665
      %4079 = vmatmul.mubr.bf16.gmra.mrb[0].mxu0 %v2664
      %v4080 = vpop.f32.mrb[0].mxu0
      %v4081 = vadd.f32 0.0, %v4080
      %v4082 = vpop.f32.mrb[0].mxu0
      %v4083 = vpop.f32.mrb[0].mxu0
      %v4084 = vadd.f32 0.0, %v4083
      %v4085 = vpop.f32.mrb[0].mxu0
      %4086 = vdwg.mxu0
      %4087 = vmatprep.subr.bf16.mxu0 0
      %4088 = vmatpush1.bf16.msra.mxu0 %v3267
      %4089 = vmatprep.subr.bf16.mxu0 0
      %4090 = vmatpush1.bf16.msra.mxu0 %v3268
      %4091 = vmatprep.subr.bf16.mxu0 0
      %4092 = vmatpush1.bf16.msra.mxu0 %v3269
      %4093 = vmatprep.subr.bf16.mxu0 0
      %4094 = vmatpush1.bf16.msra.mxu0 %v3270
      %4095 = vmatprep.subr.bf16.mxu0 0
      %4096 = vmatpush1.bf16.msra.mxu0 %v3271
      %4097 = vmatprep.subr.bf16.mxu0 0
      %4098 = vmatpush1.bf16.msra.mxu0 %v3272
      %4099 = vmatprep.subr.bf16.mxu0 0
      %4100 = vmatpush1.bf16.msra.mxu0 %v3273
      %4101 = vmatprep.subr.bf16.mxu0 0
      %4102 = vmatpush1.bf16.msra.mxu0 %v3274
      %4103 = vmatprep.subr.bf16.mxu0 0
      %4104 = vmatpush1.bf16.msra.mxu0 %v3275
      %4105 = vmatprep.subr.bf16.mxu0 0
      %4106 = vmatpush1.bf16.msra.mxu0 %v3276
      %4107 = vmatprep.subr.bf16.mxu0 0
      %4108 = vmatpush1.bf16.msra.mxu0 %v3277
      %4109 = vmatprep.subr.bf16.mxu0 0
      %4110 = vmatpush1.bf16.msra.mxu0 %v3278
      %4111 = vmatprep.subr.bf16.mxu0 0
      %4112 = vmatpush1.bf16.msra.mxu0 %v3279
      %4113 = vmatprep.subr.bf16.mxu0 0
      %4114 = vmatpush1.bf16.msra.mxu0 %v3280
      %4115 = vmatprep.subr.bf16.mxu0 0
      %4116 = vmatpush1.bf16.msra.mxu0 %v3281
      %4117 = vmatprep.subr.bf16.mxu0 0
      %4118 = vmatpush1.bf16.msra.mxu0 %v3282
      %4119 = vmatprep.mubr.bf16.mxu0 %v2226
      %4120 = vmatmul.mubr.bf16.gmra.mrb[0].mxu0 %v2225
      %v4121 = vpop.f32.mrb[0].mxu0
      %v4122 = vadd.f32 %v3577, %v4121
      %v4123 = vpop.f32.mrb[0].mxu0
      %v4124 = vpop.f32.mrb[0].mxu0
      %v4125 = vadd.f32 %v3580, %v4124
      %v4126 = vpop.f32.mrb[0].mxu0
      %4127 = vmatprep.mubr.bf16.mxu0 %v2233
      %4128 = vmatmul.mubr.bf16.gmra.mrb[0].mxu0 %v2232
      %v4129 = vpop.f32.mrb[0].mxu0
      %v4130 = vadd.f32 %v3585, %v4129
      %v4131 = vpop.f32.mrb[0].mxu0
      %v4132 = vpop.f32.mrb[0].mxu0
      %v4133 = vadd.f32 %v3588, %v4132
      %v4134 = vpop.f32.mrb[0].mxu0
      %4135 = vmatprep.mubr.bf16.mxu0 %v2240
      %4136 = vmatmul.mubr.bf16.gmra.mrb[0].mxu0 %v2239
      %v4137 = vpop.f32.mrb[0].mxu0
      %v4138 = vadd.f32 %v3593, %v4137
      %v4139 = vpop.f32.mrb[0].mxu0
      %v4140 = vpop.f32.mrb[0].mxu0
      %v4141 = vadd.f32 %v3596, %v4140
      %v4142 = vpop.f32.mrb[0].mxu0
      %4143 = vmatprep.mubr.bf16.mxu0 %v2247
      %4144 = vmatmul.mubr.bf16.gmra.mrb[0].mxu0 %v2246
      %v4145 = vpop.f32.mrb[0].mxu0
      %v4146 = vadd.f32 %v3601, %v4145
      %v4147 = vpop.f32.mrb[0].mxu0
      %v4148 = vpop.f32.mrb[0].mxu0
      %v4149 = vadd.f32 %v3604, %v4148
      %v4150 = vpop.f32.mrb[0].mxu0
      %4151 = vmatprep.mubr.bf16.mxu0 %v2254
      %4152 = vmatmul.mubr.bf16.gmra.mrb[0].mxu0 %v2253
      %v4153 = vpop.f32.mrb[0].mxu0
      %v4154 = vadd.f32 %v3609, %v4153
      %v4155 = vpop.f32.mrb[0].mxu0
      %v4156 = vpop.f32.mrb[0].mxu0
      %v4157 = vadd.f32 %v3612, %v4156
      %v4158 = vpop.f32.mrb[0].mxu0
      %4159 = vmatprep.mubr.bf16.mxu0 %v2261
      %4160 = vmatmul.mubr.bf16.gmra.mrb[0].mxu0 %v2260
      %v4161 = vpop.f32.mrb[0].mxu0
      %v4162 = vadd.f32 %v3617, %v4161
      %v4163 = vpop.f32.mrb[0].mxu0
      %v4164 = vpop.f32.mrb[0].mxu0
      %v4165 = vadd.f32 %v3620, %v4164
      %v4166 = vpop.f32.mrb[0].mxu0
      %4167 = vmatprep.mubr.bf16.mxu0 %v2268
      %4168 = vmatmul.mubr.bf16.gmra.mrb[0].mxu0 %v2267
      %v4169 = vpop.f32.mrb[0].mxu0
      %v4170 = vadd.f32 %v3625, %v4169
      %v4171 = vpop.f32.mrb[0].mxu0
      %v4172 = vpop.f32.mrb[0].mxu0
      %v4173 = vadd.f32 %v3628, %v4172
      %v4174 = vpop.f32.mrb[0].mxu0
      %4175 = vmatprep.mubr.bf16.mxu0 %v2275
      %4176 = vmatmul.mubr.bf16.gmra.mrb[0].mxu0 %v2274
      %v4177 = vpop.f32.mrb[0].mxu0
      %v4178 = vadd.f32 %v3633, %v4177
      %v4179 = vpop.f32.mrb[0].mxu0
      %v4180 = vpop.f32.mrb[0].mxu0
      %v4181 = vadd.f32 %v3636, %v4180
      %v4182 = vpop.f32.mrb[0].mxu0
      %4183 = vmatprep.mubr.bf16.mxu0 %v2282
      %4184 = vmatmul.mubr.bf16.gmra.mrb[0].mxu0 %v2281
      %v4185 = vpop.f32.mrb[0].mxu0
      %v4186 = vadd.f32 %v3641, %v4185
      %v4187 = vpop.f32.mrb[0].mxu0
      %v4188 = vpop.f32.mrb[0].mxu0
      %v4189 = vadd.f32 %v3644, %v4188
      %v4190 = vpop.f32.mrb[0].mxu0
      %4191 = vmatprep.mubr.bf16.mxu0 %v2289
      %4192 = vmatmul.mubr.bf16.gmra.mrb[0].mxu0 %v2288
      %v4193 = vpop.f32.mrb[0].mxu0
      %v4194 = vadd.f32 %v3649, %v4193
      %v4195 = vpop.f32.mrb[0].mxu0
      %v4196 = vpop.f32.mrb[0].mxu0
      %v4197 = vadd.f32 %v3652, %v4196
      %v4198 = vpop.f32.mrb[0].mxu0
      %4199 = vmatprep.mubr.bf16.mxu0 %v2296
      %4200 = vmatmul.mubr.bf16.gmra.mrb[0].mxu0 %v2295
      %v4201 = vpop.f32.mrb[0].mxu0
      %v4202 = vadd.f32 %v3657, %v4201
      %v4203 = vpop.f32.mrb[0].mxu0
      %v4204 = vpop.f32.mrb[0].mxu0
      %v4205 = vadd.f32 %v3660, %v4204
      %v4206 = vpop.f32.mrb[0].mxu0
      %4207 = vmatprep.mubr.bf16.mxu0 %v2303
      %4208 = vmatmul.mubr.bf16.gmra.mrb[0].mxu0 %v2302
      %v4209 = vpop.f32.mrb[0].mxu0
      %v4210 = vadd.f32 %v3665, %v4209
      %v4211 = vpop.f32.mrb[0].mxu0
      %v4212 = vpop.f32.mrb[0].mxu0
      %v4213 = vadd.f32 %v3668, %v4212
      %v4214 = vpop.f32.mrb[0].mxu0
      %4215 = vmatprep.mubr.bf16.mxu0 %v2310
      %4216 = vmatmul.mubr.bf16.gmra.mrb[0].mxu0 %v2309
      %v4217 = vpop.f32.mrb[0].mxu0
      %v4218 = vadd.f32 %v3673, %v4217
      %v4219 = vpop.f32.mrb[0].mxu0
      %v4220 = vpop.f32.mrb[0].mxu0
      %v4221 = vadd.f32 %v3676, %v4220
      %v4222 = vpop.f32.mrb[0].mxu0
      %4223 = vmatprep.mubr.bf16.mxu0 %v2317
      %4224 = vmatmul.mubr.bf16.gmra.mrb[0].mxu0 %v2316
      %v4225 = vpop.f32.mrb[0].mxu0
      %v4226 = vadd.f32 %v3681, %v4225
      %v4227 = vpop.f32.mrb[0].mxu0
      %v4228 = vpop.f32.mrb[0].mxu0
      %v4229 = vadd.f32 %v3684, %v4228
      %v4230 = vpop.f32.mrb[0].mxu0
      %4231 = vmatprep.mubr.bf16.mxu0 %v2324
      %4232 = vmatmul.mubr.bf16.gmra.mrb[0].mxu0 %v2323
      %v4233 = vpop.f32.mrb[0].mxu0
      %v4234 = vadd.f32 %v3689, %v4233
      %v4235 = vpop.f32.mrb[0].mxu0
      %v4236 = vpop.f32.mrb[0].mxu0
      %v4237 = vadd.f32 %v3692, %v4236
      %v4238 = vpop.f32.mrb[0].mxu0
      %4239 = vmatprep.mubr.bf16.mxu0 %v2331
      %4240 = vmatmul.mubr.bf16.gmra.mrb[0].mxu0 %v2330
      %v4241 = vpop.f32.mrb[0].mxu0
      %v4242 = vadd.f32 %v3697, %v4241
      %v4243 = vpop.f32.mrb[0].mxu0
      %v4244 = vpop.f32.mrb[0].mxu0
      %v4245 = vadd.f32 %v3700, %v4244
      %v4246 = vpop.f32.mrb[0].mxu0
      %4247 = vmatprep.mubr.bf16.mxu0 %v2338
      %4248 = vmatmul.mubr.bf16.gmra.mrb[0].mxu0 %v2337
      %v4249 = vpop.f32.mrb[0].mxu0
      %v4250 = vadd.f32 %v3705, %v4249
      %v4251 = vpop.f32.mrb[0].mxu0
      %v4252 = vpop.f32.mrb[0].mxu0
      %v4253 = vadd.f32 %v3708, %v4252
      %v4254 = vpop.f32.mrb[0].mxu0
      %4255 = vmatprep.mubr.bf16.mxu0 %v2345
      %4256 = vmatmul.mubr.bf16.gmra.mrb[0].mxu0 %v2344
      %v4257 = vpop.f32.mrb[0].mxu0
      %v4258 = vadd.f32 %v3713, %v4257
      %v4259 = vpop.f32.mrb[0].mxu0
      %v4260 = vpop.f32.mrb[0].mxu0
      %v4261 = vadd.f32 %v3716, %v4260
      %v4262 = vpop.f32.mrb[0].mxu0
      %4263 = vmatprep.mubr.bf16.mxu0 %v2352
      %4264 = vmatmul.mubr.bf16.gmra.mrb[0].mxu0 %v2351
      %v4265 = vpop.f32.mrb[0].mxu0
      %v4266 = vadd.f32 %v3721, %v4265
      %v4267 = vpop.f32.mrb[0].mxu0
      %v4268 = vpop.f32.mrb[0].mxu0
      %v4269 = vadd.f32 %v3724, %v4268
      %v4270 = vpop.f32.mrb[0].mxu0
      %4271 = vmatprep.mubr.bf16.mxu0 %v2359
      %4272 = vmatmul.mubr.bf16.gmra.mrb[0].mxu0 %v2358
      %v4273 = vpop.f32.mrb[0].mxu0
      %v4274 = vadd.f32 %v3729, %v4273
      %v4275 = vpop.f32.mrb[0].mxu0
      %v4276 = vpop.f32.mrb[0].mxu0
      %v4277 = vadd.f32 %v3732, %v4276
      %v4278 = vpop.f32.mrb[0].mxu0
      %4279 = vmatprep.mubr.bf16.mxu0 %v2366
      %4280 = vmatmul.mubr.bf16.gmra.mrb[0].mxu0 %v2365
      %v4281 = vpop.f32.mrb[0].mxu0
      %v4282 = vadd.f32 %v3737, %v4281
      %v4283 = vpop.f32.mrb[0].mxu0
      %v4284 = vpop.f32.mrb[0].mxu0
      %v4285 = vadd.f32 %v3740, %v4284
      %v4286 = vpop.f32.mrb[0].mxu0
      %4287 = vmatprep.mubr.bf16.mxu0 %v2373
      %4288 = vmatmul.mubr.bf16.gmra.mrb[0].mxu0 %v2372
      %v4289 = vpop.f32.mrb[0].mxu0
      %v4290 = vadd.f32 %v3745, %v4289
      %v4291 = vpop.f32.mrb[0].mxu0
      %v4292 = vpop.f32.mrb[0].mxu0
      %v4293 = vadd.f32 %v3748, %v4292
      %v4294 = vpop.f32.mrb[0].mxu0
      %4295 = vmatprep.mubr.bf16.mxu0 %v2380
      %4296 = vmatmul.mubr.bf16.gmra.mrb[0].mxu0 %v2379
      %v4297 = vpop.f32.mrb[0].mxu0
      %v4298 = vadd.f32 %v3753, %v4297
      %v4299 = vpop.f32.mrb[0].mxu0
      %v4300 = vpop.f32.mrb[0].mxu0
      %v4301 = vadd.f32 %v3756, %v4300
      %v4302 = vpop.f32.mrb[0].mxu0
      %4303 = vmatprep.mubr.bf16.mxu0 %v2387
      %4304 = vmatmul.mubr.bf16.gmra.mrb[0].mxu0 %v2386
      %v4305 = vpop.f32.mrb[0].mxu0
      %v4306 = vadd.f32 %v3761, %v4305
      %v4307 = vpop.f32.mrb[0].mxu0
      %v4308 = vpop.f32.mrb[0].mxu0
      %v4309 = vadd.f32 %v3764, %v4308
      %v4310 = vpop.f32.mrb[0].mxu0
      %4311 = vmatprep.mubr.bf16.mxu0 %v2394
      %4312 = vmatmul.mubr.bf16.gmra.mrb[0].mxu0 %v2393
      %v4313 = vpop.f32.mrb[0].mxu0
      %v4314 = vadd.f32 %v3769, %v4313
      %v4315 = vpop.f32.mrb[0].mxu0
      %v4316 = vpop.f32.mrb[0].mxu0
      %v4317 = vadd.f32 %v3772, %v4316
      %v4318 = vpop.f32.mrb[0].mxu0
      %4319 = vmatprep.mubr.bf16.mxu0 %v2401
      %4320 = vmatmul.mubr.bf16.gmra.mrb[0].mxu0 %v2400
      %v4321 = vpop.f32.mrb[0].mxu0
      %v4322 = vadd.f32 %v3777, %v4321
      %v4323 = vpop.f32.mrb[0].mxu0
      %v4324 = vpop.f32.mrb[0].mxu0
      %v4325 = vadd.f32 %v3780, %v4324
      %v4326 = vpop.f32.mrb[0].mxu0
      %4327 = vmatprep.mubr.bf16.mxu0 %v2408
      %4328 = vmatmul.mubr.bf16.gmra.mrb[0].mxu0 %v2407
      %v4329 = vpop.f32.mrb[0].mxu0
      %v4330 = vadd.f32 %v3785, %v4329
      %v4331 = vpop.f32.mrb[0].mxu0
      %v4332 = vpop.f32.mrb[0].mxu0
      %v4333 = vadd.f32 %v3788, %v4332
      %v4334 = vpop.f32.mrb[0].mxu0
      %4335 = vmatprep.mubr.bf16.mxu0 %v2415
      %4336 = vmatmul.mubr.bf16.gmra.mrb[0].mxu0 %v2414
      %v4337 = vpop.f32.mrb[0].mxu0
      %v4338 = vadd.f32 %v3793, %v4337
      %v4339 = vpop.f32.mrb[0].mxu0
      %v4340 = vpop.f32.mrb[0].mxu0
      %v4341 = vadd.f32 %v3796, %v4340
      %v4342 = vpop.f32.mrb[0].mxu0
      %4343 = vmatprep.mubr.bf16.mxu0 %v2422
      %4344 = vmatmul.mubr.bf16.gmra.mrb[0].mxu0 %v2421
      %v4345 = vpop.f32.mrb[0].mxu0
      %v4346 = vadd.f32 %v3801, %v4345
      %v4347 = vpop.f32.mrb[0].mxu0
      %v4348 = vpop.f32.mrb[0].mxu0
      %v4349 = vadd.f32 %v3804, %v4348
      %v4350 = vpop.f32.mrb[0].mxu0
      %4351 = vmatprep.mubr.bf16.mxu0 %v2429
      %4352 = vmatmul.mubr.bf16.gmra.mrb[0].mxu0 %v2428
      %v4353 = vpop.f32.mrb[0].mxu0
      %v4354 = vadd.f32 %v3809, %v4353
      %v4355 = vpop.f32.mrb[0].mxu0
      %v4356 = vpop.f32.mrb[0].mxu0
      %v4357 = vadd.f32 %v3812, %v4356
      %v4358 = vpop.f32.mrb[0].mxu0
      %4359 = vmatprep.mubr.bf16.mxu0 %v2436
      %4360 = vmatmul.mubr.bf16.gmra.mrb[0].mxu0 %v2435
      %v4361 = vpop.f32.mrb[0].mxu0
      %v4362 = vadd.f32 %v3817, %v4361
      %v4363 = vpop.f32.mrb[0].mxu0
      %v4364 = vpop.f32.mrb[0].mxu0
      %v4365 = vadd.f32 %v3820, %v4364
      %v4366 = vpop.f32.mrb[0].mxu0
      %4367 = vmatprep.mubr.bf16.mxu0 %v2443
      %4368 = vmatmul.mubr.bf16.gmra.mrb[0].mxu0 %v2442
      %v4369 = vpop.f32.mrb[0].mxu0
      %v4370 = vadd.f32 %v3825, %v4369
      %v4371 = vpop.f32.mrb[0].mxu0
      %v4372 = vpop.f32.mrb[0].mxu0
      %v4373 = vadd.f32 %v3828, %v4372
      %v4374 = vpop.f32.mrb[0].mxu0
      %4375 = vmatprep.mubr.bf16.mxu0 %v2450
      %4376 = vmatmul.mubr.bf16.gmra.mrb[0].mxu0 %v2449
      %v4377 = vpop.f32.mrb[0].mxu0
      %v4378 = vadd.f32 %v3833, %v4377
      %v4379 = vpop.f32.mrb[0].mxu0
      %v4380 = vpop.f32.mrb[0].mxu0
      %v4381 = vadd.f32 %v3836, %v4380
      %v4382 = vpop.f32.mrb[0].mxu0
      %4383 = vmatprep.mubr.bf16.mxu0 %v2457
      %4384 = vmatmul.mubr.bf16.gmra.mrb[0].mxu0 %v2456
      %v4385 = vpop.f32.mrb[0].mxu0
      %v4386 = vadd.f32 %v3841, %v4385
      %v4387 = vpop.f32.mrb[0].mxu0
      %v4388 = vpop.f32.mrb[0].mxu0
      %v4389 = vadd.f32 %v3844, %v4388
      %v4390 = vpop.f32.mrb[0].mxu0
      %4391 = vmatprep.mubr.bf16.mxu0 %v2464
      %4392 = vmatmul.mubr.bf16.gmra.mrb[0].mxu0 %v2463
      %v4393 = vpop.f32.mrb[0].mxu0
      %v4394 = vadd.f32 %v3849, %v4393
      %v4395 = vpop.f32.mrb[0].mxu0
      %v4396 = vpop.f32.mrb[0].mxu0
      %v4397 = vadd.f32 %v3852, %v4396
      %v4398 = vpop.f32.mrb[0].mxu0
      %4399 = vmatprep.mubr.bf16.mxu0 %v2471
      %4400 = vmatmul.mubr.bf16.gmra.mrb[0].mxu0 %v2470
      %v4401 = vpop.f32.mrb[0].mxu0
      %v4402 = vadd.f32 %v3857, %v4401
      %v4403 = vpop.f32.mrb[0].mxu0
      %v4404 = vpop.f32.mrb[0].mxu0
      %v4405 = vadd.f32 %v3860, %v4404
      %v4406 = vpop.f32.mrb[0].mxu0
      %4407 = vmatprep.mubr.bf16.mxu0 %v2478
      %4408 = vmatmul.mubr.bf16.gmra.mrb[0].mxu0 %v2477
      %v4409 = vpop.f32.mrb[0].mxu0
      %v4410 = vadd.f32 %v3865, %v4409
      %v4411 = vpop.f32.mrb[0].mxu0
      %v4412 = vpop.f32.mrb[0].mxu0
      %v4413 = vadd.f32 %v3868, %v4412
      %v4414 = vpop.f32.mrb[0].mxu0
      %4415 = vmatprep.mubr.bf16.mxu0 %v2485
      %4416 = vmatmul.mubr.bf16.gmra.mrb[0].mxu0 %v2484
      %v4417 = vpop.f32.mrb[0].mxu0
      %v4418 = vadd.f32 %v3873, %v4417
      %v4419 = vpop.f32.mrb[0].mxu0
      %v4420 = vpop.f32.mrb[0].mxu0
      %v4421 = vadd.f32 %v3876, %v4420
      %v4422 = vpop.f32.mrb[0].mxu0
      %4423 = vmatprep.mubr.bf16.mxu0 %v2492
      %4424 = vmatmul.mubr.bf16.gmra.mrb[0].mxu0 %v2491
      %v4425 = vpop.f32.mrb[0].mxu0
      %v4426 = vadd.f32 %v3881, %v4425
      %v4427 = vpop.f32.mrb[0].mxu0
      %v4428 = vpop.f32.mrb[0].mxu0
      %v4429 = vadd.f32 %v3884, %v4428
      %v4430 = vpop.f32.mrb[0].mxu0
      %4431 = vmatprep.mubr.bf16.mxu0 %v2499
      %4432 = vmatmul.mubr.bf16.gmra.mrb[0].mxu0 %v2498
      %v4433 = vpop.f32.mrb[0].mxu0
      %v4434 = vadd.f32 %v3889, %v4433
      %v4435 = vpop.f32.mrb[0].mxu0
      %v4436 = vpop.f32.mrb[0].mxu0
      %v4437 = vadd.f32 %v3892, %v4436
      %v4438 = vpop.f32.mrb[0].mxu0
      %4439 = vmatprep.mubr.bf16.mxu0 %v2506
      %4440 = vmatmul.mubr.bf16.gmra.mrb[0].mxu0 %v2505
      %v4441 = vpop.f32.mrb[0].mxu0
      %v4442 = vadd.f32 %v3897, %v4441
      %v4443 = vpop.f32.mrb[0].mxu0
      %v4444 = vpop.f32.mrb[0].mxu0
      %v4445 = vadd.f32 %v3900, %v4444
      %v4446 = vpop.f32.mrb[0].mxu0
      %4447 = vmatprep.mubr.bf16.mxu0 %v2513
      %4448 = vmatmul.mubr.bf16.gmra.mrb[0].mxu0 %v2512
      %v4449 = vpop.f32.mrb[0].mxu0
      %v4450 = vadd.f32 %v3905, %v4449
      %v4451 = vpop.f32.mrb[0].mxu0
      %v4452 = vpop.f32.mrb[0].mxu0
      %v4453 = vadd.f32 %v3908, %v4452
      %v4454 = vpop.f32.mrb[0].mxu0
      %4455 = vmatprep.mubr.bf16.mxu0 %v2520
      %4456 = vmatmul.mubr.bf16.gmra.mrb[0].mxu0 %v2519
      %v4457 = vpop.f32.mrb[0].mxu0
      %v4458 = vadd.f32 %v3913, %v4457
      %v4459 = vpop.f32.mrb[0].mxu0
      %v4460 = vpop.f32.mrb[0].mxu0
      %v4461 = vadd.f32 %v3916, %v4460
      %v4462 = vpop.f32.mrb[0].mxu0
      %4463 = vmatprep.mubr.bf16.mxu0 %v2527
      %4464 = vmatmul.mubr.bf16.gmra.mrb[0].mxu0 %v2526
      %v4465 = vpop.f32.mrb[0].mxu0
      %v4466 = vadd.f32 %v3921, %v4465
      %v4467 = vpop.f32.mrb[0].mxu0
      %v4468 = vpop.f32.mrb[0].mxu0
      %v4469 = vadd.f32 %v3924, %v4468
      %v4470 = vpop.f32.mrb[0].mxu0
      %4471 = vmatprep.mubr.bf16.mxu0 %v2534
      %4472 = vmatmul.mubr.bf16.gmra.mrb[0].mxu0 %v2533
      %v4473 = vpop.f32.mrb[0].mxu0
      %v4474 = vadd.f32 %v3929, %v4473
      %v4475 = vpop.f32.mrb[0].mxu0
      %v4476 = vpop.f32.mrb[0].mxu0
      %v4477 = vadd.f32 %v3932, %v4476
      %v4478 = vpop.f32.mrb[0].mxu0
      %4479 = vmatprep.mubr.bf16.mxu0 %v2541
      %4480 = vmatmul.mubr.bf16.gmra.mrb[0].mxu0 %v2540
      %v4481 = vpop.f32.mrb[0].mxu0
      %v4482 = vadd.f32 %v3937, %v4481
      %v4483 = vpop.f32.mrb[0].mxu0
      %v4484 = vpop.f32.mrb[0].mxu0
      %v4485 = vadd.f32 %v3940, %v4484
      %v4486 = vpop.f32.mrb[0].mxu0
      %4487 = vmatprep.mubr.bf16.mxu0 %v2548
      %4488 = vmatmul.mubr.bf16.gmra.mrb[0].mxu0 %v2547
      %v4489 = vpop.f32.mrb[0].mxu0
      %v4490 = vadd.f32 %v3945, %v4489
      %v4491 = vpop.f32.mrb[0].mxu0
      %v4492 = vpop.f32.mrb[0].mxu0
      %v4493 = vadd.f32 %v3948, %v4492
      %v4494 = vpop.f32.mrb[0].mxu0
      %4495 = vmatprep.mubr.bf16.mxu0 %v2555
      %4496 = vmatmul.mubr.bf16.gmra.mrb[0].mxu0 %v2554
      %v4497 = vpop.f32.mrb[0].mxu0
      %v4498 = vadd.f32 %v3953, %v4497
      %v4499 = vpop.f32.mrb[0].mxu0
      %v4500 = vpop.f32.mrb[0].mxu0
      %v4501 = vadd.f32 %v3956, %v4500
      %v4502 = vpop.f32.mrb[0].mxu0
      %4503 = vmatprep.mubr.bf16.mxu0 %v2562
      %4504 = vmatmul.mubr.bf16.gmra.mrb[0].mxu0 %v2561
      %v4505 = vpop.f32.mrb[0].mxu0
      %v4506 = vadd.f32 %v3961, %v4505
      %v4507 = vpop.f32.mrb[0].mxu0
      %v4508 = vpop.f32.mrb[0].mxu0
      %v4509 = vadd.f32 %v3964, %v4508
      %v4510 = vpop.f32.mrb[0].mxu0
      %4511 = vmatprep.mubr.bf16.mxu0 %v2569
      %4512 = vmatmul.mubr.bf16.gmra.mrb[0].mxu0 %v2568
      %v4513 = vpop.f32.mrb[0].mxu0
      %v4514 = vadd.f32 %v3969, %v4513
      %v4515 = vpop.f32.mrb[0].mxu0
      %v4516 = vpop.f32.mrb[0].mxu0
      %v4517 = vadd.f32 %v3972, %v4516
      %v4518 = vpop.f32.mrb[0].mxu0
      %4519 = vmatprep.mubr.bf16.mxu0 %v2576
      %4520 = vmatmul.mubr.bf16.gmra.mrb[0].mxu0 %v2575
      %v4521 = vpop.f32.mrb[0].mxu0
      %v4522 = vadd.f32 %v3977, %v4521
      %v4523 = vpop.f32.mrb[0].mxu0
      %v4524 = vpop.f32.mrb[0].mxu0
      %v4525 = vadd.f32 %v3980, %v4524
      %v4526 = vpop.f32.mrb[0].mxu0
      %4527 = vmatprep.mubr.bf16.mxu0 %v2583
      %4528 = vmatmul.mubr.bf16.gmra.mrb[0].mxu0 %v2582
      %v4529 = vpop.f32.mrb[0].mxu0
      %v4530 = vadd.f32 %v3985, %v4529
      %v4531 = vpop.f32.mrb[0].mxu0
      %v4532 = vpop.f32.mrb[0].mxu0
      %v4533 = vadd.f32 %v3988, %v4532
      %v4534 = vpop.f32.mrb[0].mxu0
      %4535 = vmatprep.mubr.bf16.mxu0 %v2590
      %4536 = vmatmul.mubr.bf16.gmra.mrb[0].mxu0 %v2589
      %v4537 = vpop.f32.mrb[0].mxu0
      %v4538 = vadd.f32 %v3993, %v4537
      %v4539 = vpop.f32.mrb[0].mxu0
      %v4540 = vpop.f32.mrb[0].mxu0
      %v4541 = vadd.f32 %v3996, %v4540
      %v4542 = vpop.f32.mrb[0].mxu0
      %4543 = vmatprep.mubr.bf16.mxu0 %v2597
      %4544 = vmatmul.mubr.bf16.gmra.mrb[0].mxu0 %v2596
      %v4545 = vpop.f32.mrb[0].mxu0
      %v4546 = vadd.f32 %v4001, %v4545
      %v4547 = vpop.f32.mrb[0].mxu0
      %v4548 = vpop.f32.mrb[0].mxu0
      %v4549 = vadd.f32 %v4004, %v4548
      %v4550 = vpop.f32.mrb[0].mxu0
      %4551 = vmatprep.mubr.bf16.mxu0 %v2604
      %4552 = vmatmul.mubr.bf16.gmra.mrb[0].mxu0 %v2603
      %v4553 = vpop.f32.mrb[0].mxu0
      %v4554 = vadd.f32 %v4009, %v4553
      %v4555 = vpop.f32.mrb[0].mxu0
      %v4556 = vpop.f32.mrb[0].mxu0
      %v4557 = vadd.f32 %v4012, %v4556
      %v4558 = vpop.f32.mrb[0].mxu0
      %4559 = vmatprep.mubr.bf16.mxu0 %v2611
      %4560 = vmatmul.mubr.bf16.gmra.mrb[0].mxu0 %v2610
      %v4561 = vpop.f32.mrb[0].mxu0
      %v4562 = vadd.f32 %v4017, %v4561
      %v4563 = vpop.f32.mrb[0].mxu0
      %v4564 = vpop.f32.mrb[0].mxu0
      %v4565 = vadd.f32 %v4020, %v4564
      %v4566 = vpop.f32.mrb[0].mxu0
      %4567 = vmatprep.mubr.bf16.mxu0 %v2618
      %4568 = vmatmul.mubr.bf16.gmra.mrb[0].mxu0 %v2617
      %v4569 = vpop.f32.mrb[0].mxu0
      %v4570 = vadd.f32 %v4025, %v4569
      %v4571 = vpop.f32.mrb[0].mxu0
      %v4572 = vpop.f32.mrb[0].mxu0
      %v4573 = vadd.f32 %v4028, %v4572
      %v4574 = vpop.f32.mrb[0].mxu0
      %4575 = vmatprep.mubr.bf16.mxu0 %v2625
      %4576 = vmatmul.mubr.bf16.gmra.mrb[0].mxu0 %v2624
      %v4577 = vpop.f32.mrb[0].mxu0
      %v4578 = vadd.f32 %v4033, %v4577
      %v4579 = vpop.f32.mrb[0].mxu0
      %v4580 = vpop.f32.mrb[0].mxu0
      %v4581 = vadd.f32 %v4036, %v4580
      %v4582 = vpop.f32.mrb[0].mxu0
      %4583 = vmatprep.mubr.bf16.mxu0 %v2632
      %4584 = vmatmul.mubr.bf16.gmra.mrb[0].mxu0 %v2631
      %v4585 = vpop.f32.mrb[0].mxu0
      %v4586 = vadd.f32 %v4041, %v4585
      %v4587 = vpop.f32.mrb[0].mxu0
      %v4588 = vpop.f32.mrb[0].mxu0
      %v4589 = vadd.f32 %v4044, %v4588
      %v4590 = vpop.f32.mrb[0].mxu0
      %4591 = vmatprep.mubr.bf16.mxu0 %v2639
      %4592 = vmatmul.mubr.bf16.gmra.mrb[0].mxu0 %v2638
      %v4593 = vpop.f32.mrb[0].mxu0
      %v4594 = vadd.f32 %v4049, %v4593
      %v4595 = vpop.f32.mrb[0].mxu0
      %v4596 = vpop.f32.mrb[0].mxu0
      %v4597 = vadd.f32 %v4052, %v4596
      %v4598 = vpop.f32.mrb[0].mxu0
      %4599 = vmatprep.mubr.bf16.mxu0 %v2646
      %4600 = vmatmul.mubr.bf16.gmra.mrb[0].mxu0 %v2645
      %v4601 = vpop.f32.mrb[0].mxu0
      %v4602 = vadd.f32 %v4057, %v4601
      %v4603 = vpop.f32.mrb[0].mxu0
      %v4604 = vpop.f32.mrb[0].mxu0
      %v4605 = vadd.f32 %v4060, %v4604
      %v4606 = vpop.f32.mrb[0].mxu0
      %4607 = vmatprep.mubr.bf16.mxu0 %v2653
      %4608 = vmatmul.mubr.bf16.gmra.mrb[0].mxu0 %v2652
      %v4609 = vpop.f32.mrb[0].mxu0
      %v4610 = vadd.f32 %v4065, %v4609
      %v4611 = vpop.f32.mrb[0].mxu0
      %v4612 = vpop.f32.mrb[0].mxu0
      %v4613 = vadd.f32 %v4068, %v4612
      %v4614 = vpop.f32.mrb[0].mxu0
      %4615 = vmatprep.mubr.bf16.mxu0 %v2660
      %4616 = vmatmul.mubr.bf16.gmra.mrb[0].mxu0 %v2659
      %v4617 = vpop.f32.mrb[0].mxu0
      %v4618 = vadd.f32 %v4073, %v4617
      %v4619 = vpop.f32.mrb[0].mxu0
      %v4620 = vpop.f32.mrb[0].mxu0
      %v4621 = vadd.f32 %v4076, %v4620
      %v4622 = vpop.f32.mrb[0].mxu0
      %4623 = vmatprep.mubr.bf16.mxu0 %v2667
      %4624 = vmatmul.mubr.bf16.gmra.mrb[0].mxu0 %v2666
      %v4625 = vpop.f32.mrb[0].mxu0
      %v4626 = vadd.f32 %v4081, %v4625
      %v4627 = vpop.f32.mrb[0].mxu0
      %v4628 = vpop.f32.mrb[0].mxu0
      %v4629 = vadd.f32 %v4084, %v4628
      %v4630 = vpop.f32.mrb[0].mxu0
      %4631 = vdwg.mxu0
      %4632 = vmatprep.subr.bf16.mxu0 0
      %4633 = vmatpush1.bf16.msra.mxu0 %v3283
      %4634 = vmatprep.subr.bf16.mxu0 0
      %4635 = vmatpush1.bf16.msra.mxu0 %v3284
      %4636 = vmatprep.subr.bf16.mxu0 0
      %4637 = vmatpush1.bf16.msra.mxu0 %v3285
      %4638 = vmatprep.subr.bf16.mxu0 0
      %4639 = vmatpush1.bf16.msra.mxu0 %v3286
      %4640 = vmatprep.subr.bf16.mxu0 0
      %4641 = vmatpush1.bf16.msra.mxu0 %v3287
      %4642 = vmatprep.subr.bf16.mxu0 0
      %4643 = vmatpush1.bf16.msra.mxu0 %v3288
      %4644 = vmatprep.subr.bf16.mxu0 0
      %4645 = vmatpush1.bf16.msra.mxu0 %v3289
      %4646 = vmatprep.subr.bf16.mxu0 0
      %4647 = vmatpush1.bf16.msra.mxu0 %v3290
      %4648 = vmatprep.subr.bf16.mxu0 0
      %4649 = vmatpush1.bf16.msra.mxu0 %v3291
      %4650 = vmatprep.subr.bf16.mxu0 0
      %4651 = vmatpush1.bf16.msra.mxu0 %v3292
      %4652 = vmatprep.subr.bf16.mxu0 0
      %4653 = vmatpush1.bf16.msra.mxu0 %v3293
      %4654 = vmatprep.subr.bf16.mxu0 0
      %4655 = vmatpush1.bf16.msra.mxu0 %v3294
      %4656 = vmatprep.subr.bf16.mxu0 0
      %4657 = vmatpush1.bf16.msra.mxu0 %v3295
      %4658 = vmatprep.subr.bf16.mxu0 0
      %4659 = vmatpush1.bf16.msra.mxu0 %v3296
      %4660 = vmatprep.subr.bf16.mxu0 0
      %4661 = vmatpush1.bf16.msra.mxu0 %v3297
      %4662 = vmatprep.subr.bf16.mxu0 0
      %4663 = vmatpush1.bf16.msra.mxu0 %v3298
      %4664 = vmatprep.mubr.bf16.mxu0 %v2228
      %4665 = vmatmul.mubr.bf16.gmra.mrb[0].mxu0 %v2227
      %v4666 = vpop.f32.mrb[0].mxu0
      %v4667 = vadd.f32 %v4122, %v4666
      %v4668 = vpop.f32.mrb[0].mxu0
      %v4669 = vpop.f32.mrb[0].mxu0
      %v4670 = vadd.f32 %v4125, %v4669
      %v4671 = vpop.f32.mrb[0].mxu0
      %4672 = vmatprep.mubr.bf16.mxu0 %v2235
      %4673 = vmatmul.mubr.bf16.gmra.mrb[0].mxu0 %v2234
      %v4674 = vpop.f32.mrb[0].mxu0
      %v4675 = vadd.f32 %v4130, %v4674
      %v4676 = vpop.f32.mrb[0].mxu0
      %v4677 = vpop.f32.mrb[0].mxu0
      %v4678 = vadd.f32 %v4133, %v4677
      %v4679 = vpop.f32.mrb[0].mxu0
      %4680 = vmatprep.mubr.bf16.mxu0 %v2242
      %4681 = vmatmul.mubr.bf16.gmra.mrb[0].mxu0 %v2241
      %v4682 = vpop.f32.mrb[0].mxu0
      %v4683 = vadd.f32 %v4138, %v4682
      %v4684 = vpop.f32.mrb[0].mxu0
      %v4685 = vpop.f32.mrb[0].mxu0
      %v4686 = vadd.f32 %v4141, %v4685
      %v4687 = vpop.f32.mrb[0].mxu0
      %4688 = vmatprep.mubr.bf16.mxu0 %v2249
      %4689 = vmatmul.mubr.bf16.gmra.mrb[0].mxu0 %v2248
      %v4690 = vpop.f32.mrb[0].mxu0
      %v4691 = vadd.f32 %v4146, %v4690
      %v4692 = vpop.f32.mrb[0].mxu0
      %v4693 = vpop.f32.mrb[0].mxu0
      %v4694 = vadd.f32 %v4149, %v4693
      %v4695 = vpop.f32.mrb[0].mxu0
      %4696 = vmatprep.mubr.bf16.mxu0 %v2256
      %4697 = vmatmul.mubr.bf16.gmra.mrb[0].mxu0 %v2255
      %v4698 = vpop.f32.mrb[0].mxu0
      %v4699 = vadd.f32 %v4154, %v4698
      %v4700 = vpop.f32.mrb[0].mxu0
      %v4701 = vpop.f32.mrb[0].mxu0
      %v4702 = vadd.f32 %v4157, %v4701
      %v4703 = vpop.f32.mrb[0].mxu0
      %4704 = vmatprep.mubr.bf16.mxu0 %v2263
      %4705 = vmatmul.mubr.bf16.gmra.mrb[0].mxu0 %v2262
      %v4706 = vpop.f32.mrb[0].mxu0
      %v4707 = vadd.f32 %v4162, %v4706
      %v4708 = vpop.f32.mrb[0].mxu0
      %v4709 = vpop.f32.mrb[0].mxu0
      %v4710 = vadd.f32 %v4165, %v4709
      %v4711 = vpop.f32.mrb[0].mxu0
      %4712 = vmatprep.mubr.bf16.mxu0 %v2270
      %4713 = vmatmul.mubr.bf16.gmra.mrb[0].mxu0 %v2269
      %v4714 = vpop.f32.mrb[0].mxu0
      %v4715 = vadd.f32 %v4170, %v4714
      %v4716 = vpop.f32.mrb[0].mxu0
      %v4717 = vpop.f32.mrb[0].mxu0
      %v4718 = vadd.f32 %v4173, %v4717
      %v4719 = vpop.f32.mrb[0].mxu0
      %4720 = vmatprep.mubr.bf16.mxu0 %v2277
      %4721 = vmatmul.mubr.bf16.gmra.mrb[0].mxu0 %v2276
      %v4722 = vpop.f32.mrb[0].mxu0
      %v4723 = vadd.f32 %v4178, %v4722
      %v4724 = vpop.f32.mrb[0].mxu0
      %v4725 = vpop.f32.mrb[0].mxu0
      %v4726 = vadd.f32 %v4181, %v4725
      %v4727 = vpop.f32.mrb[0].mxu0
      %4728 = vmatprep.mubr.bf16.mxu0 %v2284
      %4729 = vmatmul.mubr.bf16.gmra.mrb[0].mxu0 %v2283
      %v4730 = vpop.f32.mrb[0].mxu0
      %v4731 = vadd.f32 %v4186, %v4730
      %v4732 = vpop.f32.mrb[0].mxu0
      %v4733 = vpop.f32.mrb[0].mxu0
      %v4734 = vadd.f32 %v4189, %v4733
      %v4735 = vpop.f32.mrb[0].mxu0
      %4736 = vmatprep.mubr.bf16.mxu0 %v2291
      %4737 = vmatmul.mubr.bf16.gmra.mrb[0].mxu0 %v2290
      %v4738 = vpop.f32.mrb[0].mxu0
      %v4739 = vadd.f32 %v4194, %v4738
      %v4740 = vpop.f32.mrb[0].mxu0
      %v4741 = vpop.f32.mrb[0].mxu0
      %v4742 = vadd.f32 %v4197, %v4741
      %v4743 = vpop.f32.mrb[0].mxu0
      %4744 = vmatprep.mubr.bf16.mxu0 %v2298
      %4745 = vmatmul.mubr.bf16.gmra.mrb[0].mxu0 %v2297
      %v4746 = vpop.f32.mrb[0].mxu0
      %v4747 = vadd.f32 %v4202, %v4746
      %v4748 = vpop.f32.mrb[0].mxu0
      %v4749 = vpop.f32.mrb[0].mxu0
      %v4750 = vadd.f32 %v4205, %v4749
      %v4751 = vpop.f32.mrb[0].mxu0
      %4752 = vmatprep.mubr.bf16.mxu0 %v2305
      %4753 = vmatmul.mubr.bf16.gmra.mrb[0].mxu0 %v2304
      %v4754 = vpop.f32.mrb[0].mxu0
      %v4755 = vadd.f32 %v4210, %v4754
      %v4756 = vpop.f32.mrb[0].mxu0
      %v4757 = vpop.f32.mrb[0].mxu0
      %v4758 = vadd.f32 %v4213, %v4757
      %v4759 = vpop.f32.mrb[0].mxu0
      %4760 = vmatprep.mubr.bf16.mxu0 %v2312
      %4761 = vmatmul.mubr.bf16.gmra.mrb[0].mxu0 %v2311
      %v4762 = vpop.f32.mrb[0].mxu0
      %v4763 = vadd.f32 %v4218, %v4762
      %v4764 = vpop.f32.mrb[0].mxu0
      %v4765 = vpop.f32.mrb[0].mxu0
      %v4766 = vadd.f32 %v4221, %v4765
      %v4767 = vpop.f32.mrb[0].mxu0
      %4768 = vmatprep.mubr.bf16.mxu0 %v2319
      %4769 = vmatmul.mubr.bf16.gmra.mrb[0].mxu0 %v2318
      %v4770 = vpop.f32.mrb[0].mxu0
      %v4771 = vadd.f32 %v4226, %v4770
      %v4772 = vpop.f32.mrb[0].mxu0
      %v4773 = vpop.f32.mrb[0].mxu0
      %v4774 = vadd.f32 %v4229, %v4773
      %v4775 = vpop.f32.mrb[0].mxu0
      %4776 = vmatprep.mubr.bf16.mxu0 %v2326
      %4777 = vmatmul.mubr.bf16.gmra.mrb[0].mxu0 %v2325
      %v4778 = vpop.f32.mrb[0].mxu0
      %v4779 = vadd.f32 %v4234, %v4778
      %v4780 = vpop.f32.mrb[0].mxu0
      %v4781 = vpop.f32.mrb[0].mxu0
      %v4782 = vadd.f32 %v4237, %v4781
      %v4783 = vpop.f32.mrb[0].mxu0
      %4784 = vmatprep.mubr.bf16.mxu0 %v2333
      %4785 = vmatmul.mubr.bf16.gmra.mrb[0].mxu0 %v2332
      %v4786 = vpop.f32.mrb[0].mxu0
      %v4787 = vadd.f32 %v4242, %v4786
      %v4788 = vpop.f32.mrb[0].mxu0
      %v4789 = vpop.f32.mrb[0].mxu0
      %v4790 = vadd.f32 %v4245, %v4789
      %v4791 = vpop.f32.mrb[0].mxu0
      %4792 = vmatprep.mubr.bf16.mxu0 %v2340
      %4793 = vmatmul.mubr.bf16.gmra.mrb[0].mxu0 %v2339
      %v4794 = vpop.f32.mrb[0].mxu0
      %v4795 = vadd.f32 %v4250, %v4794
      %v4796 = vpop.f32.mrb[0].mxu0
      %v4797 = vpop.f32.mrb[0].mxu0
      %v4798 = vadd.f32 %v4253, %v4797
      %v4799 = vpop.f32.mrb[0].mxu0
      %4800 = vmatprep.mubr.bf16.mxu0 %v2347
      %4801 = vmatmul.mubr.bf16.gmra.mrb[0].mxu0 %v2346
      %v4802 = vpop.f32.mrb[0].mxu0
      %v4803 = vadd.f32 %v4258, %v4802
      %v4804 = vpop.f32.mrb[0].mxu0
      %v4805 = vpop.f32.mrb[0].mxu0
      %v4806 = vadd.f32 %v4261, %v4805
      %v4807 = vpop.f32.mrb[0].mxu0
      %4808 = vmatprep.mubr.bf16.mxu0 %v2354
      %4809 = vmatmul.mubr.bf16.gmra.mrb[0].mxu0 %v2353
      %v4810 = vpop.f32.mrb[0].mxu0
      %v4811 = vadd.f32 %v4266, %v4810
      %v4812 = vpop.f32.mrb[0].mxu0
      %v4813 = vpop.f32.mrb[0].mxu0
      %v4814 = vadd.f32 %v4269, %v4813
      %v4815 = vpop.f32.mrb[0].mxu0
      %4816 = vmatprep.mubr.bf16.mxu0 %v2361
      %4817 = vmatmul.mubr.bf16.gmra.mrb[0].mxu0 %v2360
      %v4818 = vpop.f32.mrb[0].mxu0
      %v4819 = vadd.f32 %v4274, %v4818
      %v4820 = vpop.f32.mrb[0].mxu0
      %v4821 = vpop.f32.mrb[0].mxu0
      %v4822 = vadd.f32 %v4277, %v4821
      %v4823 = vpop.f32.mrb[0].mxu0
      %4824 = vmatprep.mubr.bf16.mxu0 %v2368
      %4825 = vmatmul.mubr.bf16.gmra.mrb[0].mxu0 %v2367
      %v4826 = vpop.f32.mrb[0].mxu0
      %v4827 = vadd.f32 %v4282, %v4826
      %v4828 = vpop.f32.mrb[0].mxu0
      %v4829 = vpop.f32.mrb[0].mxu0
      %v4830 = vadd.f32 %v4285, %v4829
      %v4831 = vpop.f32.mrb[0].mxu0
      %4832 = vmatprep.mubr.bf16.mxu0 %v2375
      %4833 = vmatmul.mubr.bf16.gmra.mrb[0].mxu0 %v2374
      %v4834 = vpop.f32.mrb[0].mxu0
      %v4835 = vadd.f32 %v4290, %v4834
      %v4836 = vpop.f32.mrb[0].mxu0
      %v4837 = vpop.f32.mrb[0].mxu0
      %v4838 = vadd.f32 %v4293, %v4837
      %v4839 = vpop.f32.mrb[0].mxu0
      %4840 = vmatprep.mubr.bf16.mxu0 %v2382
      %4841 = vmatmul.mubr.bf16.gmra.mrb[0].mxu0 %v2381
      %v4842 = vpop.f32.mrb[0].mxu0
      %v4843 = vadd.f32 %v4298, %v4842
      %v4844 = vpop.f32.mrb[0].mxu0
      %v4845 = vpop.f32.mrb[0].mxu0
      %v4846 = vadd.f32 %v4301, %v4845
      %v4847 = vpop.f32.mrb[0].mxu0
      %4848 = vmatprep.mubr.bf16.mxu0 %v2389
      %4849 = vmatmul.mubr.bf16.gmra.mrb[0].mxu0 %v2388
      %v4850 = vpop.f32.mrb[0].mxu0
      %v4851 = vadd.f32 %v4306, %v4850
      %v4852 = vpop.f32.mrb[0].mxu0
      %v4853 = vpop.f32.mrb[0].mxu0
      %v4854 = vadd.f32 %v4309, %v4853
      %v4855 = vpop.f32.mrb[0].mxu0
      %4856 = vmatprep.mubr.bf16.mxu0 %v2396
      %4857 = vmatmul.mubr.bf16.gmra.mrb[0].mxu0 %v2395
      %v4858 = vpop.f32.mrb[0].mxu0
      %v4859 = vadd.f32 %v4314, %v4858
      %v4860 = vpop.f32.mrb[0].mxu0
      %v4861 = vpop.f32.mrb[0].mxu0
      %v4862 = vadd.f32 %v4317, %v4861
      %v4863 = vpop.f32.mrb[0].mxu0
      %4864 = vmatprep.mubr.bf16.mxu0 %v2403
      %4865 = vmatmul.mubr.bf16.gmra.mrb[0].mxu0 %v2402
      %v4866 = vpop.f32.mrb[0].mxu0
      %v4867 = vadd.f32 %v4322, %v4866
      %v4868 = vpop.f32.mrb[0].mxu0
      %v4869 = vpop.f32.mrb[0].mxu0
      %v4870 = vadd.f32 %v4325, %v4869
      %v4871 = vpop.f32.mrb[0].mxu0
      %4872 = vmatprep.mubr.bf16.mxu0 %v2410
      %4873 = vmatmul.mubr.bf16.gmra.mrb[0].mxu0 %v2409
      %v4874 = vpop.f32.mrb[0].mxu0
      %v4875 = vadd.f32 %v4330, %v4874
      %v4876 = vpop.f32.mrb[0].mxu0
      %v4877 = vpop.f32.mrb[0].mxu0
      %v4878 = vadd.f32 %v4333, %v4877
      %v4879 = vpop.f32.mrb[0].mxu0
      %4880 = vmatprep.mubr.bf16.mxu0 %v2417
      %4881 = vmatmul.mubr.bf16.gmra.mrb[0].mxu0 %v2416
      %v4882 = vpop.f32.mrb[0].mxu0
      %v4883 = vadd.f32 %v4338, %v4882
      %v4884 = vpop.f32.mrb[0].mxu0
      %v4885 = vpop.f32.mrb[0].mxu0
      %v4886 = vadd.f32 %v4341, %v4885
      %v4887 = vpop.f32.mrb[0].mxu0
      %4888 = vmatprep.mubr.bf16.mxu0 %v2424
      %4889 = vmatmul.mubr.bf16.gmra.mrb[0].mxu0 %v2423
      %v4890 = vpop.f32.mrb[0].mxu0
      %v4891 = vadd.f32 %v4346, %v4890
      %v4892 = vpop.f32.mrb[0].mxu0
      %v4893 = vpop.f32.mrb[0].mxu0
      %v4894 = vadd.f32 %v4349, %v4893
      %v4895 = vpop.f32.mrb[0].mxu0
      %4896 = vmatprep.mubr.bf16.mxu0 %v2431
      %4897 = vmatmul.mubr.bf16.gmra.mrb[0].mxu0 %v2430
      %v4898 = vpop.f32.mrb[0].mxu0
      %v4899 = vadd.f32 %v4354, %v4898
      %v4900 = vpop.f32.mrb[0].mxu0
      %v4901 = vpop.f32.mrb[0].mxu0
      %v4902 = vadd.f32 %v4357, %v4901
      %v4903 = vpop.f32.mrb[0].mxu0
      %4904 = vmatprep.mubr.bf16.mxu0 %v2438
      %4905 = vmatmul.mubr.bf16.gmra.mrb[0].mxu0 %v2437
      %v4906 = vpop.f32.mrb[0].mxu0
      %v4907 = vadd.f32 %v4362, %v4906
      %v4908 = vpop.f32.mrb[0].mxu0
      %v4909 = vpop.f32.mrb[0].mxu0
      %v4910 = vadd.f32 %v4365, %v4909
      %v4911 = vpop.f32.mrb[0].mxu0
      %4912 = vmatprep.mubr.bf16.mxu0 %v2445
      %4913 = vmatmul.mubr.bf16.gmra.mrb[0].mxu0 %v2444
      %v4914 = vpop.f32.mrb[0].mxu0
      %v4915 = vadd.f32 %v4370, %v4914
      %v4916 = vpop.f32.mrb[0].mxu0
      %v4917 = vpop.f32.mrb[0].mxu0
      %v4918 = vadd.f32 %v4373, %v4917
      %v4919 = vpop.f32.mrb[0].mxu0
      %4920 = vmatprep.mubr.bf16.mxu0 %v2452
      %4921 = vmatmul.mubr.bf16.gmra.mrb[0].mxu0 %v2451
      %v4922 = vpop.f32.mrb[0].mxu0
      %v4923 = vadd.f32 %v4378, %v4922
      %v4924 = vpop.f32.mrb[0].mxu0
      %v4925 = vpop.f32.mrb[0].mxu0
      %v4926 = vadd.f32 %v4381, %v4925
      %v4927 = vpop.f32.mrb[0].mxu0
      %4928 = vmatprep.mubr.bf16.mxu0 %v2459
      %4929 = vmatmul.mubr.bf16.gmra.mrb[0].mxu0 %v2458
      %v4930 = vpop.f32.mrb[0].mxu0
      %v4931 = vadd.f32 %v4386, %v4930
      %v4932 = vpop.f32.mrb[0].mxu0
      %v4933 = vpop.f32.mrb[0].mxu0
      %v4934 = vadd.f32 %v4389, %v4933
      %v4935 = vpop.f32.mrb[0].mxu0
      %4936 = vmatprep.mubr.bf16.mxu0 %v2466
      %4937 = vmatmul.mubr.bf16.gmra.mrb[0].mxu0 %v2465
      %v4938 = vpop.f32.mrb[0].mxu0
      %v4939 = vadd.f32 %v4394, %v4938
      %v4940 = vpop.f32.mrb[0].mxu0
      %v4941 = vpop.f32.mrb[0].mxu0
      %v4942 = vadd.f32 %v4397, %v4941
      %v4943 = vpop.f32.mrb[0].mxu0
      %4944 = vmatprep.mubr.bf16.mxu0 %v2473
      %4945 = vmatmul.mubr.bf16.gmra.mrb[0].mxu0 %v2472
      %v4946 = vpop.f32.mrb[0].mxu0
      %v4947 = vadd.f32 %v4402, %v4946
      %v4948 = vpop.f32.mrb[0].mxu0
      %v4949 = vpop.f32.mrb[0].mxu0
      %v4950 = vadd.f32 %v4405, %v4949
      %v4951 = vpop.f32.mrb[0].mxu0
      %4952 = vmatprep.mubr.bf16.mxu0 %v2480
      %4953 = vmatmul.mubr.bf16.gmra.mrb[0].mxu0 %v2479
      %v4954 = vpop.f32.mrb[0].mxu0
      %v4955 = vadd.f32 %v4410, %v4954
      %v4956 = vpop.f32.mrb[0].mxu0
      %v4957 = vpop.f32.mrb[0].mxu0
      %v4958 = vadd.f32 %v4413, %v4957
      %v4959 = vpop.f32.mrb[0].mxu0
      %4960 = vmatprep.mubr.bf16.mxu0 %v2487
      %4961 = vmatmul.mubr.bf16.gmra.mrb[0].mxu0 %v2486
      %v4962 = vpop.f32.mrb[0].mxu0
      %v4963 = vadd.f32 %v4418, %v4962
      %v4964 = vpop.f32.mrb[0].mxu0
      %v4965 = vpop.f32.mrb[0].mxu0
      %v4966 = vadd.f32 %v4421, %v4965
      %v4967 = vpop.f32.mrb[0].mxu0
      %4968 = vmatprep.mubr.bf16.mxu0 %v2494
      %4969 = vmatmul.mubr.bf16.gmra.mrb[0].mxu0 %v2493
      %v4970 = vpop.f32.mrb[0].mxu0
      %v4971 = vadd.f32 %v4426, %v4970
      %v4972 = vpop.f32.mrb[0].mxu0
      %v4973 = vpop.f32.mrb[0].mxu0
      %v4974 = vadd.f32 %v4429, %v4973
      %v4975 = vpop.f32.mrb[0].mxu0
      %4976 = vmatprep.mubr.bf16.mxu0 %v2501
      %4977 = vmatmul.mubr.bf16.gmra.mrb[0].mxu0 %v2500
      %v4978 = vpop.f32.mrb[0].mxu0
      %v4979 = vadd.f32 %v4434, %v4978
      %v4980 = vpop.f32.mrb[0].mxu0
      %v4981 = vpop.f32.mrb[0].mxu0
      %v4982 = vadd.f32 %v4437, %v4981
      %v4983 = vpop.f32.mrb[0].mxu0
      %4984 = vmatprep.mubr.bf16.mxu0 %v2508
      %4985 = vmatmul.mubr.bf16.gmra.mrb[0].mxu0 %v2507
      %v4986 = vpop.f32.mrb[0].mxu0
      %v4987 = vadd.f32 %v4442, %v4986
      %v4988 = vpop.f32.mrb[0].mxu0
      %v4989 = vpop.f32.mrb[0].mxu0
      %v4990 = vadd.f32 %v4445, %v4989
      %v4991 = vpop.f32.mrb[0].mxu0
      %4992 = vmatprep.mubr.bf16.mxu0 %v2515
      %4993 = vmatmul.mubr.bf16.gmra.mrb[0].mxu0 %v2514
      %v4994 = vpop.f32.mrb[0].mxu0
      %v4995 = vadd.f32 %v4450, %v4994
      %v4996 = vpop.f32.mrb[0].mxu0
      %v4997 = vpop.f32.mrb[0].mxu0
      %v4998 = vadd.f32 %v4453, %v4997
      %v4999 = vpop.f32.mrb[0].mxu0
      %5000 = vmatprep.mubr.bf16.mxu0 %v2522
      %5001 = vmatmul.mubr.bf16.gmra.mrb[0].mxu0 %v2521
      %v5002 = vpop.f32.mrb[0].mxu0
      %v5003 = vadd.f32 %v4458, %v5002
      %v5004 = vpop.f32.mrb[0].mxu0
      %v5005 = vpop.f32.mrb[0].mxu0
      %v5006 = vadd.f32 %v4461, %v5005
      %v5007 = vpop.f32.mrb[0].mxu0
      %5008 = vmatprep.mubr.bf16.mxu0 %v2529
      %5009 = vmatmul.mubr.bf16.gmra.mrb[0].mxu0 %v2528
      %v5010 = vpop.f32.mrb[0].mxu0
      %v5011 = vadd.f32 %v4466, %v5010
      %v5012 = vpop.f32.mrb[0].mxu0
      %v5013 = vpop.f32.mrb[0].mxu0
      %v5014 = vadd.f32 %v4469, %v5013
      %v5015 = vpop.f32.mrb[0].mxu0
      %5016 = vmatprep.mubr.bf16.mxu0 %v2536
      %5017 = vmatmul.mubr.bf16.gmra.mrb[0].mxu0 %v2535
      %v5018 = vpop.f32.mrb[0].mxu0
      %v5019 = vadd.f32 %v4474, %v5018
      %v5020 = vpop.f32.mrb[0].mxu0
      %v5021 = vpop.f32.mrb[0].mxu0
      %v5022 = vadd.f32 %v4477, %v5021
      %v5023 = vpop.f32.mrb[0].mxu0
      %5024 = vmatprep.mubr.bf16.mxu0 %v2543
      %5025 = vmatmul.mubr.bf16.gmra.mrb[0].mxu0 %v2542
      %v5026 = vpop.f32.mrb[0].mxu0
      %v5027 = vadd.f32 %v4482, %v5026
      %v5028 = vpop.f32.mrb[0].mxu0
      %v5029 = vpop.f32.mrb[0].mxu0
      %v5030 = vadd.f32 %v4485, %v5029
      %v5031 = vpop.f32.mrb[0].mxu0
      %5032 = vmatprep.mubr.bf16.mxu0 %v2550
      %5033 = vmatmul.mubr.bf16.gmra.mrb[0].mxu0 %v2549
      %v5034 = vpop.f32.mrb[0].mxu0
      %v5035 = vadd.f32 %v4490, %v5034
      %v5036 = vpop.f32.mrb[0].mxu0
      %v5037 = vpop.f32.mrb[0].mxu0
      %v5038 = vadd.f32 %v4493, %v5037
      %v5039 = vpop.f32.mrb[0].mxu0
      %5040 = vmatprep.mubr.bf16.mxu0 %v2557
      %5041 = vmatmul.mubr.bf16.gmra.mrb[0].mxu0 %v2556
      %v5042 = vpop.f32.mrb[0].mxu0
      %v5043 = vadd.f32 %v4498, %v5042
      %v5044 = vpop.f32.mrb[0].mxu0
      %v5045 = vpop.f32.mrb[0].mxu0
      %v5046 = vadd.f32 %v4501, %v5045
      %v5047 = vpop.f32.mrb[0].mxu0
      %5048 = vmatprep.mubr.bf16.mxu0 %v2564
      %5049 = vmatmul.mubr.bf16.gmra.mrb[0].mxu0 %v2563
      %v5050 = vpop.f32.mrb[0].mxu0
      %v5051 = vadd.f32 %v4506, %v5050
      %v5052 = vpop.f32.mrb[0].mxu0
      %v5053 = vpop.f32.mrb[0].mxu0
      %v5054 = vadd.f32 %v4509, %v5053
      %v5055 = vpop.f32.mrb[0].mxu0
      %5056 = vmatprep.mubr.bf16.mxu0 %v2571
      %5057 = vmatmul.mubr.bf16.gmra.mrb[0].mxu0 %v2570
      %v5058 = vpop.f32.mrb[0].mxu0
      %v5059 = vadd.f32 %v4514, %v5058
      %v5060 = vpop.f32.mrb[0].mxu0
      %v5061 = vpop.f32.mrb[0].mxu0
      %v5062 = vadd.f32 %v4517, %v5061
      %v5063 = vpop.f32.mrb[0].mxu0
      %5064 = vmatprep.mubr.bf16.mxu0 %v2578
      %5065 = vmatmul.mubr.bf16.gmra.mrb[0].mxu0 %v2577
      %v5066 = vpop.f32.mrb[0].mxu0
      %v5067 = vadd.f32 %v4522, %v5066
      %v5068 = vpop.f32.mrb[0].mxu0
      %v5069 = vpop.f32.mrb[0].mxu0
      %v5070 = vadd.f32 %v4525, %v5069
      %v5071 = vpop.f32.mrb[0].mxu0
      %5072 = vmatprep.mubr.bf16.mxu0 %v2585
      %5073 = vmatmul.mubr.bf16.gmra.mrb[0].mxu0 %v2584
      %v5074 = vpop.f32.mrb[0].mxu0
      %v5075 = vadd.f32 %v4530, %v5074
      %v5076 = vpop.f32.mrb[0].mxu0
      %v5077 = vpop.f32.mrb[0].mxu0
      %v5078 = vadd.f32 %v4533, %v5077
      %v5079 = vpop.f32.mrb[0].mxu0
      %5080 = vmatprep.mubr.bf16.mxu0 %v2592
      %5081 = vmatmul.mubr.bf16.gmra.mrb[0].mxu0 %v2591
      %v5082 = vpop.f32.mrb[0].mxu0
      %v5083 = vadd.f32 %v4538, %v5082
      %v5084 = vpop.f32.mrb[0].mxu0
      %v5085 = vpop.f32.mrb[0].mxu0
      %v5086 = vadd.f32 %v4541, %v5085
      %v5087 = vpop.f32.mrb[0].mxu0
      %5088 = vmatprep.mubr.bf16.mxu0 %v2599
      %5089 = vmatmul.mubr.bf16.gmra.mrb[0].mxu0 %v2598
      %v5090 = vpop.f32.mrb[0].mxu0
      %v5091 = vadd.f32 %v4546, %v5090
      %v5092 = vpop.f32.mrb[0].mxu0
      %v5093 = vpop.f32.mrb[0].mxu0
      %v5094 = vadd.f32 %v4549, %v5093
      %v5095 = vpop.f32.mrb[0].mxu0
      %5096 = vmatprep.mubr.bf16.mxu0 %v2606
      %5097 = vmatmul.mubr.bf16.gmra.mrb[0].mxu0 %v2605
      %v5098 = vpop.f32.mrb[0].mxu0
      %v5099 = vadd.f32 %v4554, %v5098
      %v5100 = vpop.f32.mrb[0].mxu0
      %v5101 = vpop.f32.mrb[0].mxu0
      %v5102 = vadd.f32 %v4557, %v5101
      %v5103 = vpop.f32.mrb[0].mxu0
      %5104 = vmatprep.mubr.bf16.mxu0 %v2613
      %5105 = vmatmul.mubr.bf16.gmra.mrb[0].mxu0 %v2612
      %v5106 = vpop.f32.mrb[0].mxu0
      %v5107 = vadd.f32 %v4562, %v5106
      %v5108 = vpop.f32.mrb[0].mxu0
      %v5109 = vpop.f32.mrb[0].mxu0
      %v5110 = vadd.f32 %v4565, %v5109
      %v5111 = vpop.f32.mrb[0].mxu0
      %5112 = vmatprep.mubr.bf16.mxu0 %v2620
      %5113 = vmatmul.mubr.bf16.gmra.mrb[0].mxu0 %v2619
      %v5114 = vpop.f32.mrb[0].mxu0
      %v5115 = vadd.f32 %v4570, %v5114
      %v5116 = vpop.f32.mrb[0].mxu0
      %v5117 = vpop.f32.mrb[0].mxu0
      %v5118 = vadd.f32 %v4573, %v5117
      %v5119 = vpop.f32.mrb[0].mxu0
      %5120 = vmatprep.mubr.bf16.mxu0 %v2627
      %5121 = vmatmul.mubr.bf16.gmra.mrb[0].mxu0 %v2626
      %v5122 = vpop.f32.mrb[0].mxu0
      %v5123 = vadd.f32 %v4578, %v5122
      %v5124 = vpop.f32.mrb[0].mxu0
      %v5125 = vpop.f32.mrb[0].mxu0
      %v5126 = vadd.f32 %v4581, %v5125
      %v5127 = vpop.f32.mrb[0].mxu0
      %5128 = vmatprep.mubr.bf16.mxu0 %v2634
      %5129 = vmatmul.mubr.bf16.gmra.mrb[0].mxu0 %v2633
      %v5130 = vpop.f32.mrb[0].mxu0
      %v5131 = vadd.f32 %v4586, %v5130
      %v5132 = vpop.f32.mrb[0].mxu0
      %v5133 = vpop.f32.mrb[0].mxu0
      %v5134 = vadd.f32 %v4589, %v5133
      %v5135 = vpop.f32.mrb[0].mxu0
      %5136 = vmatprep.mubr.bf16.mxu0 %v2641
      %5137 = vmatmul.mubr.bf16.gmra.mrb[0].mxu0 %v2640
      %v5138 = vpop.f32.mrb[0].mxu0
      %v5139 = vadd.f32 %v4594, %v5138
      %v5140 = vpop.f32.mrb[0].mxu0
      %v5141 = vpop.f32.mrb[0].mxu0
      %v5142 = vadd.f32 %v4597, %v5141
      %v5143 = vpop.f32.mrb[0].mxu0
      %5144 = vmatprep.mubr.bf16.mxu0 %v2648
      %5145 = vmatmul.mubr.bf16.gmra.mrb[0].mxu0 %v2647
      %v5146 = vpop.f32.mrb[0].mxu0
      %v5147 = vadd.f32 %v4602, %v5146
      %v5148 = vpop.f32.mrb[0].mxu0
      %v5149 = vpop.f32.mrb[0].mxu0
      %v5150 = vadd.f32 %v4605, %v5149
      %v5151 = vpop.f32.mrb[0].mxu0
      %5152 = vmatprep.mubr.bf16.mxu0 %v2655
      %5153 = vmatmul.mubr.bf16.gmra.mrb[0].mxu0 %v2654
      %v5154 = vpop.f32.mrb[0].mxu0
      %v5155 = vadd.f32 %v4610, %v5154
      %v5156 = vpop.f32.mrb[0].mxu0
      %v5157 = vpop.f32.mrb[0].mxu0
      %v5158 = vadd.f32 %v4613, %v5157
      %v5159 = vpop.f32.mrb[0].mxu0
      %5160 = vmatprep.mubr.bf16.mxu0 %v2662
      %5161 = vmatmul.mubr.bf16.gmra.mrb[0].mxu0 %v2661
      %v5162 = vpop.f32.mrb[0].mxu0
      %v5163 = vadd.f32 %v4618, %v5162
      %v5164 = vpop.f32.mrb[0].mxu0
      %v5165 = vpop.f32.mrb[0].mxu0
      %v5166 = vadd.f32 %v4621, %v5165
      %v5167 = vpop.f32.mrb[0].mxu0
      %5168 = vmatprep.mubr.bf16.mxu0 %v2669
      %5169 = vmatmul.mubr.bf16.gmra.mrb[0].mxu0 %v2668
      %v5170 = vpop.f32.mrb[0].mxu0
      %v5171 = vadd.f32 %v4626, %v5170
      %v5172 = vpop.f32.mrb[0].mxu0
      %v5173 = vpop.f32.mrb[0].mxu0
      %v5174 = vadd.f32 %v4629, %v5173
      %v5175 = vpop.f32.mrb[0].mxu0
      %5176 = vdwg.mxu0
      %5177 = vmatprep.subr.bf16.mxu0 0
      %5178 = vmatpush1.bf16.msra.mxu0 %v3299
      %5179 = vmatprep.subr.bf16.mxu0 0
      %5180 = vmatpush1.bf16.msra.mxu0 0
      %5181 = vmatprep.subr.bf16.mxu0 0
      %5182 = vmatpush1.bf16.msra.mxu0 0
      %5183 = vmatprep.subr.bf16.mxu0 0
      %5184 = vmatpush1.bf16.msra.mxu0 0
      %5185 = vmatprep.subr.bf16.mxu0 0
      %5186 = vmatpush1.bf16.msra.mxu0 0
      %5187 = vmatprep.subr.bf16.mxu0 0
      %5188 = vmatpush1.bf16.msra.mxu0 0
      %5189 = vmatprep.subr.bf16.mxu0 0
      %5190 = vmatpush1.bf16.msra.mxu0 0
      %5191 = vmatprep.subr.bf16.mxu0 0
      %5192 = vmatpush1.bf16.msra.mxu0 0
      %5193 = vmatprep.subr.bf16.mxu0 0
      %5194 = vmatpush1.bf16.msra.mxu0 0
      %5195 = vmatprep.subr.bf16.mxu0 0
      %5196 = vmatpush1.bf16.msra.mxu0 0
      %5197 = vmatprep.subr.bf16.mxu0 0
      %5198 = vmatpush1.bf16.msra.mxu0 0
      %5199 = vmatprep.subr.bf16.mxu0 0
      %5200 = vmatpush1.bf16.msra.mxu0 0
      %5201 = vmatprep.subr.bf16.mxu0 0
      %5202 = vmatpush1.bf16.msra.mxu0 0
      %5203 = vmatprep.subr.bf16.mxu0 0
      %5204 = vmatpush1.bf16.msra.mxu0 0
      %5205 = vmatprep.subr.bf16.mxu0 0
      %5206 = vmatpush1.bf16.msra.mxu0 0
      %5207 = vmatprep.subr.bf16.mxu0 0
      %5208 = vmatpush1.bf16.msra.mxu0 0
      %5209 = vmatprep.mubr.bf16.mxu0 0
      %5210 = vmatmul.mubr.bf16.gmra.mrb[0].mxu0 %v3351
      %v5211 = vpop.f32.mrb[0].mxu0
      %v5212 = vadd.f32 %v4667, %v5211
      %v5213 = vpop.f32.mrb[0].mxu0
      %v5214 = vpop.f32.mrb[0].mxu0
      %v5215 = vadd.f32 %v4670, %v5214
      %v5216 = vpop.f32.mrb[0].mxu0
      %5217 = vmatprep.mubr.bf16.mxu0 0
      %5218 = vmatmul.mubr.bf16.gmra.mrb[0].mxu0 %v3354
      %v5219 = vpop.f32.mrb[0].mxu0
      %v5220 = vadd.f32 %v4675, %v5219
      %v5221 = vpop.f32.mrb[0].mxu0
      %v5222 = vpop.f32.mrb[0].mxu0
      %v5223 = vadd.f32 %v4678, %v5222
      %v5224 = vpop.f32.mrb[0].mxu0
      %5225 = vmatprep.mubr.bf16.mxu0 0
      %5226 = vmatmul.mubr.bf16.gmra.mrb[0].mxu0 %v3357
      %v5227 = vpop.f32.mrb[0].mxu0
      %v5228 = vadd.f32 %v4683, %v5227
      %v5229 = vpop.f32.mrb[0].mxu0
      %v5230 = vpop.f32.mrb[0].mxu0
      %v5231 = vadd.f32 %v4686, %v5230
      %v5232 = vpop.f32.mrb[0].mxu0
      %5233 = vmatprep.mubr.bf16.mxu0 0
      %5234 = vmatmul.mubr.bf16.gmra.mrb[0].mxu0 %v3360
      %v5235 = vpop.f32.mrb[0].mxu0
      %v5236 = vadd.f32 %v4691, %v5235
      %v5237 = vpop.f32.mrb[0].mxu0
      %v5238 = vpop.f32.mrb[0].mxu0
      %v5239 = vadd.f32 %v4694, %v5238
      %v5240 = vpop.f32.mrb[0].mxu0
      %5241 = vmatprep.mubr.bf16.mxu0 0
      %5242 = vmatmul.mubr.bf16.gmra.mrb[0].mxu0 %v3363
      %v5243 = vpop.f32.mrb[0].mxu0
      %v5244 = vadd.f32 %v4699, %v5243
      %v5245 = vpop.f32.mrb[0].mxu0
      %v5246 = vpop.f32.mrb[0].mxu0
      %v5247 = vadd.f32 %v4702, %v5246
      %v5248 = vpop.f32.mrb[0].mxu0
      %5249 = vmatprep.mubr.bf16.mxu0 0
      %5250 = vmatmul.mubr.bf16.gmra.mrb[0].mxu0 %v3366
      %v5251 = vpop.f32.mrb[0].mxu0
      %v5252 = vadd.f32 %v4707, %v5251
      %v5253 = vpop.f32.mrb[0].mxu0
      %v5254 = vpop.f32.mrb[0].mxu0
      %v5255 = vadd.f32 %v4710, %v5254
      %v5256 = vpop.f32.mrb[0].mxu0
      %5257 = vmatprep.mubr.bf16.mxu0 0
      %5258 = vmatmul.mubr.bf16.gmra.mrb[0].mxu0 %v3369
      %v5259 = vpop.f32.mrb[0].mxu0
      %v5260 = vadd.f32 %v4715, %v5259
      %v5261 = vpop.f32.mrb[0].mxu0
      %v5262 = vpop.f32.mrb[0].mxu0
      %v5263 = vadd.f32 %v4718, %v5262
      %v5264 = vpop.f32.mrb[0].mxu0
      %5265 = vmatprep.mubr.bf16.mxu0 0
      %5266 = vmatmul.mubr.bf16.gmra.mrb[0].mxu0 %v3372
      %v5267 = vpop.f32.mrb[0].mxu0
      %v5268 = vadd.f32 %v4723, %v5267
      %v5269 = vpop.f32.mrb[0].mxu0
      %v5270 = vpop.f32.mrb[0].mxu0
      %v5271 = vadd.f32 %v4726, %v5270
      %v5272 = vpop.f32.mrb[0].mxu0
      %5273 = vmatprep.mubr.bf16.mxu0 0
      %5274 = vmatmul.mubr.bf16.gmra.mrb[0].mxu0 %v3375
      %v5275 = vpop.f32.mrb[0].mxu0
      %v5276 = vadd.f32 %v4731, %v5275
      %v5277 = vpop.f32.mrb[0].mxu0
      %v5278 = vpop.f32.mrb[0].mxu0
      %v5279 = vadd.f32 %v4734, %v5278
      %v5280 = vpop.f32.mrb[0].mxu0
      %5281 = vmatprep.mubr.bf16.mxu0 0
      %5282 = vmatmul.mubr.bf16.gmra.mrb[0].mxu0 %v3378
      %v5283 = vpop.f32.mrb[0].mxu0
      %v5284 = vadd.f32 %v4739, %v5283
      %v5285 = vpop.f32.mrb[0].mxu0
      %v5286 = vpop.f32.mrb[0].mxu0
      %v5287 = vadd.f32 %v4742, %v5286
      %v5288 = vpop.f32.mrb[0].mxu0
      %5289 = vmatprep.mubr.bf16.mxu0 0
      %5290 = vmatmul.mubr.bf16.gmra.mrb[0].mxu0 %v3381
      %v5291 = vpop.f32.mrb[0].mxu0
      %v5292 = vadd.f32 %v4747, %v5291
      %v5293 = vpop.f32.mrb[0].mxu0
      %v5294 = vpop.f32.mrb[0].mxu0
      %v5295 = vadd.f32 %v4750, %v5294
      %v5296 = vpop.f32.mrb[0].mxu0
      %5297 = vmatprep.mubr.bf16.mxu0 0
      %5298 = vmatmul.mubr.bf16.gmra.mrb[0].mxu0 %v3384
      %v5299 = vpop.f32.mrb[0].mxu0
      %v5300 = vadd.f32 %v4755, %v5299
      %v5301 = vpop.f32.mrb[0].mxu0
      %v5302 = vpop.f32.mrb[0].mxu0
      %v5303 = vadd.f32 %v4758, %v5302
      %v5304 = vpop.f32.mrb[0].mxu0
      %5305 = vmatprep.mubr.bf16.mxu0 0
      %5306 = vmatmul.mubr.bf16.gmra.mrb[0].mxu0 %v3387
      %v5307 = vpop.f32.mrb[0].mxu0
      %v5308 = vadd.f32 %v4763, %v5307
      %v5309 = vpop.f32.mrb[0].mxu0
      %v5310 = vpop.f32.mrb[0].mxu0
      %v5311 = vadd.f32 %v4766, %v5310
      %v5312 = vpop.f32.mrb[0].mxu0
      %5313 = vmatprep.mubr.bf16.mxu0 0
      %5314 = vmatmul.mubr.bf16.gmra.mrb[0].mxu0 %v3390
      %v5315 = vpop.f32.mrb[0].mxu0
      %v5316 = vadd.f32 %v4771, %v5315
      %v5317 = vpop.f32.mrb[0].mxu0
      %v5318 = vpop.f32.mrb[0].mxu0
      %v5319 = vadd.f32 %v4774, %v5318
      %v5320 = vpop.f32.mrb[0].mxu0
      %5321 = vmatprep.mubr.bf16.mxu0 0
      %5322 = vmatmul.mubr.bf16.gmra.mrb[0].mxu0 %v3393
      %v5323 = vpop.f32.mrb[0].mxu0
      %v5324 = vadd.f32 %v4779, %v5323
      %v5325 = vpop.f32.mrb[0].mxu0
      %v5326 = vpop.f32.mrb[0].mxu0
      %v5327 = vadd.f32 %v4782, %v5326
      %v5328 = vpop.f32.mrb[0].mxu0
      %5329 = vmatprep.mubr.bf16.mxu0 0
      %5330 = vmatmul.mubr.bf16.gmra.mrb[0].mxu0 %v3396
      %v5331 = vpop.f32.mrb[0].mxu0
      %v5332 = vadd.f32 %v4787, %v5331
      %v5333 = vpop.f32.mrb[0].mxu0
      %v5334 = vpop.f32.mrb[0].mxu0
      %v5335 = vadd.f32 %v4790, %v5334
      %v5336 = vpop.f32.mrb[0].mxu0
      %5337 = vmatprep.mubr.bf16.mxu0 0
      %5338 = vmatmul.mubr.bf16.gmra.mrb[0].mxu0 %v3399
      %v5339 = vpop.f32.mrb[0].mxu0
      %v5340 = vadd.f32 %v4795, %v5339
      %v5341 = vpop.f32.mrb[0].mxu0
      %v5342 = vpop.f32.mrb[0].mxu0
      %v5343 = vadd.f32 %v4798, %v5342
      %v5344 = vpop.f32.mrb[0].mxu0
      %5345 = vmatprep.mubr.bf16.mxu0 0
      %5346 = vmatmul.mubr.bf16.gmra.mrb[0].mxu0 %v3402
      %v5347 = vpop.f32.mrb[0].mxu0
      %v5348 = vadd.f32 %v4803, %v5347
      %v5349 = vpop.f32.mrb[0].mxu0
      %v5350 = vpop.f32.mrb[0].mxu0
      %v5351 = vadd.f32 %v4806, %v5350
      %v5352 = vpop.f32.mrb[0].mxu0
      %5353 = vmatprep.mubr.bf16.mxu0 0
      %5354 = vmatmul.mubr.bf16.gmra.mrb[0].mxu0 %v3405
      %v5355 = vpop.f32.mrb[0].mxu0
      %v5356 = vadd.f32 %v4811, %v5355
      %v5357 = vpop.f32.mrb[0].mxu0
      %v5358 = vpop.f32.mrb[0].mxu0
      %v5359 = vadd.f32 %v4814, %v5358
      %v5360 = vpop.f32.mrb[0].mxu0
      %5361 = vmatprep.mubr.bf16.mxu0 0
      %5362 = vmatmul.mubr.bf16.gmra.mrb[0].mxu0 %v3408
      %v5363 = vpop.f32.mrb[0].mxu0
      %v5364 = vadd.f32 %v4819, %v5363
      %v5365 = vpop.f32.mrb[0].mxu0
      %v5366 = vpop.f32.mrb[0].mxu0
      %v5367 = vadd.f32 %v4822, %v5366
      %v5368 = vpop.f32.mrb[0].mxu0
      %5369 = vmatprep.mubr.bf16.mxu0 0
      %5370 = vmatmul.mubr.bf16.gmra.mrb[0].mxu0 %v3411
      %v5371 = vpop.f32.mrb[0].mxu0
      %v5372 = vadd.f32 %v4827, %v5371
      %v5373 = vpop.f32.mrb[0].mxu0
      %v5374 = vpop.f32.mrb[0].mxu0
      %v5375 = vadd.f32 %v4830, %v5374
      %v5376 = vpop.f32.mrb[0].mxu0
      %5377 = vmatprep.mubr.bf16.mxu0 0
      %5378 = vmatmul.mubr.bf16.gmra.mrb[0].mxu0 %v3414
      %v5379 = vpop.f32.mrb[0].mxu0
      %v5380 = vadd.f32 %v4835, %v5379
      %v5381 = vpop.f32.mrb[0].mxu0
      %v5382 = vpop.f32.mrb[0].mxu0
      %v5383 = vadd.f32 %v4838, %v5382
      %v5384 = vpop.f32.mrb[0].mxu0
      %5385 = vmatprep.mubr.bf16.mxu0 0
      %5386 = vmatmul.mubr.bf16.gmra.mrb[0].mxu0 %v3417
      %v5387 = vpop.f32.mrb[0].mxu0
      %v5388 = vadd.f32 %v4843, %v5387
      %v5389 = vpop.f32.mrb[0].mxu0
      %v5390 = vpop.f32.mrb[0].mxu0
      %v5391 = vadd.f32 %v4846, %v5390
      %v5392 = vpop.f32.mrb[0].mxu0
      %5393 = vmatprep.mubr.bf16.mxu0 0
      %5394 = vmatmul.mubr.bf16.gmra.mrb[0].mxu0 %v3420
      %v5395 = vpop.f32.mrb[0].mxu0
      %v5396 = vadd.f32 %v4851, %v5395
      %v5397 = vpop.f32.mrb[0].mxu0
      %v5398 = vpop.f32.mrb[0].mxu0
      %v5399 = vadd.f32 %v4854, %v5398
      %v5400 = vpop.f32.mrb[0].mxu0
      %5401 = vmatprep.mubr.bf16.mxu0 0
      %5402 = vmatmul.mubr.bf16.gmra.mrb[0].mxu0 %v3423
      %v5403 = vpop.f32.mrb[0].mxu0
      %v5404 = vadd.f32 %v4859, %v5403
      %v5405 = vpop.f32.mrb[0].mxu0
      %v5406 = vpop.f32.mrb[0].mxu0
      %v5407 = vadd.f32 %v4862, %v5406
      %v5408 = vpop.f32.mrb[0].mxu0
      %5409 = vmatprep.mubr.bf16.mxu0 0
      %5410 = vmatmul.mubr.bf16.gmra.mrb[0].mxu0 %v3426
      %v5411 = vpop.f32.mrb[0].mxu0
      %v5412 = vadd.f32 %v4867, %v5411
      %v5413 = vpop.f32.mrb[0].mxu0
      %v5414 = vpop.f32.mrb[0].mxu0
      %v5415 = vadd.f32 %v4870, %v5414
      %v5416 = vpop.f32.mrb[0].mxu0
      %5417 = vmatprep.mubr.bf16.mxu0 0
      %5418 = vmatmul.mubr.bf16.gmra.mrb[0].mxu0 %v3429
      %v5419 = vpop.f32.mrb[0].mxu0
      %v5420 = vadd.f32 %v4875, %v5419
      %v5421 = vpop.f32.mrb[0].mxu0
      %v5422 = vpop.f32.mrb[0].mxu0
      %v5423 = vadd.f32 %v4878, %v5422
      %v5424 = vpop.f32.mrb[0].mxu0
      %5425 = vmatprep.mubr.bf16.mxu0 0
      %5426 = vmatmul.mubr.bf16.gmra.mrb[0].mxu0 %v3432
      %v5427 = vpop.f32.mrb[0].mxu0
      %v5428 = vadd.f32 %v4883, %v5427
      %v5429 = vpop.f32.mrb[0].mxu0
      %v5430 = vpop.f32.mrb[0].mxu0
      %v5431 = vadd.f32 %v4886, %v5430
      %v5432 = vpop.f32.mrb[0].mxu0
      %5433 = vmatprep.mubr.bf16.mxu0 0
      %5434 = vmatmul.mubr.bf16.gmra.mrb[0].mxu0 %v3435
      %v5435 = vpop.f32.mrb[0].mxu0
      %v5436 = vadd.f32 %v4891, %v5435
      %v5437 = vpop.f32.mrb[0].mxu0
      %v5438 = vpop.f32.mrb[0].mxu0
      %v5439 = vadd.f32 %v4894, %v5438
      %v5440 = vpop.f32.mrb[0].mxu0
      %5441 = vmatprep.mubr.bf16.mxu0 0
      %5442 = vmatmul.mubr.bf16.gmra.mrb[0].mxu0 %v3438
      %v5443 = vpop.f32.mrb[0].mxu0
      %v5444 = vadd.f32 %v4899, %v5443
      %v5445 = vpop.f32.mrb[0].mxu0
      %v5446 = vpop.f32.mrb[0].mxu0
      %v5447 = vadd.f32 %v4902, %v5446
      %v5448 = vpop.f32.mrb[0].mxu0
      %5449 = vmatprep.mubr.bf16.mxu0 0
      %5450 = vmatmul.mubr.bf16.gmra.mrb[0].mxu0 %v3441
      %v5451 = vpop.f32.mrb[0].mxu0
      %v5452 = vadd.f32 %v4907, %v5451
      %v5453 = vpop.f32.mrb[0].mxu0
      %v5454 = vpop.f32.mrb[0].mxu0
      %v5455 = vadd.f32 %v4910, %v5454
      %v5456 = vpop.f32.mrb[0].mxu0
      %5457 = vmatprep.mubr.bf16.mxu0 0
      %5458 = vmatmul.mubr.bf16.gmra.mrb[0].mxu0 %v3444
      %v5459 = vpop.f32.mrb[0].mxu0
      %v5460 = vadd.f32 %v4915, %v5459
      %v5461 = vpop.f32.mrb[0].mxu0
      %v5462 = vpop.f32.mrb[0].mxu0
      %v5463 = vadd.f32 %v4918, %v5462
      %v5464 = vpop.f32.mrb[0].mxu0
      %5465 = vmatprep.mubr.bf16.mxu0 0
      %5466 = vmatmul.mubr.bf16.gmra.mrb[0].mxu0 %v3447
      %v5467 = vpop.f32.mrb[0].mxu0
      %v5468 = vadd.f32 %v4923, %v5467
      %v5469 = vpop.f32.mrb[0].mxu0
      %v5470 = vpop.f32.mrb[0].mxu0
      %v5471 = vadd.f32 %v4926, %v5470
      %v5472 = vpop.f32.mrb[0].mxu0
      %5473 = vmatprep.mubr.bf16.mxu0 0
      %5474 = vmatmul.mubr.bf16.gmra.mrb[0].mxu0 %v3450
      %v5475 = vpop.f32.mrb[0].mxu0
      %v5476 = vadd.f32 %v4931, %v5475
      %v5477 = vpop.f32.mrb[0].mxu0
      %v5478 = vpop.f32.mrb[0].mxu0
      %v5479 = vadd.f32 %v4934, %v5478
      %v5480 = vpop.f32.mrb[0].mxu0
      %5481 = vmatprep.mubr.bf16.mxu0 0
      %5482 = vmatmul.mubr.bf16.gmra.mrb[0].mxu0 %v3453
      %v5483 = vpop.f32.mrb[0].mxu0
      %v5484 = vadd.f32 %v4939, %v5483
      %v5485 = vpop.f32.mrb[0].mxu0
      %v5486 = vpop.f32.mrb[0].mxu0
      %v5487 = vadd.f32 %v4942, %v5486
      %v5488 = vpop.f32.mrb[0].mxu0
      %5489 = vmatprep.mubr.bf16.mxu0 0
      %5490 = vmatmul.mubr.bf16.gmra.mrb[0].mxu0 %v3456
      %v5491 = vpop.f32.mrb[0].mxu0
      %v5492 = vadd.f32 %v4947, %v5491
      %v5493 = vpop.f32.mrb[0].mxu0
      %v5494 = vpop.f32.mrb[0].mxu0
      %v5495 = vadd.f32 %v4950, %v5494
      %v5496 = vpop.f32.mrb[0].mxu0
      %5497 = vmatprep.mubr.bf16.mxu0 0
      %5498 = vmatmul.mubr.bf16.gmra.mrb[0].mxu0 %v3459
      %v5499 = vpop.f32.mrb[0].mxu0
      %v5500 = vadd.f32 %v4955, %v5499
      %v5501 = vpop.f32.mrb[0].mxu0
      %v5502 = vpop.f32.mrb[0].mxu0
      %v5503 = vadd.f32 %v4958, %v5502
      %v5504 = vpop.f32.mrb[0].mxu0
      %5505 = vmatprep.mubr.bf16.mxu0 0
      %5506 = vmatmul.mubr.bf16.gmra.mrb[0].mxu0 %v3462
      %v5507 = vpop.f32.mrb[0].mxu0
      %v5508 = vadd.f32 %v4963, %v5507
      %v5509 = vpop.f32.mrb[0].mxu0
      %v5510 = vpop.f32.mrb[0].mxu0
      %v5511 = vadd.f32 %v4966, %v5510
      %v5512 = vpop.f32.mrb[0].mxu0
      %5513 = vmatprep.mubr.bf16.mxu0 0
      %5514 = vmatmul.mubr.bf16.gmra.mrb[0].mxu0 %v3465
      %v5515 = vpop.f32.mrb[0].mxu0
      %v5516 = vadd.f32 %v4971, %v5515
      %v5517 = vpop.f32.mrb[0].mxu0
      %v5518 = vpop.f32.mrb[0].mxu0
      %v5519 = vadd.f32 %v4974, %v5518
      %v5520 = vpop.f32.mrb[0].mxu0
      %5521 = vmatprep.mubr.bf16.mxu0 0
      %5522 = vmatmul.mubr.bf16.gmra.mrb[0].mxu0 %v3468
      %v5523 = vpop.f32.mrb[0].mxu0
      %v5524 = vadd.f32 %v4979, %v5523
      %v5525 = vpop.f32.mrb[0].mxu0
      %v5526 = vpop.f32.mrb[0].mxu0
      %v5527 = vadd.f32 %v4982, %v5526
      %v5528 = vpop.f32.mrb[0].mxu0
      %5529 = vmatprep.mubr.bf16.mxu0 0
      %5530 = vmatmul.mubr.bf16.gmra.mrb[0].mxu0 %v3471
      %v5531 = vpop.f32.mrb[0].mxu0
      %v5532 = vadd.f32 %v4987, %v5531
      %v5533 = vpop.f32.mrb[0].mxu0
      %v5534 = vpop.f32.mrb[0].mxu0
      %v5535 = vadd.f32 %v4990, %v5534
      %v5536 = vpop.f32.mrb[0].mxu0
      %5537 = vmatprep.mubr.bf16.mxu0 0
      %5538 = vmatmul.mubr.bf16.gmra.mrb[0].mxu0 %v3474
      %v5539 = vpop.f32.mrb[0].mxu0
      %v5540 = vadd.f32 %v4995, %v5539
      %v5541 = vpop.f32.mrb[0].mxu0
      %v5542 = vpop.f32.mrb[0].mxu0
      %v5543 = vadd.f32 %v4998, %v5542
      %v5544 = vpop.f32.mrb[0].mxu0
      %5545 = vmatprep.mubr.bf16.mxu0 0
      %5546 = vmatmul.mubr.bf16.gmra.mrb[0].mxu0 %v3477
      %v5547 = vpop.f32.mrb[0].mxu0
      %v5548 = vadd.f32 %v5003, %v5547
      %v5549 = vpop.f32.mrb[0].mxu0
      %v5550 = vpop.f32.mrb[0].mxu0
      %v5551 = vadd.f32 %v5006, %v5550
      %v5552 = vpop.f32.mrb[0].mxu0
      %5553 = vmatprep.mubr.bf16.mxu0 0
      %5554 = vmatmul.mubr.bf16.gmra.mrb[0].mxu0 %v3480
      %v5555 = vpop.f32.mrb[0].mxu0
      %v5556 = vadd.f32 %v5011, %v5555
      %v5557 = vpop.f32.mrb[0].mxu0
      %v5558 = vpop.f32.mrb[0].mxu0
      %v5559 = vadd.f32 %v5014, %v5558
      %v5560 = vpop.f32.mrb[0].mxu0
      %5561 = vmatprep.mubr.bf16.mxu0 0
      %5562 = vmatmul.mubr.bf16.gmra.mrb[0].mxu0 %v3483
      %v5563 = vpop.f32.mrb[0].mxu0
      %v5564 = vadd.f32 %v5019, %v5563
      %v5565 = vpop.f32.mrb[0].mxu0
      %v5566 = vpop.f32.mrb[0].mxu0
      %v5567 = vadd.f32 %v5022, %v5566
      %v5568 = vpop.f32.mrb[0].mxu0
      %5569 = vmatprep.mubr.bf16.mxu0 0
      %5570 = vmatmul.mubr.bf16.gmra.mrb[0].mxu0 %v3486
      %v5571 = vpop.f32.mrb[0].mxu0
      %v5572 = vadd.f32 %v5027, %v5571
      %v5573 = vpop.f32.mrb[0].mxu0
      %v5574 = vpop.f32.mrb[0].mxu0
      %v5575 = vadd.f32 %v5030, %v5574
      %v5576 = vpop.f32.mrb[0].mxu0
      %5577 = vmatprep.mubr.bf16.mxu0 0
      %5578 = vmatmul.mubr.bf16.gmra.mrb[0].mxu0 %v3489
      %v5579 = vpop.f32.mrb[0].mxu0
      %v5580 = vadd.f32 %v5035, %v5579
      %v5581 = vpop.f32.mrb[0].mxu0
      %v5582 = vpop.f32.mrb[0].mxu0
      %v5583 = vadd.f32 %v5038, %v5582
      %v5584 = vpop.f32.mrb[0].mxu0
      %5585 = vmatprep.mubr.bf16.mxu0 0
      %5586 = vmatmul.mubr.bf16.gmra.mrb[0].mxu0 %v3492
      %v5587 = vpop.f32.mrb[0].mxu0
      %v5588 = vadd.f32 %v5043, %v5587
      %v5589 = vpop.f32.mrb[0].mxu0
      %v5590 = vpop.f32.mrb[0].mxu0
      %v5591 = vadd.f32 %v5046, %v5590
      %v5592 = vpop.f32.mrb[0].mxu0
      %5593 = vmatprep.mubr.bf16.mxu0 0
      %5594 = vmatmul.mubr.bf16.gmra.mrb[0].mxu0 %v3495
      %v5595 = vpop.f32.mrb[0].mxu0
      %v5596 = vadd.f32 %v5051, %v5595
      %v5597 = vpop.f32.mrb[0].mxu0
      %v5598 = vpop.f32.mrb[0].mxu0
      %v5599 = vadd.f32 %v5054, %v5598
      %v5600 = vpop.f32.mrb[0].mxu0
      %5601 = vmatprep.mubr.bf16.mxu0 0
      %5602 = vmatmul.mubr.bf16.gmra.mrb[0].mxu0 %v3498
      %v5603 = vpop.f32.mrb[0].mxu0
      %v5604 = vadd.f32 %v5059, %v5603
      %v5605 = vpop.f32.mrb[0].mxu0
      %v5606 = vpop.f32.mrb[0].mxu0
      %v5607 = vadd.f32 %v5062, %v5606
      %v5608 = vpop.f32.mrb[0].mxu0
      %5609 = vmatprep.mubr.bf16.mxu0 0
      %5610 = vmatmul.mubr.bf16.gmra.mrb[0].mxu0 %v3501
      %v5611 = vpop.f32.mrb[0].mxu0
      %v5612 = vadd.f32 %v5067, %v5611
      %v5613 = vpop.f32.mrb[0].mxu0
      %v5614 = vpop.f32.mrb[0].mxu0
      %v5615 = vadd.f32 %v5070, %v5614
      %v5616 = vpop.f32.mrb[0].mxu0
      %5617 = vmatprep.mubr.bf16.mxu0 0
      %5618 = vmatmul.mubr.bf16.gmra.mrb[0].mxu0 %v3504
      %v5619 = vpop.f32.mrb[0].mxu0
      %v5620 = vadd.f32 %v5075, %v5619
      %v5621 = vpop.f32.mrb[0].mxu0
      %v5622 = vpop.f32.mrb[0].mxu0
      %v5623 = vadd.f32 %v5078, %v5622
      %v5624 = vpop.f32.mrb[0].mxu0
      %5625 = vmatprep.mubr.bf16.mxu0 0
      %5626 = vmatmul.mubr.bf16.gmra.mrb[0].mxu0 %v3507
      %v5627 = vpop.f32.mrb[0].mxu0
      %v5628 = vadd.f32 %v5083, %v5627
      %v5629 = vpop.f32.mrb[0].mxu0
      %v5630 = vpop.f32.mrb[0].mxu0
      %v5631 = vadd.f32 %v5086, %v5630
      %v5632 = vpop.f32.mrb[0].mxu0
      %5633 = vmatprep.mubr.bf16.mxu0 0
      %5634 = vmatmul.mubr.bf16.gmra.mrb[0].mxu0 %v3510
      %v5635 = vpop.f32.mrb[0].mxu0
      %v5636 = vadd.f32 %v5091, %v5635
      %v5637 = vpop.f32.mrb[0].mxu0
      %v5638 = vpop.f32.mrb[0].mxu0
      %v5639 = vadd.f32 %v5094, %v5638
      %v5640 = vpop.f32.mrb[0].mxu0
      %5641 = vmatprep.mubr.bf16.mxu0 0
      %5642 = vmatmul.mubr.bf16.gmra.mrb[0].mxu0 %v3513
      %v5643 = vpop.f32.mrb[0].mxu0
      %v5644 = vadd.f32 %v5099, %v5643
      %v5645 = vpop.f32.mrb[0].mxu0
      %v5646 = vpop.f32.mrb[0].mxu0
      %v5647 = vadd.f32 %v5102, %v5646
      %v5648 = vpop.f32.mrb[0].mxu0
      %5649 = vmatprep.mubr.bf16.mxu0 0
      %5650 = vmatmul.mubr.bf16.gmra.mrb[0].mxu0 %v3516
      %v5651 = vpop.f32.mrb[0].mxu0
      %v5652 = vadd.f32 %v5107, %v5651
      %v5653 = vpop.f32.mrb[0].mxu0
      %v5654 = vpop.f32.mrb[0].mxu0
      %v5655 = vadd.f32 %v5110, %v5654
      %v5656 = vpop.f32.mrb[0].mxu0
      %5657 = vmatprep.mubr.bf16.mxu0 0
      %5658 = vmatmul.mubr.bf16.gmra.mrb[0].mxu0 %v3519
      %v5659 = vpop.f32.mrb[0].mxu0
      %v5660 = vadd.f32 %v5115, %v5659
      %v5661 = vpop.f32.mrb[0].mxu0
      %v5662 = vpop.f32.mrb[0].mxu0
      %v5663 = vadd.f32 %v5118, %v5662
      %v5664 = vpop.f32.mrb[0].mxu0
      %5665 = vmatprep.mubr.bf16.mxu0 0
      %5666 = vmatmul.mubr.bf16.gmra.mrb[0].mxu0 %v3522
      %v5667 = vpop.f32.mrb[0].mxu0
      %v5668 = vadd.f32 %v5123, %v5667
      %v5669 = vpop.f32.mrb[0].mxu0
      %v5670 = vpop.f32.mrb[0].mxu0
      %v5671 = vadd.f32 %v5126, %v5670
      %v5672 = vpop.f32.mrb[0].mxu0
      %5673 = vmatprep.mubr.bf16.mxu0 0
      %5674 = vmatmul.mubr.bf16.gmra.mrb[0].mxu0 %v3525
      %v5675 = vpop.f32.mrb[0].mxu0
      %v5676 = vadd.f32 %v5131, %v5675
      %v5677 = vpop.f32.mrb[0].mxu0
      %v5678 = vpop.f32.mrb[0].mxu0
      %v5679 = vadd.f32 %v5134, %v5678
      %v5680 = vpop.f32.mrb[0].mxu0
      %5681 = vmatprep.mubr.bf16.mxu0 0
      %5682 = vmatmul.mubr.bf16.gmra.mrb[0].mxu0 %v3528
      %v5683 = vpop.f32.mrb[0].mxu0
      %v5684 = vadd.f32 %v5139, %v5683
      %v5685 = vpop.f32.mrb[0].mxu0
      %v5686 = vpop.f32.mrb[0].mxu0
      %v5687 = vadd.f32 %v5142, %v5686
      %v5688 = vpop.f32.mrb[0].mxu0
      %5689 = vmatprep.mubr.bf16.mxu0 0
      %5690 = vmatmul.mubr.bf16.gmra.mrb[0].mxu0 %v3531
      %v5691 = vpop.f32.mrb[0].mxu0
      %v5692 = vadd.f32 %v5147, %v5691
      %v5693 = vpop.f32.mrb[0].mxu0
      %v5694 = vpop.f32.mrb[0].mxu0
      %v5695 = vadd.f32 %v5150, %v5694
      %v5696 = vpop.f32.mrb[0].mxu0
      %5697 = vmatprep.mubr.bf16.mxu0 0
      %5698 = vmatmul.mubr.bf16.gmra.mrb[0].mxu0 %v3534
      %v5699 = vpop.f32.mrb[0].mxu0
      %v5700 = vadd.f32 %v5155, %v5699
      %v5701 = vpop.f32.mrb[0].mxu0
      %v5702 = vpop.f32.mrb[0].mxu0
      %v5703 = vadd.f32 %v5158, %v5702
      %v5704 = vpop.f32.mrb[0].mxu0
      %5705 = vmatprep.mubr.bf16.mxu0 0
      %5706 = vmatmul.mubr.bf16.gmra.mrb[0].mxu0 %v3537
      %v5707 = vpop.f32.mrb[0].mxu0
      %v5708 = vadd.f32 %v5163, %v5707
      %v5709 = vpop.f32.mrb[0].mxu0
      %v5710 = vpop.f32.mrb[0].mxu0
      %v5711 = vadd.f32 %v5166, %v5710
      %v5712 = vpop.f32.mrb[0].mxu0
      %5713 = vmatprep.mubr.bf16.mxu0 0
      %5714 = vmatmul.mubr.bf16.gmra.mrb[0].mxu0 %v3540
      %v5715 = vpop.f32.mrb[0].mxu0
      %v5716 = vadd.f32 %v5171, %v5715
      %v5717 = vpop.f32.mrb[0].mxu0
      %v5718 = vpop.f32.mrb[0].mxu0
      %v5719 = vadd.f32 %v5174, %v5718
      %v5720 = vpop.f32.mrb[0].mxu0
      %5721 = vdwg.mxu0
      %v5722 = vld [vmem:[%s2] sm:$0x1]
      %v5724 = vlaneseq
      %v5725 = vshrl.u32 %v5724, 7
      %v5726 = vsub.s32 0, %v5725
      %v5727 = vrot.slane %v5722, %v5726
      %v5729 = vmul.f32 %v5212, %v5727
      %v5730 = vmul.f32 %v5215, %v5727
      %v5731 = vmul.f32 %v5220, %v5727
      %v5732 = vmul.f32 %v5223, %v5727
      %v5733 = vmul.f32 %v5228, %v5727
      %v5734 = vmul.f32 %v5231, %v5727
      %v5735 = vmul.f32 %v5236, %v5727
      %v5736 = vmul.f32 %v5239, %v5727
      %v5737 = vmul.f32 %v5244, %v5727
      %v5738 = vmul.f32 %v5247, %v5727
      %v5739 = vmul.f32 %v5252, %v5727
      %v5740 = vmul.f32 %v5255, %v5727
      %v5741 = vmul.f32 %v5260, %v5727
      %v5742 = vmul.f32 %v5263, %v5727
      %v5743 = vmul.f32 %v5268, %v5727
      %v5744 = vmul.f32 %v5271, %v5727
      %v5745 = vmul.f32 %v5276, %v5727
      %v5746 = vmul.f32 %v5279, %v5727
      %v5747 = vmul.f32 %v5284, %v5727
      %v5748 = vmul.f32 %v5287, %v5727
      %v5749 = vmul.f32 %v5292, %v5727
      %v5750 = vmul.f32 %v5295, %v5727
      %v5751 = vmul.f32 %v5300, %v5727
      %v5752 = vmul.f32 %v5303, %v5727
      %v5753 = vmul.f32 %v5308, %v5727
      %v5754 = vmul.f32 %v5311, %v5727
      %v5755 = vmul.f32 %v5316, %v5727
      %v5756 = vmul.f32 %v5319, %v5727
      %v5757 = vmul.f32 %v5324, %v5727
      %v5758 = vmul.f32 %v5327, %v5727
      %v5759 = vmul.f32 %v5332, %v5727
      %v5760 = vmul.f32 %v5335, %v5727
      %v5761 = vmul.f32 %v5340, %v5727
      %v5762 = vmul.f32 %v5343, %v5727
      %v5763 = vmul.f32 %v5348, %v5727
      %v5764 = vmul.f32 %v5351, %v5727
      %v5765 = vmul.f32 %v5356, %v5727
      %v5766 = vmul.f32 %v5359, %v5727
      %v5767 = vmul.f32 %v5364, %v5727
      %v5768 = vmul.f32 %v5367, %v5727
      %v5769 = vmul.f32 %v5372, %v5727
      %v5770 = vmul.f32 %v5375, %v5727
      %v5771 = vmul.f32 %v5380, %v5727
      %v5772 = vmul.f32 %v5383, %v5727
      %v5773 = vmul.f32 %v5388, %v5727
      %v5774 = vmul.f32 %v5391, %v5727
      %v5775 = vmul.f32 %v5396, %v5727
      %v5776 = vmul.f32 %v5399, %v5727
      %v5777 = vmul.f32 %v5404, %v5727
      %v5778 = vmul.f32 %v5407, %v5727
      %v5779 = vmul.f32 %v5412, %v5727
      %v5780 = vmul.f32 %v5415, %v5727
      %v5781 = vmul.f32 %v5420, %v5727
      %v5782 = vmul.f32 %v5423, %v5727
      %v5783 = vmul.f32 %v5428, %v5727
      %v5784 = vmul.f32 %v5431, %v5727
      %v5785 = vmul.f32 %v5436, %v5727
      %v5786 = vmul.f32 %v5439, %v5727
      %v5787 = vmul.f32 %v5444, %v5727
      %v5788 = vmul.f32 %v5447, %v5727
      %v5789 = vmul.f32 %v5452, %v5727
      %v5790 = vmul.f32 %v5455, %v5727
      %v5791 = vmul.f32 %v5460, %v5727
      %v5792 = vmul.f32 %v5463, %v5727
      %v5793 = vmul.f32 %v5468, %v5727
      %v5794 = vmul.f32 %v5471, %v5727
      %v5795 = vmul.f32 %v5476, %v5727
      %v5796 = vmul.f32 %v5479, %v5727
      %v5797 = vmul.f32 %v5484, %v5727
      %v5798 = vmul.f32 %v5487, %v5727
      %v5799 = vmul.f32 %v5492, %v5727
      %v5800 = vmul.f32 %v5495, %v5727
      %v5801 = vmul.f32 %v5500, %v5727
      %v5802 = vmul.f32 %v5503, %v5727
      %v5803 = vmul.f32 %v5508, %v5727
      %v5804 = vmul.f32 %v5511, %v5727
      %v5805 = vmul.f32 %v5516, %v5727
      %v5806 = vmul.f32 %v5519, %v5727
      %v5807 = vmul.f32 %v5524, %v5727
      %v5808 = vmul.f32 %v5527, %v5727
      %v5809 = vmul.f32 %v5532, %v5727
      %v5810 = vmul.f32 %v5535, %v5727
      %v5811 = vmul.f32 %v5540, %v5727
      %v5812 = vmul.f32 %v5543, %v5727
      %v5813 = vmul.f32 %v5548, %v5727
      %v5814 = vmul.f32 %v5551, %v5727
      %v5815 = vmul.f32 %v5556, %v5727
      %v5816 = vmul.f32 %v5559, %v5727
      %v5817 = vmul.f32 %v5564, %v5727
      %v5818 = vmul.f32 %v5567, %v5727
      %v5819 = vmul.f32 %v5572, %v5727
      %v5820 = vmul.f32 %v5575, %v5727
      %v5821 = vmul.f32 %v5580, %v5727
      %v5822 = vmul.f32 %v5583, %v5727
      %v5823 = vmul.f32 %v5588, %v5727
      %v5824 = vmul.f32 %v5591, %v5727
      %v5825 = vmul.f32 %v5596, %v5727
      %v5826 = vmul.f32 %v5599, %v5727
      %v5827 = vmul.f32 %v5604, %v5727
      %v5828 = vmul.f32 %v5607, %v5727
      %v5829 = vmul.f32 %v5612, %v5727
      %v5830 = vmul.f32 %v5615, %v5727
      %v5831 = vmul.f32 %v5620, %v5727
      %v5832 = vmul.f32 %v5623, %v5727
      %v5833 = vmul.f32 %v5628, %v5727
      %v5834 = vmul.f32 %v5631, %v5727
      %v5835 = vmul.f32 %v5636, %v5727
      %v5836 = vmul.f32 %v5639, %v5727
      %v5837 = vmul.f32 %v5644, %v5727
      %v5838 = vmul.f32 %v5647, %v5727
      %v5839 = vmul.f32 %v5652, %v5727
      %v5840 = vmul.f32 %v5655, %v5727
      %v5841 = vmul.f32 %v5660, %v5727
      %v5842 = vmul.f32 %v5663, %v5727
      %v5843 = vmul.f32 %v5668, %v5727
      %v5844 = vmul.f32 %v5671, %v5727
      %v5845 = vmul.f32 %v5676, %v5727
      %v5846 = vmul.f32 %v5679, %v5727
      %v5847 = vmul.f32 %v5684, %v5727
      %v5848 = vmul.f32 %v5687, %v5727
      %v5849 = vmul.f32 %v5692, %v5727
      %v5850 = vmul.f32 %v5695, %v5727
      %v5851 = vmul.f32 %v5700, %v5727
      %v5852 = vmul.f32 %v5703, %v5727
      %v5853 = vmul.f32 %v5708, %v5727
      %v5854 = vmul.f32 %v5711, %v5727
      %v5855 = vmul.f32 %v5716, %v5727
      %v5856 = vmul.f32 %v5719, %v5727
      %v5857 = vld [vmem:[%s3] sm:$0x1]
      %v5859 = vlaneseq
      %v5860 = vshrl.u32 %v5859, 7
      %v5861 = vsub.s32 0, %v5860
      %v5862 = vrot.slane %v5857, %v5861
      %v5864 = vadd.f32 %v5729, %v5862
      %v5865 = vadd.f32 %v5730, %v5862
      %v5866 = vadd.f32 %v5731, %v5862
      %v5867 = vadd.f32 %v5732, %v5862
      %v5868 = vadd.f32 %v5733, %v5862
      %v5869 = vadd.f32 %v5734, %v5862
      %v5870 = vadd.f32 %v5735, %v5862
      %v5871 = vadd.f32 %v5736, %v5862
      %v5872 = vadd.f32 %v5737, %v5862
      %v5873 = vadd.f32 %v5738, %v5862
      %v5874 = vadd.f32 %v5739, %v5862
      %v5875 = vadd.f32 %v5740, %v5862
      %v5876 = vadd.f32 %v5741, %v5862
      %v5877 = vadd.f32 %v5742, %v5862
      %v5878 = vadd.f32 %v5743, %v5862
      %v5879 = vadd.f32 %v5744, %v5862
      %v5880 = vadd.f32 %v5745, %v5862
      %v5881 = vadd.f32 %v5746, %v5862
      %v5882 = vadd.f32 %v5747, %v5862
      %v5883 = vadd.f32 %v5748, %v5862
      %v5884 = vadd.f32 %v5749, %v5862
      %v5885 = vadd.f32 %v5750, %v5862
      %v5886 = vadd.f32 %v5751, %v5862
      %v5887 = vadd.f32 %v5752, %v5862
      %v5888 = vadd.f32 %v5753, %v5862
      %v5889 = vadd.f32 %v5754, %v5862
      %v5890 = vadd.f32 %v5755, %v5862
      %v5891 = vadd.f32 %v5756, %v5862
      %v5892 = vadd.f32 %v5757, %v5862
      %v5893 = vadd.f32 %v5758, %v5862
      %v5894 = vadd.f32 %v5759, %v5862
      %v5895 = vadd.f32 %v5760, %v5862
      %v5896 = vadd.f32 %v5761, %v5862
      %v5897 = vadd.f32 %v5762, %v5862
      %v5898 = vadd.f32 %v5763, %v5862
      %v5899 = vadd.f32 %v5764, %v5862
      %v5900 = vadd.f32 %v5765, %v5862
      %v5901 = vadd.f32 %v5766, %v5862
      %v5902 = vadd.f32 %v5767, %v5862
      %v5903 = vadd.f32 %v5768, %v5862
      %v5904 = vadd.f32 %v5769, %v5862
      %v5905 = vadd.f32 %v5770, %v5862
      %v5906 = vadd.f32 %v5771, %v5862
      %v5907 = vadd.f32 %v5772, %v5862
      %v5908 = vadd.f32 %v5773, %v5862
      %v5909 = vadd.f32 %v5774, %v5862
      %v5910 = vadd.f32 %v5775, %v5862
      %v5911 = vadd.f32 %v5776, %v5862
      %v5912 = vadd.f32 %v5777, %v5862
      %v5913 = vadd.f32 %v5778, %v5862
      %v5914 = vadd.f32 %v5779, %v5862
      %v5915 = vadd.f32 %v5780, %v5862
      %v5916 = vadd.f32 %v5781, %v5862
      %v5917 = vadd.f32 %v5782, %v5862
      %v5918 = vadd.f32 %v5783, %v5862
      %v5919 = vadd.f32 %v5784, %v5862
      %v5920 = vadd.f32 %v5785, %v5862
      %v5921 = vadd.f32 %v5786, %v5862
      %v5922 = vadd.f32 %v5787, %v5862
      %v5923 = vadd.f32 %v5788, %v5862
      %v5924 = vadd.f32 %v5789, %v5862
      %v5925 = vadd.f32 %v5790, %v5862
      %v5926 = vadd.f32 %v5791, %v5862
      %v5927 = vadd.f32 %v5792, %v5862
      %v5928 = vadd.f32 %v5793, %v5862
      %v5929 = vadd.f32 %v5794, %v5862
      %v5930 = vadd.f32 %v5795, %v5862
      %v5931 = vadd.f32 %v5796, %v5862
      %v5932 = vadd.f32 %v5797, %v5862
      %v5933 = vadd.f32 %v5798, %v5862
      %v5934 = vadd.f32 %v5799, %v5862
      %v5935 = vadd.f32 %v5800, %v5862
      %v5936 = vadd.f32 %v5801, %v5862
      %v5937 = vadd.f32 %v5802, %v5862
      %v5938 = vadd.f32 %v5803, %v5862
      %v5939 = vadd.f32 %v5804, %v5862
      %v5940 = vadd.f32 %v5805, %v5862
      %v5941 = vadd.f32 %v5806, %v5862
      %v5942 = vadd.f32 %v5807, %v5862
      %v5943 = vadd.f32 %v5808, %v5862
      %v5944 = vadd.f32 %v5809, %v5862
      %v5945 = vadd.f32 %v5810, %v5862
      %v5946 = vadd.f32 %v5811, %v5862
      %v5947 = vadd.f32 %v5812, %v5862
      %v5948 = vadd.f32 %v5813, %v5862
      %v5949 = vadd.f32 %v5814, %v5862
      %v5950 = vadd.f32 %v5815, %v5862
      %v5951 = vadd.f32 %v5816, %v5862
      %v5952 = vadd.f32 %v5817, %v5862
      %v5953 = vadd.f32 %v5818, %v5862
      %v5954 = vadd.f32 %v5819, %v5862
      %v5955 = vadd.f32 %v5820, %v5862
      %v5956 = vadd.f32 %v5821, %v5862
      %v5957 = vadd.f32 %v5822, %v5862
      %v5958 = vadd.f32 %v5823, %v5862
      %v5959 = vadd.f32 %v5824, %v5862
      %v5960 = vadd.f32 %v5825, %v5862
      %v5961 = vadd.f32 %v5826, %v5862
      %v5962 = vadd.f32 %v5827, %v5862
      %v5963 = vadd.f32 %v5828, %v5862
      %v5964 = vadd.f32 %v5829, %v5862
      %v5965 = vadd.f32 %v5830, %v5862
      %v5966 = vadd.f32 %v5831, %v5862
      %v5967 = vadd.f32 %v5832, %v5862
      %v5968 = vadd.f32 %v5833, %v5862
      %v5969 = vadd.f32 %v5834, %v5862
      %v5970 = vadd.f32 %v5835, %v5862
      %v5971 = vadd.f32 %v5836, %v5862
      %v5972 = vadd.f32 %v5837, %v5862
      %v5973 = vadd.f32 %v5838, %v5862
      %v5974 = vadd.f32 %v5839, %v5862
      %v5975 = vadd.f32 %v5840, %v5862
      %v5976 = vadd.f32 %v5841, %v5862
      %v5977 = vadd.f32 %v5842, %v5862
      %v5978 = vadd.f32 %v5843, %v5862
      %v5979 = vadd.f32 %v5844, %v5862
      %v5980 = vadd.f32 %v5845, %v5862
      %v5981 = vadd.f32 %v5846, %v5862
      %v5982 = vadd.f32 %v5847, %v5862
      %v5983 = vadd.f32 %v5848, %v5862
      %v5984 = vadd.f32 %v5849, %v5862
      %v5985 = vadd.f32 %v5850, %v5862
      %v5986 = vadd.f32 %v5851, %v5862
      %v5987 = vadd.f32 %v5852, %v5862
      %v5988 = vadd.f32 %v5853, %v5862
      %v5989 = vadd.f32 %v5854, %v5862
      %v5990 = vadd.f32 %v5855, %v5862
      %v5991 = vadd.f32 %v5856, %v5862
      %v5992 = vtanh.pop %v5864
      %v5993 = vtanh.pop %v5865
      %v5994 = vtanh.pop %v5866
      %v5995 = vtanh.pop %v5867
      %v5996 = vtanh.pop %v5868
      %v5997 = vtanh.pop %v5869
      %v5998 = vtanh.pop %v5870
      %v5999 = vtanh.pop %v5871
      %v6000 = vtanh.pop %v5872
      %v6001 = vtanh.pop %v5873
      %v6002 = vtanh.pop %v5874
      %v6003 = vtanh.pop %v5875
      %v6004 = vtanh.pop %v5876
      %v6005 = vtanh.pop %v5877
      %v6006 = vtanh.pop %v5878
      %v6007 = vtanh.pop %v5879
      %v6008 = vtanh.pop %v5880
      %v6009 = vtanh.pop %v5881
      %v6010 = vtanh.pop %v5882
      %v6011 = vtanh.pop %v5883
      %v6012 = vtanh.pop %v5884
      %v6013 = vtanh.pop %v5885
      %v6014 = vtanh.pop %v5886
      %v6015 = vtanh.pop %v5887
      %v6016 = vtanh.pop %v5888
      %v6017 = vtanh.pop %v5889
      %v6018 = vtanh.pop %v5890
      %v6019 = vtanh.pop %v5891
      %v6020 = vtanh.pop %v5892
      %v6021 = vtanh.pop %v5893
      %v6022 = vtanh.pop %v5894
      %v6023 = vtanh.pop %v5895
      %v6024 = vtanh.pop %v5896
      %v6025 = vtanh.pop %v5897
      %v6026 = vtanh.pop %v5898
      %v6027 = vtanh.pop %v5899
      %v6028 = vtanh.pop %v5900
      %v6029 = vtanh.pop %v5901
      %v6030 = vtanh.pop %v5902
      %v6031 = vtanh.pop %v5903
      %v6032 = vtanh.pop %v5904
      %v6033 = vtanh.pop %v5905
      %v6034 = vtanh.pop %v5906
      %v6035 = vtanh.pop %v5907
      %v6036 = vtanh.pop %v5908
      %v6037 = vtanh.pop %v5909
      %v6038 = vtanh.pop %v5910
      %v6039 = vtanh.pop %v5911
      %v6040 = vtanh.pop %v5912
      %v6041 = vtanh.pop %v5913
      %v6042 = vtanh.pop %v5914
      %v6043 = vtanh.pop %v5915
      %v6044 = vtanh.pop %v5916
      %v6045 = vtanh.pop %v5917
      %v6046 = vtanh.pop %v5918
      %v6047 = vtanh.pop %v5919
      %v6048 = vtanh.pop %v5920
      %v6049 = vtanh.pop %v5921
      %v6050 = vtanh.pop %v5922
      %v6051 = vtanh.pop %v5923
      %v6052 = vtanh.pop %v5924
      %v6053 = vtanh.pop %v5925
      %v6054 = vtanh.pop %v5926
      %v6055 = vtanh.pop %v5927
      %v6056 = vtanh.pop %v5928
      %v6057 = vtanh.pop %v5929
      %v6058 = vtanh.pop %v5930
      %v6059 = vtanh.pop %v5931
      %v6060 = vtanh.pop %v5932
      %v6061 = vtanh.pop %v5933
      %v6062 = vtanh.pop %v5934
      %v6063 = vtanh.pop %v5935
      %v6064 = vtanh.pop %v5936
      %v6065 = vtanh.pop %v5937
      %v6066 = vtanh.pop %v5938
      %v6067 = vtanh.pop %v5939
      %v6068 = vtanh.pop %v5940
      %v6069 = vtanh.pop %v5941
      %v6070 = vtanh.pop %v5942
      %v6071 = vtanh.pop %v5943
      %v6072 = vtanh.pop %v5944
      %v6073 = vtanh.pop %v5945
      %v6074 = vtanh.pop %v5946
      %v6075 = vtanh.pop %v5947
      %v6076 = vtanh.pop %v5948
      %v6077 = vtanh.pop %v5949
      %v6078 = vtanh.pop %v5950
      %v6079 = vtanh.pop %v5951
      %v6080 = vtanh.pop %v5952
      %v6081 = vtanh.pop %v5953
      %v6082 = vtanh.pop %v5954
      %v6083 = vtanh.pop %v5955
      %v6084 = vtanh.pop %v5956
      %v6085 = vtanh.pop %v5957
      %v6086 = vtanh.pop %v5958
      %v6087 = vtanh.pop %v5959
      %v6088 = vtanh.pop %v5960
      %v6089 = vtanh.pop %v5961
      %v6090 = vtanh.pop %v5962
      %v6091 = vtanh.pop %v5963
      %v6092 = vtanh.pop %v5964
      %v6093 = vtanh.pop %v5965
      %v6094 = vtanh.pop %v5966
      %v6095 = vtanh.pop %v5967
      %v6096 = vtanh.pop %v5968
      %v6097 = vtanh.pop %v5969
      %v6098 = vtanh.pop %v5970
      %v6099 = vtanh.pop %v5971
      %v6100 = vtanh.pop %v5972
      %v6101 = vtanh.pop %v5973
      %v6102 = vtanh.pop %v5974
      %v6103 = vtanh.pop %v5975
      %v6104 = vtanh.pop %v5976
      %v6105 = vtanh.pop %v5977
      %v6106 = vtanh.pop %v5978
      %v6107 = vtanh.pop %v5979
      %v6108 = vtanh.pop %v5980
      %v6109 = vtanh.pop %v5981
      %v6110 = vtanh.pop %v5982
      %v6111 = vtanh.pop %v5983
      %v6112 = vtanh.pop %v5984
      %v6113 = vtanh.pop %v5985
      %v6114 = vtanh.pop %v5986
      %v6115 = vtanh.pop %v5987
      %v6116 = vtanh.pop %v5988
      %v6117 = vtanh.pop %v5989
      %v6118 = vtanh.pop %v5990
      %v6119 = vtanh.pop %v5991
      %6120 = vst [vmem:[%s202] sm:$0xff] %v5992
      %6121 = vst [vmem:[%s202 + $0x8] sm:$0xff] %v5993
      %6122 = vst [vmem:[%s202 + $0x10] sm:$0xff] %v5994
      %6123 = vst [vmem:[%s202 + $0x18] sm:$0xff] %v5995
      %6124 = vst [vmem:[%s202 + $0x20] sm:$0xff] %v5996
      %6125 = vst [vmem:[%s202 + $0x28] sm:$0xff] %v5997
      %6126 = vst [vmem:[%s202 + $0x30] sm:$0xff] %v5998
      %6127 = vst [vmem:[%s202 + $0x38] sm:$0xff] %v5999
      %6128 = vst [vmem:[%s202 + $0x40] sm:$0xff] %v6000
      %6129 = vst [vmem:[%s202 + $0x48] sm:$0xff] %v6001
      %6130 = vst [vmem:[%s202 + $0x50] sm:$0xff] %v6002
      %6131 = vst [vmem:[%s202 + $0x58] sm:$0xff] %v6003
      %6132 = vst [vmem:[%s202 + $0x60] sm:$0xff] %v6004
      %6133 = vst [vmem:[%s202 + $0x68] sm:$0xff] %v6005
      %6134 = vst [vmem:[%s202 + $0x70] sm:$0xff] %v6006
      %6135 = vst [vmem:[%s202 + $0x78] sm:$0xff] %v6007
      %6136 = vst [vmem:[%s202 + $0x80] sm:$0xff] %v6008
      %6137 = vst [vmem:[%s202 + $0x88] sm:$0xff] %v6009
      %6138 = vst [vmem:[%s202 + $0x90] sm:$0xff] %v6010
      %6139 = vst [vmem:[%s202 + $0x98] sm:$0xff] %v6011
      %6140 = vst [vmem:[%s202 + $0xa0] sm:$0xff] %v6012
      %6141 = vst [vmem:[%s202 + $0xa8] sm:$0xff] %v6013
      %6142 = vst [vmem:[%s202 + $0xb0] sm:$0xff] %v6014
      %6143 = vst [vmem:[%s202 + $0xb8] sm:$0xff] %v6015
      %6144 = vst [vmem:[%s202 + $0xc0] sm:$0xff] %v6016
      %6145 = vst [vmem:[%s202 + $0xc8] sm:$0xff] %v6017
      %6146 = vst [vmem:[%s202 + $0xd0] sm:$0xff] %v6018
      %6147 = vst [vmem:[%s202 + $0xd8] sm:$0xff] %v6019
      %6148 = vst [vmem:[%s202 + $0xe0] sm:$0xff] %v6020
      %6149 = vst [vmem:[%s202 + $0xe8] sm:$0xff] %v6021
      %6150 = vst [vmem:[%s202 + $0xf0] sm:$0xff] %v6022
      %6151 = vst [vmem:[%s202 + $0xf8] sm:$0xff] %v6023
      %6152 = vst [vmem:[%s202 + $0x100] sm:$0xff] %v6024
      %6153 = vst [vmem:[%s202 + $0x108] sm:$0xff] %v6025
      %6154 = vst [vmem:[%s202 + $0x110] sm:$0xff] %v6026
      %6155 = vst [vmem:[%s202 + $0x118] sm:$0xff] %v6027
      %6156 = vst [vmem:[%s202 + $0x120] sm:$0xff] %v6028
      %6157 = vst [vmem:[%s202 + $0x128] sm:$0xff] %v6029
      %6158 = vst [vmem:[%s202 + $0x130] sm:$0xff] %v6030
      %6159 = vst [vmem:[%s202 + $0x138] sm:$0xff] %v6031
      %6160 = vst [vmem:[%s202 + $0x140] sm:$0xff] %v6032
      %6161 = vst [vmem:[%s202 + $0x148] sm:$0xff] %v6033
      %6162 = vst [vmem:[%s202 + $0x150] sm:$0xff] %v6034
      %6163 = vst [vmem:[%s202 + $0x158] sm:$0xff] %v6035
      %6164 = vst [vmem:[%s202 + $0x160] sm:$0xff] %v6036
      %6165 = vst [vmem:[%s202 + $0x168] sm:$0xff] %v6037
      %6166 = vst [vmem:[%s202 + $0x170] sm:$0xff] %v6038
      %6167 = vst [vmem:[%s202 + $0x178] sm:$0xff] %v6039
      %6168 = vst [vmem:[%s202 + $0x180] sm:$0xff] %v6040
      %6169 = vst [vmem:[%s202 + $0x188] sm:$0xff] %v6041
      %6170 = vst [vmem:[%s202 + $0x190] sm:$0xff] %v6042
      %6171 = vst [vmem:[%s202 + $0x198] sm:$0xff] %v6043
      %6172 = vst [vmem:[%s202 + $0x1a0] sm:$0xff] %v6044
      %6173 = vst [vmem:[%s202 + $0x1a8] sm:$0xff] %v6045
      %6174 = vst [vmem:[%s202 + $0x1b0] sm:$0xff] %v6046
      %6175 = vst [vmem:[%s202 + $0x1b8] sm:$0xff] %v6047
      %6176 = vst [vmem:[%s202 + $0x1c0] sm:$0xff] %v6048
      %6177 = vst [vmem:[%s202 + $0x1c8] sm:$0xff] %v6049
      %6178 = vst [vmem:[%s202 + $0x1d0] sm:$0xff] %v6050
      %6179 = vst [vmem:[%s202 + $0x1d8] sm:$0xff] %v6051
      %6180 = vst [vmem:[%s202 + $0x1e0] sm:$0xff] %v6052
      %6181 = vst [vmem:[%s202 + $0x1e8] sm:$0xff] %v6053
      %6182 = vst [vmem:[%s202 + $0x1f0] sm:$0xff] %v6054
      %6183 = vst [vmem:[%s202 + $0x1f8] sm:$0xff] %v6055
      %6184 = vst [vmem:[%s202 + $0x200] sm:$0xff] %v6056
      %6185 = vst [vmem:[%s202 + $0x208] sm:$0xff] %v6057
      %6186 = vst [vmem:[%s202 + $0x210] sm:$0xff] %v6058
      %6187 = vst [vmem:[%s202 + $0x218] sm:$0xff] %v6059
      %6188 = vst [vmem:[%s202 + $0x220] sm:$0xff] %v6060
      %6189 = vst [vmem:[%s202 + $0x228] sm:$0xff] %v6061
      %6190 = vst [vmem:[%s202 + $0x230] sm:$0xff] %v6062
      %6191 = vst [vmem:[%s202 + $0x238] sm:$0xff] %v6063
      %6192 = vst [vmem:[%s202 + $0x240] sm:$0xff] %v6064
      %6193 = vst [vmem:[%s202 + $0x248] sm:$0xff] %v6065
      %6194 = vst [vmem:[%s202 + $0x250] sm:$0xff] %v6066
      %6195 = vst [vmem:[%s202 + $0x258] sm:$0xff] %v6067
      %6196 = vst [vmem:[%s202 + $0x260] sm:$0xff] %v6068
      %6197 = vst [vmem:[%s202 + $0x268] sm:$0xff] %v6069
      %6198 = vst [vmem:[%s202 + $0x270] sm:$0xff] %v6070
      %6199 = vst [vmem:[%s202 + $0x278] sm:$0xff] %v6071
      %6200 = vst [vmem:[%s202 + $0x280] sm:$0xff] %v6072
      %6201 = vst [vmem:[%s202 + $0x288] sm:$0xff] %v6073
      %6202 = vst [vmem:[%s202 + $0x290] sm:$0xff] %v6074
      %6203 = vst [vmem:[%s202 + $0x298] sm:$0xff] %v6075
      %6204 = vst [vmem:[%s202 + $0x2a0] sm:$0xff] %v6076
      %6205 = vst [vmem:[%s202 + $0x2a8] sm:$0xff] %v6077
      %6206 = vst [vmem:[%s202 + $0x2b0] sm:$0xff] %v6078
      %6207 = vst [vmem:[%s202 + $0x2b8] sm:$0xff] %v6079
      %6208 = vst [vmem:[%s202 + $0x2c0] sm:$0xff] %v6080
      %6209 = vst [vmem:[%s202 + $0x2c8] sm:$0xff] %v6081
      %6210 = vst [vmem:[%s202 + $0x2d0] sm:$0xff] %v6082
      %6211 = vst [vmem:[%s202 + $0x2d8] sm:$0xff] %v6083
      %6212 = vst [vmem:[%s202 + $0x2e0] sm:$0xff] %v6084
      %6213 = vst [vmem:[%s202 + $0x2e8] sm:$0xff] %v6085
      %6214 = vst [vmem:[%s202 + $0x2f0] sm:$0xff] %v6086
      %6215 = vst [vmem:[%s202 + $0x2f8] sm:$0xff] %v6087
      %6216 = vst [vmem:[%s202 + $0x300] sm:$0xff] %v6088
      %6217 = vst [vmem:[%s202 + $0x308] sm:$0xff] %v6089
      %6218 = vst [vmem:[%s202 + $0x310] sm:$0xff] %v6090
      %6219 = vst [vmem:[%s202 + $0x318] sm:$0xff] %v6091
      %6220 = vst [vmem:[%s202 + $0x320] sm:$0xff] %v6092
      %6221 = vst [vmem:[%s202 + $0x328] sm:$0xff] %v6093
      %6222 = vst [vmem:[%s202 + $0x330] sm:$0xff] %v6094
      %6223 = vst [vmem:[%s202 + $0x338] sm:$0xff] %v6095
      %6224 = vst [vmem:[%s202 + $0x340] sm:$0xff] %v6096
      %6225 = vst [vmem:[%s202 + $0x348] sm:$0xff] %v6097
      %6226 = vst [vmem:[%s202 + $0x350] sm:$0xff] %v6098
      %6227 = vst [vmem:[%s202 + $0x358] sm:$0xff] %v6099
      %6228 = vst [vmem:[%s202 + $0x360] sm:$0xff] %v6100
      %6229 = vst [vmem:[%s202 + $0x368] sm:$0xff] %v6101
      %6230 = vst [vmem:[%s202 + $0x370] sm:$0xff] %v6102
      %6231 = vst [vmem:[%s202 + $0x378] sm:$0xff] %v6103
      %6232 = vst [vmem:[%s202 + $0x380] sm:$0xff] %v6104
      %6233 = vst [vmem:[%s202 + $0x388] sm:$0xff] %v6105
      %6234 = vst [vmem:[%s202 + $0x390] sm:$0xff] %v6106
      %6235 = vst [vmem:[%s202 + $0x398] sm:$0xff] %v6107
      %6236 = vst [vmem:[%s202 + $0x3a0] sm:$0xff] %v6108
      %6237 = vst [vmem:[%s202 + $0x3a8] sm:$0xff] %v6109
      %6238 = vst [vmem:[%s202 + $0x3b0] sm:$0xff] %v6110
      %6239 = vst [vmem:[%s202 + $0x3b8] sm:$0xff] %v6111
      %6240 = vst [vmem:[%s202 + $0x3c0] sm:$0xff] %v6112
      %6241 = vst [vmem:[%s202 + $0x3c8] sm:$0xff] %v6113
      %6242 = vst [vmem:[%s202 + $0x3d0] sm:$0xff] %v6114
      %6243 = vst [vmem:[%s202 + $0x3d8] sm:$0xff] %v6115
      %6244 = vst [vmem:[%s202 + $0x3e0] sm:$0xff] %v6116
      %6245 = vst [vmem:[%s202 + $0x3e8] sm:$0xff] %v6117
      %6246 = vst [vmem:[%s202 + $0x3f0] sm:$0xff] %v6118
      %6247 = vst [vmem:[%s202 + $0x3f8] sm:$0xff] %v6119
      %s6248 = smul.u32 128, %s15
      %p6249 = scmp.lt.s32.totalorder %s6248, 255
      %s6250 = scalar_select %p6249, %s6248, 255
      %s6251 = smul.addr %s6250, 8
      %s6252 = scalar_lea.vmem %s4, %s6251
      // Predicated region
      $region37: #{generator_apply.23} parent=35 // pred_check
        %p6253 = pneg %p122
      $region38: #{generator_apply.23} parent=35 // pred_check_branch
        %6255 = sbr.rel (%p6253) target = $region40
      $region39: #{generator_apply.23} parent=35 // pred_region
        %s6256 = smul.u32 128, %s15
      $region40: #{generator_apply.23} parent=35 // pred_fallthru
        _
    $region36: #{generator_apply.23} parent=5 // pred_fallthru
      _
    %p6257 = scmp.le.s32.totalorder 2, %s10
    // Predicated region
    $region41: #{generator_apply.23} parent=5 // pred_check
      %p6258 = pneg %p6257
    $region42: #{generator_apply.23} parent=5 // pred_check_branch
      %6260 = sbr.rel (%p6258) target = $region44
    $region43: #{generator_apply.23} parent=5 // pred_region
      %s6261 = ssub.s32 %s10, 2
      // Predicated region
      $region45: #{generator_apply.23} parent=43 // pred_check
        %p6262 = pneg %p128
      $region46: #{generator_apply.23} parent=43 // pred_check_branch
        %6264 = sbr.rel (%p6262) target = $region48
      $region47: #{generator_apply.23} parent=43 // pred_region
        %s6265 = smul.u32 128, %s16
        %p6266 = scmp.lt.s32.totalorder %s6265, 255
        %s6267 = scalar_select %p6266, %s6265, 255
        %s6268 = smul.addr %s6267, 8
        %s6269 = scalar_lea.vmem %s4, %s6268
      $region48: #{generator_apply.23} parent=43 // pred_fallthru
        _
    $region44: #{generator_apply.23} parent=5 // pred_fallthru
      _
  $region6: #{generator_apply.23} parent=0 // loop_footer
    %s14 = sadd.s32 1, %s10
  $region7: #{generator_apply.23} parent=0 // loop_footer_branch
    %9 = sbr.rel target = $region3
  $region8: #{generator_apply.23} parent=0 // loop_exit
    _

</llo_original>
